<compile_context>
chip_gen: v6e
topology: v6e:2x2x1
jax: 0.10.0
libtpu: 0.0.40
codegen_flags: <defaults>
</compile_context>

<pallas_src>
import functools

import jax
import jax.numpy as jnp
from jax.experimental import pallas as pl
from jax.experimental.pallas import tpu as pltpu

EPS = 1e-3              # init_bn sets BatchNorm eps = 0.001
DTYPE = jnp.bfloat16    # activation / weight storage dtype (f32 accumulation)
_TM_MM = 512            # matmul row-tile cap
_TM_POOL = 1024         # pool row-tile cap


# ----------------------------------------------------------------------------
# Pallas kernels
# ----------------------------------------------------------------------------
def _matmul_kernel(*refs, act, n_in):
    """sum_i xs[i] @ ws[i] + bias (f32 accumulate), optional SiLU epilogue."""
    xs = refs[:n_in]
    ws = refs[n_in:2 * n_in]
    b_ref = refs[2 * n_in]
    o_ref = refs[2 * n_in + 1]
    acc = jnp.dot(xs[0][...], ws[0][...], preferred_element_type=jnp.float32)
    for x_r, w_r in zip(xs[1:], ws[1:]):
        acc = acc + jnp.dot(x_r[...], w_r[...],
                            preferred_element_type=jnp.float32)
    acc = acc + b_ref[...]
    if act == "silu":
        acc = acc * jax.nn.sigmoid(acc)
    o_ref[...] = acc.astype(o_ref.dtype)


def matmul_bias_act(xs, ws, bias, act, out_dtype=DTYPE):
    """Fused (multi-input) matmul + bias + activation, tiled over rows.

    Passing several (M, Ki) inputs with their (Ki, Cout) weight row-blocks
    implements `concat(xs, -1) @ W` without ever materializing the concat.
    """
    M = xs[0].shape[0]
    cout = ws[0].shape[1]
    tm = M if M <= _TM_MM else _TM_MM
    in_specs = [pl.BlockSpec((tm, x.shape[1]), lambda m: (m, 0)) for x in xs]
    in_specs += [pl.BlockSpec((w.shape[0], cout), lambda m: (0, 0)) for w in ws]
    in_specs += [pl.BlockSpec((1, cout), lambda m: (0, 0))]
    return pl.pallas_call(
        functools.partial(_matmul_kernel, act=act, n_in=len(xs)),
        out_shape=jax.ShapeDtypeStruct((M, cout), out_dtype),
        grid=(pl.cdiv(M, tm),),
        in_specs=in_specs,
        out_specs=pl.BlockSpec((tm, cout), lambda m: (m, 0)),
        compiler_params=pltpu.CompilerParams(dimension_semantics=("parallel",)),
    )(*xs, *ws, bias.reshape(1, cout))


def _conv_s1_kernel(*refs, act, k, ow, cin, has_res):
    """Fused im2col + matmul for a stride-1 KxK conv (one output row / step).

    The whole zero-padded image of one batch element sits in VMEM (same block
    revisited across all rows of the image -> one HBM read); the k*k taps are
    accumulated as shifted (OW, Cin) x (Cin, Cout) matmuls in f32, and bias,
    SiLU and (optionally) a residual add are fused into the epilogue.
    """
    if has_res:
        x_ref, w_ref, b_ref, r_ref, o_ref = refs
    else:
        x_ref, w_ref, b_ref, o_ref = refs
        r_ref = None
    oh = pl.program_id(1)
    cout = o_ref.shape[-1]
    w_all = w_ref[...]                                    # (k*k*cin, cout)
    acc = jnp.zeros((ow, cout), jnp.float32)
    for i in range(k):
        row = x_ref[0, oh + i, :, :]                      # (Wp, cin)
        for j in range(k):
            tap = i * k + j
            acc = acc + jnp.dot(row[j:j + ow, :],
                                w_all[tap * cin:(tap + 1) * cin, :],
                                preferred_element_type=jnp.float32)
    acc = acc + b_ref[...]
    if act == "silu":
        acc = acc * jax.nn.sigmoid(acc)
    if has_res:
        acc = acc + r_ref[0, 0, :, :].astype(jnp.float32)
    o_ref[...] = acc[None, None].astype(o_ref.dtype)


def conv_s1_fused(x, p, act, residual=None):
    k, pad, cin, cout = p["k"], p["pad"], p["cin"], p["cout"]
    N, H, W, _ = x.shape
    x_pad = jnp.pad(x, ((0, 0), (pad, pad), (pad, pad), (0, 0)))
    Hp, Wp = H + 2 * pad, W + 2 * pad
    OH, OW = Hp - k + 1, Wp - k + 1
    has_res = residual is not None
    in_specs = [
        pl.BlockSpec((1, Hp, Wp, cin), lambda n, r: (n, 0, 0, 0)),
        pl.BlockSpec((k * k * cin, cout), lambda n, r: (0, 0)),
        pl.BlockSpec((1, cout), lambda n, r: (0, 0)),
    ]
    args = [x_pad, p["w"], p["b"].reshape(1, cout)]
    if has_res:
        in_specs.append(pl.BlockSpec((1, 1, OW, cout),
                                     lambda n, r: (n, r, 0, 0)))
        args.append(residual)
    return pl.pallas_call(
        functools.partial(_conv_s1_kernel, act=act, k=k, ow=OW, cin=cin,
                          has_res=has_res),
        out_shape=jax.ShapeDtypeStruct((N, OH, OW, cout), DTYPE),
        grid=(N, OH),
        in_specs=in_specs,
        out_specs=pl.BlockSpec((1, 1, OW, cout), lambda n, r: (n, r, 0, 0)),
        compiler_params=pltpu.CompilerParams(
            dimension_semantics=("parallel", "arbitrary")),
    )(*args)


def _pool_kernel(x_ref, o_ref, *, op):
    x = x_ref[...]
    if op == "max":
        o_ref[...] = jnp.max(x, axis=1).astype(o_ref.dtype)
    else:
        o_ref[...] = jnp.mean(x.astype(jnp.float32), axis=1).astype(o_ref.dtype)


def pool_reduce(patches, op):
    """(M, R, C) -> (M, C) window reduction, tiled over M (parallel grid)."""
    M, R, C = patches.shape
    tm = M if M <= _TM_POOL else _TM_POOL
    return pl.pallas_call(
        functools.partial(_pool_kernel, op=op),
        out_shape=jax.ShapeDtypeStruct((M, C), patches.dtype),
        grid=(pl.cdiv(M, tm),),
        in_specs=[pl.BlockSpec((tm, R, C), lambda m: (m, 0, 0))],
        out_specs=pl.BlockSpec((tm, C), lambda m: (m, 0)),
        compiler_params=pltpu.CompilerParams(dimension_semantics=("parallel",)),
    )(patches)


# ----------------------------------------------------------------------------
# JAX glue: im2col patch extraction (only for strided convs and small pools)
# ----------------------------------------------------------------------------
def im2col(x, ksize, stride, pad, pad_value=0.0):
    kh, kw = ksize
    sh, sw = stride
    ph, pw = pad
    N, H, W, C = x.shape
    if ph or pw:
        x = jnp.pad(x, ((0, 0), (ph, ph), (pw, pw), (0, 0)),
                    constant_values=pad_value)
    Hp, Wp = H + 2 * ph, W + 2 * pw
    OH = (Hp - kh) // sh + 1
    OW = (Wp - kw) // sw + 1
    cols = []
    for i in range(kh):
        for j in range(kw):
            cols.append(x[:, i:i + sh * (OH - 1) + 1:sh,
                          j:j + sw * (OW - 1) + 1:sw, :])
    patches = jnp.stack(cols, axis=3)      # (N, OH, OW, kh*kw, C)
    return patches, OH, OW


# ----------------------------------------------------------------------------
# Conv / pool wrappers (all heavy math in the Pallas kernels above)
# ----------------------------------------------------------------------------
def conv_im2col(x, p, act):
    """Generic (strided) conv: JAX im2col + fused Pallas matmul."""
    # TODO(synk): strided convs still materialize patches in HBM (~2.25x of
    # the input since the output is 4x smaller spatially); acceptable here.
    k, s, pad, cin, cout = p["k"], p["s"], p["pad"], p["cin"], p["cout"]
    N = x.shape[0]
    patches, OH, OW = im2col(x, (k, k), (s, s), (pad, pad), 0.0)
    flat = patches.reshape(N * OH * OW, k * k * cin)
    y = matmul_bias_act([flat], [p["w"]], p["b"], act)
    return y.reshape(N, OH, OW, cout)


def merge_conv1x1(xs, p, act=None):
    """1x1 conv over the (virtual) channel-concat of xs — no HBM concat."""
    act = p["act"] if act is None else act
    N, H, W, _ = xs[0].shape
    cout = p["cout"]
    flats, w_parts, off = [], [], 0
    for xi in xs:
        ci = xi.shape[-1]
        flats.append(xi.reshape(N * H * W, ci))
        w_parts.append(p["w"][off:off + ci, :])
        off += ci
    y = matmul_bias_act(flats, w_parts, p["b"], act)
    return y.reshape(N, H, W, cout)


def conv_layer(x, p, act=None, residual=None):
    act = p["act"] if act is None else act
    if p["k"] == 1 and p["s"] == 1:
        y = merge_conv1x1([x], p, act)
    elif p["s"] == 1:
        return conv_s1_fused(x, p, act, residual)   # residual fused in-kernel
    else:
        y = conv_im2col(x, p, act)
    if residual is not None:
        y = y + residual        # not reached with the GELAN block structure
    return y


def pool2d(x, ksize, stride, pad, op):
    # AvgPool in GELAN always has pad=0, so count_include_pad is irrelevant.
    pad_value = 0.0 if op == "mean" else -jnp.inf
    N, _, _, C = x.shape
    patches, OH, OW = im2col(x, ksize, stride, pad, pad_value)
    flat = patches.reshape(N * OH * OW, ksize[0] * ksize[1], C)
    return pool_reduce(flat, op).reshape(N, OH, OW, C)


def maxpool5_s1(x):
    # 5x5 / stride 1 / pad 2 max pool done separably (exact for max):
    # avoids the 25x window inflation of a direct im2col.
    x = pool2d(x, (5, 1), (1, 1), (2, 0), "max")
    return pool2d(x, (1, 5), (1, 1), (0, 2), "max")


def global_avgpool(x):
    N, H, W, C = x.shape
    return pool_reduce(x.reshape(N, H * W, C), "mean")  # AdaptiveAvgPool2d(1)+flatten


# ----------------------------------------------------------------------------
# Parameter construction (deterministic, synthetic; BN folded into conv)
# ----------------------------------------------------------------------------
_PARAM_KEY = [jax.random.PRNGKey(42)]


def _next_key():
    k, sub = jax.random.split(_PARAM_KEY[0])
    _PARAM_KEY[0] = k
    return sub


def _folded_conv_f32(cin, cout, k):
    """Random Conv2d(k, bias=False) + BatchNorm(eps=1e-3) folded to matmul form."""
    w = jax.random.normal(_next_key(), (cout, cin, k, k), jnp.float32)
    w = w * (1.0 / jnp.sqrt(jnp.float32(cin * k * k)))
    gamma = 1.0 + 0.1 * jax.random.normal(_next_key(), (cout,), jnp.float32)
    beta = 0.05 * jax.random.normal(_next_key(), (cout,), jnp.float32)
    mean = 0.05 * jax.random.normal(_next_key(), (cout,), jnp.float32)
    var = jnp.abs(1.0 + 0.1 * jax.random.normal(_next_key(), (cout,), jnp.float32))
    scale = gamma / jnp.sqrt(var + EPS)
    w_f = w * scale[:, None, None, None]
    b_f = beta - mean * scale
    # (Cout,Cin,KH,KW) -> (KH,KW,Cin,Cout) -> (KH*KW*Cin, Cout); tap-major order.
    w_mat = jnp.transpose(w_f, (2, 3, 1, 0)).reshape(k * k * cin, cout)
    return w_mat, b_f


def make_conv(cin, cout, k, s, act="silu"):
    """ConvLayer = Conv2d(k, s, pad=k//2, bias=False) + BN(eps=1e-3) + act."""
    w_mat, b = _folded_conv_f32(cin, cout, k)
    return dict(w=w_mat.astype(DTYPE), b=b, k=k, s=s, pad=k // 2, act=act,
                cin=cin, cout=cout)


def make_repconvn(c1, c2):
    # RepConvN training branches: 3x3 conv+BN and 1x1 conv+BN summed, then SiLU.
    # Exact reparameterization into one 3x3 conv (1x1 folded into center tap),
    # so the branch add + SiLU happen in the conv kernel epilogue.
    w3, b3 = _folded_conv_f32(c1, c2, 3)
    w1, b1 = _folded_conv_f32(c1, c2, 1)
    center = 4 * c1                      # tap (1,1) of the 3x3 kernel
    w3 = w3.at[center:center + c1, :].add(w1)
    return dict(w=w3.astype(DTYPE), b=b3 + b1, k=3, s=1, pad=1, act="silu",
                cin=c1, cout=c2)


def make_repnbottleneck(c1, c2, shortcut):
    return dict(rep=make_repconvn(c1, c2),
                cv2=make_conv(c2, c2, 3, 1),
                add=bool(shortcut and c1 == c2))


def make_repncsp(c1, c2, n, shortcut):
    c_ = int(c2 * 0.5)
    return dict(cv1=make_conv(c1, c_, 1, 1),
                cv2=make_conv(c1, c_, 1, 1),
                cv3=make_conv(2 * c_, c2, 1, 1),
                m=[make_repnbottleneck(c_, c_, shortcut) for _ in range(n)])


def make_elan(cin, cout, part, use_identity, layer_type, n=1):
    half = part // 2
    p = dict(layer_type=layer_type, cv1=make_conv(cin, part, 1, 1),
             cv4=make_conv(part + 2 * half, cout, 1, 1))
    for name in ("cv2", "cv3"):
        if layer_type == "basic":
            p[name] = [make_conv(half, half, 3, 1)]
        else:
            p[name] = [make_repncsp(half, half, n, use_identity),
                       make_conv(half, half, 3, 1)]
    return p


def make_sppelan(cin, cout, hidden):
    return dict(cv1=make_conv(cin, hidden, 1, 1),
                cv5=make_conv(4 * hidden, cout, 1, 1))


def make_aconv(cin, cout):
    return dict(cv1=make_conv(cin, cout, 3, 2))


def make_adown(cin, cout):
    c = cout // 2
    return dict(cv1=make_conv(cin // 2, c, 3, 2),
                cv2=make_conv(cin // 2, c, 1, 1))


def make_gelan(stem_out, stem_k, stem_s, stage_params):
    params = dict(stem=make_conv(3, stem_out, stem_k, stem_s), stages=[])
    prev = stem_out
    for stage in stage_params:
        sp = []
        for blk in stage:
            btype, cout = blk[0].lower(), blk[1]
            if btype == "conv":
                sp.append(("conv", make_conv(prev, cout, blk[2], blk[3])))
            elif btype == "elan":
                sp.append(("elan", make_elan(prev, cout, blk[2], blk[3], "basic")))
            elif btype == "repncspelan":
                sp.append(("repncspelan",
                           make_elan(prev, cout, blk[2], blk[3], "repncsp", blk[4])))
            elif btype == "sppelan":
                sp.append(("sppelan", make_sppelan(prev, cout, blk[2])))
            elif btype == "aconv":
                sp.append(("aconv", make_aconv(prev, cout)))
            elif btype == "adown":
                sp.append(("adown", make_adown(prev, cout)))
            else:
                raise ValueError(f"Unknown block type: {btype}")
            prev = cout
        params["stages"].append(sp)
    return params


# ----------------------------------------------------------------------------
# Block forward passes
# ----------------------------------------------------------------------------
def repnbottleneck_forward(x, p):
    y = conv_layer(x, p["rep"])                                # fused RepConvN
    return conv_layer(y, p["cv2"], residual=x if p["add"] else None)


def repncsp_forward(x, p):
    a = conv_layer(x, p["cv1"])
    for bp in p["m"]:
        a = repnbottleneck_forward(a, bp)
    b = conv_layer(x, p["cv2"])
    return merge_conv1x1([a, b], p["cv3"])


def elan_forward(x, p):
    y0 = conv_layer(x, p["cv1"])
    half = y0.shape[-1] // 2
    branches = [y0]               # y0 == concat of its own two chunks
    z = y0[..., half:]
    for name in ("cv2", "cv3"):
        if p["layer_type"] == "basic":
            z = conv_layer(z, p[name][0])
        else:
            z = repncsp_forward(z, p[name][0])
            z = conv_layer(z, p[name][1])
        branches.append(z)
    return merge_conv1x1(branches, p["cv4"])


def sppelan_forward(x, p):
    ys = [conv_layer(x, p["cv1"])]
    for _ in range(3):
        ys.append(maxpool5_s1(ys[-1]))
    return merge_conv1x1(ys, p["cv5"])


def aconv_forward(x, p):
    x = pool2d(x, (2, 2), (1, 1), (0, 0), "mean")
    return conv_layer(x, p["cv1"])


def adown_forward(x, p):
    x = pool2d(x, (2, 2), (1, 1), (0, 0), "mean")
    c = x.shape[-1]
    x1, x2 = x[..., :c // 2], x[..., c // 2:]
    x1 = conv_layer(x1, p["cv1"])
    x2 = pool2d(x2, (3, 3), (2, 2), (1, 1), "max")
    x2 = conv_layer(x2, p["cv2"])
    return jnp.concatenate([x1, x2], axis=-1)


_BLOCK_FWD = {
    "conv": conv_layer,
    "elan": elan_forward,
    "repncspelan": elan_forward,
    "sppelan": sppelan_forward,
    "aconv": aconv_forward,
    "adown": adown_forward,
}


def gelan_forward(x_nchw, params):
    # task == 'classification' -> no intermediate features; return last_feature.
    x = jnp.transpose(x_nchw, (0, 2, 3, 1)).astype(DTYPE)    # NCHW -> NHWC, bf16
    x = conv_layer(x, params["stem"])
    for stage in params["stages"]:
        for btype, p in stage:
            x = _BLOCK_FWD[btype](x, p)
    return global_avgpool(x).astype(jnp.float32)   # (N, feature_dim)


# ----------------------------------------------------------------------------
if __name__ == "__main__":
    # Small GELAN config exercising every block type.
    stage_params = [
        [["conv", 32, 3, 2], ["elan", 32, 32, False]],
        [["aconv", 48], ["repncspelan", 48, 32, True, 1]],
        [["adown", 64], ["sppelan", 64, 16]],
    ]
    params = make_gelan(stem_out=16, stem_k=3, stem_s=2, stage_params=stage_params)

    key = jax.random.PRNGKey(0)
    x = jax.random.normal(key, (2, 3, 32, 32), jnp.float32)  # PyTorch NCHW input

    fwd = jax.jit(lambda inp: gelan_forward(inp, params))
    out = jax.block_until_ready(fwd(x))
    assert out.shape == (2, 64), out.shape
    assert bool(jnp.all(jnp.isfinite(out)))
    print("KERNEL_OK")
</pallas_src>

<mosaic_0001>
module attributes {stable_mosaic.version = 11 : i64} {
  func.func @_matmul_kernel(%arg0: i32, %arg1: memref<512x27xbf16, #tpu.memory_space<vmem>>, %arg2: memref<27x16xbf16, #tpu.memory_space<vmem>>, %arg3: memref<1x16xf32, #tpu.memory_space<vmem>>, %arg4: memref<512x16xbf16, #tpu.memory_space<vmem>>) attributes {dimension_semantics = [#tpu.dimension_semantics<parallel>], iteration_bounds = array<i64: 1>, scalar_prefetch = 0 : i64, scratch_operands = 0 : i64, tpu.core_type = #tpu.core_type<tc>, window_params = [{transform_indices = @transform_0, window_bounds = array<i64: 512, 27>}, {pipeline_mode = #tpu.pipeline_mode<synchronous>, transform_indices = @transform_1, window_bounds = array<i64: 27, 16>}, {pipeline_mode = #tpu.pipeline_mode<synchronous>, transform_indices = @transform_2, window_bounds = array<i64: 1, 16>}, {transform_indices = @transform_3, window_bounds = array<i64: 512, 16>}]} {
    %c0 = arith.constant 0 : index
    %c0_0 = arith.constant 0 : index
    %0 = vector.load %arg1[%c0, %c0_0] : memref<512x27xbf16, #tpu.memory_space<vmem>>, vector<512x27xbf16>
    %c0_1 = arith.constant 0 : index
    %c0_2 = arith.constant 0 : index
    %1 = vector.load %arg2[%c0_1, %c0_2] : memref<27x16xbf16, #tpu.memory_space<vmem>>, vector<27x16xbf16>
    %cst = arith.constant dense<0.000000e+00> : vector<512x16xf32>
    %2 = tpu.matmul %0, %1, %cst {dimension_numbers = #tpu.dot_dimension_numbers<[1], [0], [0], [1], [0, 0, 1, 1], [], []>} : vector<512x27xbf16>, vector<27x16xbf16>, vector<512x16xf32> -> vector<512x16xf32>
    %c0_3 = arith.constant 0 : index
    %c0_4 = arith.constant 0 : index
    %3 = vector.load %arg3[%c0_3, %c0_4] : memref<1x16xf32, #tpu.memory_space<vmem>>, vector<1x16xf32>
    %4 = vector.broadcast %3 : vector<1x16xf32> to vector<512x16xf32>
    %5 = arith.addf %2, %4 : vector<512x16xf32>
    %6 = arith.negf %5 : vector<512x16xf32>
    %7 = math.exp %6 : vector<512x16xf32>
    %cst_5 = arith.constant 1.000000e+00 : f32
    %8 = vector.broadcast %cst_5 : f32 to vector<512x16xf32>
    %9 = arith.addf %8, %7 : vector<512x16xf32>
    %10 = arith.divf %8, %9 : vector<512x16xf32>
    %11 = arith.mulf %5, %10 : vector<512x16xf32>
    %12 = arith.truncf %11 : vector<512x16xf32> to vector<512x16xbf16>
    %c0_6 = arith.constant 0 : index
    %c0_7 = arith.constant 0 : index
    %13 = vector.load %arg4[%c0_6, %c0_7] : memref<512x16xbf16, #tpu.memory_space<vmem>>, vector<512x16xbf16>
    tpu.vector_store %arg4[%c0_6, %c0_7], %12 {strides = array<i32>} : memref<512x16xbf16, #tpu.memory_space<vmem>>, vector<512x16xbf16>,
    return
  }
  func.func @transform_0(%arg0: i32) -> (i32, i32) {
    %c0_i32 = arith.constant 0 : i32
    %c0_i32_0 = arith.constant 0 : i32
    return %arg0, %c0_i32 : i32, i32
  }
  func.func @transform_1(%arg0: i32) -> (i32, i32) {
    %c0_i32 = arith.constant 0 : i32
    %c0_i32_0 = arith.constant 0 : i32
    %c0_i32_1 = arith.constant 0 : i32
    return %c0_i32, %c0_i32_0 : i32, i32
  }
  func.func @transform_2(%arg0: i32) -> (i32, i32) {
    %c0_i32 = arith.constant 0 : i32
    %c0_i32_0 = arith.constant 0 : i32
    %c0_i32_1 = arith.constant 0 : i32
    return %c0_i32, %c0_i32_0 : i32, i32
  }
  func.func @transform_3(%arg0: i32) -> (i32, i32) {
    %c0_i32 = arith.constant 0 : i32
    %c0_i32_0 = arith.constant 0 : i32
    return %arg0, %c0_i32 : i32, i32
  }
}

module attributes {stable_mosaic.version = 11 : i64} {
  func.func @_matmul_kernel(%arg0: i32, %arg1: memref<128x144xbf16, #tpu.memory_space<vmem>>, %arg2: memref<144x32xbf16, #tpu.memory_space<vmem>>, %arg3: memref<1x32xf32, #tpu.memory_space<vmem>>, %arg4: memref<128x32xbf16, #tpu.memory_space<vmem>>) attributes {dimension_semantics = [#tpu.dimension_semantics<parallel>], iteration_bounds = array<i64: 1>, scalar_prefetch = 0 : i64, scratch_operands = 0 : i64, tpu.core_type = #tpu.core_type<tc>, window_params = [{transform_indices = @transform_0, window_bounds = array<i64: 128, 144>}, {pipeline_mode = #tpu.pipeline_mode<synchronous>, transform_indices = @transform_1, window_bounds = array<i64: 144, 32>}, {pipeline_mode = #tpu.pipeline_mode<synchronous>, transform_indices = @transform_2, window_bounds = array<i64: 1, 32>}, {transform_indices = @transform_3, window_bounds = array<i64: 128, 32>}]} {
    %c0 = arith.constant 0 : index
    %c0_0 = arith.constant 0 : index
    %0 = vector.load %arg1[%c0, %c0_0] : memref<128x144xbf16, #tpu.memory_space<vmem>>, vector<128x144xbf16>
    %c0_1 = arith.constant 0 : index
    %c0_2 = arith.constant 0 : index
    %1 = vector.load %arg2[%c0_1, %c0_2] : memref<144x32xbf16, #tpu.memory_space<vmem>>, vector<144x32xbf16>
    %cst = arith.constant dense<0.000000e+00> : vector<128x32xf32>
    %2 = tpu.matmul %0, %1, %cst {dimension_numbers = #tpu.dot_dimension_numbers<[1], [0], [0], [1], [0, 0, 1, 1], [], []>} : vector<128x144xbf16>, vector<144x32xbf16>, vector<128x32xf32> -> vector<128x32xf32>
    %c0_3 = arith.constant 0 : index
    %c0_4 = arith.constant 0 : index
    %3 = vector.load %arg3[%c0_3, %c0_4] : memref<1x32xf32, #tpu.memory_space<vmem>>, vector<1x32xf32>
    %4 = vector.broadcast %3 : vector<1x32xf32> to vector<128x32xf32>
    %5 = arith.addf %2, %4 : vector<128x32xf32>
    %6 = arith.negf %5 : vector<128x32xf32>
    %7 = math.exp %6 : vector<128x32xf32>
    %cst_5 = arith.constant 1.000000e+00 : f32
    %8 = vector.broadcast %cst_5 : f32 to vector<128x32xf32>
    %9 = arith.addf %8, %7 : vector<128x32xf32>
    %10 = arith.divf %8, %9 : vector<128x32xf32>
    %11 = arith.mulf %5, %10 : vector<128x32xf32>
    %12 = arith.truncf %11 : vector<128x32xf32> to vector<128x32xbf16>
    %c0_6 = arith.constant 0 : index
    %c0_7 = arith.constant 0 : index
    %13 = vector.load %arg4[%c0_6, %c0_7] : memref<128x32xbf16, #tpu.memory_space<vmem>>, vector<128x32xbf16>
    tpu.vector_store %arg4[%c0_6, %c0_7], %12 {strides = array<i32>} : memref<128x32xbf16, #tpu.memory_space<vmem>>, vector<128x32xbf16>,
    return
  }
  func.func @transform_0(%arg0: i32) -> (i32, i32) {
    %c0_i32 = arith.constant 0 : i32
    %c0_i32_0 = arith.constant 0 : i32
    return %arg0, %c0_i32 : i32, i32
  }
  func.func @transform_1(%arg0: i32) -> (i32, i32) {
    %c0_i32 = arith.constant 0 : i32
    %c0_i32_0 = arith.constant 0 : i32
    %c0_i32_1 = arith.constant 0 : i32
    return %c0_i32, %c0_i32_0 : i32, i32
  }
  func.func @transform_2(%arg0: i32) -> (i32, i32) {
    %c0_i32 = arith.constant 0 : i32
    %c0_i32_0 = arith.constant 0 : i32
    %c0_i32_1 = arith.constant 0 : i32
    return %c0_i32, %c0_i32_0 : i32, i32
  }
  func.func @transform_3(%arg0: i32) -> (i32, i32) {
    %c0_i32 = arith.constant 0 : i32
    %c0_i32_0 = arith.constant 0 : i32
    return %arg0, %c0_i32 : i32, i32
  }
}

module attributes {stable_mosaic.version = 11 : i64} {
  func.func @_matmul_kernel(%arg0: i32, %arg1: memref<128x32xbf16, #tpu.memory_space<vmem>>, %arg2: memref<32x32xbf16, #tpu.memory_space<vmem>>, %arg3: memref<1x32xf32, #tpu.memory_space<vmem>>, %arg4: memref<128x32xbf16, #tpu.memory_space<vmem>>) attributes {dimension_semantics = [#tpu.dimension_semantics<parallel>], iteration_bounds = array<i64: 1>, scalar_prefetch = 0 : i64, scratch_operands = 0 : i64, tpu.core_type = #tpu.core_type<tc>, window_params = [{transform_indices = @transform_0, window_bounds = array<i64: 128, 32>}, {pipeline_mode = #tpu.pipeline_mode<synchronous>, transform_indices = @transform_1, window_bounds = array<i64: 32, 32>}, {pipeline_mode = #tpu.pipeline_mode<synchronous>, transform_indices = @transform_2, window_bounds = array<i64: 1, 32>}, {transform_indices = @transform_3, window_bounds = array<i64: 128, 32>}]} {
    %c0 = arith.constant 0 : index
    %c0_0 = arith.constant 0 : index
    %0 = vector.load %arg1[%c0, %c0_0] : memref<128x32xbf16, #tpu.memory_space<vmem>>, vector<128x32xbf16>
    %c0_1 = arith.constant 0 : index
    %c0_2 = arith.constant 0 : index
    %1 = vector.load %arg2[%c0_1, %c0_2] : memref<32x32xbf16, #tpu.memory_space<vmem>>, vector<32x32xbf16>
    %cst = arith.constant dense<0.000000e+00> : vector<128x32xf32>
    %2 = tpu.matmul %0, %1, %cst {dimension_numbers = #tpu.dot_dimension_numbers<[1], [0], [0], [1], [0, 0, 1, 1], [], []>} : vector<128x32xbf16>, vector<32x32xbf16>, vector<128x32xf32> -> vector<128x32xf32>
    %c0_3 = arith.constant 0 : index
    %c0_4 = arith.constant 0 : index
    %3 = vector.load %arg3[%c0_3, %c0_4] : memref<1x32xf32, #tpu.memory_space<vmem>>, vector<1x32xf32>
    %4 = vector.broadcast %3 : vector<1x32xf32> to vector<128x32xf32>
    %5 = arith.addf %2, %4 : vector<128x32xf32>
    %6 = arith.negf %5 : vector<128x32xf32>
    %7 = math.exp %6 : vector<128x32xf32>
    %cst_5 = arith.constant 1.000000e+00 : f32
    %8 = vector.broadcast %cst_5 : f32 to vector<128x32xf32>
    %9 = arith.addf %8, %7 : vector<128x32xf32>
    %10 = arith.divf %8, %9 : vector<128x32xf32>
    %11 = arith.mulf %5, %10 : vector<128x32xf32>
    %12 = arith.truncf %11 : vector<128x32xf32> to vector<128x32xbf16>
    %c0_6 = arith.constant 0 : index
    %c0_7 = arith.constant 0 : index
    %13 = vector.load %arg4[%c0_6, %c0_7] : memref<128x32xbf16, #tpu.memory_space<vmem>>, vector<128x32xbf16>
    tpu.vector_store %arg4[%c0_6, %c0_7], %12 {strides = array<i32>} : memref<128x32xbf16, #tpu.memory_space<vmem>>, vector<128x32xbf16>,
    return
  }
  func.func @transform_0(%arg0: i32) -> (i32, i32) {
    %c0_i32 = arith.constant 0 : i32
    %c0_i32_0 = arith.constant 0 : i32
    return %arg0, %c0_i32 : i32, i32
  }
  func.func @transform_1(%arg0: i32) -> (i32, i32) {
    %c0_i32 = arith.constant 0 : i32
    %c0_i32_0 = arith.constant 0 : i32
    %c0_i32_1 = arith.constant 0 : i32
    return %c0_i32, %c0_i32_0 : i32, i32
  }
  func.func @transform_2(%arg0: i32) -> (i32, i32) {
    %c0_i32 = arith.constant 0 : i32
    %c0_i32_0 = arith.constant 0 : i32
    %c0_i32_1 = arith.constant 0 : i32
    return %c0_i32, %c0_i32_0 : i32, i32
  }
  func.func @transform_3(%arg0: i32) -> (i32, i32) {
    %c0_i32 = arith.constant 0 : i32
    %c0_i32_0 = arith.constant 0 : i32
    return %arg0, %c0_i32 : i32, i32
  }
}

module attributes {stable_mosaic.version = 11 : i64} {
  func.func @_matmul_kernel(%arg0: i32, %arg1: memref<128x32xbf16, #tpu.memory_space<vmem>>, %arg2: memref<128x16xbf16, #tpu.memory_space<vmem>>, %arg3: memref<128x16xbf16, #tpu.memory_space<vmem>>, %arg4: memref<32x32xbf16, #tpu.memory_space<vmem>>, %arg5: memref<16x32xbf16, #tpu.memory_space<vmem>>, %arg6: memref<16x32xbf16, #tpu.memory_space<vmem>>, %arg7: memref<1x32xf32, #tpu.memory_space<vmem>>, %arg8: memref<128x32xbf16, #tpu.memory_space<vmem>>) attributes {dimension_semantics = [#tpu.dimension_semantics<parallel>], iteration_bounds = array<i64: 1>, scalar_prefetch = 0 : i64, scratch_operands = 0 : i64, tpu.core_type = #tpu.core_type<tc>, window_params = [{transform_indices = @transform_0, window_bounds = array<i64: 128, 32>}, {transform_indices = @transform_1, window_bounds = array<i64: 128, 16>}, {transform_indices = @transform_2, window_bounds = array<i64: 128, 16>}, {pipeline_mode = #tpu.pipeline_mode<synchronous>, transform_indices = @transform_3, window_bounds = array<i64: 32, 32>}, {pipeline_mode = #tpu.pipeline_mode<synchronous>, transform_indices = @transform_4, window_bounds = array<i64: 16, 32>}, {pipeline_mode = #tpu.pipeline_mode<synchronous>, transform_indices = @transform_5, window_bounds = array<i64: 16, 32>}, {pipeline_mode = #tpu.pipeline_mode<synchronous>, transform_indices = @transform_6, window_bounds = array<i64: 1, 32>}, {transform_indices = @transform_7, window_bounds = array<i64: 128, 32>}]} {
    %c0 = arith.constant 0 : index
    %c0_0 = arith.constant 0 : index
    %0 = vector.load %arg1[%c0, %c0_0] : memref<128x32xbf16, #tpu.memory_space<vmem>>, vector<128x32xbf16>
    %c0_1 = arith.constant 0 : index
    %c0_2 = arith.constant 0 : index
    %1 = vector.load %arg4[%c0_1, %c0_2] : memref<32x32xbf16, #tpu.memory_space<vmem>>, vector<32x32xbf16>
    %cst = arith.constant dense<0.000000e+00> : vector<128x32xf32>
    %2 = tpu.matmul %0, %1, %cst {dimension_numbers = #tpu.dot_dimension_numbers<[1], [0], [0], [1], [0, 0, 1, 1], [], []>} : vector<128x32xbf16>, vector<32x32xbf16>, vector<128x32xf32> -> vector<128x32xf32>
    %c0_3 = arith.constant 0 : index
    %c0_4 = arith.constant 0 : index
    %3 = vector.load %arg2[%c0_3, %c0_4] : memref<128x16xbf16, #tpu.memory_space<vmem>>, vector<128x16xbf16>
    %c0_5 = arith.constant 0 : index
    %c0_6 = arith.constant 0 : index
    %4 = vector.load %arg5[%c0_5, %c0_6] : memref<16x32xbf16, #tpu.memory_space<vmem>>, vector<16x32xbf16>
    %cst_7 = arith.constant dense<0.000000e+00> : vector<128x32xf32>
    %5 = tpu.matmul %3, %4, %cst_7 {dimension_numbers = #tpu.dot_dimension_numbers<[1], [0], [0], [1], [0, 0, 1, 1], [], []>} : vector<128x16xbf16>, vector<16x32xbf16>, vector<128x32xf32> -> vector<128x32xf32>
    %6 = arith.addf %2, %5 : vector<128x32xf32>
    %c0_8 = arith.constant 0 : index
    %c0_9 = arith.constant 0 : index
    %7 = vector.load %arg3[%c0_8, %c0_9] : memref<128x16xbf16, #tpu.memory_space<vmem>>, vector<128x16xbf16>
    %c0_10 = arith.constant 0 : index
    %c0_11 = arith.constant 0 : index
    %8 = vector.load %arg6[%c0_10, %c0_11] : memref<16x32xbf16, #tpu.memory_space<vmem>>, vector<16x32xbf16>
    %cst_12 = arith.constant dense<0.000000e+00> : vector<128x32xf32>
    %9 = tpu.matmul %7, %8, %cst_12 {dimension_numbers = #tpu.dot_dimension_numbers<[1], [0], [0], [1], [0, 0, 1, 1], [], []>} : vector<128x16xbf16>, vector<16x32xbf16>, vector<128x32xf32> -> vector<128x32xf32>
    %10 = arith.addf %6, %9 : vector<128x32xf32>
    %c0_13 = arith.constant 0 : index
    %c0_14 = arith.constant 0 : index
    %11 = vector.load %arg7[%c0_13, %c0_14] : memref<1x32xf32, #tpu.memory_space<vmem>>, vector<1x32xf32>
    %12 = vector.broadcast %11 : vector<1x32xf32> to vector<128x32xf32>
    %13 = arith.addf %10, %12 : vector<128x32xf32>
    %14 = arith.negf %13 : vector<128x32xf32>
    %15 = math.exp %14 : vector<128x32xf32>
    %cst_15 = arith.constant 1.000000e+00 : f32
    %16 = vector.broadcast %cst_15 : f32 to vector<128x32xf32>
    %17 = arith.addf %16, %15 : vector<128x32xf32>
    %18 = arith.divf %16, %17 : vector<128x32xf32>
    %19 = arith.mulf %13, %18 : vector<128x32xf32>
    %20 = arith.truncf %19 : vector<128x32xf32> to vector<128x32xbf16>
    %c0_16 = arith.constant 0 : index
    %c0_17 = arith.constant 0 : index
    %21 = vector.load %arg8[%c0_16, %c0_17] : memref<128x32xbf16, #tpu.memory_space<vmem>>, vector<128x32xbf16>
    tpu.vector_store %arg8[%c0_16, %c0_17], %20 {strides = array<i32>} : memref<128x32xbf16, #tpu.memory_space<vmem>>, vector<128x32xbf16>,
    return
  }
  func.func @transform_0(%arg0: i32) -> (i32, i32) {
    %c0_i32 = arith.constant 0 : i32
    %c0_i32_0 = arith.constant 0 : i32
    return %arg0, %c0_i32 : i32, i32
  }
  func.func @transform_1(%arg0: i32) -> (i32, i32) {
    %c0_i32 = arith.constant 0 : i32
    %c0_i32_0 = arith.constant 0 : i32
    return %arg0, %c0_i32 : i32, i32
  }
  func.func @transform_2(%arg0: i32) -> (i32, i32) {
    %c0_i32 = arith.constant 0 : i32
    %c0_i32_0 = arith.constant 0 : i32
    return %arg0, %c0_i32 : i32, i32
  }
  func.func @transform_3(%arg0: i32) -> (i32, i32) {
    %c0_i32 = arith.constant 0 : i32
    %c0_i32_0 = arith.constant 0 : i32
    %c0_i32_1 = arith.constant 0 : i32
    return %c0_i32, %c0_i32_0 : i32, i32
  }
  func.func @transform_4(%arg0: i32) -> (i32, i32) {
    %c0_i32 = arith.constant 0 : i32
    %c0_i32_0 = arith.constant 0 : i32
    %c0_i32_1 = arith.constant 0 : i32
    return %c0_i32, %c0_i32_0 : i32, i32
  }
  func.func @transform_5(%arg0: i32) -> (i32, i32) {
    %c0_i32 = arith.constant 0 : i32
    %c0_i32_0 = arith.constant 0 : i32
    %c0_i32_1 = arith.constant 0 : i32
    return %c0_i32, %c0_i32_0 : i32, i32
  }
  func.func @transform_6(%arg0: i32) -> (i32, i32) {
    %c0_i32 = arith.constant 0 : i32
    %c0_i32_0 = arith.constant 0 : i32
    %c0_i32_1 = arith.constant 0 : i32
    return %c0_i32, %c0_i32_0 : i32, i32
  }
  func.func @transform_7(%arg0: i32) -> (i32, i32) {
    %c0_i32 = arith.constant 0 : i32
    %c0_i32_0 = arith.constant 0 : i32
    return %arg0, %c0_i32 : i32, i32
  }
}

module attributes {stable_mosaic.version = 11 : i64} {
  func.func @_conv_s1_kernel(%arg0: i32, %arg1: i32, %arg2: memref<1x10x10x16xbf16, #tpu.memory_space<vmem>>, %arg3: memref<144x16xbf16, #tpu.memory_space<vmem>>, %arg4: memref<1x16xf32, #tpu.memory_space<vmem>>, %arg5: memref<1x1x8x16xbf16, #tpu.memory_space<vmem>>) attributes {dimension_semantics = [#tpu.dimension_semantics<parallel>, #tpu.dimension_semantics<arbitrary>], iteration_bounds = array<i64: 2, 8>, scalar_prefetch = 0 : i64, scratch_operands = 0 : i64, tpu.core_type = #tpu.core_type<tc>, window_params = [{transform_indices = @transform_0, window_bounds = array<i64: 1, 10, 10, 16>}, {pipeline_mode = #tpu.pipeline_mode<synchronous>, transform_indices = @transform_1, window_bounds = array<i64: 144, 16>}, {pipeline_mode = #tpu.pipeline_mode<synchronous>, transform_indices = @transform_2, window_bounds = array<i64: 1, 16>}, {transform_indices = @transform_3, window_bounds = array<i64: 1, 1, 8, 16>}]} {
    %c0 = arith.constant 0 : index
    %c0_0 = arith.constant 0 : index
    %0 = vector.load %arg3[%c0, %c0_0] : memref<144x16xbf16, #tpu.memory_space<vmem>>, vector<144x16xbf16>
    %cst = arith.constant 0.000000e+00 : f32
    %1 = vector.broadcast %cst : f32 to vector<8x16xf32>
    %c0_i32 = arith.constant 0 : i32
    %2 = arith.addi %arg1, %c0_i32 : i32
    %c0_1 = arith.constant 0 : index
    %3 = arith.index_cast %2 : i32 to index
    %c0_2 = arith.constant 0 : index
    %c0_3 = arith.constant 0 : index
    %4 = vector.load %arg2[%c0_1, %3, %c0_2, %c0_3] : memref<1x10x10x16xbf16, #tpu.memory_space<vmem>>, vector<1x1x10x16xbf16>
    %5 = vector.shape_cast %4 : vector<1x1x10x16xbf16> to vector<10x16xbf16>
    %6 = vector.extract_strided_slice %5 {offsets = [0, 0], sizes = [8, 16], strides = [1, 1]} : vector<10x16xbf16> to vector<8x16xbf16>
    %7 = vector.extract_strided_slice %0 {offsets = [0, 0], sizes = [16, 16], strides = [1, 1]} : vector<144x16xbf16> to vector<16x16xbf16>
    %cst_4 = arith.constant dense<0.000000e+00> : vector<8x16xf32>
    %8 = tpu.matmul %6, %7, %cst_4 {dimension_numbers = #tpu.dot_dimension_numbers<[1], [0], [0], [1], [0, 0, 1, 1], [], []>} : vector<8x16xbf16>, vector<16x16xbf16>, vector<8x16xf32> -> vector<8x16xf32>
    %9 = arith.addf %1, %8 : vector<8x16xf32>
    %10 = vector.extract_strided_slice %5 {offsets = [1, 0], sizes = [8, 16], strides = [1, 1]} : vector<10x16xbf16> to vector<8x16xbf16>
    %11 = vector.extract_strided_slice %0 {offsets = [16, 0], sizes = [16, 16], strides = [1, 1]} : vector<144x16xbf16> to vector<16x16xbf16>
    %cst_5 = arith.constant dense<0.000000e+00> : vector<8x16xf32>
    %12 = tpu.matmul %10, %11, %cst_5 {dimension_numbers = #tpu.dot_dimension_numbers<[1], [0], [0], [1], [0, 0, 1, 1], [], []>} : vector<8x16xbf16>, vector<16x16xbf16>, vector<8x16xf32> -> vector<8x16xf32>
    %13 = arith.addf %9, %12 : vector<8x16xf32>
    %14 = vector.extract_strided_slice %5 {offsets = [2, 0], sizes = [8, 16], strides = [1, 1]} : vector<10x16xbf16> to vector<8x16xbf16>
    %15 = vector.extract_strided_slice %0 {offsets = [32, 0], sizes = [16, 16], strides = [1, 1]} : vector<144x16xbf16> to vector<16x16xbf16>
    %cst_6 = arith.constant dense<0.000000e+00> : vector<8x16xf32>
    %16 = tpu.matmul %14, %15, %cst_6 {dimension_numbers = #tpu.dot_dimension_numbers<[1], [0], [0], [1], [0, 0, 1, 1], [], []>} : vector<8x16xbf16>, vector<16x16xbf16>, vector<8x16xf32> -> vector<8x16xf32>
    %17 = arith.addf %13, %16 : vector<8x16xf32>
    %c1_i32 = arith.constant 1 : i32
    %18 = arith.addi %arg1, %c1_i32 : i32
    %c0_7 = arith.constant 0 : index
    %19 = arith.index_cast %18 : i32 to index
    %c0_8 = arith.constant 0 : index
    %c0_9 = arith.constant 0 : index
    %20 = vector.load %arg2[%c0_7, %19, %c0_8, %c0_9] : memref<1x10x10x16xbf16, #tpu.memory_space<vmem>>, vector<1x1x10x16xbf16>
    %21 = vector.shape_cast %20 : vector<1x1x10x16xbf16> to vector<10x16xbf16>
    %22 = vector.extract_strided_slice %21 {offsets = [0, 0], sizes = [8, 16], strides = [1, 1]} : vector<10x16xbf16> to vector<8x16xbf16>
    %23 = vector.extract_strided_slice %0 {offsets = [48, 0], sizes = [16, 16], strides = [1, 1]} : vector<144x16xbf16> to vector<16x16xbf16>
    %cst_10 = arith.constant dense<0.000000e+00> : vector<8x16xf32>
    %24 = tpu.matmul %22, %23, %cst_10 {dimension_numbers = #tpu.dot_dimension_numbers<[1], [0], [0], [1], [0, 0, 1, 1], [], []>} : vector<8x16xbf16>, vector<16x16xbf16>, vector<8x16xf32> -> vector<8x16xf32>
    %25 = arith.addf %17, %24 : vector<8x16xf32>
    %26 = vector.extract_strided_slice %21 {offsets = [1, 0], sizes = [8, 16], strides = [1, 1]} : vector<10x16xbf16> to vector<8x16xbf16>
    %27 = vector.extract_strided_slice %0 {offsets = [64, 0], sizes = [16, 16], strides = [1, 1]} : vector<144x16xbf16> to vector<16x16xbf16>
    %cst_11 = arith.constant dense<0.000000e+00> : vector<8x16xf32>
    %28 = tpu.matmul %26, %27, %cst_11 {dimension_numbers = #tpu.dot_dimension_numbers<[1], [0], [0], [1], [0, 0, 1, 1], [], []>} : vector<8x16xbf16>, vector<16x16xbf16>, vector<8x16xf32> -> vector<8x16xf32>
    %29 = arith.addf %25, %28 : vector<8x16xf32>
    %30 = vector.extract_strided_slice %21 {offsets = [2, 0], sizes = [8, 16], strides = [1, 1]} : vector<10x16xbf16> to vector<8x16xbf16>
    %31 = vector.extract_strided_slice %0 {offsets = [80, 0], sizes = [16, 16], strides = [1, 1]} : vector<144x16xbf16> to vector<16x16xbf16>
    %cst_12 = arith.constant dense<0.000000e+00> : vector<8x16xf32>
    %32 = tpu.matmul %30, %31, %cst_12 {dimension_numbers = #tpu.dot_dimension_numbers<[1], [0], [0], [1], [0, 0, 1, 1], [], []>} : vector<8x16xbf16>, vector<16x16xbf16>, vector<8x16xf32> -> vector<8x16xf32>
    %33 = arith.addf %29, %32 : vector<8x16xf32>
    %c2_i32 = arith.constant 2 : i32
    %34 = arith.addi %arg1, %c2_i32 : i32
    %c0_13 = arith.constant 0 : index
    %35 = arith.index_cast %34 : i32 to index
    %c0_14 = arith.constant 0 : index
    %c0_15 = arith.constant 0 : index
    %36 = vector.load %arg2[%c0_13, %35, %c0_14, %c0_15] : memref<1x10x10x16xbf16, #tpu.memory_space<vmem>>, vector<1x1x10x16xbf16>
    %37 = vector.shape_cast %36 : vector<1x1x10x16xbf16> to vector<10x16xbf16>
    %38 = vector.extract_strided_slice %37 {offsets = [0, 0], sizes = [8, 16], strides = [1, 1]} : vector<10x16xbf16> to vector<8x16xbf16>
    %39 = vector.extract_strided_slice %0 {offsets = [96, 0], sizes = [16, 16], strides = [1, 1]} : vector<144x16xbf16> to vector<16x16xbf16>
    %cst_16 = arith.constant dense<0.000000e+00> : vector<8x16xf32>
    %40 = tpu.matmul %38, %39, %cst_16 {dimension_numbers = #tpu.dot_dimension_numbers<[1], [0], [0], [1], [0, 0, 1, 1], [], []>} : vector<8x16xbf16>, vector<16x16xbf16>, vector<8x16xf32> -> vector<8x16xf32>
    %41 = arith.addf %33, %40 : vector<8x16xf32>
    %42 = vector.extract_strided_slice %37 {offsets = [1, 0], sizes = [8, 16], strides = [1, 1]} : vector<10x16xbf16> to vector<8x16xbf16>
    %43 = vector.extract_strided_slice %0 {offsets = [112, 0], sizes = [16, 16], strides = [1, 1]} : vector<144x16xbf16> to vector<16x16xbf16>
    %cst_17 = arith.constant dense<0.000000e+00> : vector<8x16xf32>
    %44 = tpu.matmul %42, %43, %cst_17 {dimension_numbers = #tpu.dot_dimension_numbers<[1], [0], [0], [1], [0, 0, 1, 1], [], []>} : vector<8x16xbf16>, vector<16x16xbf16>, vector<8x16xf32> -> vector<8x16xf32>
    %45 = arith.addf %41, %44 : vector<8x16xf32>
    %46 = vector.extract_strided_slice %37 {offsets = [2, 0], sizes = [8, 16], strides = [1, 1]} : vector<10x16xbf16> to vector<8x16xbf16>
    %47 = vector.extract_strided_slice %0 {offsets = [128, 0], sizes = [16, 16], strides = [1, 1]} : vector<144x16xbf16> to vector<16x16xbf16>
    %cst_18 = arith.constant dense<0.000000e+00> : vector<8x16xf32>
    %48 = tpu.matmul %46, %47, %cst_18 {dimension_numbers = #tpu.dot_dimension_numbers<[1], [0], [0], [1], [0, 0, 1, 1], [], []>} : vector<8x16xbf16>, vector<16x16xbf16>, vector<8x16xf32> -> vector<8x16xf32>
    %49 = arith.addf %45, %48 : vector<8x16xf32>
    %c0_19 = arith.constant 0 : index
    %c0_20 = arith.constant 0 : index
    %50 = vector.load %arg4[%c0_19, %c0_20] : memref<1x16xf32, #tpu.memory_space<vmem>>, vector<1x16xf32>
    %51 = vector.broadcast %50 : vector<1x16xf32> to vector<8x16xf32>
    %52 = arith.addf %49, %51 : vector<8x16xf32>
    %53 = arith.negf %52 : vector<8x16xf32>
    %54 = math.exp %53 : vector<8x16xf32>
    %cst_21 = arith.constant 1.000000e+00 : f32
    %55 = vector.broadcast %cst_21 : f32 to vector<8x16xf32>
    %56 = arith.addf %55, %54 : vector<8x16xf32>
    %57 = arith.divf %55, %56 : vector<8x16xf32>
    %58 = arith.mulf %52, %57 : vector<8x16xf32>
    %59 = vector.shape_cast %58 : vector<8x16xf32> to vector<1x1x8x16xf32>
    %60 = arith.truncf %59 : vector<1x1x8x16xf32> to vector<1x1x8x16xbf16>
    %c0_22 = arith.constant 0 : index
    %c0_23 = arith.constant 0 : index
    %c0_24 = arith.constant 0 : index
    %c0_25 = arith.constant 0 : index
    %61 = vector.load %arg5[%c0_22, %c0_23, %c0_24, %c0_25] : memref<1x1x8x16xbf16, #tpu.memory_space<vmem>>, vector<1x1x8x16xbf16>
    tpu.vector_store %arg5[%c0_22, %c0_23, %c0_24, %c0_25], %60 {strides = array<i32>} : memref<1x1x8x16xbf16, #tpu.memory_space<vmem>>, vector<1x1x8x16xbf16>,
    return
  }
  func.func @transform_0(%arg0: i32, %arg1: i32) -> (i32, i32, i32, i32) {
    %c0_i32 = arith.constant 0 : i32
    %c0_i32_0 = arith.constant 0 : i32
    %c0_i32_1 = arith.constant 0 : i32
    %c0_i32_2 = arith.constant 0 : i32
    return %arg0, %c0_i32, %c0_i32_0, %c0_i32_1 : i32, i32, i32, i32
  }
  func.func @transform_1(%arg0: i32, %arg1: i32) -> (i32, i32) {
    %c0_i32 = arith.constant 0 : i32
    %c0_i32_0 = arith.constant 0 : i32
    %c0_i32_1 = arith.constant 0 : i32
    return %c0_i32, %c0_i32_0 : i32, i32
  }
  func.func @transform_2(%arg0: i32, %arg1: i32) -> (i32, i32) {
    %c0_i32 = arith.constant 0 : i32
    %c0_i32_0 = arith.constant 0 : i32
    %c0_i32_1 = arith.constant 0 : i32
    return %c0_i32, %c0_i32_0 : i32, i32
  }
  func.func @transform_3(%arg0: i32, %arg1: i32) -> (i32, i32, i32, i32) {
    %c0_i32 = arith.constant 0 : i32
    %c0_i32_0 = arith.constant 0 : i32
    %c0_i32_1 = arith.constant 0 : i32
    return %arg0, %arg1, %c0_i32, %c0_i32_0 : i32, i32, i32, i32
  }
}

module attributes {stable_mosaic.version = 11 : i64} {
  func.func @_pool_kernel(%arg0: i32, %arg1: memref<98x4x32xbf16, #tpu.memory_space<vmem>>, %arg2: memref<98x32xbf16, #tpu.memory_space<vmem>>) attributes {dimension_semantics = [#tpu.dimension_semantics<parallel>], iteration_bounds = array<i64: 1>, scalar_prefetch = 0 : i64, scratch_operands = 0 : i64, tpu.core_type = #tpu.core_type<tc>, window_params = [{transform_indices = @transform_0, window_bounds = array<i64: 98, 4, 32>}, {transform_indices = @transform_1, window_bounds = array<i64: 98, 32>}]} {
    %c0 = arith.constant 0 : index
    %c0_0 = arith.constant 0 : index
    %c0_1 = arith.constant 0 : index
    %0 = vector.load %arg1[%c0, %c0_0, %c0_1] : memref<98x4x32xbf16, #tpu.memory_space<vmem>>, vector<98x4x32xbf16>
    %1 = arith.extf %0 : vector<98x4x32xbf16> to vector<98x4x32xf32>
    %cst = arith.constant dense<0.000000e+00> : vector<98x32xf32>
    %2 = vector.multi_reduction <add>, %1, %cst [1] : vector<98x4x32xf32> to vector<98x32xf32>
    %cst_2 = arith.constant 4.000000e+00 : f32
    %3 = vector.broadcast %cst_2 : f32 to vector<98x32xf32>
    %4 = arith.divf %2, %3 : vector<98x32xf32>
    %5 = arith.truncf %4 : vector<98x32xf32> to vector<98x32xbf16>
    %c0_3 = arith.constant 0 : index
    %c0_4 = arith.constant 0 : index
    %6 = vector.load %arg2[%c0_3, %c0_4] : memref<98x32xbf16, #tpu.memory_space<vmem>>, vector<98x32xbf16>
    tpu.vector_store %arg2[%c0_3, %c0_4], %5 {strides = array<i32>} : memref<98x32xbf16, #tpu.memory_space<vmem>>, vector<98x32xbf16>,
    return
  }
  func.func @transform_0(%arg0: i32) -> (i32, i32, i32) {
    %c0_i32 = arith.constant 0 : i32
    %c0_i32_0 = arith.constant 0 : i32
    %c0_i32_1 = arith.constant 0 : i32
    return %arg0, %c0_i32, %c0_i32_0 : i32, i32, i32
  }
  func.func @transform_1(%arg0: i32) -> (i32, i32) {
    %c0_i32 = arith.constant 0 : i32
    %c0_i32_0 = arith.constant 0 : i32
    return %arg0, %c0_i32 : i32, i32
  }
}

module attributes {stable_mosaic.version = 11 : i64} {
  func.func @_matmul_kernel(%arg0: i32, %arg1: memref<32x288xbf16, #tpu.memory_space<vmem>>, %arg2: memref<288x48xbf16, #tpu.memory_space<vmem>>, %arg3: memref<1x48xf32, #tpu.memory_space<vmem>>, %arg4: memref<32x48xbf16, #tpu.memory_space<vmem>>) attributes {dimension_semantics = [#tpu.dimension_semantics<parallel>], iteration_bounds = array<i64: 1>, scalar_prefetch = 0 : i64, scratch_operands = 0 : i64, tpu.core_type = #tpu.core_type<tc>, window_params = [{transform_indices = @transform_0, window_bounds = array<i64: 32, 288>}, {pipeline_mode = #tpu.pipeline_mode<synchronous>, transform_indices = @transform_1, window_bounds = array<i64: 288, 48>}, {pipeline_mode = #tpu.pipeline_mode<synchronous>, transform_indices = @transform_2, window_bounds = array<i64: 1, 48>}, {transform_indices = @transform_3, window_bounds = array<i64: 32, 48>}]} {
    %c0 = arith.constant 0 : index
    %c0_0 = arith.constant 0 : index
    %0 = vector.load %arg1[%c0, %c0_0] : memref<32x288xbf16, #tpu.memory_space<vmem>>, vector<32x288xbf16>
    %c0_1 = arith.constant 0 : index
    %c0_2 = arith.constant 0 : index
    %1 = vector.load %arg2[%c0_1, %c0_2] : memref<288x48xbf16, #tpu.memory_space<vmem>>, vector<288x48xbf16>
    %cst = arith.constant dense<0.000000e+00> : vector<32x48xf32>
    %2 = tpu.matmul %0, %1, %cst {dimension_numbers = #tpu.dot_dimension_numbers<[1], [0], [0], [1], [0, 0, 1, 1], [], []>} : vector<32x288xbf16>, vector<288x48xbf16>, vector<32x48xf32> -> vector<32x48xf32>
    %c0_3 = arith.constant 0 : index
    %c0_4 = arith.constant 0 : index
    %3 = vector.load %arg3[%c0_3, %c0_4] : memref<1x48xf32, #tpu.memory_space<vmem>>, vector<1x48xf32>
    %4 = vector.broadcast %3 : vector<1x48xf32> to vector<32x48xf32>
    %5 = arith.addf %2, %4 : vector<32x48xf32>
    %6 = arith.negf %5 : vector<32x48xf32>
    %7 = math.exp %6 : vector<32x48xf32>
    %cst_5 = arith.constant 1.000000e+00 : f32
    %8 = vector.broadcast %cst_5 : f32 to vector<32x48xf32>
    %9 = arith.addf %8, %7 : vector<32x48xf32>
    %10 = arith.divf %8, %9 : vector<32x48xf32>
    %11 = arith.mulf %5, %10 : vector<32x48xf32>
    %12 = arith.truncf %11 : vector<32x48xf32> to vector<32x48xbf16>
    %c0_6 = arith.constant 0 : index
    %c0_7 = arith.constant 0 : index
    %13 = vector.load %arg4[%c0_6, %c0_7] : memref<32x48xbf16, #tpu.memory_space<vmem>>, vector<32x48xbf16>
    tpu.vector_store %arg4[%c0_6, %c0_7], %12 {strides = array<i32>} : memref<32x48xbf16, #tpu.memory_space<vmem>>, vector<32x48xbf16>,
    return
  }
  func.func @transform_0(%arg0: i32) -> (i32, i32) {
    %c0_i32 = arith.constant 0 : i32
    %c0_i32_0 = arith.constant 0 : i32
    return %arg0, %c0_i32 : i32, i32
  }
  func.func @transform_1(%arg0: i32) -> (i32, i32) {
    %c0_i32 = arith.constant 0 : i32
    %c0_i32_0 = arith.constant 0 : i32
    %c0_i32_1 = arith.constant 0 : i32
    return %c0_i32, %c0_i32_0 : i32, i32
  }
  func.func @transform_2(%arg0: i32) -> (i32, i32) {
    %c0_i32 = arith.constant 0 : i32
    %c0_i32_0 = arith.constant 0 : i32
    %c0_i32_1 = arith.constant 0 : i32
    return %c0_i32, %c0_i32_0 : i32, i32
  }
  func.func @transform_3(%arg0: i32) -> (i32, i32) {
    %c0_i32 = arith.constant 0 : i32
    %c0_i32_0 = arith.constant 0 : i32
    return %arg0, %c0_i32 : i32, i32
  }
}

module attributes {stable_mosaic.version = 11 : i64} {
  func.func @_matmul_kernel(%arg0: i32, %arg1: memref<32x16xbf16, #tpu.memory_space<vmem>>, %arg2: memref<16x8xbf16, #tpu.memory_space<vmem>>, %arg3: memref<1x8xf32, #tpu.memory_space<vmem>>, %arg4: memref<32x8xbf16, #tpu.memory_space<vmem>>) attributes {dimension_semantics = [#tpu.dimension_semantics<parallel>], iteration_bounds = array<i64: 1>, scalar_prefetch = 0 : i64, scratch_operands = 0 : i64, tpu.core_type = #tpu.core_type<tc>, window_params = [{transform_indices = @transform_0, window_bounds = array<i64: 32, 16>}, {pipeline_mode = #tpu.pipeline_mode<synchronous>, transform_indices = @transform_1, window_bounds = array<i64: 16, 8>}, {pipeline_mode = #tpu.pipeline_mode<synchronous>, transform_indices = @transform_2, window_bounds = array<i64: 1, 8>}, {transform_indices = @transform_3, window_bounds = array<i64: 32, 8>}]} {
    %c0 = arith.constant 0 : index
    %c0_0 = arith.constant 0 : index
    %0 = vector.load %arg1[%c0, %c0_0] : memref<32x16xbf16, #tpu.memory_space<vmem>>, vector<32x16xbf16>
    %c0_1 = arith.constant 0 : index
    %c0_2 = arith.constant 0 : index
    %1 = vector.load %arg2[%c0_1, %c0_2] : memref<16x8xbf16, #tpu.memory_space<vmem>>, vector<16x8xbf16>
    %cst = arith.constant dense<0.000000e+00> : vector<32x8xf32>
    %2 = tpu.matmul %0, %1, %cst {dimension_numbers = #tpu.dot_dimension_numbers<[1], [0], [0], [1], [0, 0, 1, 1], [], []>} : vector<32x16xbf16>, vector<16x8xbf16>, vector<32x8xf32> -> vector<32x8xf32>
    %c0_3 = arith.constant 0 : index
    %c0_4 = arith.constant 0 : index
    %3 = vector.load %arg3[%c0_3, %c0_4] : memref<1x8xf32, #tpu.memory_space<vmem>>, vector<1x8xf32>
    %4 = vector.broadcast %3 : vector<1x8xf32> to vector<32x8xf32>
    %5 = arith.addf %2, %4 : vector<32x8xf32>
    %6 = arith.negf %5 : vector<32x8xf32>
    %7 = math.exp %6 : vector<32x8xf32>
    %cst_5 = arith.constant 1.000000e+00 : f32
    %8 = vector.broadcast %cst_5 : f32 to vector<32x8xf32>
    %9 = arith.addf %8, %7 : vector<32x8xf32>
    %10 = arith.divf %8, %9 : vector<32x8xf32>
    %11 = arith.mulf %5, %10 : vector<32x8xf32>
    %12 = arith.truncf %11 : vector<32x8xf32> to vector<32x8xbf16>
    %c0_6 = arith.constant 0 : index
    %c0_7 = arith.constant 0 : index
    %13 = vector.load %arg4[%c0_6, %c0_7] : memref<32x8xbf16, #tpu.memory_space<vmem>>, vector<32x8xbf16>
    tpu.vector_store %arg4[%c0_6, %c0_7], %12 {strides = array<i32>} : memref<32x8xbf16, #tpu.memory_space<vmem>>, vector<32x8xbf16>,
    return
  }
  func.func @transform_0(%arg0: i32) -> (i32, i32) {
    %c0_i32 = arith.constant 0 : i32
    %c0_i32_0 = arith.constant 0 : i32
    return %arg0, %c0_i32 : i32, i32
  }
  func.func @transform_1(%arg0: i32) -> (i32, i32) {
    %c0_i32 = arith.constant 0 : i32
    %c0_i32_0 = arith.constant 0 : i32
    %c0_i32_1 = arith.constant 0 : i32
    return %c0_i32, %c0_i32_0 : i32, i32
  }
  func.func @transform_2(%arg0: i32) -> (i32, i32) {
    %c0_i32 = arith.constant 0 : i32
    %c0_i32_0 = arith.constant 0 : i32
    %c0_i32_1 = arith.constant 0 : i32
    return %c0_i32, %c0_i32_0 : i32, i32
  }
  func.func @transform_3(%arg0: i32) -> (i32, i32) {
    %c0_i32 = arith.constant 0 : i32
    %c0_i32_0 = arith.constant 0 : i32
    return %arg0, %c0_i32 : i32, i32
  }
}

module attributes {stable_mosaic.version = 11 : i64} {
  func.func @_matmul_kernel(%arg0: i32, %arg1: memref<32x48xbf16, #tpu.memory_space<vmem>>, %arg2: memref<48x32xbf16, #tpu.memory_space<vmem>>, %arg3: memref<1x32xf32, #tpu.memory_space<vmem>>, %arg4: memref<32x32xbf16, #tpu.memory_space<vmem>>) attributes {dimension_semantics = [#tpu.dimension_semantics<parallel>], iteration_bounds = array<i64: 1>, scalar_prefetch = 0 : i64, scratch_operands = 0 : i64, tpu.core_type = #tpu.core_type<tc>, window_params = [{transform_indices = @transform_0, window_bounds = array<i64: 32, 48>}, {pipeline_mode = #tpu.pipeline_mode<synchronous>, transform_indices = @transform_1, window_bounds = array<i64: 48, 32>}, {pipeline_mode = #tpu.pipeline_mode<synchronous>, transform_indices = @transform_2, window_bounds = array<i64: 1, 32>}, {transform_indices = @transform_3, window_bounds = array<i64: 32, 32>}]} {
    %c0 = arith.constant 0 : index
    %c0_0 = arith.constant 0 : index
    %0 = vector.load %arg1[%c0, %c0_0] : memref<32x48xbf16, #tpu.memory_space<vmem>>, vector<32x48xbf16>
    %c0_1 = arith.constant 0 : index
    %c0_2 = arith.constant 0 : index
    %1 = vector.load %arg2[%c0_1, %c0_2] : memref<48x32xbf16, #tpu.memory_space<vmem>>, vector<48x32xbf16>
    %cst = arith.constant dense<0.000000e+00> : vector<32x32xf32>
    %2 = tpu.matmul %0, %1, %cst {dimension_numbers = #tpu.dot_dimension_numbers<[1], [0], [0], [1], [0, 0, 1, 1], [], []>} : vector<32x48xbf16>, vector<48x32xbf16>, vector<32x32xf32> -> vector<32x32xf32>
    %c0_3 = arith.constant 0 : index
    %c0_4 = arith.constant 0 : index
    %3 = vector.load %arg3[%c0_3, %c0_4] : memref<1x32xf32, #tpu.memory_space<vmem>>, vector<1x32xf32>
    %4 = vector.broadcast %3 : vector<1x32xf32> to vector<32x32xf32>
    %5 = arith.addf %2, %4 : vector<32x32xf32>
    %6 = arith.negf %5 : vector<32x32xf32>
    %7 = math.exp %6 : vector<32x32xf32>
    %cst_5 = arith.constant 1.000000e+00 : f32
    %8 = vector.broadcast %cst_5 : f32 to vector<32x32xf32>
    %9 = arith.addf %8, %7 : vector<32x32xf32>
    %10 = arith.divf %8, %9 : vector<32x32xf32>
    %11 = arith.mulf %5, %10 : vector<32x32xf32>
    %12 = arith.truncf %11 : vector<32x32xf32> to vector<32x32xbf16>
    %c0_6 = arith.constant 0 : index
    %c0_7 = arith.constant 0 : index
    %13 = vector.load %arg4[%c0_6, %c0_7] : memref<32x32xbf16, #tpu.memory_space<vmem>>, vector<32x32xbf16>
    tpu.vector_store %arg4[%c0_6, %c0_7], %12 {strides = array<i32>} : memref<32x32xbf16, #tpu.memory_space<vmem>>, vector<32x32xbf16>,
    return
  }
  func.func @transform_0(%arg0: i32) -> (i32, i32) {
    %c0_i32 = arith.constant 0 : i32
    %c0_i32_0 = arith.constant 0 : i32
    return %arg0, %c0_i32 : i32, i32
  }
  func.func @transform_1(%arg0: i32) -> (i32, i32) {
    %c0_i32 = arith.constant 0 : i32
    %c0_i32_0 = arith.constant 0 : i32
    %c0_i32_1 = arith.constant 0 : i32
    return %c0_i32, %c0_i32_0 : i32, i32
  }
  func.func @transform_2(%arg0: i32) -> (i32, i32) {
    %c0_i32 = arith.constant 0 : i32
    %c0_i32_0 = arith.constant 0 : i32
    %c0_i32_1 = arith.constant 0 : i32
    return %c0_i32, %c0_i32_0 : i32, i32
  }
  func.func @transform_3(%arg0: i32) -> (i32, i32) {
    %c0_i32 = arith.constant 0 : i32
    %c0_i32_0 = arith.constant 0 : i32
    return %arg0, %c0_i32 : i32, i32
  }
}

module attributes {stable_mosaic.version = 11 : i64} {
  func.func @_conv_s1_kernel(%arg0: i32, %arg1: i32, %arg2: memref<1x6x6x8xbf16, #tpu.memory_space<vmem>>, %arg3: memref<72x8xbf16, #tpu.memory_space<vmem>>, %arg4: memref<1x8xf32, #tpu.memory_space<vmem>>, %arg5: memref<1x1x4x8xbf16, #tpu.memory_space<vmem>>, %arg6: memref<1x1x4x8xbf16, #tpu.memory_space<vmem>>) attributes {dimension_semantics = [#tpu.dimension_semantics<parallel>, #tpu.dimension_semantics<arbitrary>], iteration_bounds = array<i64: 2, 4>, scalar_prefetch = 0 : i64, scratch_operands = 0 : i64, tpu.core_type = #tpu.core_type<tc>, window_params = [{transform_indices = @transform_0, window_bounds = array<i64: 1, 6, 6, 8>}, {pipeline_mode = #tpu.pipeline_mode<synchronous>, transform_indices = @transform_1, window_bounds = array<i64: 72, 8>}, {pipeline_mode = #tpu.pipeline_mode<synchronous>, transform_indices = @transform_2, window_bounds = array<i64: 1, 8>}, {transform_indices = @transform_3, window_bounds = array<i64: 1, 1, 4, 8>}, {transform_indices = @transform_4, window_bounds = array<i64: 1, 1, 4, 8>}]} {
    %c0 = arith.constant 0 : index
    %c0_0 = arith.constant 0 : index
    %0 = vector.load %arg3[%c0, %c0_0] : memref<72x8xbf16, #tpu.memory_space<vmem>>, vector<72x8xbf16>
    %cst = arith.constant 0.000000e+00 : f32
    %1 = vector.broadcast %cst : f32 to vector<4x8xf32>
    %c0_i32 = arith.constant 0 : i32
    %2 = arith.addi %arg1, %c0_i32 : i32
    %c0_1 = arith.constant 0 : index
    %3 = arith.index_cast %2 : i32 to index
    %c0_2 = arith.constant 0 : index
    %c0_3 = arith.constant 0 : index
    %4 = vector.load %arg2[%c0_1, %3, %c0_2, %c0_3] : memref<1x6x6x8xbf16, #tpu.memory_space<vmem>>, vector<1x1x6x8xbf16>
    %5 = vector.shape_cast %4 : vector<1x1x6x8xbf16> to vector<6x8xbf16>
    %6 = vector.extract_strided_slice %5 {offsets = [0, 0], sizes = [4, 8], strides = [1, 1]} : vector<6x8xbf16> to vector<4x8xbf16>
    %7 = vector.extract_strided_slice %0 {offsets = [0, 0], sizes = [8, 8], strides = [1, 1]} : vector<72x8xbf16> to vector<8x8xbf16>
    %cst_4 = arith.constant dense<0.000000e+00> : vector<4x8xf32>
    %8 = tpu.matmul %6, %7, %cst_4 {dimension_numbers = #tpu.dot_dimension_numbers<[1], [0], [0], [1], [0, 0, 1, 1], [], []>} : vector<4x8xbf16>, vector<8x8xbf16>, vector<4x8xf32> -> vector<4x8xf32>
    %9 = arith.addf %1, %8 : vector<4x8xf32>
    %10 = vector.extract_strided_slice %5 {offsets = [1, 0], sizes = [4, 8], strides = [1, 1]} : vector<6x8xbf16> to vector<4x8xbf16>
    %11 = vector.extract_strided_slice %0 {offsets = [8, 0], sizes = [8, 8], strides = [1, 1]} : vector<72x8xbf16> to vector<8x8xbf16>
    %cst_5 = arith.constant dense<0.000000e+00> : vector<4x8xf32>
    %12 = tpu.matmul %10, %11, %cst_5 {dimension_numbers = #tpu.dot_dimension_numbers<[1], [0], [0], [1], [0, 0, 1, 1], [], []>} : vector<4x8xbf16>, vector<8x8xbf16>, vector<4x8xf32> -> vector<4x8xf32>
    %13 = arith.addf %9, %12 : vector<4x8xf32>
    %14 = vector.extract_strided_slice %5 {offsets = [2, 0], sizes = [4, 8], strides = [1, 1]} : vector<6x8xbf16> to vector<4x8xbf16>
    %15 = vector.extract_strided_slice %0 {offsets = [16, 0], sizes = [8, 8], strides = [1, 1]} : vector<72x8xbf16> to vector<8x8xbf16>
    %cst_6 = arith.constant dense<0.000000e+00> : vector<4x8xf32>
    %16 = tpu.matmul %14, %15, %cst_6 {dimension_numbers = #tpu.dot_dimension_numbers<[1], [0], [0], [1], [0, 0, 1, 1], [], []>} : vector<4x8xbf16>, vector<8x8xbf16>, vector<4x8xf32> -> vector<4x8xf32>
    %17 = arith.addf %13, %16 : vector<4x8xf32>
    %c1_i32 = arith.constant 1 : i32
    %18 = arith.addi %arg1, %c1_i32 : i32
    %c0_7 = arith.constant 0 : index
    %19 = arith.index_cast %18 : i32 to index
    %c0_8 = arith.constant 0 : index
    %c0_9 = arith.constant 0 : index
    %20 = vector.load %arg2[%c0_7, %19, %c0_8, %c0_9] : memref<1x6x6x8xbf16, #tpu.memory_space<vmem>>, vector<1x1x6x8xbf16>
    %21 = vector.shape_cast %20 : vector<1x1x6x8xbf16> to vector<6x8xbf16>
    %22 = vector.extract_strided_slice %21 {offsets = [0, 0], sizes = [4, 8], strides = [1, 1]} : vector<6x8xbf16> to vector<4x8xbf16>
    %23 = vector.extract_strided_slice %0 {offsets = [24, 0], sizes = [8, 8], strides = [1, 1]} : vector<72x8xbf16> to vector<8x8xbf16>
    %cst_10 = arith.constant dense<0.000000e+00> : vector<4x8xf32>
    %24 = tpu.matmul %22, %23, %cst_10 {dimension_numbers = #tpu.dot_dimension_numbers<[1], [0], [0], [1], [0, 0, 1, 1], [], []>} : vector<4x8xbf16>, vector<8x8xbf16>, vector<4x8xf32> -> vector<4x8xf32>
    %25 = arith.addf %17, %24 : vector<4x8xf32>
    %26 = vector.extract_strided_slice %21 {offsets = [1, 0], sizes = [4, 8], strides = [1, 1]} : vector<6x8xbf16> to vector<4x8xbf16>
    %27 = vector.extract_strided_slice %0 {offsets = [32, 0], sizes = [8, 8], strides = [1, 1]} : vector<72x8xbf16> to vector<8x8xbf16>
    %cst_11 = arith.constant dense<0.000000e+00> : vector<4x8xf32>
    %28 = tpu.matmul %26, %27, %cst_11 {dimension_numbers = #tpu.dot_dimension_numbers<[1], [0], [0], [1], [0, 0, 1, 1], [], []>} : vector<4x8xbf16>, vector<8x8xbf16>, vector<4x8xf32> -> vector<4x8xf32>
    %29 = arith.addf %25, %28 : vector<4x8xf32>
    %30 = vector.extract_strided_slice %21 {offsets = [2, 0], sizes = [4, 8], strides = [1, 1]} : vector<6x8xbf16> to vector<4x8xbf16>
    %31 = vector.extract_strided_slice %0 {offsets = [40, 0], sizes = [8, 8], strides = [1, 1]} : vector<72x8xbf16> to vector<8x8xbf16>
    %cst_12 = arith.constant dense<0.000000e+00> : vector<4x8xf32>
    %32 = tpu.matmul %30, %31, %cst_12 {dimension_numbers = #tpu.dot_dimension_numbers<[1], [0], [0], [1], [0, 0, 1, 1], [], []>} : vector<4x8xbf16>, vector<8x8xbf16>, vector<4x8xf32> -> vector<4x8xf32>
    %33 = arith.addf %29, %32 : vector<4x8xf32>
    %c2_i32 = arith.constant 2 : i32
    %34 = arith.addi %arg1, %c2_i32 : i32
    %c0_13 = arith.constant 0 : index
    %35 = arith.index_cast %34 : i32 to index
    %c0_14 = arith.constant 0 : index
    %c0_15 = arith.constant 0 : index
    %36 = vector.load %arg2[%c0_13, %35, %c0_14, %c0_15] : memref<1x6x6x8xbf16, #tpu.memory_space<vmem>>, vector<1x1x6x8xbf16>
    %37 = vector.shape_cast %36 : vector<1x1x6x8xbf16> to vector<6x8xbf16>
    %38 = vector.extract_strided_slice %37 {offsets = [0, 0], sizes = [4, 8], strides = [1, 1]} : vector<6x8xbf16> to vector<4x8xbf16>
    %39 = vector.extract_strided_slice %0 {offsets = [48, 0], sizes = [8, 8], strides = [1, 1]} : vector<72x8xbf16> to vector<8x8xbf16>
    %cst_16 = arith.constant dense<0.000000e+00> : vector<4x8xf32>
    %40 = tpu.matmul %38, %39, %cst_16 {dimension_numbers = #tpu.dot_dimension_numbers<[1], [0], [0], [1], [0, 0, 1, 1], [], []>} : vector<4x8xbf16>, vector<8x8xbf16>, vector<4x8xf32> -> vector<4x8xf32>
    %41 = arith.addf %33, %40 : vector<4x8xf32>
    %42 = vector.extract_strided_slice %37 {offsets = [1, 0], sizes = [4, 8], strides = [1, 1]} : vector<6x8xbf16> to vector<4x8xbf16>
    %43 = vector.extract_strided_slice %0 {offsets = [56, 0], sizes = [8, 8], strides = [1, 1]} : vector<72x8xbf16> to vector<8x8xbf16>
    %cst_17 = arith.constant dense<0.000000e+00> : vector<4x8xf32>
    %44 = tpu.matmul %42, %43, %cst_17 {dimension_numbers = #tpu.dot_dimension_numbers<[1], [0], [0], [1], [0, 0, 1, 1], [], []>} : vector<4x8xbf16>, vector<8x8xbf16>, vector<4x8xf32> -> vector<4x8xf32>
    %45 = arith.addf %41, %44 : vector<4x8xf32>
    %46 = vector.extract_strided_slice %37 {offsets = [2, 0], sizes = [4, 8], strides = [1, 1]} : vector<6x8xbf16> to vector<4x8xbf16>
    %47 = vector.extract_strided_slice %0 {offsets = [64, 0], sizes = [8, 8], strides = [1, 1]} : vector<72x8xbf16> to vector<8x8xbf16>
    %cst_18 = arith.constant dense<0.000000e+00> : vector<4x8xf32>
    %48 = tpu.matmul %46, %47, %cst_18 {dimension_numbers = #tpu.dot_dimension_numbers<[1], [0], [0], [1], [0, 0, 1, 1], [], []>} : vector<4x8xbf16>, vector<8x8xbf16>, vector<4x8xf32> -> vector<4x8xf32>
    %49 = arith.addf %45, %48 : vector<4x8xf32>
    %c0_19 = arith.constant 0 : index
    %c0_20 = arith.constant 0 : index
    %50 = vector.load %arg4[%c0_19, %c0_20] : memref<1x8xf32, #tpu.memory_space<vmem>>, vector<1x8xf32>
    %51 = vector.broadcast %50 : vector<1x8xf32> to vector<4x8xf32>
    %52 = arith.addf %49, %51 : vector<4x8xf32>
    %53 = arith.negf %52 : vector<4x8xf32>
    %54 = math.exp %53 : vector<4x8xf32>
    %cst_21 = arith.constant 1.000000e+00 : f32
    %55 = vector.broadcast %cst_21 : f32 to vector<4x8xf32>
    %56 = arith.addf %55, %54 : vector<4x8xf32>
    %57 = arith.divf %55, %56 : vector<4x8xf32>
    %58 = arith.mulf %52, %57 : vector<4x8xf32>
    %c0_22 = arith.constant 0 : index
    %c0_23 = arith.constant 0 : index
    %c0_24 = arith.constant 0 : index
    %c0_25 = arith.constant 0 : index
    %59 = vector.load %arg5[%c0_22, %c0_23, %c0_24, %c0_25] : memref<1x1x4x8xbf16, #tpu.memory_space<vmem>>, vector<1x1x4x8xbf16>
    %60 = vector.shape_cast %59 : vector<1x1x4x8xbf16> to vector<4x8xbf16>
    %61 = arith.extf %60 : vector<4x8xbf16> to vector<4x8xf32>
    %62 = arith.addf %58, %61 : vector<4x8xf32>
    %63 = vector.shape_cast %62 : vector<4x8xf32> to vector<1x1x4x8xf32>
    %64 = arith.truncf %63 : vector<1x1x4x8xf32> to vector<1x1x4x8xbf16>
    %c0_26 = arith.constant 0 : index
    %c0_27 = arith.constant 0 : index
    %c0_28 = arith.constant 0 : index
    %c0_29 = arith.constant 0 : index
    %65 = vector.load %arg6[%c0_26, %c0_27, %c0_28, %c0_29] : memref<1x1x4x8xbf16, #tpu.memory_space<vmem>>, vector<1x1x4x8xbf16>
    tpu.vector_store %arg6[%c0_26, %c0_27, %c0_28, %c0_29], %64 {strides = array<i32>} : memref<1x1x4x8xbf16, #tpu.memory_space<vmem>>, vector<1x1x4x8xbf16>,
    return
  }
  func.func @transform_0(%arg0: i32, %arg1: i32) -> (i32, i32, i32, i32) {
    %c0_i32 = arith.constant 0 : i32
    %c0_i32_0 = arith.constant 0 : i32
    %c0_i32_1 = arith.constant 0 : i32
    %c0_i32_2 = arith.constant 0 : i32
    return %arg0, %c0_i32, %c0_i32_0, %c0_i32_1 : i32, i32, i32, i32
  }
  func.func @transform_1(%arg0: i32, %arg1: i32) -> (i32, i32) {
    %c0_i32 = arith.constant 0 : i32
    %c0_i32_0 = arith.constant 0 : i32
    %c0_i32_1 = arith.constant 0 : i32
    return %c0_i32, %c0_i32_0 : i32, i32
  }
  func.func @transform_2(%arg0: i32, %arg1: i32) -> (i32, i32) {
    %c0_i32 = arith.constant 0 : i32
    %c0_i32_0 = arith.constant 0 : i32
    %c0_i32_1 = arith.constant 0 : i32
    return %c0_i32, %c0_i32_0 : i32, i32
  }
  func.func @transform_3(%arg0: i32, %arg1: i32) -> (i32, i32, i32, i32) {
    %c0_i32 = arith.constant 0 : i32
    %c0_i32_0 = arith.constant 0 : i32
    %c0_i32_1 = arith.constant 0 : i32
    return %arg0, %arg1, %c0_i32, %c0_i32_0 : i32, i32, i32, i32
  }
  func.func @transform_4(%arg0: i32, %arg1: i32) -> (i32, i32, i32, i32) {
    %c0_i32 = arith.constant 0 : i32
    %c0_i32_0 = arith.constant 0 : i32
    %c0_i32_1 = arith.constant 0 : i32
    return %arg0, %arg1, %c0_i32, %c0_i32_0 : i32, i32, i32, i32
  }
}

module attributes {stable_mosaic.version = 11 : i64} {
  func.func @_conv_s1_kernel(%arg0: i32, %arg1: i32, %arg2: memref<1x6x6x8xbf16, #tpu.memory_space<vmem>>, %arg3: memref<72x8xbf16, #tpu.memory_space<vmem>>, %arg4: memref<1x8xf32, #tpu.memory_space<vmem>>, %arg5: memref<1x1x4x8xbf16, #tpu.memory_space<vmem>>) attributes {dimension_semantics = [#tpu.dimension_semantics<parallel>, #tpu.dimension_semantics<arbitrary>], iteration_bounds = array<i64: 2, 4>, scalar_prefetch = 0 : i64, scratch_operands = 0 : i64, tpu.core_type = #tpu.core_type<tc>, window_params = [{transform_indices = @transform_0, window_bounds = array<i64: 1, 6, 6, 8>}, {pipeline_mode = #tpu.pipeline_mode<synchronous>, transform_indices = @transform_1, window_bounds = array<i64: 72, 8>}, {pipeline_mode = #tpu.pipeline_mode<synchronous>, transform_indices = @transform_2, window_bounds = array<i64: 1, 8>}, {transform_indices = @transform_3, window_bounds = array<i64: 1, 1, 4, 8>}]} {
    %c0 = arith.constant 0 : index
    %c0_0 = arith.constant 0 : index
    %0 = vector.load %arg3[%c0, %c0_0] : memref<72x8xbf16, #tpu.memory_space<vmem>>, vector<72x8xbf16>
    %cst = arith.constant 0.000000e+00 : f32
    %1 = vector.broadcast %cst : f32 to vector<4x8xf32>
    %c0_i32 = arith.constant 0 : i32
    %2 = arith.addi %arg1, %c0_i32 : i32
    %c0_1 = arith.constant 0 : index
    %3 = arith.index_cast %2 : i32 to index
    %c0_2 = arith.constant 0 : index
    %c0_3 = arith.constant 0 : index
    %4 = vector.load %arg2[%c0_1, %3, %c0_2, %c0_3] : memref<1x6x6x8xbf16, #tpu.memory_space<vmem>>, vector<1x1x6x8xbf16>
    %5 = vector.shape_cast %4 : vector<1x1x6x8xbf16> to vector<6x8xbf16>
    %6 = vector.extract_strided_slice %5 {offsets = [0, 0], sizes = [4, 8], strides = [1, 1]} : vector<6x8xbf16> to vector<4x8xbf16>
    %7 = vector.extract_strided_slice %0 {offsets = [0, 0], sizes = [8, 8], strides = [1, 1]} : vector<72x8xbf16> to vector<8x8xbf16>
    %cst_4 = arith.constant dense<0.000000e+00> : vector<4x8xf32>
    %8 = tpu.matmul %6, %7, %cst_4 {dimension_numbers = #tpu.dot_dimension_numbers<[1], [0], [0], [1], [0, 0, 1, 1], [], []>} : vector<4x8xbf16>, vector<8x8xbf16>, vector<4x8xf32> -> vector<4x8xf32>
    %9 = arith.addf %1, %8 : vector<4x8xf32>
    %10 = vector.extract_strided_slice %5 {offsets = [1, 0], sizes = [4, 8], strides = [1, 1]} : vector<6x8xbf16> to vector<4x8xbf16>
    %11 = vector.extract_strided_slice %0 {offsets = [8, 0], sizes = [8, 8], strides = [1, 1]} : vector<72x8xbf16> to vector<8x8xbf16>
    %cst_5 = arith.constant dense<0.000000e+00> : vector<4x8xf32>
    %12 = tpu.matmul %10, %11, %cst_5 {dimension_numbers = #tpu.dot_dimension_numbers<[1], [0], [0], [1], [0, 0, 1, 1], [], []>} : vector<4x8xbf16>, vector<8x8xbf16>, vector<4x8xf32> -> vector<4x8xf32>
    %13 = arith.addf %9, %12 : vector<4x8xf32>
    %14 = vector.extract_strided_slice %5 {offsets = [2, 0], sizes = [4, 8], strides = [1, 1]} : vector<6x8xbf16> to vector<4x8xbf16>
    %15 = vector.extract_strided_slice %0 {offsets = [16, 0], sizes = [8, 8], strides = [1, 1]} : vector<72x8xbf16> to vector<8x8xbf16>
    %cst_6 = arith.constant dense<0.000000e+00> : vector<4x8xf32>
    %16 = tpu.matmul %14, %15, %cst_6 {dimension_numbers = #tpu.dot_dimension_numbers<[1], [0], [0], [1], [0, 0, 1, 1], [], []>} : vector<4x8xbf16>, vector<8x8xbf16>, vector<4x8xf32> -> vector<4x8xf32>
    %17 = arith.addf %13, %16 : vector<4x8xf32>
    %c1_i32 = arith.constant 1 : i32
    %18 = arith.addi %arg1, %c1_i32 : i32
    %c0_7 = arith.constant 0 : index
    %19 = arith.index_cast %18 : i32 to index
    %c0_8 = arith.constant 0 : index
    %c0_9 = arith.constant 0 : index
    %20 = vector.load %arg2[%c0_7, %19, %c0_8, %c0_9] : memref<1x6x6x8xbf16, #tpu.memory_space<vmem>>, vector<1x1x6x8xbf16>
    %21 = vector.shape_cast %20 : vector<1x1x6x8xbf16> to vector<6x8xbf16>
    %22 = vector.extract_strided_slice %21 {offsets = [0, 0], sizes = [4, 8], strides = [1, 1]} : vector<6x8xbf16> to vector<4x8xbf16>
    %23 = vector.extract_strided_slice %0 {offsets = [24, 0], sizes = [8, 8], strides = [1, 1]} : vector<72x8xbf16> to vector<8x8xbf16>
    %cst_10 = arith.constant dense<0.000000e+00> : vector<4x8xf32>
    %24 = tpu.matmul %22, %23, %cst_10 {dimension_numbers = #tpu.dot_dimension_numbers<[1], [0], [0], [1], [0, 0, 1, 1], [], []>} : vector<4x8xbf16>, vector<8x8xbf16>, vector<4x8xf32> -> vector<4x8xf32>
    %25 = arith.addf %17, %24 : vector<4x8xf32>
    %26 = vector.extract_strided_slice %21 {offsets = [1, 0], sizes = [4, 8], strides = [1, 1]} : vector<6x8xbf16> to vector<4x8xbf16>
    %27 = vector.extract_strided_slice %0 {offsets = [32, 0], sizes = [8, 8], strides = [1, 1]} : vector<72x8xbf16> to vector<8x8xbf16>
    %cst_11 = arith.constant dense<0.000000e+00> : vector<4x8xf32>
    %28 = tpu.matmul %26, %27, %cst_11 {dimension_numbers = #tpu.dot_dimension_numbers<[1], [0], [0], [1], [0, 0, 1, 1], [], []>} : vector<4x8xbf16>, vector<8x8xbf16>, vector<4x8xf32> -> vector<4x8xf32>
    %29 = arith.addf %25, %28 : vector<4x8xf32>
    %30 = vector.extract_strided_slice %21 {offsets = [2, 0], sizes = [4, 8], strides = [1, 1]} : vector<6x8xbf16> to vector<4x8xbf16>
    %31 = vector.extract_strided_slice %0 {offsets = [40, 0], sizes = [8, 8], strides = [1, 1]} : vector<72x8xbf16> to vector<8x8xbf16>
    %cst_12 = arith.constant dense<0.000000e+00> : vector<4x8xf32>
    %32 = tpu.matmul %30, %31, %cst_12 {dimension_numbers = #tpu.dot_dimension_numbers<[1], [0], [0], [1], [0, 0, 1, 1], [], []>} : vector<4x8xbf16>, vector<8x8xbf16>, vector<4x8xf32> -> vector<4x8xf32>
    %33 = arith.addf %29, %32 : vector<4x8xf32>
    %c2_i32 = arith.constant 2 : i32
    %34 = arith.addi %arg1, %c2_i32 : i32
    %c0_13 = arith.constant 0 : index
    %35 = arith.index_cast %34 : i32 to index
    %c0_14 = arith.constant 0 : index
    %c0_15 = arith.constant 0 : index
    %36 = vector.load %arg2[%c0_13, %35, %c0_14, %c0_15] : memref<1x6x6x8xbf16, #tpu.memory_space<vmem>>, vector<1x1x6x8xbf16>
    %37 = vector.shape_cast %36 : vector<1x1x6x8xbf16> to vector<6x8xbf16>
    %38 = vector.extract_strided_slice %37 {offsets = [0, 0], sizes = [4, 8], strides = [1, 1]} : vector<6x8xbf16> to vector<4x8xbf16>
    %39 = vector.extract_strided_slice %0 {offsets = [48, 0], sizes = [8, 8], strides = [1, 1]} : vector<72x8xbf16> to vector<8x8xbf16>
    %cst_16 = arith.constant dense<0.000000e+00> : vector<4x8xf32>
    %40 = tpu.matmul %38, %39, %cst_16 {dimension_numbers = #tpu.dot_dimension_numbers<[1], [0], [0], [1], [0, 0, 1, 1], [], []>} : vector<4x8xbf16>, vector<8x8xbf16>, vector<4x8xf32> -> vector<4x8xf32>
    %41 = arith.addf %33, %40 : vector<4x8xf32>
    %42 = vector.extract_strided_slice %37 {offsets = [1, 0], sizes = [4, 8], strides = [1, 1]} : vector<6x8xbf16> to vector<4x8xbf16>
    %43 = vector.extract_strided_slice %0 {offsets = [56, 0], sizes = [8, 8], strides = [1, 1]} : vector<72x8xbf16> to vector<8x8xbf16>
    %cst_17 = arith.constant dense<0.000000e+00> : vector<4x8xf32>
    %44 = tpu.matmul %42, %43, %cst_17 {dimension_numbers = #tpu.dot_dimension_numbers<[1], [0], [0], [1], [0, 0, 1, 1], [], []>} : vector<4x8xbf16>, vector<8x8xbf16>, vector<4x8xf32> -> vector<4x8xf32>
    %45 = arith.addf %41, %44 : vector<4x8xf32>
    %46 = vector.extract_strided_slice %37 {offsets = [2, 0], sizes = [4, 8], strides = [1, 1]} : vector<6x8xbf16> to vector<4x8xbf16>
    %47 = vector.extract_strided_slice %0 {offsets = [64, 0], sizes = [8, 8], strides = [1, 1]} : vector<72x8xbf16> to vector<8x8xbf16>
    %cst_18 = arith.constant dense<0.000000e+00> : vector<4x8xf32>
    %48 = tpu.matmul %46, %47, %cst_18 {dimension_numbers = #tpu.dot_dimension_numbers<[1], [0], [0], [1], [0, 0, 1, 1], [], []>} : vector<4x8xbf16>, vector<8x8xbf16>, vector<4x8xf32> -> vector<4x8xf32>
    %49 = arith.addf %45, %48 : vector<4x8xf32>
    %c0_19 = arith.constant 0 : index
    %c0_20 = arith.constant 0 : index
    %50 = vector.load %arg4[%c0_19, %c0_20] : memref<1x8xf32, #tpu.memory_space<vmem>>, vector<1x8xf32>
    %51 = vector.broadcast %50 : vector<1x8xf32> to vector<4x8xf32>
    %52 = arith.addf %49, %51 : vector<4x8xf32>
    %53 = arith.negf %52 : vector<4x8xf32>
    %54 = math.exp %53 : vector<4x8xf32>
    %cst_21 = arith.constant 1.000000e+00 : f32
    %55 = vector.broadcast %cst_21 : f32 to vector<4x8xf32>
    %56 = arith.addf %55, %54 : vector<4x8xf32>
    %57 = arith.divf %55, %56 : vector<4x8xf32>
    %58 = arith.mulf %52, %57 : vector<4x8xf32>
    %59 = vector.shape_cast %58 : vector<4x8xf32> to vector<1x1x4x8xf32>
    %60 = arith.truncf %59 : vector<1x1x4x8xf32> to vector<1x1x4x8xbf16>
    %c0_22 = arith.constant 0 : index
    %c0_23 = arith.constant 0 : index
    %c0_24 = arith.constant 0 : index
    %c0_25 = arith.constant 0 : index
    %61 = vector.load %arg5[%c0_22, %c0_23, %c0_24, %c0_25] : memref<1x1x4x8xbf16, #tpu.memory_space<vmem>>, vector<1x1x4x8xbf16>
    tpu.vector_store %arg5[%c0_22, %c0_23, %c0_24, %c0_25], %60 {strides = array<i32>} : memref<1x1x4x8xbf16, #tpu.memory_space<vmem>>, vector<1x1x4x8xbf16>,
    return
  }
  func.func @transform_0(%arg0: i32, %arg1: i32) -> (i32, i32, i32, i32) {
    %c0_i32 = arith.constant 0 : i32
    %c0_i32_0 = arith.constant 0 : i32
    %c0_i32_1 = arith.constant 0 : i32
    %c0_i32_2 = arith.constant 0 : i32
    return %arg0, %c0_i32, %c0_i32_0, %c0_i32_1 : i32, i32, i32, i32
  }
  func.func @transform_1(%arg0: i32, %arg1: i32) -> (i32, i32) {
    %c0_i32 = arith.constant 0 : i32
    %c0_i32_0 = arith.constant 0 : i32
    %c0_i32_1 = arith.constant 0 : i32
    return %c0_i32, %c0_i32_0 : i32, i32
  }
  func.func @transform_2(%arg0: i32, %arg1: i32) -> (i32, i32) {
    %c0_i32 = arith.constant 0 : i32
    %c0_i32_0 = arith.constant 0 : i32
    %c0_i32_1 = arith.constant 0 : i32
    return %c0_i32, %c0_i32_0 : i32, i32
  }
  func.func @transform_3(%arg0: i32, %arg1: i32) -> (i32, i32, i32, i32) {
    %c0_i32 = arith.constant 0 : i32
    %c0_i32_0 = arith.constant 0 : i32
    %c0_i32_1 = arith.constant 0 : i32
    return %arg0, %arg1, %c0_i32, %c0_i32_0 : i32, i32, i32, i32
  }
}

module attributes {stable_mosaic.version = 11 : i64} {
  func.func @_conv_s1_kernel(%arg0: i32, %arg1: i32, %arg2: memref<1x6x6x16xbf16, #tpu.memory_space<vmem>>, %arg3: memref<144x16xbf16, #tpu.memory_space<vmem>>, %arg4: memref<1x16xf32, #tpu.memory_space<vmem>>, %arg5: memref<1x1x4x16xbf16, #tpu.memory_space<vmem>>) attributes {dimension_semantics = [#tpu.dimension_semantics<parallel>, #tpu.dimension_semantics<arbitrary>], iteration_bounds = array<i64: 2, 4>, scalar_prefetch = 0 : i64, scratch_operands = 0 : i64, tpu.core_type = #tpu.core_type<tc>, window_params = [{transform_indices = @transform_0, window_bounds = array<i64: 1, 6, 6, 16>}, {pipeline_mode = #tpu.pipeline_mode<synchronous>, transform_indices = @transform_1, window_bounds = array<i64: 144, 16>}, {pipeline_mode = #tpu.pipeline_mode<synchronous>, transform_indices = @transform_2, window_bounds = array<i64: 1, 16>}, {transform_indices = @transform_3, window_bounds = array<i64: 1, 1, 4, 16>}]} {
    %c0 = arith.constant 0 : index
    %c0_0 = arith.constant 0 : index
    %0 = vector.load %arg3[%c0, %c0_0] : memref<144x16xbf16, #tpu.memory_space<vmem>>, vector<144x16xbf16>
    %cst = arith.constant 0.000000e+00 : f32
    %1 = vector.broadcast %cst : f32 to vector<4x16xf32>
    %c0_i32 = arith.constant 0 : i32
    %2 = arith.addi %arg1, %c0_i32 : i32
    %c0_1 = arith.constant 0 : index
    %3 = arith.index_cast %2 : i32 to index
    %c0_2 = arith.constant 0 : index
    %c0_3 = arith.constant 0 : index
    %4 = vector.load %arg2[%c0_1, %3, %c0_2, %c0_3] : memref<1x6x6x16xbf16, #tpu.memory_space<vmem>>, vector<1x1x6x16xbf16>
    %5 = vector.shape_cast %4 : vector<1x1x6x16xbf16> to vector<6x16xbf16>
    %6 = vector.extract_strided_slice %5 {offsets = [0, 0], sizes = [4, 16], strides = [1, 1]} : vector<6x16xbf16> to vector<4x16xbf16>
    %7 = vector.extract_strided_slice %0 {offsets = [0, 0], sizes = [16, 16], strides = [1, 1]} : vector<144x16xbf16> to vector<16x16xbf16>
    %cst_4 = arith.constant dense<0.000000e+00> : vector<4x16xf32>
    %8 = tpu.matmul %6, %7, %cst_4 {dimension_numbers = #tpu.dot_dimension_numbers<[1], [0], [0], [1], [0, 0, 1, 1], [], []>} : vector<4x16xbf16>, vector<16x16xbf16>, vector<4x16xf32> -> vector<4x16xf32>
    %9 = arith.addf %1, %8 : vector<4x16xf32>
    %10 = vector.extract_strided_slice %5 {offsets = [1, 0], sizes = [4, 16], strides = [1, 1]} : vector<6x16xbf16> to vector<4x16xbf16>
    %11 = vector.extract_strided_slice %0 {offsets = [16, 0], sizes = [16, 16], strides = [1, 1]} : vector<144x16xbf16> to vector<16x16xbf16>
    %cst_5 = arith.constant dense<0.000000e+00> : vector<4x16xf32>
    %12 = tpu.matmul %10, %11, %cst_5 {dimension_numbers = #tpu.dot_dimension_numbers<[1], [0], [0], [1], [0, 0, 1, 1], [], []>} : vector<4x16xbf16>, vector<16x16xbf16>, vector<4x16xf32> -> vector<4x16xf32>
    %13 = arith.addf %9, %12 : vector<4x16xf32>
    %14 = vector.extract_strided_slice %5 {offsets = [2, 0], sizes = [4, 16], strides = [1, 1]} : vector<6x16xbf16> to vector<4x16xbf16>
    %15 = vector.extract_strided_slice %0 {offsets = [32, 0], sizes = [16, 16], strides = [1, 1]} : vector<144x16xbf16> to vector<16x16xbf16>
    %cst_6 = arith.constant dense<0.000000e+00> : vector<4x16xf32>
    %16 = tpu.matmul %14, %15, %cst_6 {dimension_numbers = #tpu.dot_dimension_numbers<[1], [0], [0], [1], [0, 0, 1, 1], [], []>} : vector<4x16xbf16>, vector<16x16xbf16>, vector<4x16xf32> -> vector<4x16xf32>
    %17 = arith.addf %13, %16 : vector<4x16xf32>
    %c1_i32 = arith.constant 1 : i32
    %18 = arith.addi %arg1, %c1_i32 : i32
    %c0_7 = arith.constant 0 : index
    %19 = arith.index_cast %18 : i32 to index
    %c0_8 = arith.constant 0 : index
    %c0_9 = arith.constant 0 : index
    %20 = vector.load %arg2[%c0_7, %19, %c0_8, %c0_9] : memref<1x6x6x16xbf16, #tpu.memory_space<vmem>>, vector<1x1x6x16xbf16>
    %21 = vector.shape_cast %20 : vector<1x1x6x16xbf16> to vector<6x16xbf16>
    %22 = vector.extract_strided_slice %21 {offsets = [0, 0], sizes = [4, 16], strides = [1, 1]} : vector<6x16xbf16> to vector<4x16xbf16>
    %23 = vector.extract_strided_slice %0 {offsets = [48, 0], sizes = [16, 16], strides = [1, 1]} : vector<144x16xbf16> to vector<16x16xbf16>
    %cst_10 = arith.constant dense<0.000000e+00> : vector<4x16xf32>
    %24 = tpu.matmul %22, %23, %cst_10 {dimension_numbers = #tpu.dot_dimension_numbers<[1], [0], [0], [1], [0, 0, 1, 1], [], []>} : vector<4x16xbf16>, vector<16x16xbf16>, vector<4x16xf32> -> vector<4x16xf32>
    %25 = arith.addf %17, %24 : vector<4x16xf32>
    %26 = vector.extract_strided_slice %21 {offsets = [1, 0], sizes = [4, 16], strides = [1, 1]} : vector<6x16xbf16> to vector<4x16xbf16>
    %27 = vector.extract_strided_slice %0 {offsets = [64, 0], sizes = [16, 16], strides = [1, 1]} : vector<144x16xbf16> to vector<16x16xbf16>
    %cst_11 = arith.constant dense<0.000000e+00> : vector<4x16xf32>
    %28 = tpu.matmul %26, %27, %cst_11 {dimension_numbers = #tpu.dot_dimension_numbers<[1], [0], [0], [1], [0, 0, 1, 1], [], []>} : vector<4x16xbf16>, vector<16x16xbf16>, vector<4x16xf32> -> vector<4x16xf32>
    %29 = arith.addf %25, %28 : vector<4x16xf32>
    %30 = vector.extract_strided_slice %21 {offsets = [2, 0], sizes = [4, 16], strides = [1, 1]} : vector<6x16xbf16> to vector<4x16xbf16>
    %31 = vector.extract_strided_slice %0 {offsets = [80, 0], sizes = [16, 16], strides = [1, 1]} : vector<144x16xbf16> to vector<16x16xbf16>
    %cst_12 = arith.constant dense<0.000000e+00> : vector<4x16xf32>
    %32 = tpu.matmul %30, %31, %cst_12 {dimension_numbers = #tpu.dot_dimension_numbers<[1], [0], [0], [1], [0, 0, 1, 1], [], []>} : vector<4x16xbf16>, vector<16x16xbf16>, vector<4x16xf32> -> vector<4x16xf32>
    %33 = arith.addf %29, %32 : vector<4x16xf32>
    %c2_i32 = arith.constant 2 : i32
    %34 = arith.addi %arg1, %c2_i32 : i32
    %c0_13 = arith.constant 0 : index
    %35 = arith.index_cast %34 : i32 to index
    %c0_14 = arith.constant 0 : index
    %c0_15 = arith.constant 0 : index
    %36 = vector.load %arg2[%c0_13, %35, %c0_14, %c0_15] : memref<1x6x6x16xbf16, #tpu.memory_space<vmem>>, vector<1x1x6x16xbf16>
    %37 = vector.shape_cast %36 : vector<1x1x6x16xbf16> to vector<6x16xbf16>
    %38 = vector.extract_strided_slice %37 {offsets = [0, 0], sizes = [4, 16], strides = [1, 1]} : vector<6x16xbf16> to vector<4x16xbf16>
    %39 = vector.extract_strided_slice %0 {offsets = [96, 0], sizes = [16, 16], strides = [1, 1]} : vector<144x16xbf16> to vector<16x16xbf16>
    %cst_16 = arith.constant dense<0.000000e+00> : vector<4x16xf32>
    %40 = tpu.matmul %38, %39, %cst_16 {dimension_numbers = #tpu.dot_dimension_numbers<[1], [0], [0], [1], [0, 0, 1, 1], [], []>} : vector<4x16xbf16>, vector<16x16xbf16>, vector<4x16xf32> -> vector<4x16xf32>
    %41 = arith.addf %33, %40 : vector<4x16xf32>
    %42 = vector.extract_strided_slice %37 {offsets = [1, 0], sizes = [4, 16], strides = [1, 1]} : vector<6x16xbf16> to vector<4x16xbf16>
    %43 = vector.extract_strided_slice %0 {offsets = [112, 0], sizes = [16, 16], strides = [1, 1]} : vector<144x16xbf16> to vector<16x16xbf16>
    %cst_17 = arith.constant dense<0.000000e+00> : vector<4x16xf32>
    %44 = tpu.matmul %42, %43, %cst_17 {dimension_numbers = #tpu.dot_dimension_numbers<[1], [0], [0], [1], [0, 0, 1, 1], [], []>} : vector<4x16xbf16>, vector<16x16xbf16>, vector<4x16xf32> -> vector<4x16xf32>
    %45 = arith.addf %41, %44 : vector<4x16xf32>
    %46 = vector.extract_strided_slice %37 {offsets = [2, 0], sizes = [4, 16], strides = [1, 1]} : vector<6x16xbf16> to vector<4x16xbf16>
    %47 = vector.extract_strided_slice %0 {offsets = [128, 0], sizes = [16, 16], strides = [1, 1]} : vector<144x16xbf16> to vector<16x16xbf16>
    %cst_18 = arith.constant dense<0.000000e+00> : vector<4x16xf32>
    %48 = tpu.matmul %46, %47, %cst_18 {dimension_numbers = #tpu.dot_dimension_numbers<[1], [0], [0], [1], [0, 0, 1, 1], [], []>} : vector<4x16xbf16>, vector<16x16xbf16>, vector<4x16xf32> -> vector<4x16xf32>
    %49 = arith.addf %45, %48 : vector<4x16xf32>
    %c0_19 = arith.constant 0 : index
    %c0_20 = arith.constant 0 : index
    %50 = vector.load %arg4[%c0_19, %c0_20] : memref<1x16xf32, #tpu.memory_space<vmem>>, vector<1x16xf32>
    %51 = vector.broadcast %50 : vector<1x16xf32> to vector<4x16xf32>
    %52 = arith.addf %49, %51 : vector<4x16xf32>
    %53 = arith.negf %52 : vector<4x16xf32>
    %54 = math.exp %53 : vector<4x16xf32>
    %cst_21 = arith.constant 1.000000e+00 : f32
    %55 = vector.broadcast %cst_21 : f32 to vector<4x16xf32>
    %56 = arith.addf %55, %54 : vector<4x16xf32>
    %57 = arith.divf %55, %56 : vector<4x16xf32>
    %58 = arith.mulf %52, %57 : vector<4x16xf32>
    %59 = vector.shape_cast %58 : vector<4x16xf32> to vector<1x1x4x16xf32>
    %60 = arith.truncf %59 : vector<1x1x4x16xf32> to vector<1x1x4x16xbf16>
    %c0_22 = arith.constant 0 : index
    %c0_23 = arith.constant 0 : index
    %c0_24 = arith.constant 0 : index
    %c0_25 = arith.constant 0 : index
    %61 = vector.load %arg5[%c0_22, %c0_23, %c0_24, %c0_25] : memref<1x1x4x16xbf16, #tpu.memory_space<vmem>>, vector<1x1x4x16xbf16>
    tpu.vector_store %arg5[%c0_22, %c0_23, %c0_24, %c0_25], %60 {strides = array<i32>} : memref<1x1x4x16xbf16, #tpu.memory_space<vmem>>, vector<1x1x4x16xbf16>,
    return
  }
  func.func @transform_0(%arg0: i32, %arg1: i32) -> (i32, i32, i32, i32) {
    %c0_i32 = arith.constant 0 : i32
    %c0_i32_0 = arith.constant 0 : i32
    %c0_i32_1 = arith.constant 0 : i32
    %c0_i32_2 = arith.constant 0 : i32
    return %arg0, %c0_i32, %c0_i32_0, %c0_i32_1 : i32, i32, i32, i32
  }
  func.func @transform_1(%arg0: i32, %arg1: i32) -> (i32, i32) {
    %c0_i32 = arith.constant 0 : i32
    %c0_i32_0 = arith.constant 0 : i32
    %c0_i32_1 = arith.constant 0 : i32
    return %c0_i32, %c0_i32_0 : i32, i32
  }
  func.func @transform_2(%arg0: i32, %arg1: i32) -> (i32, i32) {
    %c0_i32 = arith.constant 0 : i32
    %c0_i32_0 = arith.constant 0 : i32
    %c0_i32_1 = arith.constant 0 : i32
    return %c0_i32, %c0_i32_0 : i32, i32
  }
  func.func @transform_3(%arg0: i32, %arg1: i32) -> (i32, i32, i32, i32) {
    %c0_i32 = arith.constant 0 : i32
    %c0_i32_0 = arith.constant 0 : i32
    %c0_i32_1 = arith.constant 0 : i32
    return %arg0, %arg1, %c0_i32, %c0_i32_0 : i32, i32, i32, i32
  }
}

module attributes {stable_mosaic.version = 11 : i64} {
  func.func @_matmul_kernel(%arg0: i32, %arg1: memref<32x8xbf16, #tpu.memory_space<vmem>>, %arg2: memref<32x8xbf16, #tpu.memory_space<vmem>>, %arg3: memref<8x16xbf16, #tpu.memory_space<vmem>>, %arg4: memref<8x16xbf16, #tpu.memory_space<vmem>>, %arg5: memref<1x16xf32, #tpu.memory_space<vmem>>, %arg6: memref<32x16xbf16, #tpu.memory_space<vmem>>) attributes {dimension_semantics = [#tpu.dimension_semantics<parallel>], iteration_bounds = array<i64: 1>, scalar_prefetch = 0 : i64, scratch_operands = 0 : i64, tpu.core_type = #tpu.core_type<tc>, window_params = [{transform_indices = @transform_0, window_bounds = array<i64: 32, 8>}, {transform_indices = @transform_1, window_bounds = array<i64: 32, 8>}, {pipeline_mode = #tpu.pipeline_mode<synchronous>, transform_indices = @transform_2, window_bounds = array<i64: 8, 16>}, {pipeline_mode = #tpu.pipeline_mode<synchronous>, transform_indices = @transform_3, window_bounds = array<i64: 8, 16>}, {pipeline_mode = #tpu.pipeline_mode<synchronous>, transform_indices = @transform_4, window_bounds = array<i64: 1, 16>}, {transform_indices = @transform_5, window_bounds = array<i64: 32, 16>}]} {
    %c0 = arith.constant 0 : index
    %c0_0 = arith.constant 0 : index
    %0 = vector.load %arg1[%c0, %c0_0] : memref<32x8xbf16, #tpu.memory_space<vmem>>, vector<32x8xbf16>
    %c0_1 = arith.constant 0 : index
    %c0_2 = arith.constant 0 : index
    %1 = vector.load %arg3[%c0_1, %c0_2] : memref<8x16xbf16, #tpu.memory_space<vmem>>, vector<8x16xbf16>
    %cst = arith.constant dense<0.000000e+00> : vector<32x16xf32>
    %2 = tpu.matmul %0, %1, %cst {dimension_numbers = #tpu.dot_dimension_numbers<[1], [0], [0], [1], [0, 0, 1, 1], [], []>} : vector<32x8xbf16>, vector<8x16xbf16>, vector<32x16xf32> -> vector<32x16xf32>
    %c0_3 = arith.constant 0 : index
    %c0_4 = arith.constant 0 : index
    %3 = vector.load %arg2[%c0_3, %c0_4] : memref<32x8xbf16, #tpu.memory_space<vmem>>, vector<32x8xbf16>
    %c0_5 = arith.constant 0 : index
    %c0_6 = arith.constant 0 : index
    %4 = vector.load %arg4[%c0_5, %c0_6] : memref<8x16xbf16, #tpu.memory_space<vmem>>, vector<8x16xbf16>
    %cst_7 = arith.constant dense<0.000000e+00> : vector<32x16xf32>
    %5 = tpu.matmul %3, %4, %cst_7 {dimension_numbers = #tpu.dot_dimension_numbers<[1], [0], [0], [1], [0, 0, 1, 1], [], []>} : vector<32x8xbf16>, vector<8x16xbf16>, vector<32x16xf32> -> vector<32x16xf32>
    %6 = arith.addf %2, %5 : vector<32x16xf32>
    %c0_8 = arith.constant 0 : index
    %c0_9 = arith.constant 0 : index
    %7 = vector.load %arg5[%c0_8, %c0_9] : memref<1x16xf32, #tpu.memory_space<vmem>>, vector<1x16xf32>
    %8 = vector.broadcast %7 : vector<1x16xf32> to vector<32x16xf32>
    %9 = arith.addf %6, %8 : vector<32x16xf32>
    %10 = arith.negf %9 : vector<32x16xf32>
    %11 = math.exp %10 : vector<32x16xf32>
    %cst_10 = arith.constant 1.000000e+00 : f32
    %12 = vector.broadcast %cst_10 : f32 to vector<32x16xf32>
    %13 = arith.addf %12, %11 : vector<32x16xf32>
    %14 = arith.divf %12, %13 : vector<32x16xf32>
    %15 = arith.mulf %9, %14 : vector<32x16xf32>
    %16 = arith.truncf %15 : vector<32x16xf32> to vector<32x16xbf16>
    %c0_11 = arith.constant 0 : index
    %c0_12 = arith.constant 0 : index
    %17 = vector.load %arg6[%c0_11, %c0_12] : memref<32x16xbf16, #tpu.memory_space<vmem>>, vector<32x16xbf16>
    tpu.vector_store %arg6[%c0_11, %c0_12], %16 {strides = array<i32>} : memref<32x16xbf16, #tpu.memory_space<vmem>>, vector<32x16xbf16>,
    return
  }
  func.func @transform_0(%arg0: i32) -> (i32, i32) {
    %c0_i32 = arith.constant 0 : i32
    %c0_i32_0 = arith.constant 0 : i32
    return %arg0, %c0_i32 : i32, i32
  }
  func.func @transform_1(%arg0: i32) -> (i32, i32) {
    %c0_i32 = arith.constant 0 : i32
    %c0_i32_0 = arith.constant 0 : i32
    return %arg0, %c0_i32 : i32, i32
  }
  func.func @transform_2(%arg0: i32) -> (i32, i32) {
    %c0_i32 = arith.constant 0 : i32
    %c0_i32_0 = arith.constant 0 : i32
    %c0_i32_1 = arith.constant 0 : i32
    return %c0_i32, %c0_i32_0 : i32, i32
  }
  func.func @transform_3(%arg0: i32) -> (i32, i32) {
    %c0_i32 = arith.constant 0 : i32
    %c0_i32_0 = arith.constant 0 : i32
    %c0_i32_1 = arith.constant 0 : i32
    return %c0_i32, %c0_i32_0 : i32, i32
  }
  func.func @transform_4(%arg0: i32) -> (i32, i32) {
    %c0_i32 = arith.constant 0 : i32
    %c0_i32_0 = arith.constant 0 : i32
    %c0_i32_1 = arith.constant 0 : i32
    return %c0_i32, %c0_i32_0 : i32, i32
  }
  func.func @transform_5(%arg0: i32) -> (i32, i32) {
    %c0_i32 = arith.constant 0 : i32
    %c0_i32_0 = arith.constant 0 : i32
    return %arg0, %c0_i32 : i32, i32
  }
}

module attributes {stable_mosaic.version = 11 : i64} {
  func.func @_matmul_kernel(%arg0: i32, %arg1: memref<32x32xbf16, #tpu.memory_space<vmem>>, %arg2: memref<32x16xbf16, #tpu.memory_space<vmem>>, %arg3: memref<32x16xbf16, #tpu.memory_space<vmem>>, %arg4: memref<32x48xbf16, #tpu.memory_space<vmem>>, %arg5: memref<16x48xbf16, #tpu.memory_space<vmem>>, %arg6: memref<16x48xbf16, #tpu.memory_space<vmem>>, %arg7: memref<1x48xf32, #tpu.memory_space<vmem>>, %arg8: memref<32x48xbf16, #tpu.memory_space<vmem>>) attributes {dimension_semantics = [#tpu.dimension_semantics<parallel>], iteration_bounds = array<i64: 1>, scalar_prefetch = 0 : i64, scratch_operands = 0 : i64, tpu.core_type = #tpu.core_type<tc>, window_params = [{transform_indices = @transform_0, window_bounds = array<i64: 32, 32>}, {transform_indices = @transform_1, window_bounds = array<i64: 32, 16>}, {transform_indices = @transform_2, window_bounds = array<i64: 32, 16>}, {pipeline_mode = #tpu.pipeline_mode<synchronous>, transform_indices = @transform_3, window_bounds = array<i64: 32, 48>}, {pipeline_mode = #tpu.pipeline_mode<synchronous>, transform_indices = @transform_4, window_bounds = array<i64: 16, 48>}, {pipeline_mode = #tpu.pipeline_mode<synchronous>, transform_indices = @transform_5, window_bounds = array<i64: 16, 48>}, {pipeline_mode = #tpu.pipeline_mode<synchronous>, transform_indices = @transform_6, window_bounds = array<i64: 1, 48>}, {transform_indices = @transform_7, window_bounds = array<i64: 32, 48>}]} {
    %c0 = arith.constant 0 : index
    %c0_0 = arith.constant 0 : index
    %0 = vector.load %arg1[%c0, %c0_0] : memref<32x32xbf16, #tpu.memory_space<vmem>>, vector<32x32xbf16>
    %c0_1 = arith.constant 0 : index
    %c0_2 = arith.constant 0 : index
    %1 = vector.load %arg4[%c0_1, %c0_2] : memref<32x48xbf16, #tpu.memory_space<vmem>>, vector<32x48xbf16>
    %cst = arith.constant dense<0.000000e+00> : vector<32x48xf32>
    %2 = tpu.matmul %0, %1, %cst {dimension_numbers = #tpu.dot_dimension_numbers<[1], [0], [0], [1], [0, 0, 1, 1], [], []>} : vector<32x32xbf16>, vector<32x48xbf16>, vector<32x48xf32> -> vector<32x48xf32>
    %c0_3 = arith.constant 0 : index
    %c0_4 = arith.constant 0 : index
    %3 = vector.load %arg2[%c0_3, %c0_4] : memref<32x16xbf16, #tpu.memory_space<vmem>>, vector<32x16xbf16>
    %c0_5 = arith.constant 0 : index
    %c0_6 = arith.constant 0 : index
    %4 = vector.load %arg5[%c0_5, %c0_6] : memref<16x48xbf16, #tpu.memory_space<vmem>>, vector<16x48xbf16>
    %cst_7 = arith.constant dense<0.000000e+00> : vector<32x48xf32>
    %5 = tpu.matmul %3, %4, %cst_7 {dimension_numbers = #tpu.dot_dimension_numbers<[1], [0], [0], [1], [0, 0, 1, 1], [], []>} : vector<32x16xbf16>, vector<16x48xbf16>, vector<32x48xf32> -> vector<32x48xf32>
    %6 = arith.addf %2, %5 : vector<32x48xf32>
    %c0_8 = arith.constant 0 : index
    %c0_9 = arith.constant 0 : index
    %7 = vector.load %arg3[%c0_8, %c0_9] : memref<32x16xbf16, #tpu.memory_space<vmem>>, vector<32x16xbf16>
    %c0_10 = arith.constant 0 : index
    %c0_11 = arith.constant 0 : index
    %8 = vector.load %arg6[%c0_10, %c0_11] : memref<16x48xbf16, #tpu.memory_space<vmem>>, vector<16x48xbf16>
    %cst_12 = arith.constant dense<0.000000e+00> : vector<32x48xf32>
    %9 = tpu.matmul %7, %8, %cst_12 {dimension_numbers = #tpu.dot_dimension_numbers<[1], [0], [0], [1], [0, 0, 1, 1], [], []>} : vector<32x16xbf16>, vector<16x48xbf16>, vector<32x48xf32> -> vector<32x48xf32>
    %10 = arith.addf %6, %9 : vector<32x48xf32>
    %c0_13 = arith.constant 0 : index
    %c0_14 = arith.constant 0 : index
    %11 = vector.load %arg7[%c0_13, %c0_14] : memref<1x48xf32, #tpu.memory_space<vmem>>, vector<1x48xf32>
    %12 = vector.broadcast %11 : vector<1x48xf32> to vector<32x48xf32>
    %13 = arith.addf %10, %12 : vector<32x48xf32>
    %14 = arith.negf %13 : vector<32x48xf32>
    %15 = math.exp %14 : vector<32x48xf32>
    %cst_15 = arith.constant 1.000000e+00 : f32
    %16 = vector.broadcast %cst_15 : f32 to vector<32x48xf32>
    %17 = arith.addf %16, %15 : vector<32x48xf32>
    %18 = arith.divf %16, %17 : vector<32x48xf32>
    %19 = arith.mulf %13, %18 : vector<32x48xf32>
    %20 = arith.truncf %19 : vector<32x48xf32> to vector<32x48xbf16>
    %c0_16 = arith.constant 0 : index
    %c0_17 = arith.constant 0 : index
    %21 = vector.load %arg8[%c0_16, %c0_17] : memref<32x48xbf16, #tpu.memory_space<vmem>>, vector<32x48xbf16>
    tpu.vector_store %arg8[%c0_16, %c0_17], %20 {strides = array<i32>} : memref<32x48xbf16, #tpu.memory_space<vmem>>, vector<32x48xbf16>,
    return
  }
  func.func @transform_0(%arg0: i32) -> (i32, i32) {
    %c0_i32 = arith.constant 0 : i32
    %c0_i32_0 = arith.constant 0 : i32
    return %arg0, %c0_i32 : i32, i32
  }
  func.func @transform_1(%arg0: i32) -> (i32, i32) {
    %c0_i32 = arith.constant 0 : i32
    %c0_i32_0 = arith.constant 0 : i32
    return %arg0, %c0_i32 : i32, i32
  }
  func.func @transform_2(%arg0: i32) -> (i32, i32) {
    %c0_i32 = arith.constant 0 : i32
    %c0_i32_0 = arith.constant 0 : i32
    return %arg0, %c0_i32 : i32, i32
  }
  func.func @transform_3(%arg0: i32) -> (i32, i32) {
    %c0_i32 = arith.constant 0 : i32
    %c0_i32_0 = arith.constant 0 : i32
    %c0_i32_1 = arith.constant 0 : i32
    return %c0_i32, %c0_i32_0 : i32, i32
  }
  func.func @transform_4(%arg0: i32) -> (i32, i32) {
    %c0_i32 = arith.constant 0 : i32
    %c0_i32_0 = arith.constant 0 : i32
    %c0_i32_1 = arith.constant 0 : i32
    return %c0_i32, %c0_i32_0 : i32, i32
  }
  func.func @transform_5(%arg0: i32) -> (i32, i32) {
    %c0_i32 = arith.constant 0 : i32
    %c0_i32_0 = arith.constant 0 : i32
    %c0_i32_1 = arith.constant 0 : i32
    return %c0_i32, %c0_i32_0 : i32, i32
  }
  func.func @transform_6(%arg0: i32) -> (i32, i32) {
    %c0_i32 = arith.constant 0 : i32
    %c0_i32_0 = arith.constant 0 : i32
    %c0_i32_1 = arith.constant 0 : i32
    return %c0_i32, %c0_i32_0 : i32, i32
  }
  func.func @transform_7(%arg0: i32) -> (i32, i32) {
    %c0_i32 = arith.constant 0 : i32
    %c0_i32_0 = arith.constant 0 : i32
    return %arg0, %c0_i32 : i32, i32
  }
}

module attributes {stable_mosaic.version = 11 : i64} {
  func.func @_pool_kernel(%arg0: i32, %arg1: memref<18x4x48xbf16, #tpu.memory_space<vmem>>, %arg2: memref<18x48xbf16, #tpu.memory_space<vmem>>) attributes {dimension_semantics = [#tpu.dimension_semantics<parallel>], iteration_bounds = array<i64: 1>, scalar_prefetch = 0 : i64, scratch_operands = 0 : i64, tpu.core_type = #tpu.core_type<tc>, window_params = [{transform_indices = @transform_0, window_bounds = array<i64: 18, 4, 48>}, {transform_indices = @transform_1, window_bounds = array<i64: 18, 48>}]} {
    %c0 = arith.constant 0 : index
    %c0_0 = arith.constant 0 : index
    %c0_1 = arith.constant 0 : index
    %0 = vector.load %arg1[%c0, %c0_0, %c0_1] : memref<18x4x48xbf16, #tpu.memory_space<vmem>>, vector<18x4x48xbf16>
    %1 = arith.extf %0 : vector<18x4x48xbf16> to vector<18x4x48xf32>
    %cst = arith.constant dense<0.000000e+00> : vector<18x48xf32>
    %2 = vector.multi_reduction <add>, %1, %cst [1] : vector<18x4x48xf32> to vector<18x48xf32>
    %cst_2 = arith.constant 4.000000e+00 : f32
    %3 = vector.broadcast %cst_2 : f32 to vector<18x48xf32>
    %4 = arith.divf %2, %3 : vector<18x48xf32>
    %5 = arith.truncf %4 : vector<18x48xf32> to vector<18x48xbf16>
    %c0_3 = arith.constant 0 : index
    %c0_4 = arith.constant 0 : index
    %6 = vector.load %arg2[%c0_3, %c0_4] : memref<18x48xbf16, #tpu.memory_space<vmem>>, vector<18x48xbf16>
    tpu.vector_store %arg2[%c0_3, %c0_4], %5 {strides = array<i32>} : memref<18x48xbf16, #tpu.memory_space<vmem>>, vector<18x48xbf16>,
    return
  }
  func.func @transform_0(%arg0: i32) -> (i32, i32, i32) {
    %c0_i32 = arith.constant 0 : i32
    %c0_i32_0 = arith.constant 0 : i32
    %c0_i32_1 = arith.constant 0 : i32
    return %arg0, %c0_i32, %c0_i32_0 : i32, i32, i32
  }
  func.func @transform_1(%arg0: i32) -> (i32, i32) {
    %c0_i32 = arith.constant 0 : i32
    %c0_i32_0 = arith.constant 0 : i32
    return %arg0, %c0_i32 : i32, i32
  }
}

module attributes {stable_mosaic.version = 11 : i64} {
  func.func @_matmul_kernel(%arg0: i32, %arg1: memref<8x216xbf16, #tpu.memory_space<vmem>>, %arg2: memref<216x32xbf16, #tpu.memory_space<vmem>>, %arg3: memref<1x32xf32, #tpu.memory_space<vmem>>, %arg4: memref<8x32xbf16, #tpu.memory_space<vmem>>) attributes {dimension_semantics = [#tpu.dimension_semantics<parallel>], iteration_bounds = array<i64: 1>, scalar_prefetch = 0 : i64, scratch_operands = 0 : i64, tpu.core_type = #tpu.core_type<tc>, window_params = [{transform_indices = @transform_0, window_bounds = array<i64: 8, 216>}, {pipeline_mode = #tpu.pipeline_mode<synchronous>, transform_indices = @transform_1, window_bounds = array<i64: 216, 32>}, {pipeline_mode = #tpu.pipeline_mode<synchronous>, transform_indices = @transform_2, window_bounds = array<i64: 1, 32>}, {transform_indices = @transform_3, window_bounds = array<i64: 8, 32>}]} {
    %c0 = arith.constant 0 : index
    %c0_0 = arith.constant 0 : index
    %0 = vector.load %arg1[%c0, %c0_0] : memref<8x216xbf16, #tpu.memory_space<vmem>>, vector<8x216xbf16>
    %c0_1 = arith.constant 0 : index
    %c0_2 = arith.constant 0 : index
    %1 = vector.load %arg2[%c0_1, %c0_2] : memref<216x32xbf16, #tpu.memory_space<vmem>>, vector<216x32xbf16>
    %cst = arith.constant dense<0.000000e+00> : vector<8x32xf32>
    %2 = tpu.matmul %0, %1, %cst {dimension_numbers = #tpu.dot_dimension_numbers<[1], [0], [0], [1], [0, 0, 1, 1], [], []>} : vector<8x216xbf16>, vector<216x32xbf16>, vector<8x32xf32> -> vector<8x32xf32>
    %c0_3 = arith.constant 0 : index
    %c0_4 = arith.constant 0 : index
    %3 = vector.load %arg3[%c0_3, %c0_4] : memref<1x32xf32, #tpu.memory_space<vmem>>, vector<1x32xf32>
    %4 = vector.broadcast %3 : vector<1x32xf32> to vector<8x32xf32>
    %5 = arith.addf %2, %4 : vector<8x32xf32>
    %6 = arith.negf %5 : vector<8x32xf32>
    %7 = math.exp %6 : vector<8x32xf32>
    %cst_5 = arith.constant 1.000000e+00 : f32
    %8 = vector.broadcast %cst_5 : f32 to vector<8x32xf32>
    %9 = arith.addf %8, %7 : vector<8x32xf32>
    %10 = arith.divf %8, %9 : vector<8x32xf32>
    %11 = arith.mulf %5, %10 : vector<8x32xf32>
    %12 = arith.truncf %11 : vector<8x32xf32> to vector<8x32xbf16>
    %c0_6 = arith.constant 0 : index
    %c0_7 = arith.constant 0 : index
    %13 = vector.load %arg4[%c0_6, %c0_7] : memref<8x32xbf16, #tpu.memory_space<vmem>>, vector<8x32xbf16>
    tpu.vector_store %arg4[%c0_6, %c0_7], %12 {strides = array<i32>} : memref<8x32xbf16, #tpu.memory_space<vmem>>, vector<8x32xbf16>,
    return
  }
  func.func @transform_0(%arg0: i32) -> (i32, i32) {
    %c0_i32 = arith.constant 0 : i32
    %c0_i32_0 = arith.constant 0 : i32
    return %arg0, %c0_i32 : i32, i32
  }
  func.func @transform_1(%arg0: i32) -> (i32, i32) {
    %c0_i32 = arith.constant 0 : i32
    %c0_i32_0 = arith.constant 0 : i32
    %c0_i32_1 = arith.constant 0 : i32
    return %c0_i32, %c0_i32_0 : i32, i32
  }
  func.func @transform_2(%arg0: i32) -> (i32, i32) {
    %c0_i32 = arith.constant 0 : i32
    %c0_i32_0 = arith.constant 0 : i32
    %c0_i32_1 = arith.constant 0 : i32
    return %c0_i32, %c0_i32_0 : i32, i32
  }
  func.func @transform_3(%arg0: i32) -> (i32, i32) {
    %c0_i32 = arith.constant 0 : i32
    %c0_i32_0 = arith.constant 0 : i32
    return %arg0, %c0_i32 : i32, i32
  }
}

module attributes {stable_mosaic.version = 11 : i64} {
  func.func @_pool_kernel(%arg0: i32, %arg1: memref<8x9x24xbf16, #tpu.memory_space<vmem>>, %arg2: memref<8x24xbf16, #tpu.memory_space<vmem>>) attributes {dimension_semantics = [#tpu.dimension_semantics<parallel>], iteration_bounds = array<i64: 1>, scalar_prefetch = 0 : i64, scratch_operands = 0 : i64, tpu.core_type = #tpu.core_type<tc>, window_params = [{transform_indices = @transform_0, window_bounds = array<i64: 8, 9, 24>}, {transform_indices = @transform_1, window_bounds = array<i64: 8, 24>}]} {
    %c0 = arith.constant 0 : index
    %c0_0 = arith.constant 0 : index
    %c0_1 = arith.constant 0 : index
    %0 = vector.load %arg1[%c0, %c0_0, %c0_1] : memref<8x9x24xbf16, #tpu.memory_space<vmem>>, vector<8x9x24xbf16>
    %cst = arith.constant dense<0xFF80> : vector<8x24xbf16>
    %1 = vector.multi_reduction <maximumf>, %0, %cst [1] : vector<8x9x24xbf16> to vector<8x24xbf16>
    %c0_2 = arith.constant 0 : index
    %c0_3 = arith.constant 0 : index
    %2 = vector.load %arg2[%c0_2, %c0_3] : memref<8x24xbf16, #tpu.memory_space<vmem>>, vector<8x24xbf16>
    tpu.vector_store %arg2[%c0_2, %c0_3], %1 {strides = array<i32>} : memref<8x24xbf16, #tpu.memory_space<vmem>>, vector<8x24xbf16>,
    return
  }
  func.func @transform_0(%arg0: i32) -> (i32, i32, i32) {
    %c0_i32 = arith.constant 0 : i32
    %c0_i32_0 = arith.constant 0 : i32
    %c0_i32_1 = arith.constant 0 : i32
    return %arg0, %c0_i32, %c0_i32_0 : i32, i32, i32
  }
  func.func @transform_1(%arg0: i32) -> (i32, i32) {
    %c0_i32 = arith.constant 0 : i32
    %c0_i32_0 = arith.constant 0 : i32
    return %arg0, %c0_i32 : i32, i32
  }
}

module attributes {stable_mosaic.version = 11 : i64} {
  func.func @_matmul_kernel(%arg0: i32, %arg1: memref<8x24xbf16, #tpu.memory_space<vmem>>, %arg2: memref<24x32xbf16, #tpu.memory_space<vmem>>, %arg3: memref<1x32xf32, #tpu.memory_space<vmem>>, %arg4: memref<8x32xbf16, #tpu.memory_space<vmem>>) attributes {dimension_semantics = [#tpu.dimension_semantics<parallel>], iteration_bounds = array<i64: 1>, scalar_prefetch = 0 : i64, scratch_operands = 0 : i64, tpu.core_type = #tpu.core_type<tc>, window_params = [{transform_indices = @transform_0, window_bounds = array<i64: 8, 24>}, {pipeline_mode = #tpu.pipeline_mode<synchronous>, transform_indices = @transform_1, window_bounds = array<i64: 24, 32>}, {pipeline_mode = #tpu.pipeline_mode<synchronous>, transform_indices = @transform_2, window_bounds = array<i64: 1, 32>}, {transform_indices = @transform_3, window_bounds = array<i64: 8, 32>}]} {
    %c0 = arith.constant 0 : index
    %c0_0 = arith.constant 0 : index
    %0 = vector.load %arg1[%c0, %c0_0] : memref<8x24xbf16, #tpu.memory_space<vmem>>, vector<8x24xbf16>
    %c0_1 = arith.constant 0 : index
    %c0_2 = arith.constant 0 : index
    %1 = vector.load %arg2[%c0_1, %c0_2] : memref<24x32xbf16, #tpu.memory_space<vmem>>, vector<24x32xbf16>
    %cst = arith.constant dense<0.000000e+00> : vector<8x32xf32>
    %2 = tpu.matmul %0, %1, %cst {dimension_numbers = #tpu.dot_dimension_numbers<[1], [0], [0], [1], [0, 0, 1, 1], [], []>} : vector<8x24xbf16>, vector<24x32xbf16>, vector<8x32xf32> -> vector<8x32xf32>
    %c0_3 = arith.constant 0 : index
    %c0_4 = arith.constant 0 : index
    %3 = vector.load %arg3[%c0_3, %c0_4] : memref<1x32xf32, #tpu.memory_space<vmem>>, vector<1x32xf32>
    %4 = vector.broadcast %3 : vector<1x32xf32> to vector<8x32xf32>
    %5 = arith.addf %2, %4 : vector<8x32xf32>
    %6 = arith.negf %5 : vector<8x32xf32>
    %7 = math.exp %6 : vector<8x32xf32>
    %cst_5 = arith.constant 1.000000e+00 : f32
    %8 = vector.broadcast %cst_5 : f32 to vector<8x32xf32>
    %9 = arith.addf %8, %7 : vector<8x32xf32>
    %10 = arith.divf %8, %9 : vector<8x32xf32>
    %11 = arith.mulf %5, %10 : vector<8x32xf32>
    %12 = arith.truncf %11 : vector<8x32xf32> to vector<8x32xbf16>
    %c0_6 = arith.constant 0 : index
    %c0_7 = arith.constant 0 : index
    %13 = vector.load %arg4[%c0_6, %c0_7] : memref<8x32xbf16, #tpu.memory_space<vmem>>, vector<8x32xbf16>
    tpu.vector_store %arg4[%c0_6, %c0_7], %12 {strides = array<i32>} : memref<8x32xbf16, #tpu.memory_space<vmem>>, vector<8x32xbf16>,
    return
  }
  func.func @transform_0(%arg0: i32) -> (i32, i32) {
    %c0_i32 = arith.constant 0 : i32
    %c0_i32_0 = arith.constant 0 : i32
    return %arg0, %c0_i32 : i32, i32
  }
  func.func @transform_1(%arg0: i32) -> (i32, i32) {
    %c0_i32 = arith.constant 0 : i32
    %c0_i32_0 = arith.constant 0 : i32
    %c0_i32_1 = arith.constant 0 : i32
    return %c0_i32, %c0_i32_0 : i32, i32
  }
  func.func @transform_2(%arg0: i32) -> (i32, i32) {
    %c0_i32 = arith.constant 0 : i32
    %c0_i32_0 = arith.constant 0 : i32
    %c0_i32_1 = arith.constant 0 : i32
    return %c0_i32, %c0_i32_0 : i32, i32
  }
  func.func @transform_3(%arg0: i32) -> (i32, i32) {
    %c0_i32 = arith.constant 0 : i32
    %c0_i32_0 = arith.constant 0 : i32
    return %arg0, %c0_i32 : i32, i32
  }
}

module attributes {stable_mosaic.version = 11 : i64} {
  func.func @_matmul_kernel(%arg0: i32, %arg1: memref<8x64xbf16, #tpu.memory_space<vmem>>, %arg2: memref<64x16xbf16, #tpu.memory_space<vmem>>, %arg3: memref<1x16xf32, #tpu.memory_space<vmem>>, %arg4: memref<8x16xbf16, #tpu.memory_space<vmem>>) attributes {dimension_semantics = [#tpu.dimension_semantics<parallel>], iteration_bounds = array<i64: 1>, scalar_prefetch = 0 : i64, scratch_operands = 0 : i64, tpu.core_type = #tpu.core_type<tc>, window_params = [{transform_indices = @transform_0, window_bounds = array<i64: 8, 64>}, {pipeline_mode = #tpu.pipeline_mode<synchronous>, transform_indices = @transform_1, window_bounds = array<i64: 64, 16>}, {pipeline_mode = #tpu.pipeline_mode<synchronous>, transform_indices = @transform_2, window_bounds = array<i64: 1, 16>}, {transform_indices = @transform_3, window_bounds = array<i64: 8, 16>}]} {
    %c0 = arith.constant 0 : index
    %c0_0 = arith.constant 0 : index
    %0 = vector.load %arg1[%c0, %c0_0] : memref<8x64xbf16, #tpu.memory_space<vmem>>, vector<8x64xbf16>
    %c0_1 = arith.constant 0 : index
    %c0_2 = arith.constant 0 : index
    %1 = vector.load %arg2[%c0_1, %c0_2] : memref<64x16xbf16, #tpu.memory_space<vmem>>, vector<64x16xbf16>
    %cst = arith.constant dense<0.000000e+00> : vector<8x16xf32>
    %2 = tpu.matmul %0, %1, %cst {dimension_numbers = #tpu.dot_dimension_numbers<[1], [0], [0], [1], [0, 0, 1, 1], [], []>} : vector<8x64xbf16>, vector<64x16xbf16>, vector<8x16xf32> -> vector<8x16xf32>
    %c0_3 = arith.constant 0 : index
    %c0_4 = arith.constant 0 : index
    %3 = vector.load %arg3[%c0_3, %c0_4] : memref<1x16xf32, #tpu.memory_space<vmem>>, vector<1x16xf32>
    %4 = vector.broadcast %3 : vector<1x16xf32> to vector<8x16xf32>
    %5 = arith.addf %2, %4 : vector<8x16xf32>
    %6 = arith.negf %5 : vector<8x16xf32>
    %7 = math.exp %6 : vector<8x16xf32>
    %cst_5 = arith.constant 1.000000e+00 : f32
    %8 = vector.broadcast %cst_5 : f32 to vector<8x16xf32>
    %9 = arith.addf %8, %7 : vector<8x16xf32>
    %10 = arith.divf %8, %9 : vector<8x16xf32>
    %11 = arith.mulf %5, %10 : vector<8x16xf32>
    %12 = arith.truncf %11 : vector<8x16xf32> to vector<8x16xbf16>
    %c0_6 = arith.constant 0 : index
    %c0_7 = arith.constant 0 : index
    %13 = vector.load %arg4[%c0_6, %c0_7] : memref<8x16xbf16, #tpu.memory_space<vmem>>, vector<8x16xbf16>
    tpu.vector_store %arg4[%c0_6, %c0_7], %12 {strides = array<i32>} : memref<8x16xbf16, #tpu.memory_space<vmem>>, vector<8x16xbf16>,
    return
  }
  func.func @transform_0(%arg0: i32) -> (i32, i32) {
    %c0_i32 = arith.constant 0 : i32
    %c0_i32_0 = arith.constant 0 : i32
    return %arg0, %c0_i32 : i32, i32
  }
  func.func @transform_1(%arg0: i32) -> (i32, i32) {
    %c0_i32 = arith.constant 0 : i32
    %c0_i32_0 = arith.constant 0 : i32
    %c0_i32_1 = arith.constant 0 : i32
    return %c0_i32, %c0_i32_0 : i32, i32
  }
  func.func @transform_2(%arg0: i32) -> (i32, i32) {
    %c0_i32 = arith.constant 0 : i32
    %c0_i32_0 = arith.constant 0 : i32
    %c0_i32_1 = arith.constant 0 : i32
    return %c0_i32, %c0_i32_0 : i32, i32
  }
  func.func @transform_3(%arg0: i32) -> (i32, i32) {
    %c0_i32 = arith.constant 0 : i32
    %c0_i32_0 = arith.constant 0 : i32
    return %arg0, %c0_i32 : i32, i32
  }
}

module attributes {stable_mosaic.version = 11 : i64} {
  func.func @_pool_kernel(%arg0: i32, %arg1: memref<8x5x16xbf16, #tpu.memory_space<vmem>>, %arg2: memref<8x16xbf16, #tpu.memory_space<vmem>>) attributes {dimension_semantics = [#tpu.dimension_semantics<parallel>], iteration_bounds = array<i64: 1>, scalar_prefetch = 0 : i64, scratch_operands = 0 : i64, tpu.core_type = #tpu.core_type<tc>, window_params = [{transform_indices = @transform_0, window_bounds = array<i64: 8, 5, 16>}, {transform_indices = @transform_1, window_bounds = array<i64: 8, 16>}]} {
    %c0 = arith.constant 0 : index
    %c0_0 = arith.constant 0 : index
    %c0_1 = arith.constant 0 : index
    %0 = vector.load %arg1[%c0, %c0_0, %c0_1] : memref<8x5x16xbf16, #tpu.memory_space<vmem>>, vector<8x5x16xbf16>
    %cst = arith.constant dense<0xFF80> : vector<8x16xbf16>
    %1 = vector.multi_reduction <maximumf>, %0, %cst [1] : vector<8x5x16xbf16> to vector<8x16xbf16>
    %c0_2 = arith.constant 0 : index
    %c0_3 = arith.constant 0 : index
    %2 = vector.load %arg2[%c0_2, %c0_3] : memref<8x16xbf16, #tpu.memory_space<vmem>>, vector<8x16xbf16>
    tpu.vector_store %arg2[%c0_2, %c0_3], %1 {strides = array<i32>} : memref<8x16xbf16, #tpu.memory_space<vmem>>, vector<8x16xbf16>,
    return
  }
  func.func @transform_0(%arg0: i32) -> (i32, i32, i32) {
    %c0_i32 = arith.constant 0 : i32
    %c0_i32_0 = arith.constant 0 : i32
    %c0_i32_1 = arith.constant 0 : i32
    return %arg0, %c0_i32, %c0_i32_0 : i32, i32, i32
  }
  func.func @transform_1(%arg0: i32) -> (i32, i32) {
    %c0_i32 = arith.constant 0 : i32
    %c0_i32_0 = arith.constant 0 : i32
    return %arg0, %c0_i32 : i32, i32
  }
}

module attributes {stable_mosaic.version = 11 : i64} {
  func.func @_pool_kernel(%arg0: i32, %arg1: memref<2x4x64xbf16, #tpu.memory_space<vmem>>, %arg2: memref<2x64xbf16, #tpu.memory_space<vmem>>) attributes {dimension_semantics = [#tpu.dimension_semantics<parallel>], iteration_bounds = array<i64: 1>, scalar_prefetch = 0 : i64, scratch_operands = 0 : i64, tpu.core_type = #tpu.core_type<tc>, window_params = [{transform_indices = @transform_0, window_bounds = array<i64: 2, 4, 64>}, {transform_indices = @transform_1, window_bounds = array<i64: 2, 64>}]} {
    %c0 = arith.constant 0 : index
    %c0_0 = arith.constant 0 : index
    %c0_1 = arith.constant 0 : index
    %0 = vector.load %arg1[%c0, %c0_0, %c0_1] : memref<2x4x64xbf16, #tpu.memory_space<vmem>>, vector<2x4x64xbf16>
    %1 = arith.extf %0 : vector<2x4x64xbf16> to vector<2x4x64xf32>
    %cst = arith.constant dense<0.000000e+00> : vector<2x64xf32>
    %2 = vector.multi_reduction <add>, %1, %cst [1] : vector<2x4x64xf32> to vector<2x64xf32>
    %cst_2 = arith.constant 4.000000e+00 : f32
    %3 = vector.broadcast %cst_2 : f32 to vector<2x64xf32>
    %4 = arith.divf %2, %3 : vector<2x64xf32>
    %5 = arith.truncf %4 : vector<2x64xf32> to vector<2x64xbf16>
    %c0_3 = arith.constant 0 : index
    %c0_4 = arith.constant 0 : index
    %6 = vector.load %arg2[%c0_3, %c0_4] : memref<2x64xbf16, #tpu.memory_space<vmem>>, vector<2x64xbf16>
    tpu.vector_store %arg2[%c0_3, %c0_4], %5 {strides = array<i32>} : memref<2x64xbf16, #tpu.memory_space<vmem>>, vector<2x64xbf16>,
    return
  }
  func.func @transform_0(%arg0: i32) -> (i32, i32, i32) {
    %c0_i32 = arith.constant 0 : i32
    %c0_i32_0 = arith.constant 0 : i32
    %c0_i32_1 = arith.constant 0 : i32
    return %arg0, %c0_i32, %c0_i32_0 : i32, i32, i32
  }
  func.func @transform_1(%arg0: i32) -> (i32, i32) {
    %c0_i32 = arith.constant 0 : i32
    %c0_i32_0 = arith.constant 0 : i32
    return %arg0, %c0_i32 : i32, i32
  }
}

module attributes {stable_mosaic.version = 11 : i64} {
  func.func @_matmul_kernel(%arg0: i32, %arg1: memref<8x16xbf16, #tpu.memory_space<vmem>>, %arg2: memref<8x16xbf16, #tpu.memory_space<vmem>>, %arg3: memref<8x16xbf16, #tpu.memory_space<vmem>>, %arg4: memref<8x16xbf16, #tpu.memory_space<vmem>>, %arg5: memref<16x64xbf16, #tpu.memory_space<vmem>>, %arg6: memref<16x64xbf16, #tpu.memory_space<vmem>>, %arg7: memref<16x64xbf16, #tpu.memory_space<vmem>>, %arg8: memref<16x64xbf16, #tpu.memory_space<vmem>>, %arg9: memref<1x64xf32, #tpu.memory_space<vmem>>, %arg10: memref<8x64xbf16, #tpu.memory_space<vmem>>) attributes {dimension_semantics = [#tpu.dimension_semantics<parallel>], iteration_bounds = array<i64: 1>, scalar_prefetch = 0 : i64, scratch_operands = 0 : i64, tpu.core_type = #tpu.core_type<tc>, window_params = [{transform_indices = @transform_0, window_bounds = array<i64: 8, 16>}, {transform_indices = @transform_1, window_bounds = array<i64: 8, 16>}, {transform_indices = @transform_2, window_bounds = array<i64: 8, 16>}, {transform_indices = @transform_3, window_bounds = array<i64: 8, 16>}, {pipeline_mode = #tpu.pipeline_mode<synchronous>, transform_indices = @transform_4, window_bounds = array<i64: 16, 64>}, {pipeline_mode = #tpu.pipeline_mode<synchronous>, transform_indices = @transform_5, window_bounds = array<i64: 16, 64>}, {pipeline_mode = #tpu.pipeline_mode<synchronous>, transform_indices = @transform_6, window_bounds = array<i64: 16, 64>}, {pipeline_mode = #tpu.pipeline_mode<synchronous>, transform_indices = @transform_7, window_bounds = array<i64: 16, 64>}, {pipeline_mode = #tpu.pipeline_mode<synchronous>, transform_indices = @transform_8, window_bounds = array<i64: 1, 64>}, {transform_indices = @transform_9, window_bounds = array<i64: 8, 64>}]} {
    %c0 = arith.constant 0 : index
    %c0_0 = arith.constant 0 : index
    %0 = vector.load %arg1[%c0, %c0_0] : memref<8x16xbf16, #tpu.memory_space<vmem>>, vector<8x16xbf16>
    %c0_1 = arith.constant 0 : index
    %c0_2 = arith.constant 0 : index
    %1 = vector.load %arg5[%c0_1, %c0_2] : memref<16x64xbf16, #tpu.memory_space<vmem>>, vector<16x64xbf16>
    %cst = arith.constant dense<0.000000e+00> : vector<8x64xf32>
    %2 = tpu.matmul %0, %1, %cst {dimension_numbers = #tpu.dot_dimension_numbers<[1], [0], [0], [1], [0, 0, 1, 1], [], []>} : vector<8x16xbf16>, vector<16x64xbf16>, vector<8x64xf32> -> vector<8x64xf32>
    %c0_3 = arith.constant 0 : index
    %c0_4 = arith.constant 0 : index
    %3 = vector.load %arg2[%c0_3, %c0_4] : memref<8x16xbf16, #tpu.memory_space<vmem>>, vector<8x16xbf16>
    %c0_5 = arith.constant 0 : index
    %c0_6 = arith.constant 0 : index
    %4 = vector.load %arg6[%c0_5, %c0_6] : memref<16x64xbf16, #tpu.memory_space<vmem>>, vector<16x64xbf16>
    %cst_7 = arith.constant dense<0.000000e+00> : vector<8x64xf32>
    %5 = tpu.matmul %3, %4, %cst_7 {dimension_numbers = #tpu.dot_dimension_numbers<[1], [0], [0], [1], [0, 0, 1, 1], [], []>} : vector<8x16xbf16>, vector<16x64xbf16>, vector<8x64xf32> -> vector<8x64xf32>
    %6 = arith.addf %2, %5 : vector<8x64xf32>
    %c0_8 = arith.constant 0 : index
    %c0_9 = arith.constant 0 : index
    %7 = vector.load %arg3[%c0_8, %c0_9] : memref<8x16xbf16, #tpu.memory_space<vmem>>, vector<8x16xbf16>
    %c0_10 = arith.constant 0 : index
    %c0_11 = arith.constant 0 : index
    %8 = vector.load %arg7[%c0_10, %c0_11] : memref<16x64xbf16, #tpu.memory_space<vmem>>, vector<16x64xbf16>
    %cst_12 = arith.constant dense<0.000000e+00> : vector<8x64xf32>
    %9 = tpu.matmul %7, %8, %cst_12 {dimension_numbers = #tpu.dot_dimension_numbers<[1], [0], [0], [1], [0, 0, 1, 1], [], []>} : vector<8x16xbf16>, vector<16x64xbf16>, vector<8x64xf32> -> vector<8x64xf32>
    %10 = arith.addf %6, %9 : vector<8x64xf32>
    %c0_13 = arith.constant 0 : index
    %c0_14 = arith.constant 0 : index
    %11 = vector.load %arg4[%c0_13, %c0_14] : memref<8x16xbf16, #tpu.memory_space<vmem>>, vector<8x16xbf16>
    %c0_15 = arith.constant 0 : index
    %c0_16 = arith.constant 0 : index
    %12 = vector.load %arg8[%c0_15, %c0_16] : memref<16x64xbf16, #tpu.memory_space<vmem>>, vector<16x64xbf16>
    %cst_17 = arith.constant dense<0.000000e+00> : vector<8x64xf32>
    %13 = tpu.matmul %11, %12, %cst_17 {dimension_numbers = #tpu.dot_dimension_numbers<[1], [0], [0], [1], [0, 0, 1, 1], [], []>} : vector<8x16xbf16>, vector<16x64xbf16>, vector<8x64xf32> -> vector<8x64xf32>
    %14 = arith.addf %10, %13 : vector<8x64xf32>
    %c0_18 = arith.constant 0 : index
    %c0_19 = arith.constant 0 : index
    %15 = vector.load %arg9[%c0_18, %c0_19] : memref<1x64xf32, #tpu.memory_space<vmem>>, vector<1x64xf32>
    %16 = vector.broadcast %15 : vector<1x64xf32> to vector<8x64xf32>
    %17 = arith.addf %14, %16 : vector<8x64xf32>
    %18 = arith.negf %17 : vector<8x64xf32>
    %19 = math.exp %18 : vector<8x64xf32>
    %cst_20 = arith.constant 1.000000e+00 : f32
    %20 = vector.broadcast %cst_20 : f32 to vector<8x64xf32>
    %21 = arith.addf %20, %19 : vector<8x64xf32>
    %22 = arith.divf %20, %21 : vector<8x64xf32>
    %23 = arith.mulf %17, %22 : vector<8x64xf32>
    %24 = arith.truncf %23 : vector<8x64xf32> to vector<8x64xbf16>
    %c0_21 = arith.constant 0 : index
    %c0_22 = arith.constant 0 : index
    %25 = vector.load %arg10[%c0_21, %c0_22] : memref<8x64xbf16, #tpu.memory_space<vmem>>, vector<8x64xbf16>
    tpu.vector_store %arg10[%c0_21, %c0_22], %24 {strides = array<i32>} : memref<8x64xbf16, #tpu.memory_space<vmem>>, vector<8x64xbf16>,
    return
  }
  func.func @transform_0(%arg0: i32) -> (i32, i32) {
    %c0_i32 = arith.constant 0 : i32
    %c0_i32_0 = arith.constant 0 : i32
    return %arg0, %c0_i32 : i32, i32
  }
  func.func @transform_1(%arg0: i32) -> (i32, i32) {
    %c0_i32 = arith.constant 0 : i32
    %c0_i32_0 = arith.constant 0 : i32
    return %arg0, %c0_i32 : i32, i32
  }
  func.func @transform_2(%arg0: i32) -> (i32, i32) {
    %c0_i32 = arith.constant 0 : i32
    %c0_i32_0 = arith.constant 0 : i32
    return %arg0, %c0_i32 : i32, i32
  }
  func.func @transform_3(%arg0: i32) -> (i32, i32) {
    %c0_i32 = arith.constant 0 : i32
    %c0_i32_0 = arith.constant 0 : i32
    return %arg0, %c0_i32 : i32, i32
  }
  func.func @transform_4(%arg0: i32) -> (i32, i32) {
    %c0_i32 = arith.constant 0 : i32
    %c0_i32_0 = arith.constant 0 : i32
    %c0_i32_1 = arith.constant 0 : i32
    return %c0_i32, %c0_i32_0 : i32, i32
  }
  func.func @transform_5(%arg0: i32) -> (i32, i32) {
    %c0_i32 = arith.constant 0 : i32
    %c0_i32_0 = arith.constant 0 : i32
    %c0_i32_1 = arith.constant 0 : i32
    return %c0_i32, %c0_i32_0 : i32, i32
  }
  func.func @transform_6(%arg0: i32) -> (i32, i32) {
    %c0_i32 = arith.constant 0 : i32
    %c0_i32_0 = arith.constant 0 : i32
    %c0_i32_1 = arith.constant 0 : i32
    return %c0_i32, %c0_i32_0 : i32, i32
  }
  func.func @transform_7(%arg0: i32) -> (i32, i32) {
    %c0_i32 = arith.constant 0 : i32
    %c0_i32_0 = arith.constant 0 : i32
    %c0_i32_1 = arith.constant 0 : i32
    return %c0_i32, %c0_i32_0 : i32, i32
  }
  func.func @transform_8(%arg0: i32) -> (i32, i32) {
    %c0_i32 = arith.constant 0 : i32
    %c0_i32_0 = arith.constant 0 : i32
    %c0_i32_1 = arith.constant 0 : i32
    return %c0_i32, %c0_i32_0 : i32, i32
  }
  func.func @transform_9(%arg0: i32) -> (i32, i32) {
    %c0_i32 = arith.constant 0 : i32
    %c0_i32_0 = arith.constant 0 : i32
    return %arg0, %c0_i32 : i32, i32
  }
}

</mosaic_0001>

<llo_original>
// kernel: _lambda_.35
$region0: #{_lambda_.35}
  #allocation0 [shape = 'u32[]', space=smem, size = 0x4, offset = 0x4, fixed_abs, tag = 'smem constant byte address 0x4 - core index']
  #allocation1 [shape = 'u32[144,128]{1,0:T(1,128)}', space=vmem, size = 0x12000, scoped, tag = 'internal scratch']
  %s0 = inlined_call_operand.vmem [shape: bf16[512,27], index: 0, kind: input, shape index: {}]
  %s1 = inlined_call_operand.vmem [shape: bf16[27,16], index: 1, kind: input, shape index: {}]
  %s2 = inlined_call_operand.vmem [shape: f32[1,16], index: 2, kind: input, shape index: {}]
  %s3 = inlined_call_operand.vmem [shape: bf16[512,16], index: 3, kind: output, shape index: {}]
  %s4 = sld [smem:[#allocation0]]
  $region22: #{_lambda_.35} parent=0
    _
  %s6 = ssub.s32 1, %s4
  %s7 = scalar_select 0, %s6, %s4
  // Predicated region
  $region2: #{_lambda_.35} parent=0 // pred_check
    _
  $region3: #{_lambda_.35} parent=0 // pred_check_branch
    %9 = sbr.rel (0) target = $region5
  $region4: #{_lambda_.35} parent=0 // pred_region
    _
  $region5: #{_lambda_.35} parent=0 // pred_fallthru
    _
  // Predicated region
  $region6: #{_lambda_.35} parent=0 // pred_check
    _
  $region7: #{_lambda_.35} parent=0 // pred_check_branch
    %11 = sbr.rel (0) target = $region9
  $region8: #{_lambda_.35} parent=0 // pred_region
    _
  $region9: #{_lambda_.35} parent=0 // pred_fallthru
    _
  // Predicated region
  $region10: #{_lambda_.35} parent=0 // pred_check
    _
  $region11: #{_lambda_.35} parent=0 // pred_check_branch
    %13 = sbr.rel (0) target = $region13
  $region12: #{_lambda_.35} parent=0 // pred_region
    _
  $region13: #{_lambda_.35} parent=0 // pred_fallthru
    _
  %v15 = vld [vmem:[%s0] sm:$0xf]
  %v16 = vld [vmem:[%s0 + $0x4] sm:$0xf]
  %v17 = vld [vmem:[%s0 + $0x8] sm:$0xf]
  %v18 = vld [vmem:[%s0 + $0xc] sm:$0xf]
  %v19 = vld [vmem:[%s0 + $0x10] sm:$0xf]
  %v20 = vld [vmem:[%s0 + $0x14] sm:$0xf]
  %v21 = vld [vmem:[%s0 + $0x18] sm:$0xf]
  %v22 = vld [vmem:[%s0 + $0x1c] sm:$0xf]
  %v23 = vld [vmem:[%s0 + $0x20] sm:$0xf]
  %v24 = vld [vmem:[%s0 + $0x24] sm:$0xf]
  %v25 = vld [vmem:[%s0 + $0x28] sm:$0xf]
  %v26 = vld [vmem:[%s0 + $0x2c] sm:$0xf]
  %v27 = vld [vmem:[%s0 + $0x30] sm:$0xf]
  %v28 = vld [vmem:[%s0 + $0x34] sm:$0xf]
  %v29 = vld [vmem:[%s0 + $0x38] sm:$0xf]
  %v30 = vld [vmem:[%s0 + $0x3c] sm:$0xf]
  %v31 = vld [vmem:[%s0 + $0x40] sm:$0xf]
  %v32 = vld [vmem:[%s0 + $0x44] sm:$0xf]
  %v33 = vld [vmem:[%s0 + $0x48] sm:$0xf]
  %v34 = vld [vmem:[%s0 + $0x4c] sm:$0xf]
  %v35 = vld [vmem:[%s0 + $0x50] sm:$0xf]
  %v36 = vld [vmem:[%s0 + $0x54] sm:$0xf]
  %v37 = vld [vmem:[%s0 + $0x58] sm:$0xf]
  %v38 = vld [vmem:[%s0 + $0x5c] sm:$0xf]
  %v39 = vld [vmem:[%s0 + $0x60] sm:$0xf]
  %v40 = vld [vmem:[%s0 + $0x64] sm:$0xf]
  %v41 = vld [vmem:[%s0 + $0x68] sm:$0xf]
  %v42 = vld [vmem:[%s0 + $0x6c] sm:$0xf]
  %v43 = vld [vmem:[%s0 + $0x70] sm:$0xf]
  %v44 = vld [vmem:[%s0 + $0x74] sm:$0xf]
  %v45 = vld [vmem:[%s0 + $0x78] sm:$0xf]
  %v46 = vld [vmem:[%s0 + $0x7c] sm:$0xf]
  %v47 = vld [vmem:[%s0 + $0x80] sm:$0xf]
  %v48 = vld [vmem:[%s0 + $0x84] sm:$0xf]
  %v49 = vld [vmem:[%s0 + $0x88] sm:$0xf]
  %v50 = vld [vmem:[%s0 + $0x8c] sm:$0xf]
  %v51 = vld [vmem:[%s0 + $0x90] sm:$0xf]
  %v52 = vld [vmem:[%s0 + $0x94] sm:$0xf]
  %v53 = vld [vmem:[%s0 + $0x98] sm:$0xf]
  %v54 = vld [vmem:[%s0 + $0x9c] sm:$0xf]
  %v55 = vld [vmem:[%s0 + $0xa0] sm:$0xf]
  %v56 = vld [vmem:[%s0 + $0xa4] sm:$0xf]
  %v57 = vld [vmem:[%s0 + $0xa8] sm:$0xf]
  %v58 = vld [vmem:[%s0 + $0xac] sm:$0xf]
  %v59 = vld [vmem:[%s0 + $0xb0] sm:$0xf]
  %v60 = vld [vmem:[%s0 + $0xb4] sm:$0xf]
  %v61 = vld [vmem:[%s0 + $0xb8] sm:$0xf]
  %v62 = vld [vmem:[%s0 + $0xbc] sm:$0xf]
  %v63 = vld [vmem:[%s0 + $0xc0] sm:$0xf]
  %v64 = vld [vmem:[%s0 + $0xc4] sm:$0xf]
  %v65 = vld [vmem:[%s0 + $0xc8] sm:$0xf]
  %v66 = vld [vmem:[%s0 + $0xcc] sm:$0xf]
  %v67 = vld [vmem:[%s0 + $0xd0] sm:$0xf]
  %v68 = vld [vmem:[%s0 + $0xd4] sm:$0xf]
  %v69 = vld [vmem:[%s0 + $0xd8] sm:$0xf]
  %v70 = vld [vmem:[%s0 + $0xdc] sm:$0xf]
  %v71 = vld [vmem:[%s0 + $0xe0] sm:$0xf]
  %v72 = vld [vmem:[%s0 + $0xe4] sm:$0xf]
  %v73 = vld [vmem:[%s0 + $0xe8] sm:$0xf]
  %v74 = vld [vmem:[%s0 + $0xec] sm:$0xf]
  %v75 = vld [vmem:[%s0 + $0xf0] sm:$0xf]
  %v76 = vld [vmem:[%s0 + $0xf4] sm:$0xf]
  %v77 = vld [vmem:[%s0 + $0xf8] sm:$0xf]
  %v78 = vld [vmem:[%s0 + $0xfc] sm:$0xf]
  %v79 = vld [vmem:[%s1] sm:$0xf]
  %v80 = vld [vmem:[%s1 + $0x4] sm:$0xf]
  %v81 = vld [vmem:[%s1 + $0x8] sm:$0xf]
  %v82 = vld [vmem:[%s1 + $0xc] sm:$0x3]
  %v83 = vld [vmem:[%s2] sm:$0x1]
  %v85 = vlaneseq
  %v86 = vshrl.u32 %v85, 7
  %v87 = vsub.s32 0, %v86
  %v88 = vrot.slane %v83, %v87
  %v154 = vunpack.c.l.b16 %v15
  %v155 = vunpack.c.l.b16 %v16
  %v156 = vunpack.c.l.b16 %v17
  %v157 = vunpack.c.l.b16 %v18
  %v158 = vunpack.c.l.b16 %v19
  %v159 = vunpack.c.l.b16 %v20
  %v160 = vunpack.c.l.b16 %v21
  %v161 = vunpack.c.l.b16 %v22
  %v162 = vunpack.c.l.b16 %v23
  %v163 = vunpack.c.l.b16 %v24
  %v164 = vunpack.c.l.b16 %v25
  %v165 = vunpack.c.l.b16 %v26
  %v166 = vunpack.c.l.b16 %v27
  %v167 = vunpack.c.l.b16 %v28
  %v168 = vunpack.c.l.b16 %v29
  %v169 = vunpack.c.l.b16 %v30
  %v170 = vunpack.c.l.b16 %v31
  %v171 = vunpack.c.l.b16 %v32
  %v172 = vunpack.c.l.b16 %v33
  %v173 = vunpack.c.l.b16 %v34
  %v174 = vunpack.c.l.b16 %v35
  %v175 = vunpack.c.l.b16 %v36
  %v176 = vunpack.c.l.b16 %v37
  %v177 = vunpack.c.l.b16 %v38
  %v178 = vunpack.c.l.b16 %v39
  %v179 = vunpack.c.l.b16 %v40
  %v180 = vunpack.c.l.b16 %v41
  %v181 = vunpack.c.l.b16 %v42
  %v182 = vunpack.c.l.b16 %v43
  %v183 = vunpack.c.l.b16 %v44
  %v184 = vunpack.c.l.b16 %v45
  %v185 = vunpack.c.l.b16 %v46
  %v186 = vunpack.c.l.b16 %v47
  %v187 = vunpack.c.l.b16 %v48
  %v188 = vunpack.c.l.b16 %v49
  %v189 = vunpack.c.l.b16 %v50
  %v190 = vunpack.c.l.b16 %v51
  %v191 = vunpack.c.l.b16 %v52
  %v192 = vunpack.c.l.b16 %v53
  %v193 = vunpack.c.l.b16 %v54
  %v194 = vunpack.c.l.b16 %v55
  %v195 = vunpack.c.l.b16 %v56
  %v196 = vunpack.c.l.b16 %v57
  %v197 = vunpack.c.l.b16 %v58
  %v198 = vunpack.c.l.b16 %v59
  %v199 = vunpack.c.l.b16 %v60
  %v200 = vunpack.c.l.b16 %v61
  %v201 = vunpack.c.l.b16 %v62
  %v202 = vunpack.c.l.b16 %v63
  %v203 = vunpack.c.l.b16 %v64
  %v204 = vunpack.c.l.b16 %v65
  %v205 = vunpack.c.l.b16 %v66
  %v206 = vunpack.c.l.b16 %v67
  %v207 = vunpack.c.l.b16 %v68
  %v208 = vunpack.c.l.b16 %v69
  %v209 = vunpack.c.l.b16 %v70
  %v210 = vunpack.c.l.b16 %v71
  %v211 = vunpack.c.l.b16 %v72
  %v212 = vunpack.c.l.b16 %v73
  %v213 = vunpack.c.l.b16 %v74
  %v214 = vunpack.c.l.b16 %v75
  %v215 = vunpack.c.l.b16 %v76
  %v216 = vunpack.c.l.b16 %v77
  %v217 = vunpack.c.l.b16 %v78
  %v218 = vpack.c.b16 %v155, %v154
  %v219 = vpack.c.b16 %v157, %v156
  %v220 = vpack.c.b16 %v159, %v158
  %v221 = vpack.c.b16 %v161, %v160
  %v222 = vpack.c.b16 %v163, %v162
  %v223 = vpack.c.b16 %v165, %v164
  %v224 = vpack.c.b16 %v167, %v166
  %v225 = vpack.c.b16 %v169, %v168
  %v226 = vpack.c.b16 %v171, %v170
  %v227 = vpack.c.b16 %v173, %v172
  %v228 = vpack.c.b16 %v175, %v174
  %v229 = vpack.c.b16 %v177, %v176
  %v230 = vpack.c.b16 %v179, %v178
  %v231 = vpack.c.b16 %v181, %v180
  %v232 = vpack.c.b16 %v183, %v182
  %v233 = vpack.c.b16 %v185, %v184
  %v234 = vpack.c.b16 %v187, %v186
  %v235 = vpack.c.b16 %v189, %v188
  %v236 = vpack.c.b16 %v191, %v190
  %v237 = vpack.c.b16 %v193, %v192
  %v238 = vpack.c.b16 %v195, %v194
  %v239 = vpack.c.b16 %v197, %v196
  %v240 = vpack.c.b16 %v199, %v198
  %v241 = vpack.c.b16 %v201, %v200
  %v242 = vpack.c.b16 %v203, %v202
  %v243 = vpack.c.b16 %v205, %v204
  %v244 = vpack.c.b16 %v207, %v206
  %v245 = vpack.c.b16 %v209, %v208
  %v246 = vpack.c.b16 %v211, %v210
  %v247 = vpack.c.b16 %v213, %v212
  %v248 = vpack.c.b16 %v215, %v214
  %v249 = vpack.c.b16 %v217, %v216
  %v254 = vunpack.c.l.b16 %v79
  %v255 = vunpack.c.l.b16 %v80
  %v256 = vunpack.c.l.b16 %v81
  %v257 = vunpack.c.l.b16 %v82
  %v258 = vpack.c.b16 %v255, %v254
  %v259 = vpack.c.b16 %v257, %v256
  %vm261 = vcmask 220160
  %v263 = vsel %vm261, %v218, 0
  %v266 = vsel %vm261, %v219, 0
  %v269 = vsel %vm261, %v220, 0
  %v272 = vsel %vm261, %v221, 0
  %v275 = vsel %vm261, %v222, 0
  %v278 = vsel %vm261, %v223, 0
  %v281 = vsel %vm261, %v224, 0
  %v284 = vsel %vm261, %v225, 0
  %v287 = vsel %vm261, %v226, 0
  %v290 = vsel %vm261, %v227, 0
  %v293 = vsel %vm261, %v228, 0
  %v296 = vsel %vm261, %v229, 0
  %v299 = vsel %vm261, %v230, 0
  %v302 = vsel %vm261, %v231, 0
  %v305 = vsel %vm261, %v232, 0
  %v308 = vsel %vm261, %v233, 0
  %v311 = vsel %vm261, %v234, 0
  %v314 = vsel %vm261, %v235, 0
  %v317 = vsel %vm261, %v236, 0
  %v320 = vsel %vm261, %v237, 0
  %v323 = vsel %vm261, %v238, 0
  %v326 = vsel %vm261, %v239, 0
  %v329 = vsel %vm261, %v240, 0
  %v332 = vsel %vm261, %v241, 0
  %v335 = vsel %vm261, %v242, 0
  %v338 = vsel %vm261, %v243, 0
  %v341 = vsel %vm261, %v244, 0
  %v344 = vsel %vm261, %v245, 0
  %v347 = vsel %vm261, %v246, 0
  %v350 = vsel %vm261, %v247, 0
  %v353 = vsel %vm261, %v248, 0
  %v356 = vsel %vm261, %v249, 0
  %vm358 = vcmask 1044480
  %vm359 = vcmask 1045504
  %v360 = vsel %vm358, 4294967295, 65535
  %v361 = vsel %vm359, %v360, 0
  %v363 = vand.u32 %v259, %v361
  %365 = vmatprep.subr.bf16.mxu0 0
  %366 = vmatpush1.bf16.msra.mxu0 0
  %367 = vmatprep.subr.bf16.mxu0 0
  %368 = vmatpush1.bf16.msra.mxu0 0
  %369 = vmatprep.subr.bf16.mxu0 0
  %370 = vmatpush1.bf16.msra.mxu0 0
  %371 = vmatprep.subr.bf16.mxu0 0
  %372 = vmatpush1.bf16.msra.mxu0 0
  %373 = vmatprep.subr.bf16.mxu0 0
  %374 = vmatpush1.bf16.msra.mxu0 0
  %375 = vmatprep.subr.bf16.mxu0 0
  %376 = vmatpush1.bf16.msra.mxu0 0
  %377 = vmatprep.subr.bf16.mxu0 0
  %378 = vmatpush1.bf16.msra.mxu0 %v363
  %379 = vmatprep.subr.bf16.mxu0 0
  %380 = vmatpush1.bf16.msra.mxu0 %v258
  %381 = vmatprep.subr.bf16.mxu0 0
  %382 = vmatpush2.bf16.msra.mxu0 0
  %383 = vmatprep.subr.bf16.mxu0 0
  %384 = vmatpush2.bf16.msra.mxu0 0
  %385 = vmatprep.subr.bf16.mxu0 0
  %386 = vmatpush2.bf16.msra.mxu0 0
  %387 = vmatprep.subr.bf16.mxu0 0
  %388 = vmatpush2.bf16.msra.mxu0 0
  %389 = vmatprep.subr.bf16.mxu0 0
  %390 = vmatpush2.bf16.msra.mxu0 0
  %391 = vmatprep.subr.bf16.mxu0 0
  %392 = vmatpush2.bf16.msra.mxu0 0
  %393 = vmatprep.subr.bf16.mxu0 0
  %394 = vmatpush2.bf16.msra.mxu0 0
  %395 = vmatprep.subr.bf16.mxu0 0
  %396 = vmatpush2.bf16.msra.mxu0 0
  %397 = vmatprep.mubr.bf16.mxu0 0
  %398 = vmatmul.mubr.bf16.gmra.mxu0 %v263
  %v399 = vpop.f32.mrf.mxu0
  %v400 = vadd.f32 %v88, %v399
  %v401 = vpop.f32.mrf.mxu0
  %v402 = vpop.f32.mrf.mxu0
  %v403 = vadd.f32 %v88, %v402
  %v404 = vpop.f32.mrf.mxu0
  %405 = vmatprep.mubr.bf16.mxu0 0
  %406 = vmatmul.mubr.bf16.gmra.mxu0 %v266
  %v407 = vpop.f32.mrf.mxu0
  %v408 = vadd.f32 %v88, %v407
  %v409 = vpop.f32.mrf.mxu0
  %v410 = vpop.f32.mrf.mxu0
  %v411 = vadd.f32 %v88, %v410
  %v412 = vpop.f32.mrf.mxu0
  %413 = vmatprep.mubr.bf16.mxu0 0
  %414 = vmatmul.mubr.bf16.gmra.mxu0 %v269
  %v415 = vpop.f32.mrf.mxu0
  %v416 = vadd.f32 %v88, %v415
  %v417 = vpop.f32.mrf.mxu0
  %v418 = vpop.f32.mrf.mxu0
  %v419 = vadd.f32 %v88, %v418
  %v420 = vpop.f32.mrf.mxu0
  %421 = vmatprep.mubr.bf16.mxu0 0
  %422 = vmatmul.mubr.bf16.gmra.mxu0 %v272
  %v423 = vpop.f32.mrf.mxu0
  %v424 = vadd.f32 %v88, %v423
  %v425 = vpop.f32.mrf.mxu0
  %v426 = vpop.f32.mrf.mxu0
  %v427 = vadd.f32 %v88, %v426
  %v428 = vpop.f32.mrf.mxu0
  %429 = vmatprep.mubr.bf16.mxu0 0
  %430 = vmatmul.mubr.bf16.gmra.mxu0 %v275
  %v431 = vpop.f32.mrf.mxu0
  %v432 = vadd.f32 %v88, %v431
  %v433 = vpop.f32.mrf.mxu0
  %v434 = vpop.f32.mrf.mxu0
  %v435 = vadd.f32 %v88, %v434
  %v436 = vpop.f32.mrf.mxu0
  %437 = vmatprep.mubr.bf16.mxu0 0
  %438 = vmatmul.mubr.bf16.gmra.mxu0 %v278
  %v439 = vpop.f32.mrf.mxu0
  %v440 = vadd.f32 %v88, %v439
  %v441 = vpop.f32.mrf.mxu0
  %v442 = vpop.f32.mrf.mxu0
  %v443 = vadd.f32 %v88, %v442
  %v444 = vpop.f32.mrf.mxu0
  %445 = vmatprep.mubr.bf16.mxu0 0
  %446 = vmatmul.mubr.bf16.gmra.mxu0 %v281
  %v447 = vpop.f32.mrf.mxu0
  %v448 = vadd.f32 %v88, %v447
  %v449 = vpop.f32.mrf.mxu0
  %v450 = vpop.f32.mrf.mxu0
  %v451 = vadd.f32 %v88, %v450
  %v452 = vpop.f32.mrf.mxu0
  %453 = vmatprep.mubr.bf16.mxu0 0
  %454 = vmatmul.mubr.bf16.gmra.mxu0 %v284
  %v455 = vpop.f32.mrf.mxu0
  %v456 = vadd.f32 %v88, %v455
  %v457 = vpop.f32.mrf.mxu0
  %v458 = vpop.f32.mrf.mxu0
  %v459 = vadd.f32 %v88, %v458
  %v460 = vpop.f32.mrf.mxu0
  %461 = vmatprep.mubr.bf16.mxu0 0
  %462 = vmatmul.mubr.bf16.gmra.mxu0 %v287
  %v463 = vpop.f32.mrf.mxu0
  %v464 = vadd.f32 %v88, %v463
  %v465 = vpop.f32.mrf.mxu0
  %v466 = vpop.f32.mrf.mxu0
  %v467 = vadd.f32 %v88, %v466
  %v468 = vpop.f32.mrf.mxu0
  %469 = vmatprep.mubr.bf16.mxu0 0
  %470 = vmatmul.mubr.bf16.gmra.mxu0 %v290
  %v471 = vpop.f32.mrf.mxu0
  %v472 = vadd.f32 %v88, %v471
  %v473 = vpop.f32.mrf.mxu0
  %v474 = vpop.f32.mrf.mxu0
  %v475 = vadd.f32 %v88, %v474
  %v476 = vpop.f32.mrf.mxu0
  %477 = vmatprep.mubr.bf16.mxu0 0
  %478 = vmatmul.mubr.bf16.gmra.mxu0 %v293
  %v479 = vpop.f32.mrf.mxu0
  %v480 = vadd.f32 %v88, %v479
  %v481 = vpop.f32.mrf.mxu0
  %v482 = vpop.f32.mrf.mxu0
  %v483 = vadd.f32 %v88, %v482
  %v484 = vpop.f32.mrf.mxu0
  %485 = vmatprep.mubr.bf16.mxu0 0
  %486 = vmatmul.mubr.bf16.gmra.mxu0 %v296
  %v487 = vpop.f32.mrf.mxu0
  %v488 = vadd.f32 %v88, %v487
  %v489 = vpop.f32.mrf.mxu0
  %v490 = vpop.f32.mrf.mxu0
  %v491 = vadd.f32 %v88, %v490
  %v492 = vpop.f32.mrf.mxu0
  %493 = vmatprep.mubr.bf16.mxu0 0
  %494 = vmatmul.mubr.bf16.gmra.mxu0 %v299
  %v495 = vpop.f32.mrf.mxu0
  %v496 = vadd.f32 %v88, %v495
  %v497 = vpop.f32.mrf.mxu0
  %v498 = vpop.f32.mrf.mxu0
  %v499 = vadd.f32 %v88, %v498
  %v500 = vpop.f32.mrf.mxu0
  %501 = vmatprep.mubr.bf16.mxu0 0
  %502 = vmatmul.mubr.bf16.gmra.mxu0 %v302
  %v503 = vpop.f32.mrf.mxu0
  %v504 = vadd.f32 %v88, %v503
  %v505 = vpop.f32.mrf.mxu0
  %v506 = vpop.f32.mrf.mxu0
  %v507 = vadd.f32 %v88, %v506
  %v508 = vpop.f32.mrf.mxu0
  %509 = vmatprep.mubr.bf16.mxu0 0
  %510 = vmatmul.mubr.bf16.gmra.mxu0 %v305
  %v511 = vpop.f32.mrf.mxu0
  %v512 = vadd.f32 %v88, %v511
  %v513 = vpop.f32.mrf.mxu0
  %v514 = vpop.f32.mrf.mxu0
  %v515 = vadd.f32 %v88, %v514
  %v516 = vpop.f32.mrf.mxu0
  %517 = vmatprep.mubr.bf16.mxu0 0
  %518 = vmatmul.mubr.bf16.gmra.mxu0 %v308
  %v519 = vpop.f32.mrf.mxu0
  %v520 = vadd.f32 %v88, %v519
  %v521 = vpop.f32.mrf.mxu0
  %v522 = vpop.f32.mrf.mxu0
  %v523 = vadd.f32 %v88, %v522
  %v524 = vpop.f32.mrf.mxu0
  %525 = vmatprep.mubr.bf16.mxu0 0
  %526 = vmatmul.mubr.bf16.gmra.mxu0 %v311
  %v527 = vpop.f32.mrf.mxu0
  %v528 = vadd.f32 %v88, %v527
  %v529 = vpop.f32.mrf.mxu0
  %v530 = vpop.f32.mrf.mxu0
  %v531 = vadd.f32 %v88, %v530
  %v532 = vpop.f32.mrf.mxu0
  %533 = vmatprep.mubr.bf16.mxu0 0
  %534 = vmatmul.mubr.bf16.gmra.mxu0 %v314
  %v535 = vpop.f32.mrf.mxu0
  %v536 = vadd.f32 %v88, %v535
  %v537 = vpop.f32.mrf.mxu0
  %v538 = vpop.f32.mrf.mxu0
  %v539 = vadd.f32 %v88, %v538
  %v540 = vpop.f32.mrf.mxu0
  %541 = vmatprep.mubr.bf16.mxu0 0
  %542 = vmatmul.mubr.bf16.gmra.mxu0 %v317
  %v543 = vpop.f32.mrf.mxu0
  %v544 = vadd.f32 %v88, %v543
  %v545 = vpop.f32.mrf.mxu0
  %v546 = vpop.f32.mrf.mxu0
  %v547 = vadd.f32 %v88, %v546
  %v548 = vpop.f32.mrf.mxu0
  %549 = vmatprep.mubr.bf16.mxu0 0
  %550 = vmatmul.mubr.bf16.gmra.mxu0 %v320
  %v551 = vpop.f32.mrf.mxu0
  %v552 = vadd.f32 %v88, %v551
  %v553 = vpop.f32.mrf.mxu0
  %v554 = vpop.f32.mrf.mxu0
  %v555 = vadd.f32 %v88, %v554
  %v556 = vpop.f32.mrf.mxu0
  %557 = vmatprep.mubr.bf16.mxu0 0
  %558 = vmatmul.mubr.bf16.gmra.mxu0 %v323
  %v559 = vpop.f32.mrf.mxu0
  %v560 = vadd.f32 %v88, %v559
  %v561 = vpop.f32.mrf.mxu0
  %v562 = vpop.f32.mrf.mxu0
  %v563 = vadd.f32 %v88, %v562
  %v564 = vpop.f32.mrf.mxu0
  %565 = vmatprep.mubr.bf16.mxu0 0
  %566 = vmatmul.mubr.bf16.gmra.mxu0 %v326
  %v567 = vpop.f32.mrf.mxu0
  %v568 = vadd.f32 %v88, %v567
  %v569 = vpop.f32.mrf.mxu0
  %v570 = vpop.f32.mrf.mxu0
  %v571 = vadd.f32 %v88, %v570
  %v572 = vpop.f32.mrf.mxu0
  %573 = vmatprep.mubr.bf16.mxu0 0
  %574 = vmatmul.mubr.bf16.gmra.mxu0 %v329
  %v575 = vpop.f32.mrf.mxu0
  %v576 = vadd.f32 %v88, %v575
  %v577 = vpop.f32.mrf.mxu0
  %v578 = vpop.f32.mrf.mxu0
  %v579 = vadd.f32 %v88, %v578
  %v580 = vpop.f32.mrf.mxu0
  %581 = vmatprep.mubr.bf16.mxu0 0
  %582 = vmatmul.mubr.bf16.gmra.mxu0 %v332
  %v583 = vpop.f32.mrf.mxu0
  %v584 = vadd.f32 %v88, %v583
  %v585 = vpop.f32.mrf.mxu0
  %v586 = vpop.f32.mrf.mxu0
  %v587 = vadd.f32 %v88, %v586
  %v588 = vpop.f32.mrf.mxu0
  %589 = vmatprep.mubr.bf16.mxu0 0
  %590 = vmatmul.mubr.bf16.gmra.mxu0 %v335
  %v591 = vpop.f32.mrf.mxu0
  %v592 = vadd.f32 %v88, %v591
  %v593 = vpop.f32.mrf.mxu0
  %v594 = vpop.f32.mrf.mxu0
  %v595 = vadd.f32 %v88, %v594
  %v596 = vpop.f32.mrf.mxu0
  %597 = vmatprep.mubr.bf16.mxu0 0
  %598 = vmatmul.mubr.bf16.gmra.mxu0 %v338
  %v599 = vpop.f32.mrf.mxu0
  %v600 = vadd.f32 %v88, %v599
  %v601 = vpop.f32.mrf.mxu0
  %v602 = vpop.f32.mrf.mxu0
  %v603 = vadd.f32 %v88, %v602
  %v604 = vpop.f32.mrf.mxu0
  %605 = vmatprep.mubr.bf16.mxu0 0
  %606 = vmatmul.mubr.bf16.gmra.mxu0 %v341
  %v607 = vpop.f32.mrf.mxu0
  %v608 = vadd.f32 %v88, %v607
  %v609 = vpop.f32.mrf.mxu0
  %v610 = vpop.f32.mrf.mxu0
  %v611 = vadd.f32 %v88, %v610
  %v612 = vpop.f32.mrf.mxu0
  %613 = vmatprep.mubr.bf16.mxu0 0
  %614 = vmatmul.mubr.bf16.gmra.mxu0 %v344
  %v615 = vpop.f32.mrf.mxu0
  %v616 = vadd.f32 %v88, %v615
  %v617 = vpop.f32.mrf.mxu0
  %v618 = vpop.f32.mrf.mxu0
  %v619 = vadd.f32 %v88, %v618
  %v620 = vpop.f32.mrf.mxu0
  %621 = vmatprep.mubr.bf16.mxu0 0
  %622 = vmatmul.mubr.bf16.gmra.mxu0 %v347
  %v623 = vpop.f32.mrf.mxu0
  %v624 = vadd.f32 %v88, %v623
  %v625 = vpop.f32.mrf.mxu0
  %v626 = vpop.f32.mrf.mxu0
  %v627 = vadd.f32 %v88, %v626
  %v628 = vpop.f32.mrf.mxu0
  %629 = vmatprep.mubr.bf16.mxu0 0
  %630 = vmatmul.mubr.bf16.gmra.mxu0 %v350
  %v631 = vpop.f32.mrf.mxu0
  %v632 = vadd.f32 %v88, %v631
  %v633 = vpop.f32.mrf.mxu0
  %v634 = vpop.f32.mrf.mxu0
  %v635 = vadd.f32 %v88, %v634
  %v636 = vpop.f32.mrf.mxu0
  %637 = vmatprep.mubr.bf16.mxu0 0
  %638 = vmatmul.mubr.bf16.gmra.mxu0 %v353
  %v639 = vpop.f32.mrf.mxu0
  %v640 = vadd.f32 %v88, %v639
  %v641 = vpop.f32.mrf.mxu0
  %v642 = vpop.f32.mrf.mxu0
  %v643 = vadd.f32 %v88, %v642
  %v644 = vpop.f32.mrf.mxu0
  %645 = vmatprep.mubr.bf16.mxu0 0
  %646 = vmatmul.mubr.bf16.gmra.mxu0 %v356
  %v647 = vpop.f32.mrf.mxu0
  %v648 = vadd.f32 %v88, %v647
  %v649 = vpop.f32.mrf.mxu0
  %v650 = vpop.f32.mrf.mxu0
  %v651 = vadd.f32 %v88, %v650
  %v652 = vpop.f32.mrf.mxu0
  %653 = vdwg.mxu0
  %v654 = vxor.u32 %v400, 2147483648
  %v655 = vxor.u32 %v403, 2147483648
  %v656 = vxor.u32 %v408, 2147483648
  %v657 = vxor.u32 %v411, 2147483648
  %v658 = vxor.u32 %v416, 2147483648
  %v659 = vxor.u32 %v419, 2147483648
  %v660 = vxor.u32 %v424, 2147483648
  %v661 = vxor.u32 %v427, 2147483648
  %v662 = vxor.u32 %v432, 2147483648
  %v663 = vxor.u32 %v435, 2147483648
  %v664 = vxor.u32 %v440, 2147483648
  %v665 = vxor.u32 %v443, 2147483648
  %v666 = vxor.u32 %v448, 2147483648
  %v667 = vxor.u32 %v451, 2147483648
  %v668 = vxor.u32 %v456, 2147483648
  %v669 = vxor.u32 %v459, 2147483648
  %v670 = vxor.u32 %v464, 2147483648
  %v671 = vxor.u32 %v467, 2147483648
  %v672 = vxor.u32 %v472, 2147483648
  %v673 = vxor.u32 %v475, 2147483648
  %v674 = vxor.u32 %v480, 2147483648
  %v675 = vxor.u32 %v483, 2147483648
  %v676 = vxor.u32 %v488, 2147483648
  %v677 = vxor.u32 %v491, 2147483648
  %v678 = vxor.u32 %v496, 2147483648
  %v679 = vxor.u32 %v499, 2147483648
  %v680 = vxor.u32 %v504, 2147483648
  %v681 = vxor.u32 %v507, 2147483648
  %v682 = vxor.u32 %v512, 2147483648
  %v683 = vxor.u32 %v515, 2147483648
  %v684 = vxor.u32 %v520, 2147483648
  %v685 = vxor.u32 %v523, 2147483648
  %v686 = vxor.u32 %v528, 2147483648
  %v687 = vxor.u32 %v531, 2147483648
  %v688 = vxor.u32 %v536, 2147483648
  %v689 = vxor.u32 %v539, 2147483648
  %v690 = vxor.u32 %v544, 2147483648
  %v691 = vxor.u32 %v547, 2147483648
  %v692 = vxor.u32 %v552, 2147483648
  %v693 = vxor.u32 %v555, 2147483648
  %v694 = vxor.u32 %v560, 2147483648
  %v695 = vxor.u32 %v563, 2147483648
  %v696 = vxor.u32 %v568, 2147483648
  %v697 = vxor.u32 %v571, 2147483648
  %v698 = vxor.u32 %v576, 2147483648
  %v699 = vxor.u32 %v579, 2147483648
  %v700 = vxor.u32 %v584, 2147483648
  %v701 = vxor.u32 %v587, 2147483648
  %v702 = vxor.u32 %v592, 2147483648
  %v703 = vxor.u32 %v595, 2147483648
  %v704 = vxor.u32 %v600, 2147483648
  %v705 = vxor.u32 %v603, 2147483648
  %v706 = vxor.u32 %v608, 2147483648
  %v707 = vxor.u32 %v611, 2147483648
  %v708 = vxor.u32 %v616, 2147483648
  %v709 = vxor.u32 %v619, 2147483648
  %v710 = vxor.u32 %v624, 2147483648
  %v711 = vxor.u32 %v627, 2147483648
  %v712 = vxor.u32 %v632, 2147483648
  %v713 = vxor.u32 %v635, 2147483648
  %v714 = vxor.u32 %v640, 2147483648
  %v715 = vxor.u32 %v643, 2147483648
  %v716 = vxor.u32 %v648, 2147483648
  %v717 = vxor.u32 %v651, 2147483648
  %v718 = vmul.f32 %v654, 1.442695
  %v719 = vpow.pop %v718
  %v720 = vmul.f32 %v655, 1.442695
  %v721 = vpow.pop %v720
  %v722 = vmul.f32 %v656, 1.442695
  %v723 = vpow.pop %v722
  %v724 = vmul.f32 %v657, 1.442695
  %v725 = vpow.pop %v724
  %v726 = vmul.f32 %v658, 1.442695
  %v727 = vpow.pop %v726
  %v728 = vmul.f32 %v659, 1.442695
  %v729 = vpow.pop %v728
  %v730 = vmul.f32 %v660, 1.442695
  %v731 = vpow.pop %v730
  %v732 = vmul.f32 %v661, 1.442695
  %v733 = vpow.pop %v732
  %v734 = vmul.f32 %v662, 1.442695
  %v735 = vpow.pop %v734
  %v736 = vmul.f32 %v663, 1.442695
  %v737 = vpow.pop %v736
  %v738 = vmul.f32 %v664, 1.442695
  %v739 = vpow.pop %v738
  %v740 = vmul.f32 %v665, 1.442695
  %v741 = vpow.pop %v740
  %v742 = vmul.f32 %v666, 1.442695
  %v743 = vpow.pop %v742
  %v744 = vmul.f32 %v667, 1.442695
  %v745 = vpow.pop %v744
  %v746 = vmul.f32 %v668, 1.442695
  %v747 = vpow.pop %v746
  %v748 = vmul.f32 %v669, 1.442695
  %v749 = vpow.pop %v748
  %v750 = vmul.f32 %v670, 1.442695
  %v751 = vpow.pop %v750
  %v752 = vmul.f32 %v671, 1.442695
  %v753 = vpow.pop %v752
  %v754 = vmul.f32 %v672, 1.442695
  %v755 = vpow.pop %v754
  %v756 = vmul.f32 %v673, 1.442695
  %v757 = vpow.pop %v756
  %v758 = vmul.f32 %v674, 1.442695
  %v759 = vpow.pop %v758
  %v760 = vmul.f32 %v675, 1.442695
  %v761 = vpow.pop %v760
  %v762 = vmul.f32 %v676, 1.442695
  %v763 = vpow.pop %v762
  %v764 = vmul.f32 %v677, 1.442695
  %v765 = vpow.pop %v764
  %v766 = vmul.f32 %v678, 1.442695
  %v767 = vpow.pop %v766
  %v768 = vmul.f32 %v679, 1.442695
  %v769 = vpow.pop %v768
  %v770 = vmul.f32 %v680, 1.442695
  %v771 = vpow.pop %v770
  %v772 = vmul.f32 %v681, 1.442695
  %v773 = vpow.pop %v772
  %v774 = vmul.f32 %v682, 1.442695
  %v775 = vpow.pop %v774
  %v776 = vmul.f32 %v683, 1.442695
  %v777 = vpow.pop %v776
  %v778 = vmul.f32 %v684, 1.442695
  %v779 = vpow.pop %v778
  %v780 = vmul.f32 %v685, 1.442695
  %v781 = vpow.pop %v780
  %v782 = vmul.f32 %v686, 1.442695
  %v783 = vpow.pop %v782
  %v784 = vmul.f32 %v687, 1.442695
  %v785 = vpow.pop %v784
  %v786 = vmul.f32 %v688, 1.442695
  %v787 = vpow.pop %v786
  %v788 = vmul.f32 %v689, 1.442695
  %v789 = vpow.pop %v788
  %v790 = vmul.f32 %v690, 1.442695
  %v791 = vpow.pop %v790
  %v792 = vmul.f32 %v691, 1.442695
  %v793 = vpow.pop %v792
  %v794 = vmul.f32 %v692, 1.442695
  %v795 = vpow.pop %v794
  %v796 = vmul.f32 %v693, 1.442695
  %v797 = vpow.pop %v796
  %v798 = vmul.f32 %v694, 1.442695
  %v799 = vpow.pop %v798
  %v800 = vmul.f32 %v695, 1.442695
  %v801 = vpow.pop %v800
  %v802 = vmul.f32 %v696, 1.442695
  %v803 = vpow.pop %v802
  %v804 = vmul.f32 %v697, 1.442695
  %v805 = vpow.pop %v804
  %v806 = vmul.f32 %v698, 1.442695
  %v807 = vpow.pop %v806
  %v808 = vmul.f32 %v699, 1.442695
  %v809 = vpow.pop %v808
  %v810 = vmul.f32 %v700, 1.442695
  %v811 = vpow.pop %v810
  %v812 = vmul.f32 %v701, 1.442695
  %v813 = vpow.pop %v812
  %v814 = vmul.f32 %v702, 1.442695
  %v815 = vpow.pop %v814
  %v816 = vmul.f32 %v703, 1.442695
  %v817 = vpow.pop %v816
  %v818 = vmul.f32 %v704, 1.442695
  %v819 = vpow.pop %v818
  %v820 = vmul.f32 %v705, 1.442695
  %v821 = vpow.pop %v820
  %v822 = vmul.f32 %v706, 1.442695
  %v823 = vpow.pop %v822
  %v824 = vmul.f32 %v707, 1.442695
  %v825 = vpow.pop %v824
  %v826 = vmul.f32 %v708, 1.442695
  %v827 = vpow.pop %v826
  %v828 = vmul.f32 %v709, 1.442695
  %v829 = vpow.pop %v828
  %v830 = vmul.f32 %v710, 1.442695
  %v831 = vpow.pop %v830
  %v832 = vmul.f32 %v711, 1.442695
  %v833 = vpow.pop %v832
  %v834 = vmul.f32 %v712, 1.442695
  %v835 = vpow.pop %v834
  %v836 = vmul.f32 %v713, 1.442695
  %v837 = vpow.pop %v836
  %v838 = vmul.f32 %v714, 1.442695
  %v839 = vpow.pop %v838
  %v840 = vmul.f32 %v715, 1.442695
  %v841 = vpow.pop %v840
  %v842 = vmul.f32 %v716, 1.442695
  %v843 = vpow.pop %v842
  %v844 = vmul.f32 %v717, 1.442695
  %v845 = vpow.pop %v844
  %v846 = vadd.f32 %v719, 1.0
  %v847 = vadd.f32 %v721, 1.0
  %v848 = vadd.f32 %v723, 1.0
  %v849 = vadd.f32 %v725, 1.0
  %v850 = vadd.f32 %v727, 1.0
  %v851 = vadd.f32 %v729, 1.0
  %v852 = vadd.f32 %v731, 1.0
  %v853 = vadd.f32 %v733, 1.0
  %v854 = vadd.f32 %v735, 1.0
  %v855 = vadd.f32 %v737, 1.0
  %v856 = vadd.f32 %v739, 1.0
  %v857 = vadd.f32 %v741, 1.0
  %v858 = vadd.f32 %v743, 1.0
  %v859 = vadd.f32 %v745, 1.0
  %v860 = vadd.f32 %v747, 1.0
  %v861 = vadd.f32 %v749, 1.0
  %v862 = vadd.f32 %v751, 1.0
  %v863 = vadd.f32 %v753, 1.0
  %v864 = vadd.f32 %v755, 1.0
  %v865 = vadd.f32 %v757, 1.0
  %v866 = vadd.f32 %v759, 1.0
  %v867 = vadd.f32 %v761, 1.0
  %v868 = vadd.f32 %v763, 1.0
  %v869 = vadd.f32 %v765, 1.0
  %v870 = vadd.f32 %v767, 1.0
  %v871 = vadd.f32 %v769, 1.0
  %v872 = vadd.f32 %v771, 1.0
  %v873 = vadd.f32 %v773, 1.0
  %v874 = vadd.f32 %v775, 1.0
  %v875 = vadd.f32 %v777, 1.0
  %v876 = vadd.f32 %v779, 1.0
  %v877 = vadd.f32 %v781, 1.0
  %v878 = vadd.f32 %v783, 1.0
  %v879 = vadd.f32 %v785, 1.0
  %v880 = vadd.f32 %v787, 1.0
  %v881 = vadd.f32 %v789, 1.0
  %v882 = vadd.f32 %v791, 1.0
  %v883 = vadd.f32 %v793, 1.0
  %v884 = vadd.f32 %v795, 1.0
  %v885 = vadd.f32 %v797, 1.0
  %v886 = vadd.f32 %v799, 1.0
  %v887 = vadd.f32 %v801, 1.0
  %v888 = vadd.f32 %v803, 1.0
  %v889 = vadd.f32 %v805, 1.0
  %v890 = vadd.f32 %v807, 1.0
  %v891 = vadd.f32 %v809, 1.0
  %v892 = vadd.f32 %v811, 1.0
  %v893 = vadd.f32 %v813, 1.0
  %v894 = vadd.f32 %v815, 1.0
  %v895 = vadd.f32 %v817, 1.0
  %v896 = vadd.f32 %v819, 1.0
  %v897 = vadd.f32 %v821, 1.0
  %v898 = vadd.f32 %v823, 1.0
  %v899 = vadd.f32 %v825, 1.0
  %v900 = vadd.f32 %v827, 1.0
  %v901 = vadd.f32 %v829, 1.0
  %v902 = vadd.f32 %v831, 1.0
  %v903 = vadd.f32 %v833, 1.0
  %v904 = vadd.f32 %v835, 1.0
  %v905 = vadd.f32 %v837, 1.0
  %v906 = vadd.f32 %v839, 1.0
  %v907 = vadd.f32 %v841, 1.0
  %v908 = vadd.f32 %v843, 1.0
  %v909 = vadd.f32 %v845, 1.0
  %v910 = vrcp.pop %v846
  %v911 = vmul.f32 1.0, %v910
  %v912 = vrcp.pop %v847
  %v913 = vmul.f32 1.0, %v912
  %v914 = vrcp.pop %v848
  %v915 = vmul.f32 1.0, %v914
  %v916 = vrcp.pop %v849
  %v917 = vmul.f32 1.0, %v916
  %v918 = vrcp.pop %v850
  %v919 = vmul.f32 1.0, %v918
  %v920 = vrcp.pop %v851
  %v921 = vmul.f32 1.0, %v920
  %v922 = vrcp.pop %v852
  %v923 = vmul.f32 1.0, %v922
  %v924 = vrcp.pop %v853
  %v925 = vmul.f32 1.0, %v924
  %v926 = vrcp.pop %v854
  %v927 = vmul.f32 1.0, %v926
  %v928 = vrcp.pop %v855
  %v929 = vmul.f32 1.0, %v928
  %v930 = vrcp.pop %v856
  %v931 = vmul.f32 1.0, %v930
  %v932 = vrcp.pop %v857
  %v933 = vmul.f32 1.0, %v932
  %v934 = vrcp.pop %v858
  %v935 = vmul.f32 1.0, %v934
  %v936 = vrcp.pop %v859
  %v937 = vmul.f32 1.0, %v936
  %v938 = vrcp.pop %v860
  %v939 = vmul.f32 1.0, %v938
  %v940 = vrcp.pop %v861
  %v941 = vmul.f32 1.0, %v940
  %v942 = vrcp.pop %v862
  %v943 = vmul.f32 1.0, %v942
  %v944 = vrcp.pop %v863
  %v945 = vmul.f32 1.0, %v944
  %v946 = vrcp.pop %v864
  %v947 = vmul.f32 1.0, %v946
  %v948 = vrcp.pop %v865
  %v949 = vmul.f32 1.0, %v948
  %v950 = vrcp.pop %v866
  %v951 = vmul.f32 1.0, %v950
  %v952 = vrcp.pop %v867
  %v953 = vmul.f32 1.0, %v952
  %v954 = vrcp.pop %v868
  %v955 = vmul.f32 1.0, %v954
  %v956 = vrcp.pop %v869
  %v957 = vmul.f32 1.0, %v956
  %v958 = vrcp.pop %v870
  %v959 = vmul.f32 1.0, %v958
  %v960 = vrcp.pop %v871
  %v961 = vmul.f32 1.0, %v960
  %v962 = vrcp.pop %v872
  %v963 = vmul.f32 1.0, %v962
  %v964 = vrcp.pop %v873
  %v965 = vmul.f32 1.0, %v964
  %v966 = vrcp.pop %v874
  %v967 = vmul.f32 1.0, %v966
  %v968 = vrcp.pop %v875
  %v969 = vmul.f32 1.0, %v968
  %v970 = vrcp.pop %v876
  %v971 = vmul.f32 1.0, %v970
  %v972 = vrcp.pop %v877
  %v973 = vmul.f32 1.0, %v972
  %v974 = vrcp.pop %v878
  %v975 = vmul.f32 1.0, %v974
  %v976 = vrcp.pop %v879
  %v977 = vmul.f32 1.0, %v976
  %v978 = vrcp.pop %v880
  %v979 = vmul.f32 1.0, %v978
  %v980 = vrcp.pop %v881
  %v981 = vmul.f32 1.0, %v980
  %v982 = vrcp.pop %v882
  %v983 = vmul.f32 1.0, %v982
  %v984 = vrcp.pop %v883
  %v985 = vmul.f32 1.0, %v984
  %v986 = vrcp.pop %v884
  %v987 = vmul.f32 1.0, %v986
  %v988 = vrcp.pop %v885
  %v989 = vmul.f32 1.0, %v988
  %v990 = vrcp.pop %v886
  %v991 = vmul.f32 1.0, %v990
  %v992 = vrcp.pop %v887
  %v993 = vmul.f32 1.0, %v992
  %v994 = vrcp.pop %v888
  %v995 = vmul.f32 1.0, %v994
  %v996 = vrcp.pop %v889
  %v997 = vmul.f32 1.0, %v996
  %v998 = vrcp.pop %v890
  %v999 = vmul.f32 1.0, %v998
  %v1000 = vrcp.pop %v891
  %v1001 = vmul.f32 1.0, %v1000
  %v1002 = vrcp.pop %v892
  %v1003 = vmul.f32 1.0, %v1002
  %v1004 = vrcp.pop %v893
  %v1005 = vmul.f32 1.0, %v1004
  %v1006 = vrcp.pop %v894
  %v1007 = vmul.f32 1.0, %v1006
  %v1008 = vrcp.pop %v895
  %v1009 = vmul.f32 1.0, %v1008
  %v1010 = vrcp.pop %v896
  %v1011 = vmul.f32 1.0, %v1010
  %v1012 = vrcp.pop %v897
  %v1013 = vmul.f32 1.0, %v1012
  %v1014 = vrcp.pop %v898
  %v1015 = vmul.f32 1.0, %v1014
  %v1016 = vrcp.pop %v899
  %v1017 = vmul.f32 1.0, %v1016
  %v1018 = vrcp.pop %v900
  %v1019 = vmul.f32 1.0, %v1018
  %v1020 = vrcp.pop %v901
  %v1021 = vmul.f32 1.0, %v1020
  %v1022 = vrcp.pop %v902
  %v1023 = vmul.f32 1.0, %v1022
  %v1024 = vrcp.pop %v903
  %v1025 = vmul.f32 1.0, %v1024
  %v1026 = vrcp.pop %v904
  %v1027 = vmul.f32 1.0, %v1026
  %v1028 = vrcp.pop %v905
  %v1029 = vmul.f32 1.0, %v1028
  %v1030 = vrcp.pop %v906
  %v1031 = vmul.f32 1.0, %v1030
  %v1032 = vrcp.pop %v907
  %v1033 = vmul.f32 1.0, %v1032
  %v1034 = vrcp.pop %v908
  %v1035 = vmul.f32 1.0, %v1034
  %v1036 = vrcp.pop %v909
  %v1037 = vmul.f32 1.0, %v1036
  %v1038 = vmul.f32 %v400, %v911
  %v1039 = vmul.f32 %v403, %v913
  %v1040 = vmul.f32 %v408, %v915
  %v1041 = vmul.f32 %v411, %v917
  %v1042 = vmul.f32 %v416, %v919
  %v1043 = vmul.f32 %v419, %v921
  %v1044 = vmul.f32 %v424, %v923
  %v1045 = vmul.f32 %v427, %v925
  %v1046 = vmul.f32 %v432, %v927
  %v1047 = vmul.f32 %v435, %v929
  %v1048 = vmul.f32 %v440, %v931
  %v1049 = vmul.f32 %v443, %v933
  %v1050 = vmul.f32 %v448, %v935
  %v1051 = vmul.f32 %v451, %v937
  %v1052 = vmul.f32 %v456, %v939
  %v1053 = vmul.f32 %v459, %v941
  %v1054 = vmul.f32 %v464, %v943
  %v1055 = vmul.f32 %v467, %v945
  %v1056 = vmul.f32 %v472, %v947
  %v1057 = vmul.f32 %v475, %v949
  %v1058 = vmul.f32 %v480, %v951
  %v1059 = vmul.f32 %v483, %v953
  %v1060 = vmul.f32 %v488, %v955
  %v1061 = vmul.f32 %v491, %v957
  %v1062 = vmul.f32 %v496, %v959
  %v1063 = vmul.f32 %v499, %v961
  %v1064 = vmul.f32 %v504, %v963
  %v1065 = vmul.f32 %v507, %v965
  %v1066 = vmul.f32 %v512, %v967
  %v1067 = vmul.f32 %v515, %v969
  %v1068 = vmul.f32 %v520, %v971
  %v1069 = vmul.f32 %v523, %v973
  %v1070 = vmul.f32 %v528, %v975
  %v1071 = vmul.f32 %v531, %v977
  %v1072 = vmul.f32 %v536, %v979
  %v1073 = vmul.f32 %v539, %v981
  %v1074 = vmul.f32 %v544, %v983
  %v1075 = vmul.f32 %v547, %v985
  %v1076 = vmul.f32 %v552, %v987
  %v1077 = vmul.f32 %v555, %v989
  %v1078 = vmul.f32 %v560, %v991
  %v1079 = vmul.f32 %v563, %v993
  %v1080 = vmul.f32 %v568, %v995
  %v1081 = vmul.f32 %v571, %v997
  %v1082 = vmul.f32 %v576, %v999
  %v1083 = vmul.f32 %v579, %v1001
  %v1084 = vmul.f32 %v584, %v1003
  %v1085 = vmul.f32 %v587, %v1005
  %v1086 = vmul.f32 %v592, %v1007
  %v1087 = vmul.f32 %v595, %v1009
  %v1088 = vmul.f32 %v600, %v1011
  %v1089 = vmul.f32 %v603, %v1013
  %v1090 = vmul.f32 %v608, %v1015
  %v1091 = vmul.f32 %v611, %v1017
  %v1092 = vmul.f32 %v616, %v1019
  %v1093 = vmul.f32 %v619, %v1021
  %v1094 = vmul.f32 %v624, %v1023
  %v1095 = vmul.f32 %v627, %v1025
  %v1096 = vmul.f32 %v632, %v1027
  %v1097 = vmul.f32 %v635, %v1029
  %v1098 = vmul.f32 %v640, %v1031
  %v1099 = vmul.f32 %v643, %v1033
  %v1100 = vmul.f32 %v648, %v1035
  %v1101 = vmul.f32 %v651, %v1037
  %v1102 = vpack.c.bf16 %v1039, %v1038
  %v1103 = vpack.c.bf16 %v1041, %v1040
  %v1104 = vpack.c.bf16 %v1043, %v1042
  %v1105 = vpack.c.bf16 %v1045, %v1044
  %v1106 = vpack.c.bf16 %v1047, %v1046
  %v1107 = vpack.c.bf16 %v1049, %v1048
  %v1108 = vpack.c.bf16 %v1051, %v1050
  %v1109 = vpack.c.bf16 %v1053, %v1052
  %v1110 = vpack.c.bf16 %v1055, %v1054
  %v1111 = vpack.c.bf16 %v1057, %v1056
  %v1112 = vpack.c.bf16 %v1059, %v1058
  %v1113 = vpack.c.bf16 %v1061, %v1060
  %v1114 = vpack.c.bf16 %v1063, %v1062
  %v1115 = vpack.c.bf16 %v1065, %v1064
  %v1116 = vpack.c.bf16 %v1067, %v1066
  %v1117 = vpack.c.bf16 %v1069, %v1068
  %v1118 = vpack.c.bf16 %v1071, %v1070
  %v1119 = vpack.c.bf16 %v1073, %v1072
  %v1120 = vpack.c.bf16 %v1075, %v1074
  %v1121 = vpack.c.bf16 %v1077, %v1076
  %v1122 = vpack.c.bf16 %v1079, %v1078
  %v1123 = vpack.c.bf16 %v1081, %v1080
  %v1124 = vpack.c.bf16 %v1083, %v1082
  %v1125 = vpack.c.bf16 %v1085, %v1084
  %v1126 = vpack.c.bf16 %v1087, %v1086
  %v1127 = vpack.c.bf16 %v1089, %v1088
  %v1128 = vpack.c.bf16 %v1091, %v1090
  %v1129 = vpack.c.bf16 %v1093, %v1092
  %v1130 = vpack.c.bf16 %v1095, %v1094
  %v1131 = vpack.c.bf16 %v1097, %v1096
  %v1132 = vpack.c.bf16 %v1099, %v1098
  %v1133 = vpack.c.bf16 %v1101, %v1100
  %v1166 = vunpack.c.l.b16 %v1102
  %v1167 = vunpack.c.h.b16 %v1102
  %v1168 = vunpack.c.l.b16 %v1103
  %v1169 = vunpack.c.h.b16 %v1103
  %v1170 = vunpack.c.l.b16 %v1104
  %v1171 = vunpack.c.h.b16 %v1104
  %v1172 = vunpack.c.l.b16 %v1105
  %v1173 = vunpack.c.h.b16 %v1105
  %v1174 = vunpack.c.l.b16 %v1106
  %v1175 = vunpack.c.h.b16 %v1106
  %v1176 = vunpack.c.l.b16 %v1107
  %v1177 = vunpack.c.h.b16 %v1107
  %v1178 = vunpack.c.l.b16 %v1108
  %v1179 = vunpack.c.h.b16 %v1108
  %v1180 = vunpack.c.l.b16 %v1109
  %v1181 = vunpack.c.h.b16 %v1109
  %v1182 = vunpack.c.l.b16 %v1110
  %v1183 = vunpack.c.h.b16 %v1110
  %v1184 = vunpack.c.l.b16 %v1111
  %v1185 = vunpack.c.h.b16 %v1111
  %v1186 = vunpack.c.l.b16 %v1112
  %v1187 = vunpack.c.h.b16 %v1112
  %v1188 = vunpack.c.l.b16 %v1113
  %v1189 = vunpack.c.h.b16 %v1113
  %v1190 = vunpack.c.l.b16 %v1114
  %v1191 = vunpack.c.h.b16 %v1114
  %v1192 = vunpack.c.l.b16 %v1115
  %v1193 = vunpack.c.h.b16 %v1115
  %v1194 = vunpack.c.l.b16 %v1116
  %v1195 = vunpack.c.h.b16 %v1116
  %v1196 = vunpack.c.l.b16 %v1117
  %v1197 = vunpack.c.h.b16 %v1117
  %v1198 = vunpack.c.l.b16 %v1118
  %v1199 = vunpack.c.h.b16 %v1118
  %v1200 = vunpack.c.l.b16 %v1119
  %v1201 = vunpack.c.h.b16 %v1119
  %v1202 = vunpack.c.l.b16 %v1120
  %v1203 = vunpack.c.h.b16 %v1120
  %v1204 = vunpack.c.l.b16 %v1121
  %v1205 = vunpack.c.h.b16 %v1121
  %v1206 = vunpack.c.l.b16 %v1122
  %v1207 = vunpack.c.h.b16 %v1122
  %v1208 = vunpack.c.l.b16 %v1123
  %v1209 = vunpack.c.h.b16 %v1123
  %v1210 = vunpack.c.l.b16 %v1124
  %v1211 = vunpack.c.h.b16 %v1124
  %v1212 = vunpack.c.l.b16 %v1125
  %v1213 = vunpack.c.h.b16 %v1125
  %v1214 = vunpack.c.l.b16 %v1126
  %v1215 = vunpack.c.h.b16 %v1126
  %v1216 = vunpack.c.l.b16 %v1127
  %v1217 = vunpack.c.h.b16 %v1127
  %v1218 = vunpack.c.l.b16 %v1128
  %v1219 = vunpack.c.h.b16 %v1128
  %v1220 = vunpack.c.l.b16 %v1129
  %v1221 = vunpack.c.h.b16 %v1129
  %v1222 = vunpack.c.l.b16 %v1130
  %v1223 = vunpack.c.h.b16 %v1130
  %v1224 = vunpack.c.l.b16 %v1131
  %v1225 = vunpack.c.h.b16 %v1131
  %v1226 = vunpack.c.l.b16 %v1132
  %v1227 = vunpack.c.h.b16 %v1132
  %v1228 = vunpack.c.l.b16 %v1133
  %v1229 = vunpack.c.h.b16 %v1133
  %v1230 = vpack.c.b16 %v1166, %v1166
  %v1231 = vpack.c.b16 %v1167, %v1167
  %v1232 = vpack.c.b16 %v1168, %v1168
  %v1233 = vpack.c.b16 %v1169, %v1169
  %v1234 = vpack.c.b16 %v1170, %v1170
  %v1235 = vpack.c.b16 %v1171, %v1171
  %v1236 = vpack.c.b16 %v1172, %v1172
  %v1237 = vpack.c.b16 %v1173, %v1173
  %v1238 = vpack.c.b16 %v1174, %v1174
  %v1239 = vpack.c.b16 %v1175, %v1175
  %v1240 = vpack.c.b16 %v1176, %v1176
  %v1241 = vpack.c.b16 %v1177, %v1177
  %v1242 = vpack.c.b16 %v1178, %v1178
  %v1243 = vpack.c.b16 %v1179, %v1179
  %v1244 = vpack.c.b16 %v1180, %v1180
  %v1245 = vpack.c.b16 %v1181, %v1181
  %v1246 = vpack.c.b16 %v1182, %v1182
  %v1247 = vpack.c.b16 %v1183, %v1183
  %v1248 = vpack.c.b16 %v1184, %v1184
  %v1249 = vpack.c.b16 %v1185, %v1185
  %v1250 = vpack.c.b16 %v1186, %v1186
  %v1251 = vpack.c.b16 %v1187, %v1187
  %v1252 = vpack.c.b16 %v1188, %v1188
  %v1253 = vpack.c.b16 %v1189, %v1189
  %v1254 = vpack.c.b16 %v1190, %v1190
  %v1255 = vpack.c.b16 %v1191, %v1191
  %v1256 = vpack.c.b16 %v1192, %v1192
  %v1257 = vpack.c.b16 %v1193, %v1193
  %v1258 = vpack.c.b16 %v1194, %v1194
  %v1259 = vpack.c.b16 %v1195, %v1195
  %v1260 = vpack.c.b16 %v1196, %v1196
  %v1261 = vpack.c.b16 %v1197, %v1197
  %v1262 = vpack.c.b16 %v1198, %v1198
  %v1263 = vpack.c.b16 %v1199, %v1199
  %v1264 = vpack.c.b16 %v1200, %v1200
  %v1265 = vpack.c.b16 %v1201, %v1201
  %v1266 = vpack.c.b16 %v1202, %v1202
  %v1267 = vpack.c.b16 %v1203, %v1203
  %v1268 = vpack.c.b16 %v1204, %v1204
  %v1269 = vpack.c.b16 %v1205, %v1205
  %v1270 = vpack.c.b16 %v1206, %v1206
  %v1271 = vpack.c.b16 %v1207, %v1207
  %v1272 = vpack.c.b16 %v1208, %v1208
  %v1273 = vpack.c.b16 %v1209, %v1209
  %v1274 = vpack.c.b16 %v1210, %v1210
  %v1275 = vpack.c.b16 %v1211, %v1211
  %v1276 = vpack.c.b16 %v1212, %v1212
  %v1277 = vpack.c.b16 %v1213, %v1213
  %v1278 = vpack.c.b16 %v1214, %v1214
  %v1279 = vpack.c.b16 %v1215, %v1215
  %v1280 = vpack.c.b16 %v1216, %v1216
  %v1281 = vpack.c.b16 %v1217, %v1217
  %v1282 = vpack.c.b16 %v1218, %v1218
  %v1283 = vpack.c.b16 %v1219, %v1219
  %v1284 = vpack.c.b16 %v1220, %v1220
  %v1285 = vpack.c.b16 %v1221, %v1221
  %v1286 = vpack.c.b16 %v1222, %v1222
  %v1287 = vpack.c.b16 %v1223, %v1223
  %v1288 = vpack.c.b16 %v1224, %v1224
  %v1289 = vpack.c.b16 %v1225, %v1225
  %v1290 = vpack.c.b16 %v1226, %v1226
  %v1291 = vpack.c.b16 %v1227, %v1227
  %v1292 = vpack.c.b16 %v1228, %v1228
  %v1293 = vpack.c.b16 %v1229, %v1229
  %vm1358 = vcmask 125952
  %1359 = vst.msk [vmem:[%s3] sm:$0xf] %vm1358, %v1230
  %1360 = vst.msk [vmem:[%s3 + $0x4] sm:$0xf] %vm1358, %v1231
  %1361 = vst.msk [vmem:[%s3 + $0x8] sm:$0xf] %vm1358, %v1232
  %1362 = vst.msk [vmem:[%s3 + $0xc] sm:$0xf] %vm1358, %v1233
  %1363 = vst.msk [vmem:[%s3 + $0x10] sm:$0xf] %vm1358, %v1234
  %1364 = vst.msk [vmem:[%s3 + $0x14] sm:$0xf] %vm1358, %v1235
  %1365 = vst.msk [vmem:[%s3 + $0x18] sm:$0xf] %vm1358, %v1236
  %1366 = vst.msk [vmem:[%s3 + $0x1c] sm:$0xf] %vm1358, %v1237
  %1367 = vst.msk [vmem:[%s3 + $0x20] sm:$0xf] %vm1358, %v1238
  %1368 = vst.msk [vmem:[%s3 + $0x24] sm:$0xf] %vm1358, %v1239
  %1369 = vst.msk [vmem:[%s3 + $0x28] sm:$0xf] %vm1358, %v1240
  %1370 = vst.msk [vmem:[%s3 + $0x2c] sm:$0xf] %vm1358, %v1241
  %1371 = vst.msk [vmem:[%s3 + $0x30] sm:$0xf] %vm1358, %v1242
  %1372 = vst.msk [vmem:[%s3 + $0x34] sm:$0xf] %vm1358, %v1243
  %1373 = vst.msk [vmem:[%s3 + $0x38] sm:$0xf] %vm1358, %v1244
  %1374 = vst.msk [vmem:[%s3 + $0x3c] sm:$0xf] %vm1358, %v1245
  %1375 = vst.msk [vmem:[%s3 + $0x40] sm:$0xf] %vm1358, %v1246
  %1376 = vst.msk [vmem:[%s3 + $0x44] sm:$0xf] %vm1358, %v1247
  %1377 = vst.msk [vmem:[%s3 + $0x48] sm:$0xf] %vm1358, %v1248
  %1378 = vst.msk [vmem:[%s3 + $0x4c] sm:$0xf] %vm1358, %v1249
  %1379 = vst.msk [vmem:[%s3 + $0x50] sm:$0xf] %vm1358, %v1250
  %1380 = vst.msk [vmem:[%s3 + $0x54] sm:$0xf] %vm1358, %v1251
  %1381 = vst.msk [vmem:[%s3 + $0x58] sm:$0xf] %vm1358, %v1252
  %1382 = vst.msk [vmem:[%s3 + $0x5c] sm:$0xf] %vm1358, %v1253
  %1383 = vst.msk [vmem:[%s3 + $0x60] sm:$0xf] %vm1358, %v1254
  %1384 = vst.msk [vmem:[%s3 + $0x64] sm:$0xf] %vm1358, %v1255
  %1385 = vst.msk [vmem:[%s3 + $0x68] sm:$0xf] %vm1358, %v1256
  %1386 = vst.msk [vmem:[%s3 + $0x6c] sm:$0xf] %vm1358, %v1257
  %1387 = vst.msk [vmem:[%s3 + $0x70] sm:$0xf] %vm1358, %v1258
  %1388 = vst.msk [vmem:[%s3 + $0x74] sm:$0xf] %vm1358, %v1259
  %1389 = vst.msk [vmem:[%s3 + $0x78] sm:$0xf] %vm1358, %v1260
  %1390 = vst.msk [vmem:[%s3 + $0x7c] sm:$0xf] %vm1358, %v1261
  %1391 = vst.msk [vmem:[%s3 + $0x80] sm:$0xf] %vm1358, %v1262
  %1392 = vst.msk [vmem:[%s3 + $0x84] sm:$0xf] %vm1358, %v1263
  %1393 = vst.msk [vmem:[%s3 + $0x88] sm:$0xf] %vm1358, %v1264
  %1394 = vst.msk [vmem:[%s3 + $0x8c] sm:$0xf] %vm1358, %v1265
  %1395 = vst.msk [vmem:[%s3 + $0x90] sm:$0xf] %vm1358, %v1266
  %1396 = vst.msk [vmem:[%s3 + $0x94] sm:$0xf] %vm1358, %v1267
  %1397 = vst.msk [vmem:[%s3 + $0x98] sm:$0xf] %vm1358, %v1268
  %1398 = vst.msk [vmem:[%s3 + $0x9c] sm:$0xf] %vm1358, %v1269
  %1399 = vst.msk [vmem:[%s3 + $0xa0] sm:$0xf] %vm1358, %v1270
  %1400 = vst.msk [vmem:[%s3 + $0xa4] sm:$0xf] %vm1358, %v1271
  %1401 = vst.msk [vmem:[%s3 + $0xa8] sm:$0xf] %vm1358, %v1272
  %1402 = vst.msk [vmem:[%s3 + $0xac] sm:$0xf] %vm1358, %v1273
  %1403 = vst.msk [vmem:[%s3 + $0xb0] sm:$0xf] %vm1358, %v1274
  %1404 = vst.msk [vmem:[%s3 + $0xb4] sm:$0xf] %vm1358, %v1275
  %1405 = vst.msk [vmem:[%s3 + $0xb8] sm:$0xf] %vm1358, %v1276
  %1406 = vst.msk [vmem:[%s3 + $0xbc] sm:$0xf] %vm1358, %v1277
  %1407 = vst.msk [vmem:[%s3 + $0xc0] sm:$0xf] %vm1358, %v1278
  %1408 = vst.msk [vmem:[%s3 + $0xc4] sm:$0xf] %vm1358, %v1279
  %1409 = vst.msk [vmem:[%s3 + $0xc8] sm:$0xf] %vm1358, %v1280
  %1410 = vst.msk [vmem:[%s3 + $0xcc] sm:$0xf] %vm1358, %v1281
  %1411 = vst.msk [vmem:[%s3 + $0xd0] sm:$0xf] %vm1358, %v1282
  %1412 = vst.msk [vmem:[%s3 + $0xd4] sm:$0xf] %vm1358, %v1283
  %1413 = vst.msk [vmem:[%s3 + $0xd8] sm:$0xf] %vm1358, %v1284
  %1414 = vst.msk [vmem:[%s3 + $0xdc] sm:$0xf] %vm1358, %v1285
  %1415 = vst.msk [vmem:[%s3 + $0xe0] sm:$0xf] %vm1358, %v1286
  %1416 = vst.msk [vmem:[%s3 + $0xe4] sm:$0xf] %vm1358, %v1287
  %1417 = vst.msk [vmem:[%s3 + $0xe8] sm:$0xf] %vm1358, %v1288
  %1418 = vst.msk [vmem:[%s3 + $0xec] sm:$0xf] %vm1358, %v1289
  %1419 = vst.msk [vmem:[%s3 + $0xf0] sm:$0xf] %vm1358, %v1290
  %1420 = vst.msk [vmem:[%s3 + $0xf4] sm:$0xf] %vm1358, %v1291
  %1421 = vst.msk [vmem:[%s3 + $0xf8] sm:$0xf] %vm1358, %v1292
  %1422 = vst.msk [vmem:[%s3 + $0xfc] sm:$0xf] %vm1358, %v1293
  // Predicated region
  $region14: #{_lambda_.35} parent=0 // pred_check
    _
  $region15: #{_lambda_.35} parent=0 // pred_check_branch
    %1424 = sbr.rel (0) target = $region17
  $region16: #{_lambda_.35} parent=0 // pred_region
    _
  $region17: #{_lambda_.35} parent=0 // pred_fallthru
    _
  // Predicated region
  $region18: #{_lambda_.35} parent=0 // pred_check
    _
  $region19: #{_lambda_.35} parent=0 // pred_check_branch
    %1426 = sbr.rel (0) target = $region21
  $region20: #{_lambda_.35} parent=0 // pred_region
    _
  $region21: #{_lambda_.35} parent=0 // pred_fallthru
    _

// kernel: _lambda_.36
$region0: #{_lambda_.36}
  #allocation0 [shape = 'u32[]', space=smem, size = 0x4, offset = 0x4, fixed_abs, tag = 'smem constant byte address 0x4 - core index']
  #allocation1 [shape = 'u32[144,128]{1,0:T(1,128)}', space=vmem, size = 0x12000, scoped, tag = 'internal scratch']
  %s0 = inlined_call_operand.vmem [shape: bf16[128,144], index: 0, kind: input, shape index: {}]
  %s1 = inlined_call_operand.vmem [shape: bf16[144,32], index: 1, kind: input, shape index: {}]
  %s2 = inlined_call_operand.vmem [shape: f32[1,32], index: 2, kind: input, shape index: {}]
  %s3 = inlined_call_operand.vmem [shape: bf16[128,32], index: 3, kind: output, shape index: {}]
  %s4 = sld [smem:[#allocation0]]
  $region22: #{_lambda_.36} parent=0
    _
  %s6 = ssub.s32 1, %s4
  %s7 = scalar_select 0, %s6, %s4
  // Predicated region
  $region2: #{_lambda_.36} parent=0 // pred_check
    _
  $region3: #{_lambda_.36} parent=0 // pred_check_branch
    %9 = sbr.rel (0) target = $region5
  $region4: #{_lambda_.36} parent=0 // pred_region
    _
  $region5: #{_lambda_.36} parent=0 // pred_fallthru
    _
  // Predicated region
  $region6: #{_lambda_.36} parent=0 // pred_check
    _
  $region7: #{_lambda_.36} parent=0 // pred_check_branch
    %11 = sbr.rel (0) target = $region9
  $region8: #{_lambda_.36} parent=0 // pred_region
    _
  $region9: #{_lambda_.36} parent=0 // pred_fallthru
    _
  // Predicated region
  $region10: #{_lambda_.36} parent=0 // pred_check
    _
  $region11: #{_lambda_.36} parent=0 // pred_check_branch
    %13 = sbr.rel (0) target = $region13
  $region12: #{_lambda_.36} parent=0 // pred_region
    _
  $region13: #{_lambda_.36} parent=0 // pred_fallthru
    _
  %v15 = vld [vmem:[%s0] sm:$0xff]
  %v16 = vld [vmem:[%s0 + $0x8] sm:$0xff]
  %v17 = vld [vmem:[%s0 + $0x10] sm:$0xff]
  %v18 = vld [vmem:[%s0 + $0x18] sm:$0xff]
  %v19 = vld [vmem:[%s0 + $0x20] sm:$0xff]
  %v20 = vld [vmem:[%s0 + $0x28] sm:$0xff]
  %v21 = vld [vmem:[%s0 + $0x30] sm:$0xff]
  %v22 = vld [vmem:[%s0 + $0x38] sm:$0xff]
  %v23 = vld [vmem:[%s0 + $0x40] sm:$0xff]
  %v24 = vld [vmem:[%s0 + $0x48] sm:$0xff]
  %v25 = vld [vmem:[%s0 + $0x50] sm:$0xff]
  %v26 = vld [vmem:[%s0 + $0x58] sm:$0xff]
  %v27 = vld [vmem:[%s0 + $0x60] sm:$0xff]
  %v28 = vld [vmem:[%s0 + $0x68] sm:$0xff]
  %v29 = vld [vmem:[%s0 + $0x70] sm:$0xff]
  %v30 = vld [vmem:[%s0 + $0x78] sm:$0xff]
  %v31 = vld [vmem:[%s1] sm:$0xf]
  %v32 = vld [vmem:[%s1 + $0x4] sm:$0xf]
  %v33 = vld [vmem:[%s1 + $0x8] sm:$0xf]
  %v34 = vld [vmem:[%s1 + $0xc] sm:$0xf]
  %v35 = vld [vmem:[%s1 + $0x10] sm:$0xf]
  %v36 = vld [vmem:[%s1 + $0x14] sm:$0xf]
  %v37 = vld [vmem:[%s1 + $0x18] sm:$0xf]
  %v38 = vld [vmem:[%s1 + $0x1c] sm:$0xf]
  %v39 = vld [vmem:[%s1 + $0x20] sm:$0xf]
  %v40 = vld [vmem:[%s1 + $0x24] sm:$0xf]
  %v41 = vld [vmem:[%s1 + $0x28] sm:$0xf]
  %v42 = vld [vmem:[%s1 + $0x2c] sm:$0xf]
  %v43 = vld [vmem:[%s1 + $0x30] sm:$0xf]
  %v44 = vld [vmem:[%s1 + $0x34] sm:$0xf]
  %v45 = vld [vmem:[%s1 + $0x38] sm:$0xf]
  %v46 = vld [vmem:[%s1 + $0x3c] sm:$0xf]
  %v47 = vld [vmem:[%s1 + $0x40] sm:$0xf]
  %v48 = vld [vmem:[%s1 + $0x44] sm:$0xf]
  %v49 = vld [vmem:[%s2] sm:$0x1]
  %v51 = vlaneseq
  %v52 = vshrl.u32 %v51, 7
  %v53 = vsub.s32 0, %v52
  %v54 = vrot.slane %v49, %v53
  %v72 = vunpack.c.l.b16 %v15
  %v73 = vunpack.c.h.b16 %v15
  %v74 = vunpack.c.l.b16 %v16
  %v75 = vunpack.c.h.b16 %v16
  %v76 = vunpack.c.l.b16 %v17
  %v77 = vunpack.c.h.b16 %v17
  %v78 = vunpack.c.l.b16 %v18
  %v79 = vunpack.c.h.b16 %v18
  %v80 = vunpack.c.l.b16 %v19
  %v81 = vunpack.c.h.b16 %v19
  %v82 = vunpack.c.l.b16 %v20
  %v83 = vunpack.c.h.b16 %v20
  %v84 = vunpack.c.l.b16 %v21
  %v85 = vunpack.c.h.b16 %v21
  %v86 = vunpack.c.l.b16 %v22
  %v87 = vunpack.c.h.b16 %v22
  %v88 = vunpack.c.l.b16 %v23
  %v89 = vunpack.c.h.b16 %v23
  %v90 = vunpack.c.l.b16 %v24
  %v91 = vunpack.c.h.b16 %v24
  %v92 = vunpack.c.l.b16 %v25
  %v93 = vunpack.c.h.b16 %v25
  %v94 = vunpack.c.l.b16 %v26
  %v95 = vunpack.c.h.b16 %v26
  %v96 = vunpack.c.l.b16 %v27
  %v97 = vunpack.c.h.b16 %v27
  %v98 = vunpack.c.l.b16 %v28
  %v99 = vunpack.c.h.b16 %v28
  %v100 = vunpack.c.l.b16 %v29
  %v101 = vunpack.c.h.b16 %v29
  %v102 = vunpack.c.l.b16 %v30
  %v103 = vunpack.c.h.b16 %v30
  %v104 = vpack.c.b16 %v74, %v72
  %v105 = vpack.c.b16 %v75, %v73
  %v106 = vpack.c.b16 %v78, %v76
  %v107 = vpack.c.b16 %v79, %v77
  %v108 = vpack.c.b16 %v82, %v80
  %v109 = vpack.c.b16 %v83, %v81
  %v110 = vpack.c.b16 %v86, %v84
  %v111 = vpack.c.b16 %v87, %v85
  %v112 = vpack.c.b16 %v90, %v88
  %v113 = vpack.c.b16 %v91, %v89
  %v114 = vpack.c.b16 %v94, %v92
  %v115 = vpack.c.b16 %v95, %v93
  %v116 = vpack.c.b16 %v98, %v96
  %v117 = vpack.c.b16 %v99, %v97
  %v118 = vpack.c.b16 %v102, %v100
  %v119 = vpack.c.b16 %v103, %v101
  %v146 = vunpack.c.l.b16 %v31
  %v147 = vunpack.c.l.b16 %v32
  %v148 = vunpack.c.l.b16 %v33
  %v149 = vunpack.c.l.b16 %v34
  %v150 = vunpack.c.l.b16 %v35
  %v151 = vunpack.c.l.b16 %v36
  %v152 = vunpack.c.l.b16 %v37
  %v153 = vunpack.c.l.b16 %v38
  %v154 = vunpack.c.l.b16 %v39
  %v155 = vunpack.c.l.b16 %v40
  %v156 = vunpack.c.l.b16 %v41
  %v157 = vunpack.c.l.b16 %v42
  %v158 = vunpack.c.l.b16 %v43
  %v159 = vunpack.c.l.b16 %v44
  %v160 = vunpack.c.l.b16 %v45
  %v161 = vunpack.c.l.b16 %v46
  %v162 = vunpack.c.l.b16 %v47
  %v163 = vunpack.c.l.b16 %v48
  %v164 = vpack.c.b16 %v147, %v146
  %v165 = vpack.c.b16 %v149, %v148
  %v166 = vpack.c.b16 %v151, %v150
  %v167 = vpack.c.b16 %v153, %v152
  %v168 = vpack.c.b16 %v155, %v154
  %v169 = vpack.c.b16 %v157, %v156
  %v170 = vpack.c.b16 %v159, %v158
  %v171 = vpack.c.b16 %v161, %v160
  %v172 = vpack.c.b16 %v163, %v162
  %vm182 = vcmask 130048
  %v184 = vsel %vm182, %v105, 0
  %v187 = vsel %vm182, %v107, 0
  %v190 = vsel %vm182, %v109, 0
  %v193 = vsel %vm182, %v111, 0
  %v196 = vsel %vm182, %v113, 0
  %v199 = vsel %vm182, %v115, 0
  %v202 = vsel %vm182, %v117, 0
  %v205 = vsel %vm182, %v119, 0
  %207 = vmatprep.subr.bf16.mxu0 0
  %208 = vmatpush1.bf16.msra.mxu0 %v171
  %209 = vmatprep.subr.bf16.mxu0 0
  %210 = vmatpush1.bf16.msra.mxu0 %v170
  %211 = vmatprep.subr.bf16.mxu0 0
  %212 = vmatpush1.bf16.msra.mxu0 %v169
  %213 = vmatprep.subr.bf16.mxu0 0
  %214 = vmatpush1.bf16.msra.mxu0 %v168
  %215 = vmatprep.subr.bf16.mxu0 0
  %216 = vmatpush1.bf16.msra.mxu0 %v167
  %217 = vmatprep.subr.bf16.mxu0 0
  %218 = vmatpush1.bf16.msra.mxu0 %v166
  %219 = vmatprep.subr.bf16.mxu0 0
  %220 = vmatpush1.bf16.msra.mxu0 %v165
  %221 = vmatprep.subr.bf16.mxu0 0
  %222 = vmatpush1.bf16.msra.mxu0 %v164
  %223 = vmatprep.subr.bf16.mxu0 0
  %224 = vmatpush2.bf16.msra.mxu0 0
  %225 = vmatprep.subr.bf16.mxu0 0
  %226 = vmatpush2.bf16.msra.mxu0 0
  %227 = vmatprep.subr.bf16.mxu0 0
  %228 = vmatpush2.bf16.msra.mxu0 0
  %229 = vmatprep.subr.bf16.mxu0 0
  %230 = vmatpush2.bf16.msra.mxu0 0
  %231 = vmatprep.subr.bf16.mxu0 0
  %232 = vmatpush2.bf16.msra.mxu0 0
  %233 = vmatprep.subr.bf16.mxu0 0
  %234 = vmatpush2.bf16.msra.mxu0 0
  %235 = vmatprep.subr.bf16.mxu0 0
  %236 = vmatpush2.bf16.msra.mxu0 0
  %237 = vmatprep.subr.bf16.mxu0 0
  %238 = vmatpush2.bf16.msra.mxu0 %v172
  %239 = vmatprep.mubr.bf16.mxu0 %v184
  %240 = vmatmul.mubr.bf16.gmra.mxu0 %v104
  %v241 = vpop.f32.mrf.mxu0
  %v242 = vadd.f32 %v54, %v241
  %v243 = vpop.f32.mrf.mxu0
  %v244 = vpop.f32.mrf.mxu0
  %v245 = vadd.f32 %v54, %v244
  %v246 = vpop.f32.mrf.mxu0
  %247 = vmatprep.mubr.bf16.mxu0 %v187
  %248 = vmatmul.mubr.bf16.gmra.mxu0 %v106
  %v249 = vpop.f32.mrf.mxu0
  %v250 = vadd.f32 %v54, %v249
  %v251 = vpop.f32.mrf.mxu0
  %v252 = vpop.f32.mrf.mxu0
  %v253 = vadd.f32 %v54, %v252
  %v254 = vpop.f32.mrf.mxu0
  %255 = vmatprep.mubr.bf16.mxu0 %v190
  %256 = vmatmul.mubr.bf16.gmra.mxu0 %v108
  %v257 = vpop.f32.mrf.mxu0
  %v258 = vadd.f32 %v54, %v257
  %v259 = vpop.f32.mrf.mxu0
  %v260 = vpop.f32.mrf.mxu0
  %v261 = vadd.f32 %v54, %v260
  %v262 = vpop.f32.mrf.mxu0
  %263 = vmatprep.mubr.bf16.mxu0 %v193
  %264 = vmatmul.mubr.bf16.gmra.mxu0 %v110
  %v265 = vpop.f32.mrf.mxu0
  %v266 = vadd.f32 %v54, %v265
  %v267 = vpop.f32.mrf.mxu0
  %v268 = vpop.f32.mrf.mxu0
  %v269 = vadd.f32 %v54, %v268
  %v270 = vpop.f32.mrf.mxu0
  %271 = vmatprep.mubr.bf16.mxu0 %v196
  %272 = vmatmul.mubr.bf16.gmra.mxu0 %v112
  %v273 = vpop.f32.mrf.mxu0
  %v274 = vadd.f32 %v54, %v273
  %v275 = vpop.f32.mrf.mxu0
  %v276 = vpop.f32.mrf.mxu0
  %v277 = vadd.f32 %v54, %v276
  %v278 = vpop.f32.mrf.mxu0
  %279 = vmatprep.mubr.bf16.mxu0 %v199
  %280 = vmatmul.mubr.bf16.gmra.mxu0 %v114
  %v281 = vpop.f32.mrf.mxu0
  %v282 = vadd.f32 %v54, %v281
  %v283 = vpop.f32.mrf.mxu0
  %v284 = vpop.f32.mrf.mxu0
  %v285 = vadd.f32 %v54, %v284
  %v286 = vpop.f32.mrf.mxu0
  %287 = vmatprep.mubr.bf16.mxu0 %v202
  %288 = vmatmul.mubr.bf16.gmra.mxu0 %v116
  %v289 = vpop.f32.mrf.mxu0
  %v290 = vadd.f32 %v54, %v289
  %v291 = vpop.f32.mrf.mxu0
  %v292 = vpop.f32.mrf.mxu0
  %v293 = vadd.f32 %v54, %v292
  %v294 = vpop.f32.mrf.mxu0
  %295 = vmatprep.mubr.bf16.mxu0 %v205
  %296 = vmatmul.mubr.bf16.gmra.mxu0 %v118
  %v297 = vpop.f32.mrf.mxu0
  %v298 = vadd.f32 %v54, %v297
  %v299 = vpop.f32.mrf.mxu0
  %v300 = vpop.f32.mrf.mxu0
  %v301 = vadd.f32 %v54, %v300
  %v302 = vpop.f32.mrf.mxu0
  %303 = vdwg.mxu0
  %v304 = vxor.u32 %v242, 2147483648
  %v305 = vxor.u32 %v245, 2147483648
  %v306 = vxor.u32 %v250, 2147483648
  %v307 = vxor.u32 %v253, 2147483648
  %v308 = vxor.u32 %v258, 2147483648
  %v309 = vxor.u32 %v261, 2147483648
  %v310 = vxor.u32 %v266, 2147483648
  %v311 = vxor.u32 %v269, 2147483648
  %v312 = vxor.u32 %v274, 2147483648
  %v313 = vxor.u32 %v277, 2147483648
  %v314 = vxor.u32 %v282, 2147483648
  %v315 = vxor.u32 %v285, 2147483648
  %v316 = vxor.u32 %v290, 2147483648
  %v317 = vxor.u32 %v293, 2147483648
  %v318 = vxor.u32 %v298, 2147483648
  %v319 = vxor.u32 %v301, 2147483648
  %v320 = vmul.f32 %v304, 1.442695
  %v321 = vpow.pop %v320
  %v322 = vmul.f32 %v305, 1.442695
  %v323 = vpow.pop %v322
  %v324 = vmul.f32 %v306, 1.442695
  %v325 = vpow.pop %v324
  %v326 = vmul.f32 %v307, 1.442695
  %v327 = vpow.pop %v326
  %v328 = vmul.f32 %v308, 1.442695
  %v329 = vpow.pop %v328
  %v330 = vmul.f32 %v309, 1.442695
  %v331 = vpow.pop %v330
  %v332 = vmul.f32 %v310, 1.442695
  %v333 = vpow.pop %v332
  %v334 = vmul.f32 %v311, 1.442695
  %v335 = vpow.pop %v334
  %v336 = vmul.f32 %v312, 1.442695
  %v337 = vpow.pop %v336
  %v338 = vmul.f32 %v313, 1.442695
  %v339 = vpow.pop %v338
  %v340 = vmul.f32 %v314, 1.442695
  %v341 = vpow.pop %v340
  %v342 = vmul.f32 %v315, 1.442695
  %v343 = vpow.pop %v342
  %v344 = vmul.f32 %v316, 1.442695
  %v345 = vpow.pop %v344
  %v346 = vmul.f32 %v317, 1.442695
  %v347 = vpow.pop %v346
  %v348 = vmul.f32 %v318, 1.442695
  %v349 = vpow.pop %v348
  %v350 = vmul.f32 %v319, 1.442695
  %v351 = vpow.pop %v350
  %v352 = vadd.f32 %v321, 1.0
  %v353 = vadd.f32 %v323, 1.0
  %v354 = vadd.f32 %v325, 1.0
  %v355 = vadd.f32 %v327, 1.0
  %v356 = vadd.f32 %v329, 1.0
  %v357 = vadd.f32 %v331, 1.0
  %v358 = vadd.f32 %v333, 1.0
  %v359 = vadd.f32 %v335, 1.0
  %v360 = vadd.f32 %v337, 1.0
  %v361 = vadd.f32 %v339, 1.0
  %v362 = vadd.f32 %v341, 1.0
  %v363 = vadd.f32 %v343, 1.0
  %v364 = vadd.f32 %v345, 1.0
  %v365 = vadd.f32 %v347, 1.0
  %v366 = vadd.f32 %v349, 1.0
  %v367 = vadd.f32 %v351, 1.0
  %v368 = vrcp.pop %v352
  %v369 = vmul.f32 1.0, %v368
  %v370 = vrcp.pop %v353
  %v371 = vmul.f32 1.0, %v370
  %v372 = vrcp.pop %v354
  %v373 = vmul.f32 1.0, %v372
  %v374 = vrcp.pop %v355
  %v375 = vmul.f32 1.0, %v374
  %v376 = vrcp.pop %v356
  %v377 = vmul.f32 1.0, %v376
  %v378 = vrcp.pop %v357
  %v379 = vmul.f32 1.0, %v378
  %v380 = vrcp.pop %v358
  %v381 = vmul.f32 1.0, %v380
  %v382 = vrcp.pop %v359
  %v383 = vmul.f32 1.0, %v382
  %v384 = vrcp.pop %v360
  %v385 = vmul.f32 1.0, %v384
  %v386 = vrcp.pop %v361
  %v387 = vmul.f32 1.0, %v386
  %v388 = vrcp.pop %v362
  %v389 = vmul.f32 1.0, %v388
  %v390 = vrcp.pop %v363
  %v391 = vmul.f32 1.0, %v390
  %v392 = vrcp.pop %v364
  %v393 = vmul.f32 1.0, %v392
  %v394 = vrcp.pop %v365
  %v395 = vmul.f32 1.0, %v394
  %v396 = vrcp.pop %v366
  %v397 = vmul.f32 1.0, %v396
  %v398 = vrcp.pop %v367
  %v399 = vmul.f32 1.0, %v398
  %v400 = vmul.f32 %v242, %v369
  %v401 = vmul.f32 %v245, %v371
  %v402 = vmul.f32 %v250, %v373
  %v403 = vmul.f32 %v253, %v375
  %v404 = vmul.f32 %v258, %v377
  %v405 = vmul.f32 %v261, %v379
  %v406 = vmul.f32 %v266, %v381
  %v407 = vmul.f32 %v269, %v383
  %v408 = vmul.f32 %v274, %v385
  %v409 = vmul.f32 %v277, %v387
  %v410 = vmul.f32 %v282, %v389
  %v411 = vmul.f32 %v285, %v391
  %v412 = vmul.f32 %v290, %v393
  %v413 = vmul.f32 %v293, %v395
  %v414 = vmul.f32 %v298, %v397
  %v415 = vmul.f32 %v301, %v399
  %v416 = vpack.c.bf16 %v401, %v400
  %v417 = vpack.c.bf16 %v403, %v402
  %v418 = vpack.c.bf16 %v405, %v404
  %v419 = vpack.c.bf16 %v407, %v406
  %v420 = vpack.c.bf16 %v409, %v408
  %v421 = vpack.c.bf16 %v411, %v410
  %v422 = vpack.c.bf16 %v413, %v412
  %v423 = vpack.c.bf16 %v415, %v414
  %v432 = vunpack.c.l.b16 %v416
  %v433 = vunpack.c.h.b16 %v416
  %v434 = vunpack.c.l.b16 %v417
  %v435 = vunpack.c.h.b16 %v417
  %v436 = vunpack.c.l.b16 %v418
  %v437 = vunpack.c.h.b16 %v418
  %v438 = vunpack.c.l.b16 %v419
  %v439 = vunpack.c.h.b16 %v419
  %v440 = vunpack.c.l.b16 %v420
  %v441 = vunpack.c.h.b16 %v420
  %v442 = vunpack.c.l.b16 %v421
  %v443 = vunpack.c.h.b16 %v421
  %v444 = vunpack.c.l.b16 %v422
  %v445 = vunpack.c.h.b16 %v422
  %v446 = vunpack.c.l.b16 %v423
  %v447 = vunpack.c.h.b16 %v423
  %v448 = vpack.c.b16 %v432, %v432
  %v449 = vpack.c.b16 %v433, %v433
  %v450 = vpack.c.b16 %v434, %v434
  %v451 = vpack.c.b16 %v435, %v435
  %v452 = vpack.c.b16 %v436, %v436
  %v453 = vpack.c.b16 %v437, %v437
  %v454 = vpack.c.b16 %v438, %v438
  %v455 = vpack.c.b16 %v439, %v439
  %v456 = vpack.c.b16 %v440, %v440
  %v457 = vpack.c.b16 %v441, %v441
  %v458 = vpack.c.b16 %v442, %v442
  %v459 = vpack.c.b16 %v443, %v443
  %v460 = vpack.c.b16 %v444, %v444
  %v461 = vpack.c.b16 %v445, %v445
  %v462 = vpack.c.b16 %v446, %v446
  %v463 = vpack.c.b16 %v447, %v447
  %vm480 = vcmask 257024
  %481 = vst.msk [vmem:[%s3] sm:$0xf] %vm480, %v448
  %482 = vst.msk [vmem:[%s3 + $0x4] sm:$0xf] %vm480, %v449
  %483 = vst.msk [vmem:[%s3 + $0x8] sm:$0xf] %vm480, %v450
  %484 = vst.msk [vmem:[%s3 + $0xc] sm:$0xf] %vm480, %v451
  %485 = vst.msk [vmem:[%s3 + $0x10] sm:$0xf] %vm480, %v452
  %486 = vst.msk [vmem:[%s3 + $0x14] sm:$0xf] %vm480, %v453
  %487 = vst.msk [vmem:[%s3 + $0x18] sm:$0xf] %vm480, %v454
  %488 = vst.msk [vmem:[%s3 + $0x1c] sm:$0xf] %vm480, %v455
  %489 = vst.msk [vmem:[%s3 + $0x20] sm:$0xf] %vm480, %v456
  %490 = vst.msk [vmem:[%s3 + $0x24] sm:$0xf] %vm480, %v457
  %491 = vst.msk [vmem:[%s3 + $0x28] sm:$0xf] %vm480, %v458
  %492 = vst.msk [vmem:[%s3 + $0x2c] sm:$0xf] %vm480, %v459
  %493 = vst.msk [vmem:[%s3 + $0x30] sm:$0xf] %vm480, %v460
  %494 = vst.msk [vmem:[%s3 + $0x34] sm:$0xf] %vm480, %v461
  %495 = vst.msk [vmem:[%s3 + $0x38] sm:$0xf] %vm480, %v462
  %496 = vst.msk [vmem:[%s3 + $0x3c] sm:$0xf] %vm480, %v463
  // Predicated region
  $region14: #{_lambda_.36} parent=0 // pred_check
    _
  $region15: #{_lambda_.36} parent=0 // pred_check_branch
    %498 = sbr.rel (0) target = $region17
  $region16: #{_lambda_.36} parent=0 // pred_region
    _
  $region17: #{_lambda_.36} parent=0 // pred_fallthru
    _
  // Predicated region
  $region18: #{_lambda_.36} parent=0 // pred_check
    _
  $region19: #{_lambda_.36} parent=0 // pred_check_branch
    %500 = sbr.rel (0) target = $region21
  $region20: #{_lambda_.36} parent=0 // pred_region
    _
  $region21: #{_lambda_.36} parent=0 // pred_fallthru
    _

// kernel: _lambda_.37
$region0: #{_lambda_.37}
  #allocation0 [shape = 'u32[]', space=smem, size = 0x4, offset = 0x4, fixed_abs, tag = 'smem constant byte address 0x4 - core index']
  #allocation1 [shape = 'u32[144,128]{1,0:T(1,128)}', space=vmem, size = 0x12000, scoped, tag = 'internal scratch']
  %s0 = inlined_call_operand.vmem [shape: bf16[128,32], index: 0, kind: input, shape index: {}]
  %s1 = inlined_call_operand.vmem [shape: bf16[32,32], index: 1, kind: input, shape index: {}]
  %s2 = inlined_call_operand.vmem [shape: f32[1,32], index: 2, kind: input, shape index: {}]
  %s3 = inlined_call_operand.vmem [shape: bf16[128,32], index: 3, kind: output, shape index: {}]
  %s4 = sld [smem:[#allocation0]]
  $region22: #{_lambda_.37} parent=0
    _
  %s6 = ssub.s32 1, %s4
  %s7 = scalar_select 0, %s6, %s4
  // Predicated region
  $region2: #{_lambda_.37} parent=0 // pred_check
    _
  $region3: #{_lambda_.37} parent=0 // pred_check_branch
    %9 = sbr.rel (0) target = $region5
  $region4: #{_lambda_.37} parent=0 // pred_region
    _
  $region5: #{_lambda_.37} parent=0 // pred_fallthru
    _
  // Predicated region
  $region6: #{_lambda_.37} parent=0 // pred_check
    _
  $region7: #{_lambda_.37} parent=0 // pred_check_branch
    %11 = sbr.rel (0) target = $region9
  $region8: #{_lambda_.37} parent=0 // pred_region
    _
  $region9: #{_lambda_.37} parent=0 // pred_fallthru
    _
  // Predicated region
  $region10: #{_lambda_.37} parent=0 // pred_check
    _
  $region11: #{_lambda_.37} parent=0 // pred_check_branch
    %13 = sbr.rel (0) target = $region13
  $region12: #{_lambda_.37} parent=0 // pred_region
    _
  $region13: #{_lambda_.37} parent=0 // pred_fallthru
    _
  %v15 = vld [vmem:[%s0] sm:$0xf]
  %v16 = vld [vmem:[%s0 + $0x4] sm:$0xf]
  %v17 = vld [vmem:[%s0 + $0x8] sm:$0xf]
  %v18 = vld [vmem:[%s0 + $0xc] sm:$0xf]
  %v19 = vld [vmem:[%s0 + $0x10] sm:$0xf]
  %v20 = vld [vmem:[%s0 + $0x14] sm:$0xf]
  %v21 = vld [vmem:[%s0 + $0x18] sm:$0xf]
  %v22 = vld [vmem:[%s0 + $0x1c] sm:$0xf]
  %v23 = vld [vmem:[%s0 + $0x20] sm:$0xf]
  %v24 = vld [vmem:[%s0 + $0x24] sm:$0xf]
  %v25 = vld [vmem:[%s0 + $0x28] sm:$0xf]
  %v26 = vld [vmem:[%s0 + $0x2c] sm:$0xf]
  %v27 = vld [vmem:[%s0 + $0x30] sm:$0xf]
  %v28 = vld [vmem:[%s0 + $0x34] sm:$0xf]
  %v29 = vld [vmem:[%s0 + $0x38] sm:$0xf]
  %v30 = vld [vmem:[%s0 + $0x3c] sm:$0xf]
  %v31 = vld [vmem:[%s1] sm:$0xf]
  %v32 = vld [vmem:[%s1 + $0x4] sm:$0xf]
  %v33 = vld [vmem:[%s1 + $0x8] sm:$0xf]
  %v34 = vld [vmem:[%s1 + $0xc] sm:$0xf]
  %v35 = vld [vmem:[%s2] sm:$0x1]
  %v37 = vlaneseq
  %v38 = vshrl.u32 %v37, 7
  %v39 = vsub.s32 0, %v38
  %v40 = vrot.slane %v35, %v39
  %v58 = vunpack.c.l.b16 %v15
  %v59 = vunpack.c.l.b16 %v16
  %v60 = vunpack.c.l.b16 %v17
  %v61 = vunpack.c.l.b16 %v18
  %v62 = vunpack.c.l.b16 %v19
  %v63 = vunpack.c.l.b16 %v20
  %v64 = vunpack.c.l.b16 %v21
  %v65 = vunpack.c.l.b16 %v22
  %v66 = vunpack.c.l.b16 %v23
  %v67 = vunpack.c.l.b16 %v24
  %v68 = vunpack.c.l.b16 %v25
  %v69 = vunpack.c.l.b16 %v26
  %v70 = vunpack.c.l.b16 %v27
  %v71 = vunpack.c.l.b16 %v28
  %v72 = vunpack.c.l.b16 %v29
  %v73 = vunpack.c.l.b16 %v30
  %v74 = vpack.c.b16 %v59, %v58
  %v75 = vpack.c.b16 %v61, %v60
  %v76 = vpack.c.b16 %v63, %v62
  %v77 = vpack.c.b16 %v65, %v64
  %v78 = vpack.c.b16 %v67, %v66
  %v79 = vpack.c.b16 %v69, %v68
  %v80 = vpack.c.b16 %v71, %v70
  %v81 = vpack.c.b16 %v73, %v72
  %v86 = vunpack.c.l.b16 %v31
  %v87 = vunpack.c.l.b16 %v32
  %v88 = vunpack.c.l.b16 %v33
  %v89 = vunpack.c.l.b16 %v34
  %v90 = vpack.c.b16 %v87, %v86
  %v91 = vpack.c.b16 %v89, %v88
  %vm94 = vcmask 261120
  %v96 = vsel %vm94, %v74, 0
  %v99 = vsel %vm94, %v75, 0
  %v102 = vsel %vm94, %v76, 0
  %v105 = vsel %vm94, %v77, 0
  %v108 = vsel %vm94, %v78, 0
  %v111 = vsel %vm94, %v79, 0
  %v114 = vsel %vm94, %v80, 0
  %v117 = vsel %vm94, %v81, 0
  %119 = vmatprep.subr.bf16.mxu0 0
  %120 = vmatpush1.bf16.msra.mxu0 0
  %121 = vmatprep.subr.bf16.mxu0 0
  %122 = vmatpush1.bf16.msra.mxu0 0
  %123 = vmatprep.subr.bf16.mxu0 0
  %124 = vmatpush1.bf16.msra.mxu0 0
  %125 = vmatprep.subr.bf16.mxu0 0
  %126 = vmatpush1.bf16.msra.mxu0 0
  %127 = vmatprep.subr.bf16.mxu0 0
  %128 = vmatpush1.bf16.msra.mxu0 0
  %129 = vmatprep.subr.bf16.mxu0 0
  %130 = vmatpush1.bf16.msra.mxu0 0
  %131 = vmatprep.subr.bf16.mxu0 0
  %132 = vmatpush1.bf16.msra.mxu0 %v91
  %133 = vmatprep.subr.bf16.mxu0 0
  %134 = vmatpush1.bf16.msra.mxu0 %v90
  %135 = vmatprep.subr.bf16.mxu0 0
  %136 = vmatpush2.bf16.msra.mxu0 0
  %137 = vmatprep.subr.bf16.mxu0 0
  %138 = vmatpush2.bf16.msra.mxu0 0
  %139 = vmatprep.subr.bf16.mxu0 0
  %140 = vmatpush2.bf16.msra.mxu0 0
  %141 = vmatprep.subr.bf16.mxu0 0
  %142 = vmatpush2.bf16.msra.mxu0 0
  %143 = vmatprep.subr.bf16.mxu0 0
  %144 = vmatpush2.bf16.msra.mxu0 0
  %145 = vmatprep.subr.bf16.mxu0 0
  %146 = vmatpush2.bf16.msra.mxu0 0
  %147 = vmatprep.subr.bf16.mxu0 0
  %148 = vmatpush2.bf16.msra.mxu0 0
  %149 = vmatprep.subr.bf16.mxu0 0
  %150 = vmatpush2.bf16.msra.mxu0 0
  %151 = vmatprep.mubr.bf16.mxu0 0
  %152 = vmatmul.mubr.bf16.gmra.mxu0 %v96
  %v153 = vpop.f32.mrf.mxu0
  %v154 = vadd.f32 %v40, %v153
  %v155 = vpop.f32.mrf.mxu0
  %v156 = vpop.f32.mrf.mxu0
  %v157 = vadd.f32 %v40, %v156
  %v158 = vpop.f32.mrf.mxu0
  %159 = vmatprep.mubr.bf16.mxu0 0
  %160 = vmatmul.mubr.bf16.gmra.mxu0 %v99
  %v161 = vpop.f32.mrf.mxu0
  %v162 = vadd.f32 %v40, %v161
  %v163 = vpop.f32.mrf.mxu0
  %v164 = vpop.f32.mrf.mxu0
  %v165 = vadd.f32 %v40, %v164
  %v166 = vpop.f32.mrf.mxu0
  %167 = vmatprep.mubr.bf16.mxu0 0
  %168 = vmatmul.mubr.bf16.gmra.mxu0 %v102
  %v169 = vpop.f32.mrf.mxu0
  %v170 = vadd.f32 %v40, %v169
  %v171 = vpop.f32.mrf.mxu0
  %v172 = vpop.f32.mrf.mxu0
  %v173 = vadd.f32 %v40, %v172
  %v174 = vpop.f32.mrf.mxu0
  %175 = vmatprep.mubr.bf16.mxu0 0
  %176 = vmatmul.mubr.bf16.gmra.mxu0 %v105
  %v177 = vpop.f32.mrf.mxu0
  %v178 = vadd.f32 %v40, %v177
  %v179 = vpop.f32.mrf.mxu0
  %v180 = vpop.f32.mrf.mxu0
  %v181 = vadd.f32 %v40, %v180
  %v182 = vpop.f32.mrf.mxu0
  %183 = vmatprep.mubr.bf16.mxu0 0
  %184 = vmatmul.mubr.bf16.gmra.mxu0 %v108
  %v185 = vpop.f32.mrf.mxu0
  %v186 = vadd.f32 %v40, %v185
  %v187 = vpop.f32.mrf.mxu0
  %v188 = vpop.f32.mrf.mxu0
  %v189 = vadd.f32 %v40, %v188
  %v190 = vpop.f32.mrf.mxu0
  %191 = vmatprep.mubr.bf16.mxu0 0
  %192 = vmatmul.mubr.bf16.gmra.mxu0 %v111
  %v193 = vpop.f32.mrf.mxu0
  %v194 = vadd.f32 %v40, %v193
  %v195 = vpop.f32.mrf.mxu0
  %v196 = vpop.f32.mrf.mxu0
  %v197 = vadd.f32 %v40, %v196
  %v198 = vpop.f32.mrf.mxu0
  %199 = vmatprep.mubr.bf16.mxu0 0
  %200 = vmatmul.mubr.bf16.gmra.mxu0 %v114
  %v201 = vpop.f32.mrf.mxu0
  %v202 = vadd.f32 %v40, %v201
  %v203 = vpop.f32.mrf.mxu0
  %v204 = vpop.f32.mrf.mxu0
  %v205 = vadd.f32 %v40, %v204
  %v206 = vpop.f32.mrf.mxu0
  %207 = vmatprep.mubr.bf16.mxu0 0
  %208 = vmatmul.mubr.bf16.gmra.mxu0 %v117
  %v209 = vpop.f32.mrf.mxu0
  %v210 = vadd.f32 %v40, %v209
  %v211 = vpop.f32.mrf.mxu0
  %v212 = vpop.f32.mrf.mxu0
  %v213 = vadd.f32 %v40, %v212
  %v214 = vpop.f32.mrf.mxu0
  %215 = vdwg.mxu0
  %v216 = vxor.u32 %v154, 2147483648
  %v217 = vxor.u32 %v157, 2147483648
  %v218 = vxor.u32 %v162, 2147483648
  %v219 = vxor.u32 %v165, 2147483648
  %v220 = vxor.u32 %v170, 2147483648
  %v221 = vxor.u32 %v173, 2147483648
  %v222 = vxor.u32 %v178, 2147483648
  %v223 = vxor.u32 %v181, 2147483648
  %v224 = vxor.u32 %v186, 2147483648
  %v225 = vxor.u32 %v189, 2147483648
  %v226 = vxor.u32 %v194, 2147483648
  %v227 = vxor.u32 %v197, 2147483648
  %v228 = vxor.u32 %v202, 2147483648
  %v229 = vxor.u32 %v205, 2147483648
  %v230 = vxor.u32 %v210, 2147483648
  %v231 = vxor.u32 %v213, 2147483648
  %v232 = vmul.f32 %v216, 1.442695
  %v233 = vpow.pop %v232
  %v234 = vmul.f32 %v217, 1.442695
  %v235 = vpow.pop %v234
  %v236 = vmul.f32 %v218, 1.442695
  %v237 = vpow.pop %v236
  %v238 = vmul.f32 %v219, 1.442695
  %v239 = vpow.pop %v238
  %v240 = vmul.f32 %v220, 1.442695
  %v241 = vpow.pop %v240
  %v242 = vmul.f32 %v221, 1.442695
  %v243 = vpow.pop %v242
  %v244 = vmul.f32 %v222, 1.442695
  %v245 = vpow.pop %v244
  %v246 = vmul.f32 %v223, 1.442695
  %v247 = vpow.pop %v246
  %v248 = vmul.f32 %v224, 1.442695
  %v249 = vpow.pop %v248
  %v250 = vmul.f32 %v225, 1.442695
  %v251 = vpow.pop %v250
  %v252 = vmul.f32 %v226, 1.442695
  %v253 = vpow.pop %v252
  %v254 = vmul.f32 %v227, 1.442695
  %v255 = vpow.pop %v254
  %v256 = vmul.f32 %v228, 1.442695
  %v257 = vpow.pop %v256
  %v258 = vmul.f32 %v229, 1.442695
  %v259 = vpow.pop %v258
  %v260 = vmul.f32 %v230, 1.442695
  %v261 = vpow.pop %v260
  %v262 = vmul.f32 %v231, 1.442695
  %v263 = vpow.pop %v262
  %v264 = vadd.f32 %v233, 1.0
  %v265 = vadd.f32 %v235, 1.0
  %v266 = vadd.f32 %v237, 1.0
  %v267 = vadd.f32 %v239, 1.0
  %v268 = vadd.f32 %v241, 1.0
  %v269 = vadd.f32 %v243, 1.0
  %v270 = vadd.f32 %v245, 1.0
  %v271 = vadd.f32 %v247, 1.0
  %v272 = vadd.f32 %v249, 1.0
  %v273 = vadd.f32 %v251, 1.0
  %v274 = vadd.f32 %v253, 1.0
  %v275 = vadd.f32 %v255, 1.0
  %v276 = vadd.f32 %v257, 1.0
  %v277 = vadd.f32 %v259, 1.0
  %v278 = vadd.f32 %v261, 1.0
  %v279 = vadd.f32 %v263, 1.0
  %v280 = vrcp.pop %v264
  %v281 = vmul.f32 1.0, %v280
  %v282 = vrcp.pop %v265
  %v283 = vmul.f32 1.0, %v282
  %v284 = vrcp.pop %v266
  %v285 = vmul.f32 1.0, %v284
  %v286 = vrcp.pop %v267
  %v287 = vmul.f32 1.0, %v286
  %v288 = vrcp.pop %v268
  %v289 = vmul.f32 1.0, %v288
  %v290 = vrcp.pop %v269
  %v291 = vmul.f32 1.0, %v290
  %v292 = vrcp.pop %v270
  %v293 = vmul.f32 1.0, %v292
  %v294 = vrcp.pop %v271
  %v295 = vmul.f32 1.0, %v294
  %v296 = vrcp.pop %v272
  %v297 = vmul.f32 1.0, %v296
  %v298 = vrcp.pop %v273
  %v299 = vmul.f32 1.0, %v298
  %v300 = vrcp.pop %v274
  %v301 = vmul.f32 1.0, %v300
  %v302 = vrcp.pop %v275
  %v303 = vmul.f32 1.0, %v302
  %v304 = vrcp.pop %v276
  %v305 = vmul.f32 1.0, %v304
  %v306 = vrcp.pop %v277
  %v307 = vmul.f32 1.0, %v306
  %v308 = vrcp.pop %v278
  %v309 = vmul.f32 1.0, %v308
  %v310 = vrcp.pop %v279
  %v311 = vmul.f32 1.0, %v310
  %v312 = vmul.f32 %v154, %v281
  %v313 = vmul.f32 %v157, %v283
  %v314 = vmul.f32 %v162, %v285
  %v315 = vmul.f32 %v165, %v287
  %v316 = vmul.f32 %v170, %v289
  %v317 = vmul.f32 %v173, %v291
  %v318 = vmul.f32 %v178, %v293
  %v319 = vmul.f32 %v181, %v295
  %v320 = vmul.f32 %v186, %v297
  %v321 = vmul.f32 %v189, %v299
  %v322 = vmul.f32 %v194, %v301
  %v323 = vmul.f32 %v197, %v303
  %v324 = vmul.f32 %v202, %v305
  %v325 = vmul.f32 %v205, %v307
  %v326 = vmul.f32 %v210, %v309
  %v327 = vmul.f32 %v213, %v311
  %v328 = vpack.c.bf16 %v313, %v312
  %v329 = vpack.c.bf16 %v315, %v314
  %v330 = vpack.c.bf16 %v317, %v316
  %v331 = vpack.c.bf16 %v319, %v318
  %v332 = vpack.c.bf16 %v321, %v320
  %v333 = vpack.c.bf16 %v323, %v322
  %v334 = vpack.c.bf16 %v325, %v324
  %v335 = vpack.c.bf16 %v327, %v326
  %v344 = vunpack.c.l.b16 %v328
  %v345 = vunpack.c.h.b16 %v328
  %v346 = vunpack.c.l.b16 %v329
  %v347 = vunpack.c.h.b16 %v329
  %v348 = vunpack.c.l.b16 %v330
  %v349 = vunpack.c.h.b16 %v330
  %v350 = vunpack.c.l.b16 %v331
  %v351 = vunpack.c.h.b16 %v331
  %v352 = vunpack.c.l.b16 %v332
  %v353 = vunpack.c.h.b16 %v332
  %v354 = vunpack.c.l.b16 %v333
  %v355 = vunpack.c.h.b16 %v333
  %v356 = vunpack.c.l.b16 %v334
  %v357 = vunpack.c.h.b16 %v334
  %v358 = vunpack.c.l.b16 %v335
  %v359 = vunpack.c.h.b16 %v335
  %v360 = vpack.c.b16 %v344, %v344
  %v361 = vpack.c.b16 %v345, %v345
  %v362 = vpack.c.b16 %v346, %v346
  %v363 = vpack.c.b16 %v347, %v347
  %v364 = vpack.c.b16 %v348, %v348
  %v365 = vpack.c.b16 %v349, %v349
  %v366 = vpack.c.b16 %v350, %v350
  %v367 = vpack.c.b16 %v351, %v351
  %v368 = vpack.c.b16 %v352, %v352
  %v369 = vpack.c.b16 %v353, %v353
  %v370 = vpack.c.b16 %v354, %v354
  %v371 = vpack.c.b16 %v355, %v355
  %v372 = vpack.c.b16 %v356, %v356
  %v373 = vpack.c.b16 %v357, %v357
  %v374 = vpack.c.b16 %v358, %v358
  %v375 = vpack.c.b16 %v359, %v359
  %vm392 = vcmask 257024
  %393 = vst.msk [vmem:[%s3] sm:$0xf] %vm392, %v360
  %394 = vst.msk [vmem:[%s3 + $0x4] sm:$0xf] %vm392, %v361
  %395 = vst.msk [vmem:[%s3 + $0x8] sm:$0xf] %vm392, %v362
  %396 = vst.msk [vmem:[%s3 + $0xc] sm:$0xf] %vm392, %v363
  %397 = vst.msk [vmem:[%s3 + $0x10] sm:$0xf] %vm392, %v364
  %398 = vst.msk [vmem:[%s3 + $0x14] sm:$0xf] %vm392, %v365
  %399 = vst.msk [vmem:[%s3 + $0x18] sm:$0xf] %vm392, %v366
  %400 = vst.msk [vmem:[%s3 + $0x1c] sm:$0xf] %vm392, %v367
  %401 = vst.msk [vmem:[%s3 + $0x20] sm:$0xf] %vm392, %v368
  %402 = vst.msk [vmem:[%s3 + $0x24] sm:$0xf] %vm392, %v369
  %403 = vst.msk [vmem:[%s3 + $0x28] sm:$0xf] %vm392, %v370
  %404 = vst.msk [vmem:[%s3 + $0x2c] sm:$0xf] %vm392, %v371
  %405 = vst.msk [vmem:[%s3 + $0x30] sm:$0xf] %vm392, %v372
  %406 = vst.msk [vmem:[%s3 + $0x34] sm:$0xf] %vm392, %v373
  %407 = vst.msk [vmem:[%s3 + $0x38] sm:$0xf] %vm392, %v374
  %408 = vst.msk [vmem:[%s3 + $0x3c] sm:$0xf] %vm392, %v375
  // Predicated region
  $region14: #{_lambda_.37} parent=0 // pred_check
    _
  $region15: #{_lambda_.37} parent=0 // pred_check_branch
    %410 = sbr.rel (0) target = $region17
  $region16: #{_lambda_.37} parent=0 // pred_region
    _
  $region17: #{_lambda_.37} parent=0 // pred_fallthru
    _
  // Predicated region
  $region18: #{_lambda_.37} parent=0 // pred_check
    _
  $region19: #{_lambda_.37} parent=0 // pred_check_branch
    %412 = sbr.rel (0) target = $region21
  $region20: #{_lambda_.37} parent=0 // pred_region
    _
  $region21: #{_lambda_.37} parent=0 // pred_fallthru
    _

// kernel: _lambda_.40
$region0: #{_lambda_.40}
  #allocation0 [shape = 'u32[]', space=smem, size = 0x4, offset = 0x4, fixed_abs, tag = 'smem constant byte address 0x4 - core index']
  #allocation1 [shape = 'u32[144,128]{1,0:T(1,128)}', space=vmem, size = 0x12000, scoped, tag = 'internal scratch']
  %s0 = inlined_call_operand.vmem [shape: bf16[128,32], index: 0, kind: input, shape index: {}]
  %s1 = inlined_call_operand.vmem [shape: bf16[128,16], index: 1, kind: input, shape index: {}]
  %s2 = inlined_call_operand.vmem [shape: bf16[128,16], index: 2, kind: input, shape index: {}]
  %s3 = inlined_call_operand.vmem [shape: bf16[32,32], index: 3, kind: input, shape index: {}]
  %s4 = inlined_call_operand.vmem [shape: bf16[16,32], index: 4, kind: input, shape index: {}]
  %s5 = inlined_call_operand.vmem [shape: bf16[16,32], index: 5, kind: input, shape index: {}]
  %s6 = inlined_call_operand.vmem [shape: f32[1,32], index: 6, kind: input, shape index: {}]
  %s7 = inlined_call_operand.vmem [shape: bf16[128,32], index: 7, kind: output, shape index: {}]
  %s8 = sld [smem:[#allocation0]]
  $region38: #{_lambda_.40} parent=0
    _
  %s10 = ssub.s32 1, %s8
  %s11 = scalar_select 0, %s10, %s8
  // Predicated region
  $region2: #{_lambda_.40} parent=0 // pred_check
    _
  $region3: #{_lambda_.40} parent=0 // pred_check_branch
    %13 = sbr.rel (0) target = $region5
  $region4: #{_lambda_.40} parent=0 // pred_region
    _
  $region5: #{_lambda_.40} parent=0 // pred_fallthru
    _
  // Predicated region
  $region6: #{_lambda_.40} parent=0 // pred_check
    _
  $region7: #{_lambda_.40} parent=0 // pred_check_branch
    %15 = sbr.rel (0) target = $region9
  $region8: #{_lambda_.40} parent=0 // pred_region
    _
  $region9: #{_lambda_.40} parent=0 // pred_fallthru
    _
  // Predicated region
  $region10: #{_lambda_.40} parent=0 // pred_check
    _
  $region11: #{_lambda_.40} parent=0 // pred_check_branch
    %17 = sbr.rel (0) target = $region13
  $region12: #{_lambda_.40} parent=0 // pred_region
    _
  $region13: #{_lambda_.40} parent=0 // pred_fallthru
    _
  // Predicated region
  $region14: #{_lambda_.40} parent=0 // pred_check
    _
  $region15: #{_lambda_.40} parent=0 // pred_check_branch
    %19 = sbr.rel (0) target = $region17
  $region16: #{_lambda_.40} parent=0 // pred_region
    _
  $region17: #{_lambda_.40} parent=0 // pred_fallthru
    _
  // Predicated region
  $region18: #{_lambda_.40} parent=0 // pred_check
    _
  $region19: #{_lambda_.40} parent=0 // pred_check_branch
    %21 = sbr.rel (0) target = $region21
  $region20: #{_lambda_.40} parent=0 // pred_region
    _
  $region21: #{_lambda_.40} parent=0 // pred_fallthru
    _
  // Predicated region
  $region22: #{_lambda_.40} parent=0 // pred_check
    _
  $region23: #{_lambda_.40} parent=0 // pred_check_branch
    %23 = sbr.rel (0) target = $region25
  $region24: #{_lambda_.40} parent=0 // pred_region
    _
  $region25: #{_lambda_.40} parent=0 // pred_fallthru
    _
  // Predicated region
  $region26: #{_lambda_.40} parent=0 // pred_check
    _
  $region27: #{_lambda_.40} parent=0 // pred_check_branch
    %25 = sbr.rel (0) target = $region29
  $region28: #{_lambda_.40} parent=0 // pred_region
    _
  $region29: #{_lambda_.40} parent=0 // pred_fallthru
    _
  %v27 = vld [vmem:[%s0] sm:$0xf]
  %v28 = vld [vmem:[%s0 + $0x4] sm:$0xf]
  %v29 = vld [vmem:[%s0 + $0x8] sm:$0xf]
  %v30 = vld [vmem:[%s0 + $0xc] sm:$0xf]
  %v31 = vld [vmem:[%s0 + $0x10] sm:$0xf]
  %v32 = vld [vmem:[%s0 + $0x14] sm:$0xf]
  %v33 = vld [vmem:[%s0 + $0x18] sm:$0xf]
  %v34 = vld [vmem:[%s0 + $0x1c] sm:$0xf]
  %v35 = vld [vmem:[%s0 + $0x20] sm:$0xf]
  %v36 = vld [vmem:[%s0 + $0x24] sm:$0xf]
  %v37 = vld [vmem:[%s0 + $0x28] sm:$0xf]
  %v38 = vld [vmem:[%s0 + $0x2c] sm:$0xf]
  %v39 = vld [vmem:[%s0 + $0x30] sm:$0xf]
  %v40 = vld [vmem:[%s0 + $0x34] sm:$0xf]
  %v41 = vld [vmem:[%s0 + $0x38] sm:$0xf]
  %v42 = vld [vmem:[%s0 + $0x3c] sm:$0xf]
  %v43 = vld [vmem:[%s3] sm:$0xf]
  %v44 = vld [vmem:[%s3 + $0x4] sm:$0xf]
  %v45 = vld [vmem:[%s3 + $0x8] sm:$0xf]
  %v46 = vld [vmem:[%s3 + $0xc] sm:$0xf]
  %v47 = vld [vmem:[%s1] sm:$0xf]
  %v48 = vld [vmem:[%s1 + $0x4] sm:$0xf]
  %v49 = vld [vmem:[%s1 + $0x8] sm:$0xf]
  %v50 = vld [vmem:[%s1 + $0xc] sm:$0xf]
  %v51 = vld [vmem:[%s1 + $0x10] sm:$0xf]
  %v52 = vld [vmem:[%s1 + $0x14] sm:$0xf]
  %v53 = vld [vmem:[%s1 + $0x18] sm:$0xf]
  %v54 = vld [vmem:[%s1 + $0x1c] sm:$0xf]
  %v55 = vld [vmem:[%s1 + $0x20] sm:$0xf]
  %v56 = vld [vmem:[%s1 + $0x24] sm:$0xf]
  %v57 = vld [vmem:[%s1 + $0x28] sm:$0xf]
  %v58 = vld [vmem:[%s1 + $0x2c] sm:$0xf]
  %v59 = vld [vmem:[%s1 + $0x30] sm:$0xf]
  %v60 = vld [vmem:[%s1 + $0x34] sm:$0xf]
  %v61 = vld [vmem:[%s1 + $0x38] sm:$0xf]
  %v62 = vld [vmem:[%s1 + $0x3c] sm:$0xf]
  %v63 = vld [vmem:[%s4] sm:$0xf]
  %v64 = vld [vmem:[%s4 + $0x4] sm:$0xf]
  %v81 = vunpack.c.l.b16 %v47
  %v82 = vunpack.c.l.b16 %v48
  %v83 = vunpack.c.l.b16 %v49
  %v84 = vunpack.c.l.b16 %v50
  %v85 = vunpack.c.l.b16 %v51
  %v86 = vunpack.c.l.b16 %v52
  %v87 = vunpack.c.l.b16 %v53
  %v88 = vunpack.c.l.b16 %v54
  %v89 = vunpack.c.l.b16 %v55
  %v90 = vunpack.c.l.b16 %v56
  %v91 = vunpack.c.l.b16 %v57
  %v92 = vunpack.c.l.b16 %v58
  %v93 = vunpack.c.l.b16 %v59
  %v94 = vunpack.c.l.b16 %v60
  %v95 = vunpack.c.l.b16 %v61
  %v96 = vunpack.c.l.b16 %v62
  %v97 = vpack.c.b16 %v82, %v81
  %v98 = vpack.c.b16 %v84, %v83
  %v99 = vpack.c.b16 %v86, %v85
  %v100 = vpack.c.b16 %v88, %v87
  %v101 = vpack.c.b16 %v90, %v89
  %v102 = vpack.c.b16 %v92, %v91
  %v103 = vpack.c.b16 %v94, %v93
  %v104 = vpack.c.b16 %v96, %v95
  %v107 = vunpack.c.l.b16 %v63
  %v108 = vunpack.c.l.b16 %v64
  %v109 = vpack.c.b16 %v108, %v107
  %vm111 = vcmask 130048
  %v113 = vsel %vm111, %v97, 0
  %v116 = vsel %vm111, %v98, 0
  %v119 = vsel %vm111, %v99, 0
  %v122 = vsel %vm111, %v100, 0
  %v125 = vsel %vm111, %v101, 0
  %v128 = vsel %vm111, %v102, 0
  %v131 = vsel %vm111, %v103, 0
  %v134 = vsel %vm111, %v104, 0
  %136 = vmatprep.subr.bf16.mxu0 0
  %137 = vmatpush1.bf16.msra.mxu0 0
  %138 = vmatprep.subr.bf16.mxu0 0
  %139 = vmatpush1.bf16.msra.mxu0 0
  %140 = vmatprep.subr.bf16.mxu0 0
  %141 = vmatpush1.bf16.msra.mxu0 0
  %142 = vmatprep.subr.bf16.mxu0 0
  %143 = vmatpush1.bf16.msra.mxu0 0
  %144 = vmatprep.subr.bf16.mxu0 0
  %145 = vmatpush1.bf16.msra.mxu0 0
  %146 = vmatprep.subr.bf16.mxu0 0
  %147 = vmatpush1.bf16.msra.mxu0 0
  %148 = vmatprep.subr.bf16.mxu0 0
  %149 = vmatpush1.bf16.msra.mxu0 0
  %150 = vmatprep.subr.bf16.mxu0 0
  %151 = vmatpush1.bf16.msra.mxu0 %v109
  %152 = vmatprep.subr.bf16.mxu0 0
  %153 = vmatpush2.bf16.msra.mxu0 0
  %154 = vmatprep.subr.bf16.mxu0 0
  %155 = vmatpush2.bf16.msra.mxu0 0
  %156 = vmatprep.subr.bf16.mxu0 0
  %157 = vmatpush2.bf16.msra.mxu0 0
  %158 = vmatprep.subr.bf16.mxu0 0
  %159 = vmatpush2.bf16.msra.mxu0 0
  %160 = vmatprep.subr.bf16.mxu0 0
  %161 = vmatpush2.bf16.msra.mxu0 0
  %162 = vmatprep.subr.bf16.mxu0 0
  %163 = vmatpush2.bf16.msra.mxu0 0
  %164 = vmatprep.subr.bf16.mxu0 0
  %165 = vmatpush2.bf16.msra.mxu0 0
  %166 = vmatprep.subr.bf16.mxu0 0
  %167 = vmatpush2.bf16.msra.mxu0 0
  %168 = vmatprep.mubr.bf16.mxu0 0
  %169 = vmatmul.mubr.bf16.gmra.mxu0 %v113
  %v170 = vpop.f32.mrf.mxu0
  %v171 = vadd.f32 0.0, %v170
  %v172 = vpop.f32.mrf.mxu0
  %v173 = vpop.f32.mrf.mxu0
  %v174 = vadd.f32 0.0, %v173
  %v175 = vpop.f32.mrf.mxu0
  %176 = vmatprep.mubr.bf16.mxu0 0
  %177 = vmatmul.mubr.bf16.gmra.mxu0 %v116
  %v178 = vpop.f32.mrf.mxu0
  %v179 = vadd.f32 0.0, %v178
  %v180 = vpop.f32.mrf.mxu0
  %v181 = vpop.f32.mrf.mxu0
  %v182 = vadd.f32 0.0, %v181
  %v183 = vpop.f32.mrf.mxu0
  %184 = vmatprep.mubr.bf16.mxu0 0
  %185 = vmatmul.mubr.bf16.gmra.mxu0 %v119
  %v186 = vpop.f32.mrf.mxu0
  %v187 = vadd.f32 0.0, %v186
  %v188 = vpop.f32.mrf.mxu0
  %v189 = vpop.f32.mrf.mxu0
  %v190 = vadd.f32 0.0, %v189
  %v191 = vpop.f32.mrf.mxu0
  %192 = vmatprep.mubr.bf16.mxu0 0
  %193 = vmatmul.mubr.bf16.gmra.mxu0 %v122
  %v194 = vpop.f32.mrf.mxu0
  %v195 = vadd.f32 0.0, %v194
  %v196 = vpop.f32.mrf.mxu0
  %v197 = vpop.f32.mrf.mxu0
  %v198 = vadd.f32 0.0, %v197
  %v199 = vpop.f32.mrf.mxu0
  %200 = vmatprep.mubr.bf16.mxu0 0
  %201 = vmatmul.mubr.bf16.gmra.mxu0 %v125
  %v202 = vpop.f32.mrf.mxu0
  %v203 = vadd.f32 0.0, %v202
  %v204 = vpop.f32.mrf.mxu0
  %v205 = vpop.f32.mrf.mxu0
  %v206 = vadd.f32 0.0, %v205
  %v207 = vpop.f32.mrf.mxu0
  %208 = vmatprep.mubr.bf16.mxu0 0
  %209 = vmatmul.mubr.bf16.gmra.mxu0 %v128
  %v210 = vpop.f32.mrf.mxu0
  %v211 = vadd.f32 0.0, %v210
  %v212 = vpop.f32.mrf.mxu0
  %v213 = vpop.f32.mrf.mxu0
  %v214 = vadd.f32 0.0, %v213
  %v215 = vpop.f32.mrf.mxu0
  %216 = vmatprep.mubr.bf16.mxu0 0
  %217 = vmatmul.mubr.bf16.gmra.mxu0 %v131
  %v218 = vpop.f32.mrf.mxu0
  %v219 = vadd.f32 0.0, %v218
  %v220 = vpop.f32.mrf.mxu0
  %v221 = vpop.f32.mrf.mxu0
  %v222 = vadd.f32 0.0, %v221
  %v223 = vpop.f32.mrf.mxu0
  %224 = vmatprep.mubr.bf16.mxu0 0
  %225 = vmatmul.mubr.bf16.gmra.mxu0 %v134
  %v226 = vpop.f32.mrf.mxu0
  %v227 = vadd.f32 0.0, %v226
  %v228 = vpop.f32.mrf.mxu0
  %v229 = vpop.f32.mrf.mxu0
  %v230 = vadd.f32 0.0, %v229
  %v231 = vpop.f32.mrf.mxu0
  %232 = vdwg.mxu0
  %v249 = vunpack.c.l.b16 %v27
  %v250 = vunpack.c.l.b16 %v28
  %v251 = vunpack.c.l.b16 %v29
  %v252 = vunpack.c.l.b16 %v30
  %v253 = vunpack.c.l.b16 %v31
  %v254 = vunpack.c.l.b16 %v32
  %v255 = vunpack.c.l.b16 %v33
  %v256 = vunpack.c.l.b16 %v34
  %v257 = vunpack.c.l.b16 %v35
  %v258 = vunpack.c.l.b16 %v36
  %v259 = vunpack.c.l.b16 %v37
  %v260 = vunpack.c.l.b16 %v38
  %v261 = vunpack.c.l.b16 %v39
  %v262 = vunpack.c.l.b16 %v40
  %v263 = vunpack.c.l.b16 %v41
  %v264 = vunpack.c.l.b16 %v42
  %v265 = vpack.c.b16 %v250, %v249
  %v266 = vpack.c.b16 %v252, %v251
  %v267 = vpack.c.b16 %v254, %v253
  %v268 = vpack.c.b16 %v256, %v255
  %v269 = vpack.c.b16 %v258, %v257
  %v270 = vpack.c.b16 %v260, %v259
  %v271 = vpack.c.b16 %v262, %v261
  %v272 = vpack.c.b16 %v264, %v263
  %v277 = vunpack.c.l.b16 %v43
  %v278 = vunpack.c.l.b16 %v44
  %v279 = vunpack.c.l.b16 %v45
  %v280 = vunpack.c.l.b16 %v46
  %v281 = vpack.c.b16 %v278, %v277
  %v282 = vpack.c.b16 %v280, %v279
  %vm285 = vcmask 261120
  %v287 = vsel %vm285, %v265, 0
  %v290 = vsel %vm285, %v266, 0
  %v293 = vsel %vm285, %v267, 0
  %v296 = vsel %vm285, %v268, 0
  %v299 = vsel %vm285, %v269, 0
  %v302 = vsel %vm285, %v270, 0
  %v305 = vsel %vm285, %v271, 0
  %v308 = vsel %vm285, %v272, 0
  %310 = vmatprep.subr.bf16.mxu0 0
  %311 = vmatpush1.bf16.msra.mxu0 0
  %312 = vmatprep.subr.bf16.mxu0 0
  %313 = vmatpush1.bf16.msra.mxu0 0
  %314 = vmatprep.subr.bf16.mxu0 0
  %315 = vmatpush1.bf16.msra.mxu0 0
  %316 = vmatprep.subr.bf16.mxu0 0
  %317 = vmatpush1.bf16.msra.mxu0 0
  %318 = vmatprep.subr.bf16.mxu0 0
  %319 = vmatpush1.bf16.msra.mxu0 0
  %320 = vmatprep.subr.bf16.mxu0 0
  %321 = vmatpush1.bf16.msra.mxu0 0
  %322 = vmatprep.subr.bf16.mxu0 0
  %323 = vmatpush1.bf16.msra.mxu0 %v282
  %324 = vmatprep.subr.bf16.mxu0 0
  %325 = vmatpush1.bf16.msra.mxu0 %v281
  %326 = vmatprep.subr.bf16.mxu0 0
  %327 = vmatpush2.bf16.msra.mxu0 0
  %328 = vmatprep.subr.bf16.mxu0 0
  %329 = vmatpush2.bf16.msra.mxu0 0
  %330 = vmatprep.subr.bf16.mxu0 0
  %331 = vmatpush2.bf16.msra.mxu0 0
  %332 = vmatprep.subr.bf16.mxu0 0
  %333 = vmatpush2.bf16.msra.mxu0 0
  %334 = vmatprep.subr.bf16.mxu0 0
  %335 = vmatpush2.bf16.msra.mxu0 0
  %336 = vmatprep.subr.bf16.mxu0 0
  %337 = vmatpush2.bf16.msra.mxu0 0
  %338 = vmatprep.subr.bf16.mxu0 0
  %339 = vmatpush2.bf16.msra.mxu0 0
  %340 = vmatprep.subr.bf16.mxu0 0
  %341 = vmatpush2.bf16.msra.mxu0 0
  %342 = vmatprep.mubr.bf16.mxu0 0
  %343 = vmatmul.mubr.bf16.gmra.mxu0 %v287
  %v344 = vpop.f32.mrf.mxu0
  %v345 = vadd.f32 %v171, %v344
  %v346 = vpop.f32.mrf.mxu0
  %v347 = vpop.f32.mrf.mxu0
  %v348 = vadd.f32 %v174, %v347
  %v349 = vpop.f32.mrf.mxu0
  %350 = vmatprep.mubr.bf16.mxu0 0
  %351 = vmatmul.mubr.bf16.gmra.mxu0 %v290
  %v352 = vpop.f32.mrf.mxu0
  %v353 = vadd.f32 %v179, %v352
  %v354 = vpop.f32.mrf.mxu0
  %v355 = vpop.f32.mrf.mxu0
  %v356 = vadd.f32 %v182, %v355
  %v357 = vpop.f32.mrf.mxu0
  %358 = vmatprep.mubr.bf16.mxu0 0
  %359 = vmatmul.mubr.bf16.gmra.mxu0 %v293
  %v360 = vpop.f32.mrf.mxu0
  %v361 = vadd.f32 %v187, %v360
  %v362 = vpop.f32.mrf.mxu0
  %v363 = vpop.f32.mrf.mxu0
  %v364 = vadd.f32 %v190, %v363
  %v365 = vpop.f32.mrf.mxu0
  %366 = vmatprep.mubr.bf16.mxu0 0
  %367 = vmatmul.mubr.bf16.gmra.mxu0 %v296
  %v368 = vpop.f32.mrf.mxu0
  %v369 = vadd.f32 %v195, %v368
  %v370 = vpop.f32.mrf.mxu0
  %v371 = vpop.f32.mrf.mxu0
  %v372 = vadd.f32 %v198, %v371
  %v373 = vpop.f32.mrf.mxu0
  %374 = vmatprep.mubr.bf16.mxu0 0
  %375 = vmatmul.mubr.bf16.gmra.mxu0 %v299
  %v376 = vpop.f32.mrf.mxu0
  %v377 = vadd.f32 %v203, %v376
  %v378 = vpop.f32.mrf.mxu0
  %v379 = vpop.f32.mrf.mxu0
  %v380 = vadd.f32 %v206, %v379
  %v381 = vpop.f32.mrf.mxu0
  %382 = vmatprep.mubr.bf16.mxu0 0
  %383 = vmatmul.mubr.bf16.gmra.mxu0 %v302
  %v384 = vpop.f32.mrf.mxu0
  %v385 = vadd.f32 %v211, %v384
  %v386 = vpop.f32.mrf.mxu0
  %v387 = vpop.f32.mrf.mxu0
  %v388 = vadd.f32 %v214, %v387
  %v389 = vpop.f32.mrf.mxu0
  %390 = vmatprep.mubr.bf16.mxu0 0
  %391 = vmatmul.mubr.bf16.gmra.mxu0 %v305
  %v392 = vpop.f32.mrf.mxu0
  %v393 = vadd.f32 %v219, %v392
  %v394 = vpop.f32.mrf.mxu0
  %v395 = vpop.f32.mrf.mxu0
  %v396 = vadd.f32 %v222, %v395
  %v397 = vpop.f32.mrf.mxu0
  %398 = vmatprep.mubr.bf16.mxu0 0
  %399 = vmatmul.mubr.bf16.gmra.mxu0 %v308
  %v400 = vpop.f32.mrf.mxu0
  %v401 = vadd.f32 %v227, %v400
  %v402 = vpop.f32.mrf.mxu0
  %v403 = vpop.f32.mrf.mxu0
  %v404 = vadd.f32 %v230, %v403
  %v405 = vpop.f32.mrf.mxu0
  %406 = vdwg.mxu0
  %v407 = vld [vmem:[%s2] sm:$0xf]
  %v408 = vld [vmem:[%s2 + $0x4] sm:$0xf]
  %v409 = vld [vmem:[%s2 + $0x8] sm:$0xf]
  %v410 = vld [vmem:[%s2 + $0xc] sm:$0xf]
  %v411 = vld [vmem:[%s2 + $0x10] sm:$0xf]
  %v412 = vld [vmem:[%s2 + $0x14] sm:$0xf]
  %v413 = vld [vmem:[%s2 + $0x18] sm:$0xf]
  %v414 = vld [vmem:[%s2 + $0x1c] sm:$0xf]
  %v415 = vld [vmem:[%s2 + $0x20] sm:$0xf]
  %v416 = vld [vmem:[%s2 + $0x24] sm:$0xf]
  %v417 = vld [vmem:[%s2 + $0x28] sm:$0xf]
  %v418 = vld [vmem:[%s2 + $0x2c] sm:$0xf]
  %v419 = vld [vmem:[%s2 + $0x30] sm:$0xf]
  %v420 = vld [vmem:[%s2 + $0x34] sm:$0xf]
  %v421 = vld [vmem:[%s2 + $0x38] sm:$0xf]
  %v422 = vld [vmem:[%s2 + $0x3c] sm:$0xf]
  %v423 = vld [vmem:[%s5] sm:$0xf]
  %v424 = vld [vmem:[%s5 + $0x4] sm:$0xf]
  %v441 = vunpack.c.l.b16 %v407
  %v442 = vunpack.c.l.b16 %v408
  %v443 = vunpack.c.l.b16 %v409
  %v444 = vunpack.c.l.b16 %v410
  %v445 = vunpack.c.l.b16 %v411
  %v446 = vunpack.c.l.b16 %v412
  %v447 = vunpack.c.l.b16 %v413
  %v448 = vunpack.c.l.b16 %v414
  %v449 = vunpack.c.l.b16 %v415
  %v450 = vunpack.c.l.b16 %v416
  %v451 = vunpack.c.l.b16 %v417
  %v452 = vunpack.c.l.b16 %v418
  %v453 = vunpack.c.l.b16 %v419
  %v454 = vunpack.c.l.b16 %v420
  %v455 = vunpack.c.l.b16 %v421
  %v456 = vunpack.c.l.b16 %v422
  %v457 = vpack.c.b16 %v442, %v441
  %v458 = vpack.c.b16 %v444, %v443
  %v459 = vpack.c.b16 %v446, %v445
  %v460 = vpack.c.b16 %v448, %v447
  %v461 = vpack.c.b16 %v450, %v449
  %v462 = vpack.c.b16 %v452, %v451
  %v463 = vpack.c.b16 %v454, %v453
  %v464 = vpack.c.b16 %v456, %v455
  %v467 = vunpack.c.l.b16 %v423
  %v468 = vunpack.c.l.b16 %v424
  %v469 = vpack.c.b16 %v468, %v467
  %v472 = vsel %vm111, %v457, 0
  %v475 = vsel %vm111, %v458, 0
  %v478 = vsel %vm111, %v459, 0
  %v481 = vsel %vm111, %v460, 0
  %v484 = vsel %vm111, %v461, 0
  %v487 = vsel %vm111, %v462, 0
  %v490 = vsel %vm111, %v463, 0
  %v493 = vsel %vm111, %v464, 0
  %495 = vmatprep.subr.bf16.mxu0 0
  %496 = vmatpush1.bf16.msra.mxu0 0
  %497 = vmatprep.subr.bf16.mxu0 0
  %498 = vmatpush1.bf16.msra.mxu0 0
  %499 = vmatprep.subr.bf16.mxu0 0
  %500 = vmatpush1.bf16.msra.mxu0 0
  %501 = vmatprep.subr.bf16.mxu0 0
  %502 = vmatpush1.bf16.msra.mxu0 0
  %503 = vmatprep.subr.bf16.mxu0 0
  %504 = vmatpush1.bf16.msra.mxu0 0
  %505 = vmatprep.subr.bf16.mxu0 0
  %506 = vmatpush1.bf16.msra.mxu0 0
  %507 = vmatprep.subr.bf16.mxu0 0
  %508 = vmatpush1.bf16.msra.mxu0 0
  %509 = vmatprep.subr.bf16.mxu0 0
  %510 = vmatpush1.bf16.msra.mxu0 %v469
  %511 = vmatprep.subr.bf16.mxu0 0
  %512 = vmatpush2.bf16.msra.mxu0 0
  %513 = vmatprep.subr.bf16.mxu0 0
  %514 = vmatpush2.bf16.msra.mxu0 0
  %515 = vmatprep.subr.bf16.mxu0 0
  %516 = vmatpush2.bf16.msra.mxu0 0
  %517 = vmatprep.subr.bf16.mxu0 0
  %518 = vmatpush2.bf16.msra.mxu0 0
  %519 = vmatprep.subr.bf16.mxu0 0
  %520 = vmatpush2.bf16.msra.mxu0 0
  %521 = vmatprep.subr.bf16.mxu0 0
  %522 = vmatpush2.bf16.msra.mxu0 0
  %523 = vmatprep.subr.bf16.mxu0 0
  %524 = vmatpush2.bf16.msra.mxu0 0
  %525 = vmatprep.subr.bf16.mxu0 0
  %526 = vmatpush2.bf16.msra.mxu0 0
  %527 = vmatprep.mubr.bf16.mxu0 0
  %528 = vmatmul.mubr.bf16.gmra.mxu0 %v472
  %v529 = vpop.f32.mrf.mxu0
  %v530 = vadd.f32 0.0, %v529
  %v531 = vpop.f32.mrf.mxu0
  %v532 = vpop.f32.mrf.mxu0
  %v533 = vadd.f32 0.0, %v532
  %v534 = vpop.f32.mrf.mxu0
  %535 = vmatprep.mubr.bf16.mxu0 0
  %536 = vmatmul.mubr.bf16.gmra.mxu0 %v475
  %v537 = vpop.f32.mrf.mxu0
  %v538 = vadd.f32 0.0, %v537
  %v539 = vpop.f32.mrf.mxu0
  %v540 = vpop.f32.mrf.mxu0
  %v541 = vadd.f32 0.0, %v540
  %v542 = vpop.f32.mrf.mxu0
  %543 = vmatprep.mubr.bf16.mxu0 0
  %544 = vmatmul.mubr.bf16.gmra.mxu0 %v478
  %v545 = vpop.f32.mrf.mxu0
  %v546 = vadd.f32 0.0, %v545
  %v547 = vpop.f32.mrf.mxu0
  %v548 = vpop.f32.mrf.mxu0
  %v549 = vadd.f32 0.0, %v548
  %v550 = vpop.f32.mrf.mxu0
  %551 = vmatprep.mubr.bf16.mxu0 0
  %552 = vmatmul.mubr.bf16.gmra.mxu0 %v481
  %v553 = vpop.f32.mrf.mxu0
  %v554 = vadd.f32 0.0, %v553
  %v555 = vpop.f32.mrf.mxu0
  %v556 = vpop.f32.mrf.mxu0
  %v557 = vadd.f32 0.0, %v556
  %v558 = vpop.f32.mrf.mxu0
  %559 = vmatprep.mubr.bf16.mxu0 0
  %560 = vmatmul.mubr.bf16.gmra.mxu0 %v484
  %v561 = vpop.f32.mrf.mxu0
  %v562 = vadd.f32 0.0, %v561
  %v563 = vpop.f32.mrf.mxu0
  %v564 = vpop.f32.mrf.mxu0
  %v565 = vadd.f32 0.0, %v564
  %v566 = vpop.f32.mrf.mxu0
  %567 = vmatprep.mubr.bf16.mxu0 0
  %568 = vmatmul.mubr.bf16.gmra.mxu0 %v487
  %v569 = vpop.f32.mrf.mxu0
  %v570 = vadd.f32 0.0, %v569
  %v571 = vpop.f32.mrf.mxu0
  %v572 = vpop.f32.mrf.mxu0
  %v573 = vadd.f32 0.0, %v572
  %v574 = vpop.f32.mrf.mxu0
  %575 = vmatprep.mubr.bf16.mxu0 0
  %576 = vmatmul.mubr.bf16.gmra.mxu0 %v490
  %v577 = vpop.f32.mrf.mxu0
  %v578 = vadd.f32 0.0, %v577
  %v579 = vpop.f32.mrf.mxu0
  %v580 = vpop.f32.mrf.mxu0
  %v581 = vadd.f32 0.0, %v580
  %v582 = vpop.f32.mrf.mxu0
  %583 = vmatprep.mubr.bf16.mxu0 0
  %584 = vmatmul.mubr.bf16.gmra.mxu0 %v493
  %v585 = vpop.f32.mrf.mxu0
  %v586 = vadd.f32 0.0, %v585
  %v587 = vpop.f32.mrf.mxu0
  %v588 = vpop.f32.mrf.mxu0
  %v589 = vadd.f32 0.0, %v588
  %v590 = vpop.f32.mrf.mxu0
  %591 = vdwg.mxu0
  %v592 = vadd.f32 %v345, %v530
  %v593 = vadd.f32 %v348, %v533
  %v594 = vadd.f32 %v353, %v538
  %v595 = vadd.f32 %v356, %v541
  %v596 = vadd.f32 %v361, %v546
  %v597 = vadd.f32 %v364, %v549
  %v598 = vadd.f32 %v369, %v554
  %v599 = vadd.f32 %v372, %v557
  %v600 = vadd.f32 %v377, %v562
  %v601 = vadd.f32 %v380, %v565
  %v602 = vadd.f32 %v385, %v570
  %v603 = vadd.f32 %v388, %v573
  %v604 = vadd.f32 %v393, %v578
  %v605 = vadd.f32 %v396, %v581
  %v606 = vadd.f32 %v401, %v586
  %v607 = vadd.f32 %v404, %v589
  %v608 = vld [vmem:[%s6] sm:$0x1]
  %v610 = vlaneseq
  %v611 = vshrl.u32 %v610, 7
  %v612 = vsub.s32 0, %v611
  %v613 = vrot.slane %v608, %v612
  %v615 = vadd.f32 %v592, %v613
  %v616 = vadd.f32 %v593, %v613
  %v617 = vadd.f32 %v594, %v613
  %v618 = vadd.f32 %v595, %v613
  %v619 = vadd.f32 %v596, %v613
  %v620 = vadd.f32 %v597, %v613
  %v621 = vadd.f32 %v598, %v613
  %v622 = vadd.f32 %v599, %v613
  %v623 = vadd.f32 %v600, %v613
  %v624 = vadd.f32 %v601, %v613
  %v625 = vadd.f32 %v602, %v613
  %v626 = vadd.f32 %v603, %v613
  %v627 = vadd.f32 %v604, %v613
  %v628 = vadd.f32 %v605, %v613
  %v629 = vadd.f32 %v606, %v613
  %v630 = vadd.f32 %v607, %v613
  %v631 = vxor.u32 %v615, 2147483648
  %v632 = vxor.u32 %v616, 2147483648
  %v633 = vxor.u32 %v617, 2147483648
  %v634 = vxor.u32 %v618, 2147483648
  %v635 = vxor.u32 %v619, 2147483648
  %v636 = vxor.u32 %v620, 2147483648
  %v637 = vxor.u32 %v621, 2147483648
  %v638 = vxor.u32 %v622, 2147483648
  %v639 = vxor.u32 %v623, 2147483648
  %v640 = vxor.u32 %v624, 2147483648
  %v641 = vxor.u32 %v625, 2147483648
  %v642 = vxor.u32 %v626, 2147483648
  %v643 = vxor.u32 %v627, 2147483648
  %v644 = vxor.u32 %v628, 2147483648
  %v645 = vxor.u32 %v629, 2147483648
  %v646 = vxor.u32 %v630, 2147483648
  %v647 = vmul.f32 %v631, 1.442695
  %v648 = vpow.pop %v647
  %v649 = vmul.f32 %v632, 1.442695
  %v650 = vpow.pop %v649
  %v651 = vmul.f32 %v633, 1.442695
  %v652 = vpow.pop %v651
  %v653 = vmul.f32 %v634, 1.442695
  %v654 = vpow.pop %v653
  %v655 = vmul.f32 %v635, 1.442695
  %v656 = vpow.pop %v655
  %v657 = vmul.f32 %v636, 1.442695
  %v658 = vpow.pop %v657
  %v659 = vmul.f32 %v637, 1.442695
  %v660 = vpow.pop %v659
  %v661 = vmul.f32 %v638, 1.442695
  %v662 = vpow.pop %v661
  %v663 = vmul.f32 %v639, 1.442695
  %v664 = vpow.pop %v663
  %v665 = vmul.f32 %v640, 1.442695
  %v666 = vpow.pop %v665
  %v667 = vmul.f32 %v641, 1.442695
  %v668 = vpow.pop %v667
  %v669 = vmul.f32 %v642, 1.442695
  %v670 = vpow.pop %v669
  %v671 = vmul.f32 %v643, 1.442695
  %v672 = vpow.pop %v671
  %v673 = vmul.f32 %v644, 1.442695
  %v674 = vpow.pop %v673
  %v675 = vmul.f32 %v645, 1.442695
  %v676 = vpow.pop %v675
  %v677 = vmul.f32 %v646, 1.442695
  %v678 = vpow.pop %v677
  %v679 = vadd.f32 %v648, 1.0
  %v680 = vadd.f32 %v650, 1.0
  %v681 = vadd.f32 %v652, 1.0
  %v682 = vadd.f32 %v654, 1.0
  %v683 = vadd.f32 %v656, 1.0
  %v684 = vadd.f32 %v658, 1.0
  %v685 = vadd.f32 %v660, 1.0
  %v686 = vadd.f32 %v662, 1.0
  %v687 = vadd.f32 %v664, 1.0
  %v688 = vadd.f32 %v666, 1.0
  %v689 = vadd.f32 %v668, 1.0
  %v690 = vadd.f32 %v670, 1.0
  %v691 = vadd.f32 %v672, 1.0
  %v692 = vadd.f32 %v674, 1.0
  %v693 = vadd.f32 %v676, 1.0
  %v694 = vadd.f32 %v678, 1.0
  %v695 = vrcp.pop %v679
  %v696 = vmul.f32 1.0, %v695
  %v697 = vrcp.pop %v680
  %v698 = vmul.f32 1.0, %v697
  %v699 = vrcp.pop %v681
  %v700 = vmul.f32 1.0, %v699
  %v701 = vrcp.pop %v682
  %v702 = vmul.f32 1.0, %v701
  %v703 = vrcp.pop %v683
  %v704 = vmul.f32 1.0, %v703
  %v705 = vrcp.pop %v684
  %v706 = vmul.f32 1.0, %v705
  %v707 = vrcp.pop %v685
  %v708 = vmul.f32 1.0, %v707
  %v709 = vrcp.pop %v686
  %v710 = vmul.f32 1.0, %v709
  %v711 = vrcp.pop %v687
  %v712 = vmul.f32 1.0, %v711
  %v713 = vrcp.pop %v688
  %v714 = vmul.f32 1.0, %v713
  %v715 = vrcp.pop %v689
  %v716 = vmul.f32 1.0, %v715
  %v717 = vrcp.pop %v690
  %v718 = vmul.f32 1.0, %v717
  %v719 = vrcp.pop %v691
  %v720 = vmul.f32 1.0, %v719
  %v721 = vrcp.pop %v692
  %v722 = vmul.f32 1.0, %v721
  %v723 = vrcp.pop %v693
  %v724 = vmul.f32 1.0, %v723
  %v725 = vrcp.pop %v694
  %v726 = vmul.f32 1.0, %v725
  %v727 = vmul.f32 %v615, %v696
  %v728 = vmul.f32 %v616, %v698
  %v729 = vmul.f32 %v617, %v700
  %v730 = vmul.f32 %v618, %v702
  %v731 = vmul.f32 %v619, %v704
  %v732 = vmul.f32 %v620, %v706
  %v733 = vmul.f32 %v621, %v708
  %v734 = vmul.f32 %v622, %v710
  %v735 = vmul.f32 %v623, %v712
  %v736 = vmul.f32 %v624, %v714
  %v737 = vmul.f32 %v625, %v716
  %v738 = vmul.f32 %v626, %v718
  %v739 = vmul.f32 %v627, %v720
  %v740 = vmul.f32 %v628, %v722
  %v741 = vmul.f32 %v629, %v724
  %v742 = vmul.f32 %v630, %v726
  %v743 = vpack.c.bf16 %v728, %v727
  %v744 = vpack.c.bf16 %v730, %v729
  %v745 = vpack.c.bf16 %v732, %v731
  %v746 = vpack.c.bf16 %v734, %v733
  %v747 = vpack.c.bf16 %v736, %v735
  %v748 = vpack.c.bf16 %v738, %v737
  %v749 = vpack.c.bf16 %v740, %v739
  %v750 = vpack.c.bf16 %v742, %v741
  %v759 = vunpack.c.l.b16 %v743
  %v760 = vunpack.c.h.b16 %v743
  %v761 = vunpack.c.l.b16 %v744
  %v762 = vunpack.c.h.b16 %v744
  %v763 = vunpack.c.l.b16 %v745
  %v764 = vunpack.c.h.b16 %v745
  %v765 = vunpack.c.l.b16 %v746
  %v766 = vunpack.c.h.b16 %v746
  %v767 = vunpack.c.l.b16 %v747
  %v768 = vunpack.c.h.b16 %v747
  %v769 = vunpack.c.l.b16 %v748
  %v770 = vunpack.c.h.b16 %v748
  %v771 = vunpack.c.l.b16 %v749
  %v772 = vunpack.c.h.b16 %v749
  %v773 = vunpack.c.l.b16 %v750
  %v774 = vunpack.c.h.b16 %v750
  %v775 = vpack.c.b16 %v759, %v759
  %v776 = vpack.c.b16 %v760, %v760
  %v777 = vpack.c.b16 %v761, %v761
  %v778 = vpack.c.b16 %v762, %v762
  %v779 = vpack.c.b16 %v763, %v763
  %v780 = vpack.c.b16 %v764, %v764
  %v781 = vpack.c.b16 %v765, %v765
  %v782 = vpack.c.b16 %v766, %v766
  %v783 = vpack.c.b16 %v767, %v767
  %v784 = vpack.c.b16 %v768, %v768
  %v785 = vpack.c.b16 %v769, %v769
  %v786 = vpack.c.b16 %v770, %v770
  %v787 = vpack.c.b16 %v771, %v771
  %v788 = vpack.c.b16 %v772, %v772
  %v789 = vpack.c.b16 %v773, %v773
  %v790 = vpack.c.b16 %v774, %v774
  %vm807 = vcmask 257024
  %808 = vst.msk [vmem:[%s7] sm:$0xf] %vm807, %v775
  %809 = vst.msk [vmem:[%s7 + $0x4] sm:$0xf] %vm807, %v776
  %810 = vst.msk [vmem:[%s7 + $0x8] sm:$0xf] %vm807, %v777
  %811 = vst.msk [vmem:[%s7 + $0xc] sm:$0xf] %vm807, %v778
  %812 = vst.msk [vmem:[%s7 + $0x10] sm:$0xf] %vm807, %v779
  %813 = vst.msk [vmem:[%s7 + $0x14] sm:$0xf] %vm807, %v780
  %814 = vst.msk [vmem:[%s7 + $0x18] sm:$0xf] %vm807, %v781
  %815 = vst.msk [vmem:[%s7 + $0x1c] sm:$0xf] %vm807, %v782
  %816 = vst.msk [vmem:[%s7 + $0x20] sm:$0xf] %vm807, %v783
  %817 = vst.msk [vmem:[%s7 + $0x24] sm:$0xf] %vm807, %v784
  %818 = vst.msk [vmem:[%s7 + $0x28] sm:$0xf] %vm807, %v785
  %819 = vst.msk [vmem:[%s7 + $0x2c] sm:$0xf] %vm807, %v786
  %820 = vst.msk [vmem:[%s7 + $0x30] sm:$0xf] %vm807, %v787
  %821 = vst.msk [vmem:[%s7 + $0x34] sm:$0xf] %vm807, %v788
  %822 = vst.msk [vmem:[%s7 + $0x38] sm:$0xf] %vm807, %v789
  %823 = vst.msk [vmem:[%s7 + $0x3c] sm:$0xf] %vm807, %v790
  // Predicated region
  $region30: #{_lambda_.40} parent=0 // pred_check
    _
  $region31: #{_lambda_.40} parent=0 // pred_check_branch
    %825 = sbr.rel (0) target = $region33
  $region32: #{_lambda_.40} parent=0 // pred_region
    _
  $region33: #{_lambda_.40} parent=0 // pred_fallthru
    _
  // Predicated region
  $region34: #{_lambda_.40} parent=0 // pred_check
    _
  $region35: #{_lambda_.40} parent=0 // pred_check_branch
    %827 = sbr.rel (0) target = $region37
  $region36: #{_lambda_.40} parent=0 // pred_region
    _
  $region37: #{_lambda_.40} parent=0 // pred_fallthru
    _

// kernel: _lambda_.38
$region0: #{_lambda_.38}
  #allocation0 [shape = 'u32[]', space=smem, size = 0x4, offset = 0x4, fixed_abs, tag = 'smem constant byte address 0x4 - core index']
  #allocation1 [shape = 'u32[144,128]{1,0:T(1,128)}', space=vmem, size = 0x12000, scoped, tag = 'internal scratch']
  %s0 = inlined_call_operand.vmem [shape: bf16[2,10,10,16], index: 0, kind: input, shape index: {}]
  %s1 = inlined_call_operand.vmem [shape: bf16[144,16], index: 1, kind: input, shape index: {}]
  %s2 = inlined_call_operand.vmem [shape: f32[1,16], index: 2, kind: input, shape index: {}]
  %s3 = inlined_call_operand.vmem [shape: bf16[2,8,8,16], index: 3, kind: output, shape index: {}]
  %s4 = sld [smem:[#allocation0]]
  $region45: #{_lambda_.38} parent=0
    _
  %s6 = ssub.s32 1, %s4
  %s7 = scalar_select 0, %s6, %s4
  loop: start=0, step=1, limit=18
  $region2: #{_lambda_.38} parent=0 // loop_pre_header
    _
  $region3: #{_lambda_.38} parent=0 // loop_header
    %s9 = sphi 0, %s13
    %p10 = scmp.ge.s32.totalorder %s9, 18
    %s16 = sphi 0, %s28
    %s17 = sphi 0, %s24
    %s18 = sphi 0, %s16
    %s19 = sphi 0, %s17
    %s20 = sphi 0, %s18
    %s21 = sphi 0, %s19
    %s31 = sphi 0, %s33
    %s34 = sphi 0, %s31
    %s35 = sphi 0, %s34
    %s51 = sphi 0, %s35
    %s55 = sphi 0, %s55
    %s57 = sphi 0, %s55
    %s58 = sphi 0, %s57
    %s72 = sphi 0, %s58
    %s76 = sphi 0, %s76
    %s78 = sphi 0, %s76
    %s79 = sphi 0, %s78
    %s93 = sphi 0, %s79
    %s101 = sphi 0, %s103
    %s104 = sphi 0, %s101
    %s105 = sphi 0, %s104
    %s121 = sphi 0, %s105
  $region4: #{_lambda_.38} parent=0 // loop_header_branch
    %12 = sbr.rel (%p10) target = $region8
  $region5: #{_lambda_.38} parent=0 // loop_body
    %s14 = ssub.s32 %s9, 1
    %s15 = ssub.s32 %s9, 2
    %s22 = sadd.s32 1, %s17
    %p23 = scmp.ge.s32.totalorder %s22, 8
    %s24 = scalar_select %p23, 0, %s22
    %s25 = sadd.s32 1, %s16
    %s26 = scalar_select %p23, %s25, %s16
    %p27 = scmp.ge.s32.totalorder %s26, 2
    %s28 = scalar_select %p27, 0, %s26
    %s29 = ssub.s32 %s16, %s28
    %p30 = scmp.eq.s32.totalorder %s29, 0
    %s32 = sadd.s32 %s31, 1
    %s33 = scalar_select %p30, %s31, %s32
    %p36 = pneg %p30
    %p37 = scmp.eq.s32.totalorder %s9, 15
    %p38 = por %p36, %p37
    %p39 = scmp.ne.s32.totalorder %s31, %s34
    %p40 = scmp.eq.s32.totalorder %s9, 0
    %p41 = por %p39, %p40
    %p42 = scmp.ne.s32.totalorder %s31, %s34
    %p43 = scmp.eq.s32.totalorder %s14, 15
    %p44 = por %p42, %p43
    %p45 = scmp.ne.s32.totalorder %s34, %s35
    %p46 = scmp.eq.s32.totalorder %s14, 0
    %p47 = por %p45, %p46
    %p48 = scmp.ne.s32.totalorder %s34, %s35
    %p49 = scmp.eq.s32.totalorder %s15, 15
    %p50 = por %p48, %p49
    %p52 = scmp.ne.s32.totalorder %s35, %s51
    %p53 = scmp.eq.s32.totalorder %s15, 0
    %p54 = por %p52, %p53
    %s56 = sadd.s32 %s55, 1
    %p59 = scmp.eq.s32.totalorder %s9, 15
    %p60 = scmp.ne.s32.totalorder %s55, %s57
    %p61 = scmp.eq.s32.totalorder %s9, 0
    %p62 = por %p60, %p61
    %p63 = scmp.ne.s32.totalorder %s55, %s57
    %p64 = scmp.eq.s32.totalorder %s14, 15
    %p65 = por %p63, %p64
    %p66 = scmp.ne.s32.totalorder %s57, %s58
    %p67 = scmp.eq.s32.totalorder %s14, 0
    %p68 = por %p66, %p67
    %p69 = scmp.ne.s32.totalorder %s57, %s58
    %p70 = scmp.eq.s32.totalorder %s15, 15
    %p71 = por %p69, %p70
    %p73 = scmp.ne.s32.totalorder %s58, %s72
    %p74 = scmp.eq.s32.totalorder %s15, 0
    %p75 = por %p73, %p74
    %s77 = sadd.s32 %s76, 1
    %p80 = scmp.eq.s32.totalorder %s9, 15
    %p81 = scmp.ne.s32.totalorder %s76, %s78
    %p82 = scmp.eq.s32.totalorder %s9, 0
    %p83 = por %p81, %p82
    %p84 = scmp.ne.s32.totalorder %s76, %s78
    %p85 = scmp.eq.s32.totalorder %s14, 15
    %p86 = por %p84, %p85
    %p87 = scmp.ne.s32.totalorder %s78, %s79
    %p88 = scmp.eq.s32.totalorder %s14, 0
    %p89 = por %p87, %p88
    %p90 = scmp.ne.s32.totalorder %s78, %s79
    %p91 = scmp.eq.s32.totalorder %s15, 15
    %p92 = por %p90, %p91
    %p94 = scmp.ne.s32.totalorder %s79, %s93
    %p95 = scmp.eq.s32.totalorder %s15, 0
    %p96 = por %p94, %p95
    %s97 = ssub.s32 %s16, %s28
    %s98 = ssub.s32 %s17, %s24
    %s99 = sor.u32 %s97, %s98
    %p100 = scmp.eq.s32.totalorder %s99, 0
    %s102 = sadd.s32 %s101, 1
    %s103 = scalar_select %p100, %s101, %s102
    %p106 = pneg %p100
    %p107 = scmp.eq.s32.totalorder %s9, 15
    %p108 = por %p106, %p107
    %p109 = scmp.ne.s32.totalorder %s101, %s104
    %p110 = scmp.eq.s32.totalorder %s9, 0
    %p111 = por %p109, %p110
    %p112 = scmp.ne.s32.totalorder %s101, %s104
    %p113 = scmp.eq.s32.totalorder %s14, 15
    %p114 = por %p112, %p113
    %p115 = scmp.ne.s32.totalorder %s104, %s105
    %p116 = scmp.eq.s32.totalorder %s14, 0
    %p117 = por %p115, %p116
    %p118 = scmp.ne.s32.totalorder %s104, %s105
    %p119 = scmp.eq.s32.totalorder %s15, 15
    %p120 = por %p118, %p119
    %p122 = scmp.ne.s32.totalorder %s105, %s121
    %p123 = scmp.eq.s32.totalorder %s15, 0
    %p124 = por %p122, %p123
    %p125 = scmp.le.s32.totalorder 1, %s9
    %p126 = scmp.lt.s32.totalorder %s9, 17
    %p127 = pnand %p125, %p126
    %p128 = pneg %p127
    // Predicated region
    $region9: #{_lambda_.38} parent=5 // pred_check
      _
    $region10: #{_lambda_.38} parent=5 // pred_check_branch
      %130 = sbr.rel (%p127) target = $region12
    $region11: #{_lambda_.38} parent=5 // pred_region
      %s131 = ssub.s32 %s9, 1
      // Predicated region
      $region13: #{_lambda_.38} parent=11 // pred_check
        %p132 = pneg %p68
      $region14: #{_lambda_.38} parent=11 // pred_check_branch
        %134 = sbr.rel (%p132) target = $region16
      $region15: #{_lambda_.38} parent=11 // pred_region
        _
      $region16: #{_lambda_.38} parent=11 // pred_fallthru
        _
      // Predicated region
      $region17: #{_lambda_.38} parent=11 // pred_check
        %p135 = pneg %p89
      $region18: #{_lambda_.38} parent=11 // pred_check_branch
        %137 = sbr.rel (%p135) target = $region20
      $region19: #{_lambda_.38} parent=11 // pred_region
        _
      $region20: #{_lambda_.38} parent=11 // pred_fallthru
        _
    $region12: #{_lambda_.38} parent=5 // pred_fallthru
      _
    %p138 = scmp.lt.s32.totalorder %s9, 16
    // Predicated region
    $region21: #{_lambda_.38} parent=5 // pred_check
      %p139 = pneg %p138
    $region22: #{_lambda_.38} parent=5 // pred_check_branch
      %141 = sbr.rel (%p139) target = $region24
    $region23: #{_lambda_.38} parent=5 // pred_region
      // Predicated region
      $region25: #{_lambda_.38} parent=23 // pred_check
        %p142 = pneg %p41
      $region26: #{_lambda_.38} parent=23 // pred_check_branch
        %144 = sbr.rel (%p142) target = $region28
      $region27: #{_lambda_.38} parent=23 // pred_region
        %p145 = scmp.lt.s32.totalorder %s16, 1
        %s146 = scalar_select %p145, %s16, 1
        %s147 = smul.addr %s146, 20
        %s148 = smul.addr %s147, 4
        %s149 = scalar_lea.vmem %s0, %s148
      $region28: #{_lambda_.38} parent=23 // pred_fallthru
        _
    $region24: #{_lambda_.38} parent=5 // pred_fallthru
      _
    %p150 = scmp.le.s32.totalorder 1, %s9
    %p151 = scmp.lt.s32.totalorder %s9, 17
    %p152 = pnand %p150, %p151
    %p153 = pneg %p152
    // Predicated region
    $region29: #{_lambda_.38} parent=5 // pred_check
      _
    $region30: #{_lambda_.38} parent=5 // pred_check_branch
      %155 = sbr.rel (%p152) target = $region32
    $region31: #{_lambda_.38} parent=5 // pred_region
      %s156 = ssub.s32 %s9, 1
      %p157 = scmp.lt.s32.totalorder %s18, 1
      %s158 = scalar_select %p157, %s18, 1
      %s159 = smul.addr %s158, 20
      %s160 = smul.addr %s159, 4
      %s161 = scalar_lea.vmem %s0, %s160
      %p162 = pneg %p47
      %p163 = pneg %p44
      %p164 = pneg %p68
      %p165 = pneg %p65
      %p166 = pneg %p89
      %p167 = pneg %p86
      %p168 = pneg %p117
      %p169 = pneg %p114
      %p170 = scmp.lt.s32.totalorder %s18, 1
      %s171 = scalar_select %p170, %s18, 1
      %p172 = scmp.lt.s32.totalorder %s19, 7
      %s173 = scalar_select %p172, %s19, 7
      %s174 = smul.addr %s171, 8
      %s175 = sadd.s32 %s173, %s174
      %s176 = smul.addr %s175, 4
      %s177 = scalar_lea.vmem %s3, %s176
      %p178 = scmp.lt.s32.totalorder %s18, 1
      %s179 = scalar_select %p178, %s18, 1
      %s180 = smul.addr %s179, 20
      %s181 = smul.addr %s180, 4
      %s182 = scalar_lea.vmem %s0, %s181
      %p183 = scmp.lt.s32.totalorder %s18, 1
      %s184 = scalar_select %p183, %s18, 1
      %p185 = scmp.lt.s32.totalorder %s19, 7
      %s186 = scalar_select %p185, %s19, 7
      %s187 = smul.addr %s184, 8
      %s188 = sadd.s32 %s186, %s187
      %s189 = smul.addr %s188, 4
      %s190 = scalar_lea.vmem %s3, %s189
      %v192 = vld [vmem:[%s1] sm:$0xf]
      %v193 = vld [vmem:[%s1 + $0x4] sm:$0xf]
      %v194 = vld [vmem:[%s1 + $0x8] sm:$0xf]
      %v195 = vld [vmem:[%s1 + $0xc] sm:$0xf]
      %v196 = vld [vmem:[%s1 + $0x10] sm:$0xf]
      %v197 = vld [vmem:[%s1 + $0x14] sm:$0xf]
      %v198 = vld [vmem:[%s1 + $0x18] sm:$0xf]
      %v199 = vld [vmem:[%s1 + $0x1c] sm:$0xf]
      %v200 = vld [vmem:[%s1 + $0x20] sm:$0xf]
      %v201 = vld [vmem:[%s1 + $0x24] sm:$0xf]
      %v202 = vld [vmem:[%s1 + $0x28] sm:$0xf]
      %v203 = vld [vmem:[%s1 + $0x2c] sm:$0xf]
      %v204 = vld [vmem:[%s1 + $0x30] sm:$0xf]
      %v205 = vld [vmem:[%s1 + $0x34] sm:$0xf]
      %v206 = vld [vmem:[%s1 + $0x38] sm:$0xf]
      %v207 = vld [vmem:[%s1 + $0x3c] sm:$0xf]
      %v208 = vld [vmem:[%s1 + $0x40] sm:$0xf]
      %v209 = vld [vmem:[%s1 + $0x44] sm:$0xf]
      %s210 = smul.u32 %s19, 2
      %s211 = smul.addr %s210, 4
      %s212 = scalar_lea.vmem %s182, %s211
      %v213 = vld [vmem:[%s212] sm:$0xf]
      %v214 = vld [vmem:[%s212 + $0x4] sm:$0x1]
      %v217 = vunpack.c.l.b16 %v213
      %v218 = vunpack.c.l.b16 %v214
      %v219 = vpack.c.b16 %v218, %v217
      %v221 = vshrl.u32 %v219, 16
      %v223 = vshll.u32 %v219, 16
      %v225 = vrot.slane %v223, 1
      %v226 = vor.u32 %v221, %v225
      %v229 = vunpack.c.l.b16 %v194
      %v230 = vunpack.c.l.b16 %v195
      %v231 = vpack.c.b16 %v230, %v229
      %vm233 = vcmask 130048
      %v235 = vsel %vm233, %v226, 0
      %237 = vmatprep.subr.bf16.mxu0 0
      %238 = vmatpush1.bf16.msra.mxu0 0
      %239 = vmatprep.subr.bf16.mxu0 0
      %240 = vmatpush1.bf16.msra.mxu0 0
      %241 = vmatprep.subr.bf16.mxu0 0
      %242 = vmatpush1.bf16.msra.mxu0 0
      %243 = vmatprep.subr.bf16.mxu0 0
      %244 = vmatpush1.bf16.msra.mxu0 0
      %245 = vmatprep.subr.bf16.mxu0 0
      %246 = vmatpush1.bf16.msra.mxu0 0
      %247 = vmatprep.subr.bf16.mxu0 0
      %248 = vmatpush1.bf16.msra.mxu0 0
      %249 = vmatprep.subr.bf16.mxu0 0
      %250 = vmatpush1.bf16.msra.mxu0 0
      %251 = vmatprep.subr.bf16.mxu0 0
      %252 = vmatpush1.bf16.msra.mxu0 %v231
      %253 = vmatprep.subr.bf16.mxu0 0
      %254 = vmatpush2.bf16.msra.mxu0 0
      %255 = vmatprep.subr.bf16.mxu0 0
      %256 = vmatpush2.bf16.msra.mxu0 0
      %257 = vmatprep.subr.bf16.mxu0 0
      %258 = vmatpush2.bf16.msra.mxu0 0
      %259 = vmatprep.subr.bf16.mxu0 0
      %260 = vmatpush2.bf16.msra.mxu0 0
      %261 = vmatprep.subr.bf16.mxu0 0
      %262 = vmatpush2.bf16.msra.mxu0 0
      %263 = vmatprep.subr.bf16.mxu0 0
      %264 = vmatpush2.bf16.msra.mxu0 0
      %265 = vmatprep.subr.bf16.mxu0 0
      %266 = vmatpush2.bf16.msra.mxu0 0
      %267 = vmatprep.subr.bf16.mxu0 0
      %268 = vmatpush2.bf16.msra.mxu0 0
      %269 = vmatprep.mubr.bf16.mxu0 0
      %270 = vmatmul.mubr.bf16.gmra.mxu0 %v235
      %v271 = vpop.f32.mrf.mxu0
      %v272 = vadd.f32 0.0, %v271
      %v273 = vpop.f32.mrf.mxu0
      %v274 = vpop.f32.mrf.mxu0
      %v275 = vpop.f32.mrf.mxu0
      %276 = vdwg.mxu0
      %v279 = vunpack.c.l.b16 %v192
      %v280 = vunpack.c.l.b16 %v193
      %v281 = vpack.c.b16 %v280, %v279
      %v284 = vsel %vm233, %v213, 0
      %286 = vmatprep.subr.bf16.mxu0 0
      %287 = vmatpush1.bf16.msra.mxu0 0
      %288 = vmatprep.subr.bf16.mxu0 0
      %289 = vmatpush1.bf16.msra.mxu0 0
      %290 = vmatprep.subr.bf16.mxu0 0
      %291 = vmatpush1.bf16.msra.mxu0 0
      %292 = vmatprep.subr.bf16.mxu0 0
      %293 = vmatpush1.bf16.msra.mxu0 0
      %294 = vmatprep.subr.bf16.mxu0 0
      %295 = vmatpush1.bf16.msra.mxu0 0
      %296 = vmatprep.subr.bf16.mxu0 0
      %297 = vmatpush1.bf16.msra.mxu0 0
      %298 = vmatprep.subr.bf16.mxu0 0
      %299 = vmatpush1.bf16.msra.mxu0 0
      %300 = vmatprep.subr.bf16.mxu0 0
      %301 = vmatpush1.bf16.msra.mxu0 %v281
      %302 = vmatprep.subr.bf16.mxu0 0
      %303 = vmatpush2.bf16.msra.mxu0 0
      %304 = vmatprep.subr.bf16.mxu0 0
      %305 = vmatpush2.bf16.msra.mxu0 0
      %306 = vmatprep.subr.bf16.mxu0 0
      %307 = vmatpush2.bf16.msra.mxu0 0
      %308 = vmatprep.subr.bf16.mxu0 0
      %309 = vmatpush2.bf16.msra.mxu0 0
      %310 = vmatprep.subr.bf16.mxu0 0
      %311 = vmatpush2.bf16.msra.mxu0 0
      %312 = vmatprep.subr.bf16.mxu0 0
      %313 = vmatpush2.bf16.msra.mxu0 0
      %314 = vmatprep.subr.bf16.mxu0 0
      %315 = vmatpush2.bf16.msra.mxu0 0
      %316 = vmatprep.subr.bf16.mxu0 0
      %317 = vmatpush2.bf16.msra.mxu0 0
      %318 = vmatprep.mubr.bf16.mxu0 0
      %319 = vmatmul.mubr.bf16.gmra.mxu0 %v284
      %v320 = vpop.f32.mrf.mxu0
      %v321 = vadd.f32 %v272, %v320
      %v322 = vpop.f32.mrf.mxu0
      %v323 = vpop.f32.mrf.mxu0
      %v324 = vpop.f32.mrf.mxu0
      %325 = vdwg.mxu0
      %v326 = vrot.slane %v219, 1
      %v329 = vunpack.c.l.b16 %v196
      %v330 = vunpack.c.l.b16 %v197
      %v331 = vpack.c.b16 %v330, %v329
      %v334 = vsel %vm233, %v326, 0
      %336 = vmatprep.subr.bf16.mxu0 0
      %337 = vmatpush1.bf16.msra.mxu0 0
      %338 = vmatprep.subr.bf16.mxu0 0
      %339 = vmatpush1.bf16.msra.mxu0 0
      %340 = vmatprep.subr.bf16.mxu0 0
      %341 = vmatpush1.bf16.msra.mxu0 0
      %342 = vmatprep.subr.bf16.mxu0 0
      %343 = vmatpush1.bf16.msra.mxu0 0
      %344 = vmatprep.subr.bf16.mxu0 0
      %345 = vmatpush1.bf16.msra.mxu0 0
      %346 = vmatprep.subr.bf16.mxu0 0
      %347 = vmatpush1.bf16.msra.mxu0 0
      %348 = vmatprep.subr.bf16.mxu0 0
      %349 = vmatpush1.bf16.msra.mxu0 0
      %350 = vmatprep.subr.bf16.mxu0 0
      %351 = vmatpush1.bf16.msra.mxu0 %v331
      %352 = vmatprep.subr.bf16.mxu0 0
      %353 = vmatpush2.bf16.msra.mxu0 0
      %354 = vmatprep.subr.bf16.mxu0 0
      %355 = vmatpush2.bf16.msra.mxu0 0
      %356 = vmatprep.subr.bf16.mxu0 0
      %357 = vmatpush2.bf16.msra.mxu0 0
      %358 = vmatprep.subr.bf16.mxu0 0
      %359 = vmatpush2.bf16.msra.mxu0 0
      %360 = vmatprep.subr.bf16.mxu0 0
      %361 = vmatpush2.bf16.msra.mxu0 0
      %362 = vmatprep.subr.bf16.mxu0 0
      %363 = vmatpush2.bf16.msra.mxu0 0
      %364 = vmatprep.subr.bf16.mxu0 0
      %365 = vmatpush2.bf16.msra.mxu0 0
      %366 = vmatprep.subr.bf16.mxu0 0
      %367 = vmatpush2.bf16.msra.mxu0 0
      %368 = vmatprep.mubr.bf16.mxu0 0
      %369 = vmatmul.mubr.bf16.gmra.mxu0 %v334
      %v370 = vpop.f32.mrf.mxu0
      %v371 = vadd.f32 0.0, %v370
      %v372 = vpop.f32.mrf.mxu0
      %v373 = vpop.f32.mrf.mxu0
      %v374 = vpop.f32.mrf.mxu0
      %375 = vdwg.mxu0
      %v376 = vadd.f32 %v321, %v371
      %s377 = sadd.s32 %s19, 1
      %s378 = smul.u32 %s377, 2
      %s379 = smul.addr %s378, 4
      %s380 = scalar_lea.vmem %s182, %s379
      %v381 = vld [vmem:[%s380] sm:$0xf]
      %v382 = vld [vmem:[%s380 + $0x4] sm:$0x1]
      %v385 = vunpack.c.l.b16 %v198
      %v386 = vunpack.c.l.b16 %v199
      %v387 = vpack.c.b16 %v386, %v385
      %v390 = vsel %vm233, %v381, 0
      %392 = vmatprep.subr.bf16.mxu0 0
      %393 = vmatpush1.bf16.msra.mxu0 0
      %394 = vmatprep.subr.bf16.mxu0 0
      %395 = vmatpush1.bf16.msra.mxu0 0
      %396 = vmatprep.subr.bf16.mxu0 0
      %397 = vmatpush1.bf16.msra.mxu0 0
      %398 = vmatprep.subr.bf16.mxu0 0
      %399 = vmatpush1.bf16.msra.mxu0 0
      %400 = vmatprep.subr.bf16.mxu0 0
      %401 = vmatpush1.bf16.msra.mxu0 0
      %402 = vmatprep.subr.bf16.mxu0 0
      %403 = vmatpush1.bf16.msra.mxu0 0
      %404 = vmatprep.subr.bf16.mxu0 0
      %405 = vmatpush1.bf16.msra.mxu0 0
      %406 = vmatprep.subr.bf16.mxu0 0
      %407 = vmatpush1.bf16.msra.mxu0 %v387
      %408 = vmatprep.subr.bf16.mxu0 0
      %409 = vmatpush2.bf16.msra.mxu0 0
      %410 = vmatprep.subr.bf16.mxu0 0
      %411 = vmatpush2.bf16.msra.mxu0 0
      %412 = vmatprep.subr.bf16.mxu0 0
      %413 = vmatpush2.bf16.msra.mxu0 0
      %414 = vmatprep.subr.bf16.mxu0 0
      %415 = vmatpush2.bf16.msra.mxu0 0
      %416 = vmatprep.subr.bf16.mxu0 0
      %417 = vmatpush2.bf16.msra.mxu0 0
      %418 = vmatprep.subr.bf16.mxu0 0
      %419 = vmatpush2.bf16.msra.mxu0 0
      %420 = vmatprep.subr.bf16.mxu0 0
      %421 = vmatpush2.bf16.msra.mxu0 0
      %422 = vmatprep.subr.bf16.mxu0 0
      %423 = vmatpush2.bf16.msra.mxu0 0
      %424 = vmatprep.mubr.bf16.mxu0 0
      %425 = vmatmul.mubr.bf16.gmra.mxu0 %v390
      %v426 = vpop.f32.mrf.mxu0
      %v427 = vadd.f32 0.0, %v426
      %v428 = vpop.f32.mrf.mxu0
      %v429 = vpop.f32.mrf.mxu0
      %v430 = vpop.f32.mrf.mxu0
      %431 = vdwg.mxu0
      %v432 = vadd.f32 %v376, %v427
      %v435 = vunpack.c.l.b16 %v381
      %v436 = vunpack.c.l.b16 %v382
      %v437 = vpack.c.b16 %v436, %v435
      %v439 = vshrl.u32 %v437, 16
      %v441 = vshll.u32 %v437, 16
      %v443 = vrot.slane %v441, 1
      %v444 = vor.u32 %v439, %v443
      %v447 = vunpack.c.l.b16 %v200
      %v448 = vunpack.c.l.b16 %v201
      %v449 = vpack.c.b16 %v448, %v447
      %v452 = vsel %vm233, %v444, 0
      %454 = vmatprep.subr.bf16.mxu0 0
      %455 = vmatpush1.bf16.msra.mxu0 0
      %456 = vmatprep.subr.bf16.mxu0 0
      %457 = vmatpush1.bf16.msra.mxu0 0
      %458 = vmatprep.subr.bf16.mxu0 0
      %459 = vmatpush1.bf16.msra.mxu0 0
      %460 = vmatprep.subr.bf16.mxu0 0
      %461 = vmatpush1.bf16.msra.mxu0 0
      %462 = vmatprep.subr.bf16.mxu0 0
      %463 = vmatpush1.bf16.msra.mxu0 0
      %464 = vmatprep.subr.bf16.mxu0 0
      %465 = vmatpush1.bf16.msra.mxu0 0
      %466 = vmatprep.subr.bf16.mxu0 0
      %467 = vmatpush1.bf16.msra.mxu0 0
      %468 = vmatprep.subr.bf16.mxu0 0
      %469 = vmatpush1.bf16.msra.mxu0 %v449
      %470 = vmatprep.subr.bf16.mxu0 0
      %471 = vmatpush2.bf16.msra.mxu0 0
      %472 = vmatprep.subr.bf16.mxu0 0
      %473 = vmatpush2.bf16.msra.mxu0 0
      %474 = vmatprep.subr.bf16.mxu0 0
      %475 = vmatpush2.bf16.msra.mxu0 0
      %476 = vmatprep.subr.bf16.mxu0 0
      %477 = vmatpush2.bf16.msra.mxu0 0
      %478 = vmatprep.subr.bf16.mxu0 0
      %479 = vmatpush2.bf16.msra.mxu0 0
      %480 = vmatprep.subr.bf16.mxu0 0
      %481 = vmatpush2.bf16.msra.mxu0 0
      %482 = vmatprep.subr.bf16.mxu0 0
      %483 = vmatpush2.bf16.msra.mxu0 0
      %484 = vmatprep.subr.bf16.mxu0 0
      %485 = vmatpush2.bf16.msra.mxu0 0
      %486 = vmatprep.mubr.bf16.mxu0 0
      %487 = vmatmul.mubr.bf16.gmra.mxu0 %v452
      %v488 = vpop.f32.mrf.mxu0
      %v489 = vadd.f32 0.0, %v488
      %v490 = vpop.f32.mrf.mxu0
      %v491 = vpop.f32.mrf.mxu0
      %v492 = vpop.f32.mrf.mxu0
      %493 = vdwg.mxu0
      %v494 = vadd.f32 %v432, %v489
      %v495 = vrot.slane %v437, 1
      %v498 = vunpack.c.l.b16 %v202
      %v499 = vunpack.c.l.b16 %v203
      %v500 = vpack.c.b16 %v499, %v498
      %v503 = vsel %vm233, %v495, 0
      %505 = vmatprep.subr.bf16.mxu0 0
      %506 = vmatpush1.bf16.msra.mxu0 0
      %507 = vmatprep.subr.bf16.mxu0 0
      %508 = vmatpush1.bf16.msra.mxu0 0
      %509 = vmatprep.subr.bf16.mxu0 0
      %510 = vmatpush1.bf16.msra.mxu0 0
      %511 = vmatprep.subr.bf16.mxu0 0
      %512 = vmatpush1.bf16.msra.mxu0 0
      %513 = vmatprep.subr.bf16.mxu0 0
      %514 = vmatpush1.bf16.msra.mxu0 0
      %515 = vmatprep.subr.bf16.mxu0 0
      %516 = vmatpush1.bf16.msra.mxu0 0
      %517 = vmatprep.subr.bf16.mxu0 0
      %518 = vmatpush1.bf16.msra.mxu0 0
      %519 = vmatprep.subr.bf16.mxu0 0
      %520 = vmatpush1.bf16.msra.mxu0 %v500
      %521 = vmatprep.subr.bf16.mxu0 0
      %522 = vmatpush2.bf16.msra.mxu0 0
      %523 = vmatprep.subr.bf16.mxu0 0
      %524 = vmatpush2.bf16.msra.mxu0 0
      %525 = vmatprep.subr.bf16.mxu0 0
      %526 = vmatpush2.bf16.msra.mxu0 0
      %527 = vmatprep.subr.bf16.mxu0 0
      %528 = vmatpush2.bf16.msra.mxu0 0
      %529 = vmatprep.subr.bf16.mxu0 0
      %530 = vmatpush2.bf16.msra.mxu0 0
      %531 = vmatprep.subr.bf16.mxu0 0
      %532 = vmatpush2.bf16.msra.mxu0 0
      %533 = vmatprep.subr.bf16.mxu0 0
      %534 = vmatpush2.bf16.msra.mxu0 0
      %535 = vmatprep.subr.bf16.mxu0 0
      %536 = vmatpush2.bf16.msra.mxu0 0
      %537 = vmatprep.mubr.bf16.mxu0 0
      %538 = vmatmul.mubr.bf16.gmra.mxu0 %v503
      %v539 = vpop.f32.mrf.mxu0
      %v540 = vadd.f32 0.0, %v539
      %v541 = vpop.f32.mrf.mxu0
      %v542 = vpop.f32.mrf.mxu0
      %v543 = vpop.f32.mrf.mxu0
      %544 = vdwg.mxu0
      %v545 = vadd.f32 %v494, %v540
      %s546 = sadd.s32 %s19, 2
      %s547 = smul.u32 %s546, 2
      %s548 = smul.addr %s547, 4
      %s549 = scalar_lea.vmem %s182, %s548
      %v550 = vld [vmem:[%s549] sm:$0xf]
      %v551 = vld [vmem:[%s549 + $0x4] sm:$0x1]
      %v554 = vunpack.c.l.b16 %v204
      %v555 = vunpack.c.l.b16 %v205
      %v556 = vpack.c.b16 %v555, %v554
      %v559 = vsel %vm233, %v550, 0
      %561 = vmatprep.subr.bf16.mxu0 0
      %562 = vmatpush1.bf16.msra.mxu0 0
      %563 = vmatprep.subr.bf16.mxu0 0
      %564 = vmatpush1.bf16.msra.mxu0 0
      %565 = vmatprep.subr.bf16.mxu0 0
      %566 = vmatpush1.bf16.msra.mxu0 0
      %567 = vmatprep.subr.bf16.mxu0 0
      %568 = vmatpush1.bf16.msra.mxu0 0
      %569 = vmatprep.subr.bf16.mxu0 0
      %570 = vmatpush1.bf16.msra.mxu0 0
      %571 = vmatprep.subr.bf16.mxu0 0
      %572 = vmatpush1.bf16.msra.mxu0 0
      %573 = vmatprep.subr.bf16.mxu0 0
      %574 = vmatpush1.bf16.msra.mxu0 0
      %575 = vmatprep.subr.bf16.mxu0 0
      %576 = vmatpush1.bf16.msra.mxu0 %v556
      %577 = vmatprep.subr.bf16.mxu0 0
      %578 = vmatpush2.bf16.msra.mxu0 0
      %579 = vmatprep.subr.bf16.mxu0 0
      %580 = vmatpush2.bf16.msra.mxu0 0
      %581 = vmatprep.subr.bf16.mxu0 0
      %582 = vmatpush2.bf16.msra.mxu0 0
      %583 = vmatprep.subr.bf16.mxu0 0
      %584 = vmatpush2.bf16.msra.mxu0 0
      %585 = vmatprep.subr.bf16.mxu0 0
      %586 = vmatpush2.bf16.msra.mxu0 0
      %587 = vmatprep.subr.bf16.mxu0 0
      %588 = vmatpush2.bf16.msra.mxu0 0
      %589 = vmatprep.subr.bf16.mxu0 0
      %590 = vmatpush2.bf16.msra.mxu0 0
      %591 = vmatprep.subr.bf16.mxu0 0
      %592 = vmatpush2.bf16.msra.mxu0 0
      %593 = vmatprep.mubr.bf16.mxu0 0
      %594 = vmatmul.mubr.bf16.gmra.mxu0 %v559
      %v595 = vpop.f32.mrf.mxu0
      %v596 = vadd.f32 0.0, %v595
      %v597 = vpop.f32.mrf.mxu0
      %v598 = vpop.f32.mrf.mxu0
      %v599 = vpop.f32.mrf.mxu0
      %600 = vdwg.mxu0
      %v601 = vadd.f32 %v545, %v596
      %v604 = vunpack.c.l.b16 %v550
      %v605 = vunpack.c.l.b16 %v551
      %v606 = vpack.c.b16 %v605, %v604
      %v608 = vshrl.u32 %v606, 16
      %v610 = vshll.u32 %v606, 16
      %v612 = vrot.slane %v610, 1
      %v613 = vor.u32 %v608, %v612
      %v616 = vunpack.c.l.b16 %v206
      %v617 = vunpack.c.l.b16 %v207
      %v618 = vpack.c.b16 %v617, %v616
      %v621 = vsel %vm233, %v613, 0
      %623 = vmatprep.subr.bf16.mxu0 0
      %624 = vmatpush1.bf16.msra.mxu0 0
      %625 = vmatprep.subr.bf16.mxu0 0
      %626 = vmatpush1.bf16.msra.mxu0 0
      %627 = vmatprep.subr.bf16.mxu0 0
      %628 = vmatpush1.bf16.msra.mxu0 0
      %629 = vmatprep.subr.bf16.mxu0 0
      %630 = vmatpush1.bf16.msra.mxu0 0
      %631 = vmatprep.subr.bf16.mxu0 0
      %632 = vmatpush1.bf16.msra.mxu0 0
      %633 = vmatprep.subr.bf16.mxu0 0
      %634 = vmatpush1.bf16.msra.mxu0 0
      %635 = vmatprep.subr.bf16.mxu0 0
      %636 = vmatpush1.bf16.msra.mxu0 0
      %637 = vmatprep.subr.bf16.mxu0 0
      %638 = vmatpush1.bf16.msra.mxu0 %v618
      %639 = vmatprep.subr.bf16.mxu0 0
      %640 = vmatpush2.bf16.msra.mxu0 0
      %641 = vmatprep.subr.bf16.mxu0 0
      %642 = vmatpush2.bf16.msra.mxu0 0
      %643 = vmatprep.subr.bf16.mxu0 0
      %644 = vmatpush2.bf16.msra.mxu0 0
      %645 = vmatprep.subr.bf16.mxu0 0
      %646 = vmatpush2.bf16.msra.mxu0 0
      %647 = vmatprep.subr.bf16.mxu0 0
      %648 = vmatpush2.bf16.msra.mxu0 0
      %649 = vmatprep.subr.bf16.mxu0 0
      %650 = vmatpush2.bf16.msra.mxu0 0
      %651 = vmatprep.subr.bf16.mxu0 0
      %652 = vmatpush2.bf16.msra.mxu0 0
      %653 = vmatprep.subr.bf16.mxu0 0
      %654 = vmatpush2.bf16.msra.mxu0 0
      %655 = vmatprep.mubr.bf16.mxu0 0
      %656 = vmatmul.mubr.bf16.gmra.mxu0 %v621
      %v657 = vpop.f32.mrf.mxu0
      %v658 = vadd.f32 0.0, %v657
      %v659 = vpop.f32.mrf.mxu0
      %v660 = vpop.f32.mrf.mxu0
      %v661 = vpop.f32.mrf.mxu0
      %662 = vdwg.mxu0
      %v663 = vadd.f32 %v601, %v658
      %v664 = vrot.slane %v606, 1
      %v667 = vunpack.c.l.b16 %v208
      %v668 = vunpack.c.l.b16 %v209
      %v669 = vpack.c.b16 %v668, %v667
      %v672 = vsel %vm233, %v664, 0
      %674 = vmatprep.subr.bf16.mxu0 0
      %675 = vmatpush1.bf16.msra.mxu0 0
      %676 = vmatprep.subr.bf16.mxu0 0
      %677 = vmatpush1.bf16.msra.mxu0 0
      %678 = vmatprep.subr.bf16.mxu0 0
      %679 = vmatpush1.bf16.msra.mxu0 0
      %680 = vmatprep.subr.bf16.mxu0 0
      %681 = vmatpush1.bf16.msra.mxu0 0
      %682 = vmatprep.subr.bf16.mxu0 0
      %683 = vmatpush1.bf16.msra.mxu0 0
      %684 = vmatprep.subr.bf16.mxu0 0
      %685 = vmatpush1.bf16.msra.mxu0 0
      %686 = vmatprep.subr.bf16.mxu0 0
      %687 = vmatpush1.bf16.msra.mxu0 0
      %688 = vmatprep.subr.bf16.mxu0 0
      %689 = vmatpush1.bf16.msra.mxu0 %v669
      %690 = vmatprep.subr.bf16.mxu0 0
      %691 = vmatpush2.bf16.msra.mxu0 0
      %692 = vmatprep.subr.bf16.mxu0 0
      %693 = vmatpush2.bf16.msra.mxu0 0
      %694 = vmatprep.subr.bf16.mxu0 0
      %695 = vmatpush2.bf16.msra.mxu0 0
      %696 = vmatprep.subr.bf16.mxu0 0
      %697 = vmatpush2.bf16.msra.mxu0 0
      %698 = vmatprep.subr.bf16.mxu0 0
      %699 = vmatpush2.bf16.msra.mxu0 0
      %700 = vmatprep.subr.bf16.mxu0 0
      %701 = vmatpush2.bf16.msra.mxu0 0
      %702 = vmatprep.subr.bf16.mxu0 0
      %703 = vmatpush2.bf16.msra.mxu0 0
      %704 = vmatprep.subr.bf16.mxu0 0
      %705 = vmatpush2.bf16.msra.mxu0 0
      %706 = vmatprep.mubr.bf16.mxu0 0
      %707 = vmatmul.mubr.bf16.gmra.mxu0 %v672
      %v708 = vpop.f32.mrf.mxu0
      %v709 = vadd.f32 0.0, %v708
      %v710 = vpop.f32.mrf.mxu0
      %v711 = vpop.f32.mrf.mxu0
      %v712 = vpop.f32.mrf.mxu0
      %713 = vdwg.mxu0
      %v714 = vadd.f32 %v663, %v709
      %v715 = vld [vmem:[%s2] sm:$0x1]
      %v717 = vlaneseq
      %v718 = vshrl.u32 %v717, 7
      %v719 = vsub.s32 0, %v718
      %v720 = vrot.slane %v715, %v719
      %v722 = vadd.f32 %v714, %v720
      %v723 = vxor.u32 %v722, 2147483648
      %v724 = vmul.f32 %v723, 1.442695
      %v725 = vpow.pop %v724
      %v726 = vadd.f32 %v725, 1.0
      %v727 = vrcp.pop %v726
      %v728 = vmul.f32 1.0, %v727
      %v729 = vmul.f32 %v722, %v728
      %v730 = vpack.c.bf16 %v729, %v729
      %vm731 = vcmask 125952
      %732 = vst.msk [vmem:[%s190] sm:$0xf] %vm731, %v730
      %p733 = scmp.lt.s32.totalorder %s18, 1
      %s734 = scalar_select %p733, %s18, 1
      %p735 = scmp.lt.s32.totalorder %s19, 7
      %s736 = scalar_select %p735, %s19, 7
      %s737 = smul.addr %s734, 8
      %s738 = sadd.s32 %s736, %s737
      %s739 = smul.addr %s738, 4
      %s740 = scalar_lea.vmem %s3, %s739
      // Predicated region
      $region33: #{_lambda_.38} parent=31 // pred_check
        %p741 = pneg %p114
      $region34: #{_lambda_.38} parent=31 // pred_check_branch
        %743 = sbr.rel (%p741) target = $region36
      $region35: #{_lambda_.38} parent=31 // pred_region
        _
      $region36: #{_lambda_.38} parent=31 // pred_fallthru
        _
    $region32: #{_lambda_.38} parent=5 // pred_fallthru
      _
    %p744 = scmp.le.s32.totalorder 2, %s9
    // Predicated region
    $region37: #{_lambda_.38} parent=5 // pred_check
      %p745 = pneg %p744
    $region38: #{_lambda_.38} parent=5 // pred_check_branch
      %747 = sbr.rel (%p745) target = $region40
    $region39: #{_lambda_.38} parent=5 // pred_region
      %s748 = ssub.s32 %s9, 2
      // Predicated region
      $region41: #{_lambda_.38} parent=39 // pred_check
        %p749 = pneg %p120
      $region42: #{_lambda_.38} parent=39 // pred_check_branch
        %751 = sbr.rel (%p749) target = $region44
      $region43: #{_lambda_.38} parent=39 // pred_region
        %p752 = scmp.lt.s32.totalorder %s20, 1
        %s753 = scalar_select %p752, %s20, 1
        %p754 = scmp.lt.s32.totalorder %s21, 7
        %s755 = scalar_select %p754, %s21, 7
        %s756 = smul.addr %s753, 8
        %s757 = sadd.s32 %s755, %s756
        %s758 = smul.addr %s757, 4
        %s759 = scalar_lea.vmem %s3, %s758
      $region44: #{_lambda_.38} parent=39 // pred_fallthru
        _
    $region40: #{_lambda_.38} parent=5 // pred_fallthru
      _
  $region6: #{_lambda_.38} parent=0 // loop_footer
    %s13 = sadd.s32 1, %s9
  $region7: #{_lambda_.38} parent=0 // loop_footer_branch
    %8 = sbr.rel target = $region3
  $region8: #{_lambda_.38} parent=0 // loop_exit
    _

// kernel: _lambda_.41
$region0: #{_lambda_.41}
  #allocation0 [shape = 'u32[]', space=smem, size = 0x4, offset = 0x4, fixed_abs, tag = 'smem constant byte address 0x4 - core index']
  #allocation1 [shape = 'u32[144,128]{1,0:T(1,128)}', space=vmem, size = 0x12000, scoped, tag = 'internal scratch']
  %s0 = inlined_call_operand.vmem [shape: bf16[98,4,32], index: 0, kind: input, shape index: {}]
  %s1 = inlined_call_operand.vmem [shape: bf16[98,32], index: 1, kind: output, shape index: {}]
  %s2 = sld [smem:[#allocation0]]
  $region14: #{_lambda_.41} parent=0
    _
  %s4 = ssub.s32 1, %s2
  %s5 = scalar_select 0, %s4, %s2
  // Predicated region
  $region2: #{_lambda_.41} parent=0 // pred_check
    _
  $region3: #{_lambda_.41} parent=0 // pred_check_branch
    %7 = sbr.rel (0) target = $region5
  $region4: #{_lambda_.41} parent=0 // pred_region
    _
  $region5: #{_lambda_.41} parent=0 // pred_fallthru
    _
  %v8 = vld [vmem:[%s0] sm:$0x3]
  %v9 = vld [vmem:[%s0 + $0x2] sm:$0x3]
  %v10 = vld [vmem:[%s0 + $0x4] sm:$0x3]
  %v11 = vld [vmem:[%s0 + $0x6] sm:$0x3]
  %v12 = vld [vmem:[%s0 + $0x8] sm:$0x3]
  %v13 = vld [vmem:[%s0 + $0xa] sm:$0x3]
  %v14 = vld [vmem:[%s0 + $0xc] sm:$0x3]
  %v15 = vld [vmem:[%s0 + $0xe] sm:$0x3]
  %v16 = vld [vmem:[%s0 + $0x10] sm:$0x3]
  %v17 = vld [vmem:[%s0 + $0x12] sm:$0x3]
  %v18 = vld [vmem:[%s0 + $0x14] sm:$0x3]
  %v19 = vld [vmem:[%s0 + $0x16] sm:$0x3]
  %v20 = vld [vmem:[%s0 + $0x18] sm:$0x3]
  %v21 = vld [vmem:[%s0 + $0x1a] sm:$0x3]
  %v22 = vld [vmem:[%s0 + $0x1c] sm:$0x3]
  %v23 = vld [vmem:[%s0 + $0x1e] sm:$0x3]
  %v24 = vld [vmem:[%s0 + $0x20] sm:$0x3]
  %v25 = vld [vmem:[%s0 + $0x22] sm:$0x3]
  %v26 = vld [vmem:[%s0 + $0x24] sm:$0x3]
  %v27 = vld [vmem:[%s0 + $0x26] sm:$0x3]
  %v28 = vld [vmem:[%s0 + $0x28] sm:$0x3]
  %v29 = vld [vmem:[%s0 + $0x2a] sm:$0x3]
  %v30 = vld [vmem:[%s0 + $0x2c] sm:$0x3]
  %v31 = vld [vmem:[%s0 + $0x2e] sm:$0x3]
  %v32 = vld [vmem:[%s0 + $0x30] sm:$0x3]
  %v33 = vld [vmem:[%s0 + $0x32] sm:$0x3]
  %v34 = vld [vmem:[%s0 + $0x34] sm:$0x3]
  %v35 = vld [vmem:[%s0 + $0x36] sm:$0x3]
  %v36 = vld [vmem:[%s0 + $0x38] sm:$0x3]
  %v37 = vld [vmem:[%s0 + $0x3a] sm:$0x3]
  %v38 = vld [vmem:[%s0 + $0x3c] sm:$0x3]
  %v39 = vld [vmem:[%s0 + $0x3e] sm:$0x3]
  %v40 = vld [vmem:[%s0 + $0x40] sm:$0x3]
  %v41 = vld [vmem:[%s0 + $0x42] sm:$0x3]
  %v42 = vld [vmem:[%s0 + $0x44] sm:$0x3]
  %v43 = vld [vmem:[%s0 + $0x46] sm:$0x3]
  %v44 = vld [vmem:[%s0 + $0x48] sm:$0x3]
  %v45 = vld [vmem:[%s0 + $0x4a] sm:$0x3]
  %v46 = vld [vmem:[%s0 + $0x4c] sm:$0x3]
  %v47 = vld [vmem:[%s0 + $0x4e] sm:$0x3]
  %v48 = vld [vmem:[%s0 + $0x50] sm:$0x3]
  %v49 = vld [vmem:[%s0 + $0x52] sm:$0x3]
  %v50 = vld [vmem:[%s0 + $0x54] sm:$0x3]
  %v51 = vld [vmem:[%s0 + $0x56] sm:$0x3]
  %v52 = vld [vmem:[%s0 + $0x58] sm:$0x3]
  %v53 = vld [vmem:[%s0 + $0x5a] sm:$0x3]
  %v54 = vld [vmem:[%s0 + $0x5c] sm:$0x3]
  %v55 = vld [vmem:[%s0 + $0x5e] sm:$0x3]
  %v56 = vld [vmem:[%s0 + $0x60] sm:$0x3]
  %v57 = vld [vmem:[%s0 + $0x62] sm:$0x3]
  %v58 = vld [vmem:[%s0 + $0x64] sm:$0x3]
  %v59 = vld [vmem:[%s0 + $0x66] sm:$0x3]
  %v60 = vld [vmem:[%s0 + $0x68] sm:$0x3]
  %v61 = vld [vmem:[%s0 + $0x6a] sm:$0x3]
  %v62 = vld [vmem:[%s0 + $0x6c] sm:$0x3]
  %v63 = vld [vmem:[%s0 + $0x6e] sm:$0x3]
  %v64 = vld [vmem:[%s0 + $0x70] sm:$0x3]
  %v65 = vld [vmem:[%s0 + $0x72] sm:$0x3]
  %v66 = vld [vmem:[%s0 + $0x74] sm:$0x3]
  %v67 = vld [vmem:[%s0 + $0x76] sm:$0x3]
  %v68 = vld [vmem:[%s0 + $0x78] sm:$0x3]
  %v69 = vld [vmem:[%s0 + $0x7a] sm:$0x3]
  %v70 = vld [vmem:[%s0 + $0x7c] sm:$0x3]
  %v71 = vld [vmem:[%s0 + $0x7e] sm:$0x3]
  %v72 = vld [vmem:[%s0 + $0x80] sm:$0x3]
  %v73 = vld [vmem:[%s0 + $0x82] sm:$0x3]
  %v74 = vld [vmem:[%s0 + $0x84] sm:$0x3]
  %v75 = vld [vmem:[%s0 + $0x86] sm:$0x3]
  %v76 = vld [vmem:[%s0 + $0x88] sm:$0x3]
  %v77 = vld [vmem:[%s0 + $0x8a] sm:$0x3]
  %v78 = vld [vmem:[%s0 + $0x8c] sm:$0x3]
  %v79 = vld [vmem:[%s0 + $0x8e] sm:$0x3]
  %v80 = vld [vmem:[%s0 + $0x90] sm:$0x3]
  %v81 = vld [vmem:[%s0 + $0x92] sm:$0x3]
  %v82 = vld [vmem:[%s0 + $0x94] sm:$0x3]
  %v83 = vld [vmem:[%s0 + $0x96] sm:$0x3]
  %v84 = vld [vmem:[%s0 + $0x98] sm:$0x3]
  %v85 = vld [vmem:[%s0 + $0x9a] sm:$0x3]
  %v86 = vld [vmem:[%s0 + $0x9c] sm:$0x3]
  %v87 = vld [vmem:[%s0 + $0x9e] sm:$0x3]
  %v88 = vld [vmem:[%s0 + $0xa0] sm:$0x3]
  %v89 = vld [vmem:[%s0 + $0xa2] sm:$0x3]
  %v90 = vld [vmem:[%s0 + $0xa4] sm:$0x3]
  %v91 = vld [vmem:[%s0 + $0xa6] sm:$0x3]
  %v92 = vld [vmem:[%s0 + $0xa8] sm:$0x3]
  %v93 = vld [vmem:[%s0 + $0xaa] sm:$0x3]
  %v94 = vld [vmem:[%s0 + $0xac] sm:$0x3]
  %v95 = vld [vmem:[%s0 + $0xae] sm:$0x3]
  %v96 = vld [vmem:[%s0 + $0xb0] sm:$0x3]
  %v97 = vld [vmem:[%s0 + $0xb2] sm:$0x3]
  %v98 = vld [vmem:[%s0 + $0xb4] sm:$0x3]
  %v99 = vld [vmem:[%s0 + $0xb6] sm:$0x3]
  %v100 = vld [vmem:[%s0 + $0xb8] sm:$0x3]
  %v101 = vld [vmem:[%s0 + $0xba] sm:$0x3]
  %v102 = vld [vmem:[%s0 + $0xbc] sm:$0x3]
  %v103 = vld [vmem:[%s0 + $0xbe] sm:$0x3]
  %v104 = vld [vmem:[%s0 + $0xc0] sm:$0x3]
  %v105 = vld [vmem:[%s0 + $0xc2] sm:$0x3]
  %v106 = vunpack.c.l.bf16 %v8
  %v107 = vunpack.c.l.bf16 %v9
  %v108 = vunpack.c.l.bf16 %v10
  %v109 = vunpack.c.l.bf16 %v11
  %v110 = vunpack.c.l.bf16 %v12
  %v111 = vunpack.c.l.bf16 %v13
  %v112 = vunpack.c.l.bf16 %v14
  %v113 = vunpack.c.l.bf16 %v15
  %v114 = vunpack.c.l.bf16 %v16
  %v115 = vunpack.c.l.bf16 %v17
  %v116 = vunpack.c.l.bf16 %v18
  %v117 = vunpack.c.l.bf16 %v19
  %v118 = vunpack.c.l.bf16 %v20
  %v119 = vunpack.c.l.bf16 %v21
  %v120 = vunpack.c.l.bf16 %v22
  %v121 = vunpack.c.l.bf16 %v23
  %v122 = vunpack.c.l.bf16 %v24
  %v123 = vunpack.c.l.bf16 %v25
  %v124 = vunpack.c.l.bf16 %v26
  %v125 = vunpack.c.l.bf16 %v27
  %v126 = vunpack.c.l.bf16 %v28
  %v127 = vunpack.c.l.bf16 %v29
  %v128 = vunpack.c.l.bf16 %v30
  %v129 = vunpack.c.l.bf16 %v31
  %v130 = vunpack.c.l.bf16 %v32
  %v131 = vunpack.c.l.bf16 %v33
  %v132 = vunpack.c.l.bf16 %v34
  %v133 = vunpack.c.l.bf16 %v35
  %v134 = vunpack.c.l.bf16 %v36
  %v135 = vunpack.c.l.bf16 %v37
  %v136 = vunpack.c.l.bf16 %v38
  %v137 = vunpack.c.l.bf16 %v39
  %v138 = vunpack.c.l.bf16 %v40
  %v139 = vunpack.c.l.bf16 %v41
  %v140 = vunpack.c.l.bf16 %v42
  %v141 = vunpack.c.l.bf16 %v43
  %v142 = vunpack.c.l.bf16 %v44
  %v143 = vunpack.c.l.bf16 %v45
  %v144 = vunpack.c.l.bf16 %v46
  %v145 = vunpack.c.l.bf16 %v47
  %v146 = vunpack.c.l.bf16 %v48
  %v147 = vunpack.c.l.bf16 %v49
  %v148 = vunpack.c.l.bf16 %v50
  %v149 = vunpack.c.l.bf16 %v51
  %v150 = vunpack.c.l.bf16 %v52
  %v151 = vunpack.c.l.bf16 %v53
  %v152 = vunpack.c.l.bf16 %v54
  %v153 = vunpack.c.l.bf16 %v55
  %v154 = vunpack.c.l.bf16 %v56
  %v155 = vunpack.c.l.bf16 %v57
  %v156 = vunpack.c.l.bf16 %v58
  %v157 = vunpack.c.l.bf16 %v59
  %v158 = vunpack.c.l.bf16 %v60
  %v159 = vunpack.c.l.bf16 %v61
  %v160 = vunpack.c.l.bf16 %v62
  %v161 = vunpack.c.l.bf16 %v63
  %v162 = vunpack.c.l.bf16 %v64
  %v163 = vunpack.c.l.bf16 %v65
  %v164 = vunpack.c.l.bf16 %v66
  %v165 = vunpack.c.l.bf16 %v67
  %v166 = vunpack.c.l.bf16 %v68
  %v167 = vunpack.c.l.bf16 %v69
  %v168 = vunpack.c.l.bf16 %v70
  %v169 = vunpack.c.l.bf16 %v71
  %v170 = vunpack.c.l.bf16 %v72
  %v171 = vunpack.c.l.bf16 %v73
  %v172 = vunpack.c.l.bf16 %v74
  %v173 = vunpack.c.l.bf16 %v75
  %v174 = vunpack.c.l.bf16 %v76
  %v175 = vunpack.c.l.bf16 %v77
  %v176 = vunpack.c.l.bf16 %v78
  %v177 = vunpack.c.l.bf16 %v79
  %v178 = vunpack.c.l.bf16 %v80
  %v179 = vunpack.c.l.bf16 %v81
  %v180 = vunpack.c.l.bf16 %v82
  %v181 = vunpack.c.l.bf16 %v83
  %v182 = vunpack.c.l.bf16 %v84
  %v183 = vunpack.c.l.bf16 %v85
  %v184 = vunpack.c.l.bf16 %v86
  %v185 = vunpack.c.l.bf16 %v87
  %v186 = vunpack.c.l.bf16 %v88
  %v187 = vunpack.c.l.bf16 %v89
  %v188 = vunpack.c.l.bf16 %v90
  %v189 = vunpack.c.l.bf16 %v91
  %v190 = vunpack.c.l.bf16 %v92
  %v191 = vunpack.c.l.bf16 %v93
  %v192 = vunpack.c.l.bf16 %v94
  %v193 = vunpack.c.l.bf16 %v95
  %v194 = vunpack.c.l.bf16 %v96
  %v195 = vunpack.c.l.bf16 %v97
  %v196 = vunpack.c.l.bf16 %v98
  %v197 = vunpack.c.l.bf16 %v99
  %v198 = vunpack.c.l.bf16 %v100
  %v199 = vunpack.c.l.bf16 %v101
  %v200 = vunpack.c.l.bf16 %v102
  %v201 = vunpack.c.l.bf16 %v103
  %v202 = vunpack.c.l.bf16 %v104
  %v203 = vunpack.c.l.bf16 %v105
  %vm204 = vcmask 257024
  %v205 = vsel %vm204, %v106, 0.0
  %v206 = vrot.slane %v205, 4
  %v207 = vadd.f32 %v205, %v206
  %v208 = vrot.slane %v207, 2
  %v209 = vadd.f32 %v207, %v208
  %v210 = vrot.slane %v209, 1
  %v211 = vadd.f32 %v209, %v210
  %v212 = vsel %vm204, %v107, 0.0
  %v213 = vrot.slane %v212, 4
  %v214 = vadd.f32 %v212, %v213
  %v215 = vrot.slane %v214, 2
  %v216 = vadd.f32 %v214, %v215
  %v217 = vrot.slane %v216, 1
  %v218 = vadd.f32 %v216, %v217
  %v219 = vsel %vm204, %v108, 0.0
  %v220 = vrot.slane %v219, 4
  %v221 = vadd.f32 %v219, %v220
  %v222 = vrot.slane %v221, 2
  %v223 = vadd.f32 %v221, %v222
  %v224 = vrot.slane %v223, 1
  %v225 = vadd.f32 %v223, %v224
  %v226 = vsel %vm204, %v109, 0.0
  %v227 = vrot.slane %v226, 4
  %v228 = vadd.f32 %v226, %v227
  %v229 = vrot.slane %v228, 2
  %v230 = vadd.f32 %v228, %v229
  %v231 = vrot.slane %v230, 1
  %v232 = vadd.f32 %v230, %v231
  %v233 = vsel %vm204, %v110, 0.0
  %v234 = vrot.slane %v233, 4
  %v235 = vadd.f32 %v233, %v234
  %v236 = vrot.slane %v235, 2
  %v237 = vadd.f32 %v235, %v236
  %v238 = vrot.slane %v237, 1
  %v239 = vadd.f32 %v237, %v238
  %v240 = vsel %vm204, %v111, 0.0
  %v241 = vrot.slane %v240, 4
  %v242 = vadd.f32 %v240, %v241
  %v243 = vrot.slane %v242, 2
  %v244 = vadd.f32 %v242, %v243
  %v245 = vrot.slane %v244, 1
  %v246 = vadd.f32 %v244, %v245
  %v247 = vsel %vm204, %v112, 0.0
  %v248 = vrot.slane %v247, 4
  %v249 = vadd.f32 %v247, %v248
  %v250 = vrot.slane %v249, 2
  %v251 = vadd.f32 %v249, %v250
  %v252 = vrot.slane %v251, 1
  %v253 = vadd.f32 %v251, %v252
  %v254 = vsel %vm204, %v113, 0.0
  %v255 = vrot.slane %v254, 4
  %v256 = vadd.f32 %v254, %v255
  %v257 = vrot.slane %v256, 2
  %v258 = vadd.f32 %v256, %v257
  %v259 = vrot.slane %v258, 1
  %v260 = vadd.f32 %v258, %v259
  %v261 = vsel %vm204, %v114, 0.0
  %v262 = vrot.slane %v261, 4
  %v263 = vadd.f32 %v261, %v262
  %v264 = vrot.slane %v263, 2
  %v265 = vadd.f32 %v263, %v264
  %v266 = vrot.slane %v265, 1
  %v267 = vadd.f32 %v265, %v266
  %v268 = vsel %vm204, %v115, 0.0
  %v269 = vrot.slane %v268, 4
  %v270 = vadd.f32 %v268, %v269
  %v271 = vrot.slane %v270, 2
  %v272 = vadd.f32 %v270, %v271
  %v273 = vrot.slane %v272, 1
  %v274 = vadd.f32 %v272, %v273
  %v275 = vsel %vm204, %v116, 0.0
  %v276 = vrot.slane %v275, 4
  %v277 = vadd.f32 %v275, %v276
  %v278 = vrot.slane %v277, 2
  %v279 = vadd.f32 %v277, %v278
  %v280 = vrot.slane %v279, 1
  %v281 = vadd.f32 %v279, %v280
  %v282 = vsel %vm204, %v117, 0.0
  %v283 = vrot.slane %v282, 4
  %v284 = vadd.f32 %v282, %v283
  %v285 = vrot.slane %v284, 2
  %v286 = vadd.f32 %v284, %v285
  %v287 = vrot.slane %v286, 1
  %v288 = vadd.f32 %v286, %v287
  %v289 = vsel %vm204, %v118, 0.0
  %v290 = vrot.slane %v289, 4
  %v291 = vadd.f32 %v289, %v290
  %v292 = vrot.slane %v291, 2
  %v293 = vadd.f32 %v291, %v292
  %v294 = vrot.slane %v293, 1
  %v295 = vadd.f32 %v293, %v294
  %v296 = vsel %vm204, %v119, 0.0
  %v297 = vrot.slane %v296, 4
  %v298 = vadd.f32 %v296, %v297
  %v299 = vrot.slane %v298, 2
  %v300 = vadd.f32 %v298, %v299
  %v301 = vrot.slane %v300, 1
  %v302 = vadd.f32 %v300, %v301
  %v303 = vsel %vm204, %v120, 0.0
  %v304 = vrot.slane %v303, 4
  %v305 = vadd.f32 %v303, %v304
  %v306 = vrot.slane %v305, 2
  %v307 = vadd.f32 %v305, %v306
  %v308 = vrot.slane %v307, 1
  %v309 = vadd.f32 %v307, %v308
  %v310 = vsel %vm204, %v121, 0.0
  %v311 = vrot.slane %v310, 4
  %v312 = vadd.f32 %v310, %v311
  %v313 = vrot.slane %v312, 2
  %v314 = vadd.f32 %v312, %v313
  %v315 = vrot.slane %v314, 1
  %v316 = vadd.f32 %v314, %v315
  %v317 = vsel %vm204, %v122, 0.0
  %v318 = vrot.slane %v317, 4
  %v319 = vadd.f32 %v317, %v318
  %v320 = vrot.slane %v319, 2
  %v321 = vadd.f32 %v319, %v320
  %v322 = vrot.slane %v321, 1
  %v323 = vadd.f32 %v321, %v322
  %v324 = vsel %vm204, %v123, 0.0
  %v325 = vrot.slane %v324, 4
  %v326 = vadd.f32 %v324, %v325
  %v327 = vrot.slane %v326, 2
  %v328 = vadd.f32 %v326, %v327
  %v329 = vrot.slane %v328, 1
  %v330 = vadd.f32 %v328, %v329
  %v331 = vsel %vm204, %v124, 0.0
  %v332 = vrot.slane %v331, 4
  %v333 = vadd.f32 %v331, %v332
  %v334 = vrot.slane %v333, 2
  %v335 = vadd.f32 %v333, %v334
  %v336 = vrot.slane %v335, 1
  %v337 = vadd.f32 %v335, %v336
  %v338 = vsel %vm204, %v125, 0.0
  %v339 = vrot.slane %v338, 4
  %v340 = vadd.f32 %v338, %v339
  %v341 = vrot.slane %v340, 2
  %v342 = vadd.f32 %v340, %v341
  %v343 = vrot.slane %v342, 1
  %v344 = vadd.f32 %v342, %v343
  %v345 = vsel %vm204, %v126, 0.0
  %v346 = vrot.slane %v345, 4
  %v347 = vadd.f32 %v345, %v346
  %v348 = vrot.slane %v347, 2
  %v349 = vadd.f32 %v347, %v348
  %v350 = vrot.slane %v349, 1
  %v351 = vadd.f32 %v349, %v350
  %v352 = vsel %vm204, %v127, 0.0
  %v353 = vrot.slane %v352, 4
  %v354 = vadd.f32 %v352, %v353
  %v355 = vrot.slane %v354, 2
  %v356 = vadd.f32 %v354, %v355
  %v357 = vrot.slane %v356, 1
  %v358 = vadd.f32 %v356, %v357
  %v359 = vsel %vm204, %v128, 0.0
  %v360 = vrot.slane %v359, 4
  %v361 = vadd.f32 %v359, %v360
  %v362 = vrot.slane %v361, 2
  %v363 = vadd.f32 %v361, %v362
  %v364 = vrot.slane %v363, 1
  %v365 = vadd.f32 %v363, %v364
  %v366 = vsel %vm204, %v129, 0.0
  %v367 = vrot.slane %v366, 4
  %v368 = vadd.f32 %v366, %v367
  %v369 = vrot.slane %v368, 2
  %v370 = vadd.f32 %v368, %v369
  %v371 = vrot.slane %v370, 1
  %v372 = vadd.f32 %v370, %v371
  %v373 = vsel %vm204, %v130, 0.0
  %v374 = vrot.slane %v373, 4
  %v375 = vadd.f32 %v373, %v374
  %v376 = vrot.slane %v375, 2
  %v377 = vadd.f32 %v375, %v376
  %v378 = vrot.slane %v377, 1
  %v379 = vadd.f32 %v377, %v378
  %v380 = vsel %vm204, %v131, 0.0
  %v381 = vrot.slane %v380, 4
  %v382 = vadd.f32 %v380, %v381
  %v383 = vrot.slane %v382, 2
  %v384 = vadd.f32 %v382, %v383
  %v385 = vrot.slane %v384, 1
  %v386 = vadd.f32 %v384, %v385
  %v387 = vsel %vm204, %v132, 0.0
  %v388 = vrot.slane %v387, 4
  %v389 = vadd.f32 %v387, %v388
  %v390 = vrot.slane %v389, 2
  %v391 = vadd.f32 %v389, %v390
  %v392 = vrot.slane %v391, 1
  %v393 = vadd.f32 %v391, %v392
  %v394 = vsel %vm204, %v133, 0.0
  %v395 = vrot.slane %v394, 4
  %v396 = vadd.f32 %v394, %v395
  %v397 = vrot.slane %v396, 2
  %v398 = vadd.f32 %v396, %v397
  %v399 = vrot.slane %v398, 1
  %v400 = vadd.f32 %v398, %v399
  %v401 = vsel %vm204, %v134, 0.0
  %v402 = vrot.slane %v401, 4
  %v403 = vadd.f32 %v401, %v402
  %v404 = vrot.slane %v403, 2
  %v405 = vadd.f32 %v403, %v404
  %v406 = vrot.slane %v405, 1
  %v407 = vadd.f32 %v405, %v406
  %v408 = vsel %vm204, %v135, 0.0
  %v409 = vrot.slane %v408, 4
  %v410 = vadd.f32 %v408, %v409
  %v411 = vrot.slane %v410, 2
  %v412 = vadd.f32 %v410, %v411
  %v413 = vrot.slane %v412, 1
  %v414 = vadd.f32 %v412, %v413
  %v415 = vsel %vm204, %v136, 0.0
  %v416 = vrot.slane %v415, 4
  %v417 = vadd.f32 %v415, %v416
  %v418 = vrot.slane %v417, 2
  %v419 = vadd.f32 %v417, %v418
  %v420 = vrot.slane %v419, 1
  %v421 = vadd.f32 %v419, %v420
  %v422 = vsel %vm204, %v137, 0.0
  %v423 = vrot.slane %v422, 4
  %v424 = vadd.f32 %v422, %v423
  %v425 = vrot.slane %v424, 2
  %v426 = vadd.f32 %v424, %v425
  %v427 = vrot.slane %v426, 1
  %v428 = vadd.f32 %v426, %v427
  %v429 = vsel %vm204, %v138, 0.0
  %v430 = vrot.slane %v429, 4
  %v431 = vadd.f32 %v429, %v430
  %v432 = vrot.slane %v431, 2
  %v433 = vadd.f32 %v431, %v432
  %v434 = vrot.slane %v433, 1
  %v435 = vadd.f32 %v433, %v434
  %v436 = vsel %vm204, %v139, 0.0
  %v437 = vrot.slane %v436, 4
  %v438 = vadd.f32 %v436, %v437
  %v439 = vrot.slane %v438, 2
  %v440 = vadd.f32 %v438, %v439
  %v441 = vrot.slane %v440, 1
  %v442 = vadd.f32 %v440, %v441
  %v443 = vsel %vm204, %v140, 0.0
  %v444 = vrot.slane %v443, 4
  %v445 = vadd.f32 %v443, %v444
  %v446 = vrot.slane %v445, 2
  %v447 = vadd.f32 %v445, %v446
  %v448 = vrot.slane %v447, 1
  %v449 = vadd.f32 %v447, %v448
  %v450 = vsel %vm204, %v141, 0.0
  %v451 = vrot.slane %v450, 4
  %v452 = vadd.f32 %v450, %v451
  %v453 = vrot.slane %v452, 2
  %v454 = vadd.f32 %v452, %v453
  %v455 = vrot.slane %v454, 1
  %v456 = vadd.f32 %v454, %v455
  %v457 = vsel %vm204, %v142, 0.0
  %v458 = vrot.slane %v457, 4
  %v459 = vadd.f32 %v457, %v458
  %v460 = vrot.slane %v459, 2
  %v461 = vadd.f32 %v459, %v460
  %v462 = vrot.slane %v461, 1
  %v463 = vadd.f32 %v461, %v462
  %v464 = vsel %vm204, %v143, 0.0
  %v465 = vrot.slane %v464, 4
  %v466 = vadd.f32 %v464, %v465
  %v467 = vrot.slane %v466, 2
  %v468 = vadd.f32 %v466, %v467
  %v469 = vrot.slane %v468, 1
  %v470 = vadd.f32 %v468, %v469
  %v471 = vsel %vm204, %v144, 0.0
  %v472 = vrot.slane %v471, 4
  %v473 = vadd.f32 %v471, %v472
  %v474 = vrot.slane %v473, 2
  %v475 = vadd.f32 %v473, %v474
  %v476 = vrot.slane %v475, 1
  %v477 = vadd.f32 %v475, %v476
  %v478 = vsel %vm204, %v145, 0.0
  %v479 = vrot.slane %v478, 4
  %v480 = vadd.f32 %v478, %v479
  %v481 = vrot.slane %v480, 2
  %v482 = vadd.f32 %v480, %v481
  %v483 = vrot.slane %v482, 1
  %v484 = vadd.f32 %v482, %v483
  %v485 = vsel %vm204, %v146, 0.0
  %v486 = vrot.slane %v485, 4
  %v487 = vadd.f32 %v485, %v486
  %v488 = vrot.slane %v487, 2
  %v489 = vadd.f32 %v487, %v488
  %v490 = vrot.slane %v489, 1
  %v491 = vadd.f32 %v489, %v490
  %v492 = vsel %vm204, %v147, 0.0
  %v493 = vrot.slane %v492, 4
  %v494 = vadd.f32 %v492, %v493
  %v495 = vrot.slane %v494, 2
  %v496 = vadd.f32 %v494, %v495
  %v497 = vrot.slane %v496, 1
  %v498 = vadd.f32 %v496, %v497
  %v499 = vsel %vm204, %v148, 0.0
  %v500 = vrot.slane %v499, 4
  %v501 = vadd.f32 %v499, %v500
  %v502 = vrot.slane %v501, 2
  %v503 = vadd.f32 %v501, %v502
  %v504 = vrot.slane %v503, 1
  %v505 = vadd.f32 %v503, %v504
  %v506 = vsel %vm204, %v149, 0.0
  %v507 = vrot.slane %v506, 4
  %v508 = vadd.f32 %v506, %v507
  %v509 = vrot.slane %v508, 2
  %v510 = vadd.f32 %v508, %v509
  %v511 = vrot.slane %v510, 1
  %v512 = vadd.f32 %v510, %v511
  %v513 = vsel %vm204, %v150, 0.0
  %v514 = vrot.slane %v513, 4
  %v515 = vadd.f32 %v513, %v514
  %v516 = vrot.slane %v515, 2
  %v517 = vadd.f32 %v515, %v516
  %v518 = vrot.slane %v517, 1
  %v519 = vadd.f32 %v517, %v518
  %v520 = vsel %vm204, %v151, 0.0
  %v521 = vrot.slane %v520, 4
  %v522 = vadd.f32 %v520, %v521
  %v523 = vrot.slane %v522, 2
  %v524 = vadd.f32 %v522, %v523
  %v525 = vrot.slane %v524, 1
  %v526 = vadd.f32 %v524, %v525
  %v527 = vsel %vm204, %v152, 0.0
  %v528 = vrot.slane %v527, 4
  %v529 = vadd.f32 %v527, %v528
  %v530 = vrot.slane %v529, 2
  %v531 = vadd.f32 %v529, %v530
  %v532 = vrot.slane %v531, 1
  %v533 = vadd.f32 %v531, %v532
  %v534 = vsel %vm204, %v153, 0.0
  %v535 = vrot.slane %v534, 4
  %v536 = vadd.f32 %v534, %v535
  %v537 = vrot.slane %v536, 2
  %v538 = vadd.f32 %v536, %v537
  %v539 = vrot.slane %v538, 1
  %v540 = vadd.f32 %v538, %v539
  %v541 = vsel %vm204, %v154, 0.0
  %v542 = vrot.slane %v541, 4
  %v543 = vadd.f32 %v541, %v542
  %v544 = vrot.slane %v543, 2
  %v545 = vadd.f32 %v543, %v544
  %v546 = vrot.slane %v545, 1
  %v547 = vadd.f32 %v545, %v546
  %v548 = vsel %vm204, %v155, 0.0
  %v549 = vrot.slane %v548, 4
  %v550 = vadd.f32 %v548, %v549
  %v551 = vrot.slane %v550, 2
  %v552 = vadd.f32 %v550, %v551
  %v553 = vrot.slane %v552, 1
  %v554 = vadd.f32 %v552, %v553
  %v555 = vsel %vm204, %v156, 0.0
  %v556 = vrot.slane %v555, 4
  %v557 = vadd.f32 %v555, %v556
  %v558 = vrot.slane %v557, 2
  %v559 = vadd.f32 %v557, %v558
  %v560 = vrot.slane %v559, 1
  %v561 = vadd.f32 %v559, %v560
  %v562 = vsel %vm204, %v157, 0.0
  %v563 = vrot.slane %v562, 4
  %v564 = vadd.f32 %v562, %v563
  %v565 = vrot.slane %v564, 2
  %v566 = vadd.f32 %v564, %v565
  %v567 = vrot.slane %v566, 1
  %v568 = vadd.f32 %v566, %v567
  %v569 = vsel %vm204, %v158, 0.0
  %v570 = vrot.slane %v569, 4
  %v571 = vadd.f32 %v569, %v570
  %v572 = vrot.slane %v571, 2
  %v573 = vadd.f32 %v571, %v572
  %v574 = vrot.slane %v573, 1
  %v575 = vadd.f32 %v573, %v574
  %v576 = vsel %vm204, %v159, 0.0
  %v577 = vrot.slane %v576, 4
  %v578 = vadd.f32 %v576, %v577
  %v579 = vrot.slane %v578, 2
  %v580 = vadd.f32 %v578, %v579
  %v581 = vrot.slane %v580, 1
  %v582 = vadd.f32 %v580, %v581
  %v583 = vsel %vm204, %v160, 0.0
  %v584 = vrot.slane %v583, 4
  %v585 = vadd.f32 %v583, %v584
  %v586 = vrot.slane %v585, 2
  %v587 = vadd.f32 %v585, %v586
  %v588 = vrot.slane %v587, 1
  %v589 = vadd.f32 %v587, %v588
  %v590 = vsel %vm204, %v161, 0.0
  %v591 = vrot.slane %v590, 4
  %v592 = vadd.f32 %v590, %v591
  %v593 = vrot.slane %v592, 2
  %v594 = vadd.f32 %v592, %v593
  %v595 = vrot.slane %v594, 1
  %v596 = vadd.f32 %v594, %v595
  %v597 = vsel %vm204, %v162, 0.0
  %v598 = vrot.slane %v597, 4
  %v599 = vadd.f32 %v597, %v598
  %v600 = vrot.slane %v599, 2
  %v601 = vadd.f32 %v599, %v600
  %v602 = vrot.slane %v601, 1
  %v603 = vadd.f32 %v601, %v602
  %v604 = vsel %vm204, %v163, 0.0
  %v605 = vrot.slane %v604, 4
  %v606 = vadd.f32 %v604, %v605
  %v607 = vrot.slane %v606, 2
  %v608 = vadd.f32 %v606, %v607
  %v609 = vrot.slane %v608, 1
  %v610 = vadd.f32 %v608, %v609
  %v611 = vsel %vm204, %v164, 0.0
  %v612 = vrot.slane %v611, 4
  %v613 = vadd.f32 %v611, %v612
  %v614 = vrot.slane %v613, 2
  %v615 = vadd.f32 %v613, %v614
  %v616 = vrot.slane %v615, 1
  %v617 = vadd.f32 %v615, %v616
  %v618 = vsel %vm204, %v165, 0.0
  %v619 = vrot.slane %v618, 4
  %v620 = vadd.f32 %v618, %v619
  %v621 = vrot.slane %v620, 2
  %v622 = vadd.f32 %v620, %v621
  %v623 = vrot.slane %v622, 1
  %v624 = vadd.f32 %v622, %v623
  %v625 = vsel %vm204, %v166, 0.0
  %v626 = vrot.slane %v625, 4
  %v627 = vadd.f32 %v625, %v626
  %v628 = vrot.slane %v627, 2
  %v629 = vadd.f32 %v627, %v628
  %v630 = vrot.slane %v629, 1
  %v631 = vadd.f32 %v629, %v630
  %v632 = vsel %vm204, %v167, 0.0
  %v633 = vrot.slane %v632, 4
  %v634 = vadd.f32 %v632, %v633
  %v635 = vrot.slane %v634, 2
  %v636 = vadd.f32 %v634, %v635
  %v637 = vrot.slane %v636, 1
  %v638 = vadd.f32 %v636, %v637
  %v639 = vsel %vm204, %v168, 0.0
  %v640 = vrot.slane %v639, 4
  %v641 = vadd.f32 %v639, %v640
  %v642 = vrot.slane %v641, 2
  %v643 = vadd.f32 %v641, %v642
  %v644 = vrot.slane %v643, 1
  %v645 = vadd.f32 %v643, %v644
  %v646 = vsel %vm204, %v169, 0.0
  %v647 = vrot.slane %v646, 4
  %v648 = vadd.f32 %v646, %v647
  %v649 = vrot.slane %v648, 2
  %v650 = vadd.f32 %v648, %v649
  %v651 = vrot.slane %v650, 1
  %v652 = vadd.f32 %v650, %v651
  %v653 = vsel %vm204, %v170, 0.0
  %v654 = vrot.slane %v653, 4
  %v655 = vadd.f32 %v653, %v654
  %v656 = vrot.slane %v655, 2
  %v657 = vadd.f32 %v655, %v656
  %v658 = vrot.slane %v657, 1
  %v659 = vadd.f32 %v657, %v658
  %v660 = vsel %vm204, %v171, 0.0
  %v661 = vrot.slane %v660, 4
  %v662 = vadd.f32 %v660, %v661
  %v663 = vrot.slane %v662, 2
  %v664 = vadd.f32 %v662, %v663
  %v665 = vrot.slane %v664, 1
  %v666 = vadd.f32 %v664, %v665
  %v667 = vsel %vm204, %v172, 0.0
  %v668 = vrot.slane %v667, 4
  %v669 = vadd.f32 %v667, %v668
  %v670 = vrot.slane %v669, 2
  %v671 = vadd.f32 %v669, %v670
  %v672 = vrot.slane %v671, 1
  %v673 = vadd.f32 %v671, %v672
  %v674 = vsel %vm204, %v173, 0.0
  %v675 = vrot.slane %v674, 4
  %v676 = vadd.f32 %v674, %v675
  %v677 = vrot.slane %v676, 2
  %v678 = vadd.f32 %v676, %v677
  %v679 = vrot.slane %v678, 1
  %v680 = vadd.f32 %v678, %v679
  %v681 = vsel %vm204, %v174, 0.0
  %v682 = vrot.slane %v681, 4
  %v683 = vadd.f32 %v681, %v682
  %v684 = vrot.slane %v683, 2
  %v685 = vadd.f32 %v683, %v684
  %v686 = vrot.slane %v685, 1
  %v687 = vadd.f32 %v685, %v686
  %v688 = vsel %vm204, %v175, 0.0
  %v689 = vrot.slane %v688, 4
  %v690 = vadd.f32 %v688, %v689
  %v691 = vrot.slane %v690, 2
  %v692 = vadd.f32 %v690, %v691
  %v693 = vrot.slane %v692, 1
  %v694 = vadd.f32 %v692, %v693
  %v695 = vsel %vm204, %v176, 0.0
  %v696 = vrot.slane %v695, 4
  %v697 = vadd.f32 %v695, %v696
  %v698 = vrot.slane %v697, 2
  %v699 = vadd.f32 %v697, %v698
  %v700 = vrot.slane %v699, 1
  %v701 = vadd.f32 %v699, %v700
  %v702 = vsel %vm204, %v177, 0.0
  %v703 = vrot.slane %v702, 4
  %v704 = vadd.f32 %v702, %v703
  %v705 = vrot.slane %v704, 2
  %v706 = vadd.f32 %v704, %v705
  %v707 = vrot.slane %v706, 1
  %v708 = vadd.f32 %v706, %v707
  %v709 = vsel %vm204, %v178, 0.0
  %v710 = vrot.slane %v709, 4
  %v711 = vadd.f32 %v709, %v710
  %v712 = vrot.slane %v711, 2
  %v713 = vadd.f32 %v711, %v712
  %v714 = vrot.slane %v713, 1
  %v715 = vadd.f32 %v713, %v714
  %v716 = vsel %vm204, %v179, 0.0
  %v717 = vrot.slane %v716, 4
  %v718 = vadd.f32 %v716, %v717
  %v719 = vrot.slane %v718, 2
  %v720 = vadd.f32 %v718, %v719
  %v721 = vrot.slane %v720, 1
  %v722 = vadd.f32 %v720, %v721
  %v723 = vsel %vm204, %v180, 0.0
  %v724 = vrot.slane %v723, 4
  %v725 = vadd.f32 %v723, %v724
  %v726 = vrot.slane %v725, 2
  %v727 = vadd.f32 %v725, %v726
  %v728 = vrot.slane %v727, 1
  %v729 = vadd.f32 %v727, %v728
  %v730 = vsel %vm204, %v181, 0.0
  %v731 = vrot.slane %v730, 4
  %v732 = vadd.f32 %v730, %v731
  %v733 = vrot.slane %v732, 2
  %v734 = vadd.f32 %v732, %v733
  %v735 = vrot.slane %v734, 1
  %v736 = vadd.f32 %v734, %v735
  %v737 = vsel %vm204, %v182, 0.0
  %v738 = vrot.slane %v737, 4
  %v739 = vadd.f32 %v737, %v738
  %v740 = vrot.slane %v739, 2
  %v741 = vadd.f32 %v739, %v740
  %v742 = vrot.slane %v741, 1
  %v743 = vadd.f32 %v741, %v742
  %v744 = vsel %vm204, %v183, 0.0
  %v745 = vrot.slane %v744, 4
  %v746 = vadd.f32 %v744, %v745
  %v747 = vrot.slane %v746, 2
  %v748 = vadd.f32 %v746, %v747
  %v749 = vrot.slane %v748, 1
  %v750 = vadd.f32 %v748, %v749
  %v751 = vsel %vm204, %v184, 0.0
  %v752 = vrot.slane %v751, 4
  %v753 = vadd.f32 %v751, %v752
  %v754 = vrot.slane %v753, 2
  %v755 = vadd.f32 %v753, %v754
  %v756 = vrot.slane %v755, 1
  %v757 = vadd.f32 %v755, %v756
  %v758 = vsel %vm204, %v185, 0.0
  %v759 = vrot.slane %v758, 4
  %v760 = vadd.f32 %v758, %v759
  %v761 = vrot.slane %v760, 2
  %v762 = vadd.f32 %v760, %v761
  %v763 = vrot.slane %v762, 1
  %v764 = vadd.f32 %v762, %v763
  %v765 = vsel %vm204, %v186, 0.0
  %v766 = vrot.slane %v765, 4
  %v767 = vadd.f32 %v765, %v766
  %v768 = vrot.slane %v767, 2
  %v769 = vadd.f32 %v767, %v768
  %v770 = vrot.slane %v769, 1
  %v771 = vadd.f32 %v769, %v770
  %v772 = vsel %vm204, %v187, 0.0
  %v773 = vrot.slane %v772, 4
  %v774 = vadd.f32 %v772, %v773
  %v775 = vrot.slane %v774, 2
  %v776 = vadd.f32 %v774, %v775
  %v777 = vrot.slane %v776, 1
  %v778 = vadd.f32 %v776, %v777
  %v779 = vsel %vm204, %v188, 0.0
  %v780 = vrot.slane %v779, 4
  %v781 = vadd.f32 %v779, %v780
  %v782 = vrot.slane %v781, 2
  %v783 = vadd.f32 %v781, %v782
  %v784 = vrot.slane %v783, 1
  %v785 = vadd.f32 %v783, %v784
  %v786 = vsel %vm204, %v189, 0.0
  %v787 = vrot.slane %v786, 4
  %v788 = vadd.f32 %v786, %v787
  %v789 = vrot.slane %v788, 2
  %v790 = vadd.f32 %v788, %v789
  %v791 = vrot.slane %v790, 1
  %v792 = vadd.f32 %v790, %v791
  %v793 = vsel %vm204, %v190, 0.0
  %v794 = vrot.slane %v793, 4
  %v795 = vadd.f32 %v793, %v794
  %v796 = vrot.slane %v795, 2
  %v797 = vadd.f32 %v795, %v796
  %v798 = vrot.slane %v797, 1
  %v799 = vadd.f32 %v797, %v798
  %v800 = vsel %vm204, %v191, 0.0
  %v801 = vrot.slane %v800, 4
  %v802 = vadd.f32 %v800, %v801
  %v803 = vrot.slane %v802, 2
  %v804 = vadd.f32 %v802, %v803
  %v805 = vrot.slane %v804, 1
  %v806 = vadd.f32 %v804, %v805
  %v807 = vsel %vm204, %v192, 0.0
  %v808 = vrot.slane %v807, 4
  %v809 = vadd.f32 %v807, %v808
  %v810 = vrot.slane %v809, 2
  %v811 = vadd.f32 %v809, %v810
  %v812 = vrot.slane %v811, 1
  %v813 = vadd.f32 %v811, %v812
  %v814 = vsel %vm204, %v193, 0.0
  %v815 = vrot.slane %v814, 4
  %v816 = vadd.f32 %v814, %v815
  %v817 = vrot.slane %v816, 2
  %v818 = vadd.f32 %v816, %v817
  %v819 = vrot.slane %v818, 1
  %v820 = vadd.f32 %v818, %v819
  %v821 = vsel %vm204, %v194, 0.0
  %v822 = vrot.slane %v821, 4
  %v823 = vadd.f32 %v821, %v822
  %v824 = vrot.slane %v823, 2
  %v825 = vadd.f32 %v823, %v824
  %v826 = vrot.slane %v825, 1
  %v827 = vadd.f32 %v825, %v826
  %v828 = vsel %vm204, %v195, 0.0
  %v829 = vrot.slane %v828, 4
  %v830 = vadd.f32 %v828, %v829
  %v831 = vrot.slane %v830, 2
  %v832 = vadd.f32 %v830, %v831
  %v833 = vrot.slane %v832, 1
  %v834 = vadd.f32 %v832, %v833
  %v835 = vsel %vm204, %v196, 0.0
  %v836 = vrot.slane %v835, 4
  %v837 = vadd.f32 %v835, %v836
  %v838 = vrot.slane %v837, 2
  %v839 = vadd.f32 %v837, %v838
  %v840 = vrot.slane %v839, 1
  %v841 = vadd.f32 %v839, %v840
  %v842 = vsel %vm204, %v197, 0.0
  %v843 = vrot.slane %v842, 4
  %v844 = vadd.f32 %v842, %v843
  %v845 = vrot.slane %v844, 2
  %v846 = vadd.f32 %v844, %v845
  %v847 = vrot.slane %v846, 1
  %v848 = vadd.f32 %v846, %v847
  %v849 = vsel %vm204, %v198, 0.0
  %v850 = vrot.slane %v849, 4
  %v851 = vadd.f32 %v849, %v850
  %v852 = vrot.slane %v851, 2
  %v853 = vadd.f32 %v851, %v852
  %v854 = vrot.slane %v853, 1
  %v855 = vadd.f32 %v853, %v854
  %v856 = vsel %vm204, %v199, 0.0
  %v857 = vrot.slane %v856, 4
  %v858 = vadd.f32 %v856, %v857
  %v859 = vrot.slane %v858, 2
  %v860 = vadd.f32 %v858, %v859
  %v861 = vrot.slane %v860, 1
  %v862 = vadd.f32 %v860, %v861
  %v863 = vsel %vm204, %v200, 0.0
  %v864 = vrot.slane %v863, 4
  %v865 = vadd.f32 %v863, %v864
  %v866 = vrot.slane %v865, 2
  %v867 = vadd.f32 %v865, %v866
  %v868 = vrot.slane %v867, 1
  %v869 = vadd.f32 %v867, %v868
  %v870 = vsel %vm204, %v201, 0.0
  %v871 = vrot.slane %v870, 4
  %v872 = vadd.f32 %v870, %v871
  %v873 = vrot.slane %v872, 2
  %v874 = vadd.f32 %v872, %v873
  %v875 = vrot.slane %v874, 1
  %v876 = vadd.f32 %v874, %v875
  %v877 = vsel %vm204, %v202, 0.0
  %v878 = vrot.slane %v877, 4
  %v879 = vadd.f32 %v877, %v878
  %v880 = vrot.slane %v879, 2
  %v881 = vadd.f32 %v879, %v880
  %v882 = vrot.slane %v881, 1
  %v883 = vadd.f32 %v881, %v882
  %v884 = vsel %vm204, %v203, 0.0
  %v885 = vrot.slane %v884, 4
  %v886 = vadd.f32 %v884, %v885
  %v887 = vrot.slane %v886, 2
  %v888 = vadd.f32 %v886, %v887
  %v889 = vrot.slane %v888, 1
  %v890 = vadd.f32 %v888, %v889
  %v891 = vrcp.pop 4.0
  %v892 = vmul.f32 %v211, %v891
  %v893 = vmul.f32 %v218, %v891
  %v894 = vmul.f32 %v225, %v891
  %v895 = vmul.f32 %v232, %v891
  %v896 = vmul.f32 %v239, %v891
  %v897 = vmul.f32 %v246, %v891
  %v898 = vmul.f32 %v253, %v891
  %v899 = vmul.f32 %v260, %v891
  %v900 = vmul.f32 %v267, %v891
  %v901 = vmul.f32 %v274, %v891
  %v902 = vmul.f32 %v281, %v891
  %v903 = vmul.f32 %v288, %v891
  %v904 = vmul.f32 %v295, %v891
  %v905 = vmul.f32 %v302, %v891
  %v906 = vmul.f32 %v309, %v891
  %v907 = vmul.f32 %v316, %v891
  %v908 = vmul.f32 %v323, %v891
  %v909 = vmul.f32 %v330, %v891
  %v910 = vmul.f32 %v337, %v891
  %v911 = vmul.f32 %v344, %v891
  %v912 = vmul.f32 %v351, %v891
  %v913 = vmul.f32 %v358, %v891
  %v914 = vmul.f32 %v365, %v891
  %v915 = vmul.f32 %v372, %v891
  %v916 = vmul.f32 %v379, %v891
  %v917 = vmul.f32 %v386, %v891
  %v918 = vmul.f32 %v393, %v891
  %v919 = vmul.f32 %v400, %v891
  %v920 = vmul.f32 %v407, %v891
  %v921 = vmul.f32 %v414, %v891
  %v922 = vmul.f32 %v421, %v891
  %v923 = vmul.f32 %v428, %v891
  %v924 = vmul.f32 %v435, %v891
  %v925 = vmul.f32 %v442, %v891
  %v926 = vmul.f32 %v449, %v891
  %v927 = vmul.f32 %v456, %v891
  %v928 = vmul.f32 %v463, %v891
  %v929 = vmul.f32 %v470, %v891
  %v930 = vmul.f32 %v477, %v891
  %v931 = vmul.f32 %v484, %v891
  %v932 = vmul.f32 %v491, %v891
  %v933 = vmul.f32 %v498, %v891
  %v934 = vmul.f32 %v505, %v891
  %v935 = vmul.f32 %v512, %v891
  %v936 = vmul.f32 %v519, %v891
  %v937 = vmul.f32 %v526, %v891
  %v938 = vmul.f32 %v533, %v891
  %v939 = vmul.f32 %v540, %v891
  %v940 = vmul.f32 %v547, %v891
  %v941 = vmul.f32 %v554, %v891
  %v942 = vmul.f32 %v561, %v891
  %v943 = vmul.f32 %v568, %v891
  %v944 = vmul.f32 %v575, %v891
  %v945 = vmul.f32 %v582, %v891
  %v946 = vmul.f32 %v589, %v891
  %v947 = vmul.f32 %v596, %v891
  %v948 = vmul.f32 %v603, %v891
  %v949 = vmul.f32 %v610, %v891
  %v950 = vmul.f32 %v617, %v891
  %v951 = vmul.f32 %v624, %v891
  %v952 = vmul.f32 %v631, %v891
  %v953 = vmul.f32 %v638, %v891
  %v954 = vmul.f32 %v645, %v891
  %v955 = vmul.f32 %v652, %v891
  %v956 = vmul.f32 %v659, %v891
  %v957 = vmul.f32 %v666, %v891
  %v958 = vmul.f32 %v673, %v891
  %v959 = vmul.f32 %v680, %v891
  %v960 = vmul.f32 %v687, %v891
  %v961 = vmul.f32 %v694, %v891
  %v962 = vmul.f32 %v701, %v891
  %v963 = vmul.f32 %v708, %v891
  %v964 = vmul.f32 %v715, %v891
  %v965 = vmul.f32 %v722, %v891
  %v966 = vmul.f32 %v729, %v891
  %v967 = vmul.f32 %v736, %v891
  %v968 = vmul.f32 %v743, %v891
  %v969 = vmul.f32 %v750, %v891
  %v970 = vmul.f32 %v757, %v891
  %v971 = vmul.f32 %v764, %v891
  %v972 = vmul.f32 %v771, %v891
  %v973 = vmul.f32 %v778, %v891
  %v974 = vmul.f32 %v785, %v891
  %v975 = vmul.f32 %v792, %v891
  %v976 = vmul.f32 %v799, %v891
  %v977 = vmul.f32 %v806, %v891
  %v978 = vmul.f32 %v813, %v891
  %v979 = vmul.f32 %v820, %v891
  %v980 = vmul.f32 %v827, %v891
  %v981 = vmul.f32 %v834, %v891
  %v982 = vmul.f32 %v841, %v891
  %v983 = vmul.f32 %v848, %v891
  %v984 = vmul.f32 %v855, %v891
  %v985 = vmul.f32 %v862, %v891
  %v986 = vmul.f32 %v869, %v891
  %v987 = vmul.f32 %v876, %v891
  %v988 = vmul.f32 %v883, %v891
  %v989 = vmul.f32 %v890, %v891
  %v990 = vpack.c.bf16 %v892, %v892
  %v991 = vpack.c.bf16 %v893, %v893
  %v992 = vpack.c.bf16 %v894, %v894
  %v993 = vpack.c.bf16 %v895, %v895
  %v994 = vpack.c.bf16 %v896, %v896
  %v995 = vpack.c.bf16 %v897, %v897
  %v996 = vpack.c.bf16 %v898, %v898
  %v997 = vpack.c.bf16 %v899, %v899
  %v998 = vpack.c.bf16 %v900, %v900
  %v999 = vpack.c.bf16 %v901, %v901
  %v1000 = vpack.c.bf16 %v902, %v902
  %v1001 = vpack.c.bf16 %v903, %v903
  %v1002 = vpack.c.bf16 %v904, %v904
  %v1003 = vpack.c.bf16 %v905, %v905
  %v1004 = vpack.c.bf16 %v906, %v906
  %v1005 = vpack.c.bf16 %v907, %v907
  %v1006 = vpack.c.bf16 %v908, %v908
  %v1007 = vpack.c.bf16 %v909, %v909
  %v1008 = vpack.c.bf16 %v910, %v910
  %v1009 = vpack.c.bf16 %v911, %v911
  %v1010 = vpack.c.bf16 %v912, %v912
  %v1011 = vpack.c.bf16 %v913, %v913
  %v1012 = vpack.c.bf16 %v914, %v914
  %v1013 = vpack.c.bf16 %v915, %v915
  %v1014 = vpack.c.bf16 %v916, %v916
  %v1015 = vpack.c.bf16 %v917, %v917
  %v1016 = vpack.c.bf16 %v918, %v918
  %v1017 = vpack.c.bf16 %v919, %v919
  %v1018 = vpack.c.bf16 %v920, %v920
  %v1019 = vpack.c.bf16 %v921, %v921
  %v1020 = vpack.c.bf16 %v922, %v922
  %v1021 = vpack.c.bf16 %v923, %v923
  %v1022 = vpack.c.bf16 %v924, %v924
  %v1023 = vpack.c.bf16 %v925, %v925
  %v1024 = vpack.c.bf16 %v926, %v926
  %v1025 = vpack.c.bf16 %v927, %v927
  %v1026 = vpack.c.bf16 %v928, %v928
  %v1027 = vpack.c.bf16 %v929, %v929
  %v1028 = vpack.c.bf16 %v930, %v930
  %v1029 = vpack.c.bf16 %v931, %v931
  %v1030 = vpack.c.bf16 %v932, %v932
  %v1031 = vpack.c.bf16 %v933, %v933
  %v1032 = vpack.c.bf16 %v934, %v934
  %v1033 = vpack.c.bf16 %v935, %v935
  %v1034 = vpack.c.bf16 %v936, %v936
  %v1035 = vpack.c.bf16 %v937, %v937
  %v1036 = vpack.c.bf16 %v938, %v938
  %v1037 = vpack.c.bf16 %v939, %v939
  %v1038 = vpack.c.bf16 %v940, %v940
  %v1039 = vpack.c.bf16 %v941, %v941
  %v1040 = vpack.c.bf16 %v942, %v942
  %v1041 = vpack.c.bf16 %v943, %v943
  %v1042 = vpack.c.bf16 %v944, %v944
  %v1043 = vpack.c.bf16 %v945, %v945
  %v1044 = vpack.c.bf16 %v946, %v946
  %v1045 = vpack.c.bf16 %v947, %v947
  %v1046 = vpack.c.bf16 %v948, %v948
  %v1047 = vpack.c.bf16 %v949, %v949
  %v1048 = vpack.c.bf16 %v950, %v950
  %v1049 = vpack.c.bf16 %v951, %v951
  %v1050 = vpack.c.bf16 %v952, %v952
  %v1051 = vpack.c.bf16 %v953, %v953
  %v1052 = vpack.c.bf16 %v954, %v954
  %v1053 = vpack.c.bf16 %v955, %v955
  %v1054 = vpack.c.bf16 %v956, %v956
  %v1055 = vpack.c.bf16 %v957, %v957
  %v1056 = vpack.c.bf16 %v958, %v958
  %v1057 = vpack.c.bf16 %v959, %v959
  %v1058 = vpack.c.bf16 %v960, %v960
  %v1059 = vpack.c.bf16 %v961, %v961
  %v1060 = vpack.c.bf16 %v962, %v962
  %v1061 = vpack.c.bf16 %v963, %v963
  %v1062 = vpack.c.bf16 %v964, %v964
  %v1063 = vpack.c.bf16 %v965, %v965
  %v1064 = vpack.c.bf16 %v966, %v966
  %v1065 = vpack.c.bf16 %v967, %v967
  %v1066 = vpack.c.bf16 %v968, %v968
  %v1067 = vpack.c.bf16 %v969, %v969
  %v1068 = vpack.c.bf16 %v970, %v970
  %v1069 = vpack.c.bf16 %v971, %v971
  %v1070 = vpack.c.bf16 %v972, %v972
  %v1071 = vpack.c.bf16 %v973, %v973
  %v1072 = vpack.c.bf16 %v974, %v974
  %v1073 = vpack.c.bf16 %v975, %v975
  %v1074 = vpack.c.bf16 %v976, %v976
  %v1075 = vpack.c.bf16 %v977, %v977
  %v1076 = vpack.c.bf16 %v978, %v978
  %v1077 = vpack.c.bf16 %v979, %v979
  %v1078 = vpack.c.bf16 %v980, %v980
  %v1079 = vpack.c.bf16 %v981, %v981
  %v1080 = vpack.c.bf16 %v982, %v982
  %v1081 = vpack.c.bf16 %v983, %v983
  %v1082 = vpack.c.bf16 %v984, %v984
  %v1083 = vpack.c.bf16 %v985, %v985
  %v1084 = vpack.c.bf16 %v986, %v986
  %v1085 = vpack.c.bf16 %v987, %v987
  %v1086 = vpack.c.bf16 %v988, %v988
  %v1087 = vpack.c.bf16 %v989, %v989
  %v1186 = vunpack.c.l.b16 %v990
  %v1187 = vunpack.c.l.b16 %v991
  %v1188 = vunpack.c.l.b16 %v992
  %v1189 = vunpack.c.l.b16 %v993
  %v1190 = vunpack.c.l.b16 %v994
  %v1191 = vunpack.c.l.b16 %v995
  %v1192 = vunpack.c.l.b16 %v996
  %v1193 = vunpack.c.l.b16 %v997
  %v1194 = vunpack.c.l.b16 %v998
  %v1195 = vunpack.c.l.b16 %v999
  %v1196 = vunpack.c.l.b16 %v1000
  %v1197 = vunpack.c.l.b16 %v1001
  %v1198 = vunpack.c.l.b16 %v1002
  %v1199 = vunpack.c.l.b16 %v1003
  %v1200 = vunpack.c.l.b16 %v1004
  %v1201 = vunpack.c.l.b16 %v1005
  %v1202 = vunpack.c.l.b16 %v1006
  %v1203 = vunpack.c.l.b16 %v1007
  %v1204 = vunpack.c.l.b16 %v1008
  %v1205 = vunpack.c.l.b16 %v1009
  %v1206 = vunpack.c.l.b16 %v1010
  %v1207 = vunpack.c.l.b16 %v1011
  %v1208 = vunpack.c.l.b16 %v1012
  %v1209 = vunpack.c.l.b16 %v1013
  %v1210 = vunpack.c.l.b16 %v1014
  %v1211 = vunpack.c.l.b16 %v1015
  %v1212 = vunpack.c.l.b16 %v1016
  %v1213 = vunpack.c.l.b16 %v1017
  %v1214 = vunpack.c.l.b16 %v1018
  %v1215 = vunpack.c.l.b16 %v1019
  %v1216 = vunpack.c.l.b16 %v1020
  %v1217 = vunpack.c.l.b16 %v1021
  %v1218 = vunpack.c.l.b16 %v1022
  %v1219 = vunpack.c.l.b16 %v1023
  %v1220 = vunpack.c.l.b16 %v1024
  %v1221 = vunpack.c.l.b16 %v1025
  %v1222 = vunpack.c.l.b16 %v1026
  %v1223 = vunpack.c.l.b16 %v1027
  %v1224 = vunpack.c.l.b16 %v1028
  %v1225 = vunpack.c.l.b16 %v1029
  %v1226 = vunpack.c.l.b16 %v1030
  %v1227 = vunpack.c.l.b16 %v1031
  %v1228 = vunpack.c.l.b16 %v1032
  %v1229 = vunpack.c.l.b16 %v1033
  %v1230 = vunpack.c.l.b16 %v1034
  %v1231 = vunpack.c.l.b16 %v1035
  %v1232 = vunpack.c.l.b16 %v1036
  %v1233 = vunpack.c.l.b16 %v1037
  %v1234 = vunpack.c.l.b16 %v1038
  %v1235 = vunpack.c.l.b16 %v1039
  %v1236 = vunpack.c.l.b16 %v1040
  %v1237 = vunpack.c.l.b16 %v1041
  %v1238 = vunpack.c.l.b16 %v1042
  %v1239 = vunpack.c.l.b16 %v1043
  %v1240 = vunpack.c.l.b16 %v1044
  %v1241 = vunpack.c.l.b16 %v1045
  %v1242 = vunpack.c.l.b16 %v1046
  %v1243 = vunpack.c.l.b16 %v1047
  %v1244 = vunpack.c.l.b16 %v1048
  %v1245 = vunpack.c.l.b16 %v1049
  %v1246 = vunpack.c.l.b16 %v1050
  %v1247 = vunpack.c.l.b16 %v1051
  %v1248 = vunpack.c.l.b16 %v1052
  %v1249 = vunpack.c.l.b16 %v1053
  %v1250 = vunpack.c.l.b16 %v1054
  %v1251 = vunpack.c.l.b16 %v1055
  %v1252 = vunpack.c.l.b16 %v1056
  %v1253 = vunpack.c.l.b16 %v1057
  %v1254 = vunpack.c.l.b16 %v1058
  %v1255 = vunpack.c.l.b16 %v1059
  %v1256 = vunpack.c.l.b16 %v1060
  %v1257 = vunpack.c.l.b16 %v1061
  %v1258 = vunpack.c.l.b16 %v1062
  %v1259 = vunpack.c.l.b16 %v1063
  %v1260 = vunpack.c.l.b16 %v1064
  %v1261 = vunpack.c.l.b16 %v1065
  %v1262 = vunpack.c.l.b16 %v1066
  %v1263 = vunpack.c.l.b16 %v1067
  %v1264 = vunpack.c.l.b16 %v1068
  %v1265 = vunpack.c.l.b16 %v1069
  %v1266 = vunpack.c.l.b16 %v1070
  %v1267 = vunpack.c.l.b16 %v1071
  %v1268 = vunpack.c.l.b16 %v1072
  %v1269 = vunpack.c.l.b16 %v1073
  %v1270 = vunpack.c.l.b16 %v1074
  %v1271 = vunpack.c.l.b16 %v1075
  %v1272 = vunpack.c.l.b16 %v1076
  %v1273 = vunpack.c.l.b16 %v1077
  %v1274 = vunpack.c.l.b16 %v1078
  %v1275 = vunpack.c.l.b16 %v1079
  %v1276 = vunpack.c.l.b16 %v1080
  %v1277 = vunpack.c.l.b16 %v1081
  %v1278 = vunpack.c.l.b16 %v1082
  %v1279 = vunpack.c.l.b16 %v1083
  %v1280 = vunpack.c.l.b16 %v1084
  %v1281 = vunpack.c.l.b16 %v1085
  %v1282 = vunpack.c.l.b16 %v1086
  %v1283 = vunpack.c.l.b16 %v1087
  %v1284 = vpack.c.b16 %v1186, %v1186
  %v1285 = vpack.c.b16 %v1187, %v1187
  %v1286 = vpack.c.b16 %v1188, %v1188
  %v1287 = vpack.c.b16 %v1189, %v1189
  %v1288 = vpack.c.b16 %v1190, %v1190
  %v1289 = vpack.c.b16 %v1191, %v1191
  %v1290 = vpack.c.b16 %v1192, %v1192
  %v1291 = vpack.c.b16 %v1193, %v1193
  %v1292 = vpack.c.b16 %v1194, %v1194
  %v1293 = vpack.c.b16 %v1195, %v1195
  %v1294 = vpack.c.b16 %v1196, %v1196
  %v1295 = vpack.c.b16 %v1197, %v1197
  %v1296 = vpack.c.b16 %v1198, %v1198
  %v1297 = vpack.c.b16 %v1199, %v1199
  %v1298 = vpack.c.b16 %v1200, %v1200
  %v1299 = vpack.c.b16 %v1201, %v1201
  %v1300 = vpack.c.b16 %v1202, %v1202
  %v1301 = vpack.c.b16 %v1203, %v1203
  %v1302 = vpack.c.b16 %v1204, %v1204
  %v1303 = vpack.c.b16 %v1205, %v1205
  %v1304 = vpack.c.b16 %v1206, %v1206
  %v1305 = vpack.c.b16 %v1207, %v1207
  %v1306 = vpack.c.b16 %v1208, %v1208
  %v1307 = vpack.c.b16 %v1209, %v1209
  %v1308 = vpack.c.b16 %v1210, %v1210
  %v1309 = vpack.c.b16 %v1211, %v1211
  %v1310 = vpack.c.b16 %v1212, %v1212
  %v1311 = vpack.c.b16 %v1213, %v1213
  %v1312 = vpack.c.b16 %v1214, %v1214
  %v1313 = vpack.c.b16 %v1215, %v1215
  %v1314 = vpack.c.b16 %v1216, %v1216
  %v1315 = vpack.c.b16 %v1217, %v1217
  %v1316 = vpack.c.b16 %v1218, %v1218
  %v1317 = vpack.c.b16 %v1219, %v1219
  %v1318 = vpack.c.b16 %v1220, %v1220
  %v1319 = vpack.c.b16 %v1221, %v1221
  %v1320 = vpack.c.b16 %v1222, %v1222
  %v1321 = vpack.c.b16 %v1223, %v1223
  %v1322 = vpack.c.b16 %v1224, %v1224
  %v1323 = vpack.c.b16 %v1225, %v1225
  %v1324 = vpack.c.b16 %v1226, %v1226
  %v1325 = vpack.c.b16 %v1227, %v1227
  %v1326 = vpack.c.b16 %v1228, %v1228
  %v1327 = vpack.c.b16 %v1229, %v1229
  %v1328 = vpack.c.b16 %v1230, %v1230
  %v1329 = vpack.c.b16 %v1231, %v1231
  %v1330 = vpack.c.b16 %v1232, %v1232
  %v1331 = vpack.c.b16 %v1233, %v1233
  %v1332 = vpack.c.b16 %v1234, %v1234
  %v1333 = vpack.c.b16 %v1235, %v1235
  %v1334 = vpack.c.b16 %v1236, %v1236
  %v1335 = vpack.c.b16 %v1237, %v1237
  %v1336 = vpack.c.b16 %v1238, %v1238
  %v1337 = vpack.c.b16 %v1239, %v1239
  %v1338 = vpack.c.b16 %v1240, %v1240
  %v1339 = vpack.c.b16 %v1241, %v1241
  %v1340 = vpack.c.b16 %v1242, %v1242
  %v1341 = vpack.c.b16 %v1243, %v1243
  %v1342 = vpack.c.b16 %v1244, %v1244
  %v1343 = vpack.c.b16 %v1245, %v1245
  %v1344 = vpack.c.b16 %v1246, %v1246
  %v1345 = vpack.c.b16 %v1247, %v1247
  %v1346 = vpack.c.b16 %v1248, %v1248
  %v1347 = vpack.c.b16 %v1249, %v1249
  %v1348 = vpack.c.b16 %v1250, %v1250
  %v1349 = vpack.c.b16 %v1251, %v1251
  %v1350 = vpack.c.b16 %v1252, %v1252
  %v1351 = vpack.c.b16 %v1253, %v1253
  %v1352 = vpack.c.b16 %v1254, %v1254
  %v1353 = vpack.c.b16 %v1255, %v1255
  %v1354 = vpack.c.b16 %v1256, %v1256
  %v1355 = vpack.c.b16 %v1257, %v1257
  %v1356 = vpack.c.b16 %v1258, %v1258
  %v1357 = vpack.c.b16 %v1259, %v1259
  %v1358 = vpack.c.b16 %v1260, %v1260
  %v1359 = vpack.c.b16 %v1261, %v1261
  %v1360 = vpack.c.b16 %v1262, %v1262
  %v1361 = vpack.c.b16 %v1263, %v1263
  %v1362 = vpack.c.b16 %v1264, %v1264
  %v1363 = vpack.c.b16 %v1265, %v1265
  %v1364 = vpack.c.b16 %v1266, %v1266
  %v1365 = vpack.c.b16 %v1267, %v1267
  %v1366 = vpack.c.b16 %v1268, %v1268
  %v1367 = vpack.c.b16 %v1269, %v1269
  %v1368 = vpack.c.b16 %v1270, %v1270
  %v1369 = vpack.c.b16 %v1271, %v1271
  %v1370 = vpack.c.b16 %v1272, %v1272
  %v1371 = vpack.c.b16 %v1273, %v1273
  %v1372 = vpack.c.b16 %v1274, %v1274
  %v1373 = vpack.c.b16 %v1275, %v1275
  %v1374 = vpack.c.b16 %v1276, %v1276
  %v1375 = vpack.c.b16 %v1277, %v1277
  %v1376 = vpack.c.b16 %v1278, %v1278
  %v1377 = vpack.c.b16 %v1279, %v1279
  %v1378 = vpack.c.b16 %v1280, %v1280
  %v1379 = vpack.c.b16 %v1281, %v1281
  %v1380 = vpack.c.b16 %v1282, %v1282
  %v1381 = vpack.c.b16 %v1283, %v1283
  %v1382 = vunpack.c.l.b16 %v1284
  %v1383 = vunpack.c.l.b16 %v1285
  %v1384 = vunpack.c.l.b16 %v1286
  %v1385 = vunpack.c.l.b16 %v1287
  %v1386 = vunpack.c.l.b16 %v1288
  %v1387 = vunpack.c.l.b16 %v1289
  %v1388 = vunpack.c.l.b16 %v1290
  %v1389 = vunpack.c.l.b16 %v1291
  %v1390 = vunpack.c.l.b16 %v1292
  %v1391 = vunpack.c.l.b16 %v1293
  %v1392 = vunpack.c.l.b16 %v1294
  %v1393 = vunpack.c.l.b16 %v1295
  %v1394 = vunpack.c.l.b16 %v1296
  %v1395 = vunpack.c.l.b16 %v1297
  %v1396 = vunpack.c.l.b16 %v1298
  %v1397 = vunpack.c.l.b16 %v1299
  %v1398 = vunpack.c.l.b16 %v1300
  %v1399 = vunpack.c.l.b16 %v1301
  %v1400 = vunpack.c.l.b16 %v1302
  %v1401 = vunpack.c.l.b16 %v1303
  %v1402 = vunpack.c.l.b16 %v1304
  %v1403 = vunpack.c.l.b16 %v1305
  %v1404 = vunpack.c.l.b16 %v1306
  %v1405 = vunpack.c.l.b16 %v1307
  %v1406 = vunpack.c.l.b16 %v1308
  %v1407 = vunpack.c.l.b16 %v1309
  %v1408 = vunpack.c.l.b16 %v1310
  %v1409 = vunpack.c.l.b16 %v1311
  %v1410 = vunpack.c.l.b16 %v1312
  %v1411 = vunpack.c.l.b16 %v1313
  %v1412 = vunpack.c.l.b16 %v1314
  %v1413 = vunpack.c.l.b16 %v1315
  %v1414 = vunpack.c.l.b16 %v1316
  %v1415 = vunpack.c.l.b16 %v1317
  %v1416 = vunpack.c.l.b16 %v1318
  %v1417 = vunpack.c.l.b16 %v1319
  %v1418 = vunpack.c.l.b16 %v1320
  %v1419 = vunpack.c.l.b16 %v1321
  %v1420 = vunpack.c.l.b16 %v1322
  %v1421 = vunpack.c.l.b16 %v1323
  %v1422 = vunpack.c.l.b16 %v1324
  %v1423 = vunpack.c.l.b16 %v1325
  %v1424 = vunpack.c.l.b16 %v1326
  %v1425 = vunpack.c.l.b16 %v1327
  %v1426 = vunpack.c.l.b16 %v1328
  %v1427 = vunpack.c.l.b16 %v1329
  %v1428 = vunpack.c.l.b16 %v1330
  %v1429 = vunpack.c.l.b16 %v1331
  %v1430 = vunpack.c.l.b16 %v1332
  %v1431 = vunpack.c.l.b16 %v1333
  %v1432 = vunpack.c.l.b16 %v1334
  %v1433 = vunpack.c.l.b16 %v1335
  %v1434 = vunpack.c.l.b16 %v1336
  %v1435 = vunpack.c.l.b16 %v1337
  %v1436 = vunpack.c.l.b16 %v1338
  %v1437 = vunpack.c.l.b16 %v1339
  %v1438 = vunpack.c.l.b16 %v1340
  %v1439 = vunpack.c.l.b16 %v1341
  %v1440 = vunpack.c.l.b16 %v1342
  %v1441 = vunpack.c.l.b16 %v1343
  %v1442 = vunpack.c.l.b16 %v1344
  %v1443 = vunpack.c.l.b16 %v1345
  %v1444 = vunpack.c.l.b16 %v1346
  %v1445 = vunpack.c.l.b16 %v1347
  %v1446 = vunpack.c.l.b16 %v1348
  %v1447 = vunpack.c.l.b16 %v1349
  %v1448 = vunpack.c.l.b16 %v1350
  %v1449 = vunpack.c.l.b16 %v1351
  %v1450 = vunpack.c.l.b16 %v1352
  %v1451 = vunpack.c.l.b16 %v1353
  %v1452 = vunpack.c.l.b16 %v1354
  %v1453 = vunpack.c.l.b16 %v1355
  %v1454 = vunpack.c.l.b16 %v1356
  %v1455 = vunpack.c.l.b16 %v1357
  %v1456 = vunpack.c.l.b16 %v1358
  %v1457 = vunpack.c.l.b16 %v1359
  %v1458 = vunpack.c.l.b16 %v1360
  %v1459 = vunpack.c.l.b16 %v1361
  %v1460 = vunpack.c.l.b16 %v1362
  %v1461 = vunpack.c.l.b16 %v1363
  %v1462 = vunpack.c.l.b16 %v1364
  %v1463 = vunpack.c.l.b16 %v1365
  %v1464 = vunpack.c.l.b16 %v1366
  %v1465 = vunpack.c.l.b16 %v1367
  %v1466 = vunpack.c.l.b16 %v1368
  %v1467 = vunpack.c.l.b16 %v1369
  %v1468 = vunpack.c.l.b16 %v1370
  %v1469 = vunpack.c.l.b16 %v1371
  %v1470 = vunpack.c.l.b16 %v1372
  %v1471 = vunpack.c.l.b16 %v1373
  %v1472 = vunpack.c.l.b16 %v1374
  %v1473 = vunpack.c.l.b16 %v1375
  %v1474 = vunpack.c.l.b16 %v1376
  %v1475 = vunpack.c.l.b16 %v1377
  %v1476 = vunpack.c.l.b16 %v1378
  %v1477 = vunpack.c.l.b16 %v1379
  %v1478 = vunpack.c.l.b16 %v1380
  %v1479 = vunpack.c.l.b16 %v1381
  %vm1480 = vcmask 1041409
  %v1481 = vsel %vm1480, %v1383, %v1382
  %vm1482 = vcmask 1042434
  %v1483 = vsel %vm1482, %v1384, %v1481
  %vm1484 = vcmask 1043459
  %v1485 = vsel %vm1484, %v1385, %v1483
  %vm1486 = vcmask 1044484
  %v1487 = vsel %vm1486, %v1386, %v1485
  %vm1488 = vcmask 1045509
  %v1489 = vsel %vm1488, %v1387, %v1487
  %vm1490 = vcmask 1046534
  %v1491 = vsel %vm1490, %v1388, %v1489
  %vm1492 = vcmask 1047559
  %v1493 = vsel %vm1492, %v1389, %v1491
  %v1494 = vsel %vm1480, %v1391, %v1390
  %v1495 = vsel %vm1482, %v1392, %v1494
  %v1496 = vsel %vm1484, %v1393, %v1495
  %v1497 = vsel %vm1486, %v1394, %v1496
  %v1498 = vsel %vm1488, %v1395, %v1497
  %v1499 = vsel %vm1490, %v1396, %v1498
  %v1500 = vsel %vm1492, %v1397, %v1499
  %v1501 = vsel %vm1480, %v1399, %v1398
  %v1502 = vsel %vm1482, %v1400, %v1501
  %v1503 = vsel %vm1484, %v1401, %v1502
  %v1504 = vsel %vm1486, %v1402, %v1503
  %v1505 = vsel %vm1488, %v1403, %v1504
  %v1506 = vsel %vm1490, %v1404, %v1505
  %v1507 = vsel %vm1492, %v1405, %v1506
  %v1508 = vsel %vm1480, %v1407, %v1406
  %v1509 = vsel %vm1482, %v1408, %v1508
  %v1510 = vsel %vm1484, %v1409, %v1509
  %v1511 = vsel %vm1486, %v1410, %v1510
  %v1512 = vsel %vm1488, %v1411, %v1511
  %v1513 = vsel %vm1490, %v1412, %v1512
  %v1514 = vsel %vm1492, %v1413, %v1513
  %v1515 = vsel %vm1480, %v1415, %v1414
  %v1516 = vsel %vm1482, %v1416, %v1515
  %v1517 = vsel %vm1484, %v1417, %v1516
  %v1518 = vsel %vm1486, %v1418, %v1517
  %v1519 = vsel %vm1488, %v1419, %v1518
  %v1520 = vsel %vm1490, %v1420, %v1519
  %v1521 = vsel %vm1492, %v1421, %v1520
  %v1522 = vsel %vm1480, %v1423, %v1422
  %v1523 = vsel %vm1482, %v1424, %v1522
  %v1524 = vsel %vm1484, %v1425, %v1523
  %v1525 = vsel %vm1486, %v1426, %v1524
  %v1526 = vsel %vm1488, %v1427, %v1525
  %v1527 = vsel %vm1490, %v1428, %v1526
  %v1528 = vsel %vm1492, %v1429, %v1527
  %v1529 = vsel %vm1480, %v1431, %v1430
  %v1530 = vsel %vm1482, %v1432, %v1529
  %v1531 = vsel %vm1484, %v1433, %v1530
  %v1532 = vsel %vm1486, %v1434, %v1531
  %v1533 = vsel %vm1488, %v1435, %v1532
  %v1534 = vsel %vm1490, %v1436, %v1533
  %v1535 = vsel %vm1492, %v1437, %v1534
  %v1536 = vsel %vm1480, %v1439, %v1438
  %v1537 = vsel %vm1482, %v1440, %v1536
  %v1538 = vsel %vm1484, %v1441, %v1537
  %v1539 = vsel %vm1486, %v1442, %v1538
  %v1540 = vsel %vm1488, %v1443, %v1539
  %v1541 = vsel %vm1490, %v1444, %v1540
  %v1542 = vsel %vm1492, %v1445, %v1541
  %v1543 = vsel %vm1480, %v1447, %v1446
  %v1544 = vsel %vm1482, %v1448, %v1543
  %v1545 = vsel %vm1484, %v1449, %v1544
  %v1546 = vsel %vm1486, %v1450, %v1545
  %v1547 = vsel %vm1488, %v1451, %v1546
  %v1548 = vsel %vm1490, %v1452, %v1547
  %v1549 = vsel %vm1492, %v1453, %v1548
  %v1550 = vsel %vm1480, %v1455, %v1454
  %v1551 = vsel %vm1482, %v1456, %v1550
  %v1552 = vsel %vm1484, %v1457, %v1551
  %v1553 = vsel %vm1486, %v1458, %v1552
  %v1554 = vsel %vm1488, %v1459, %v1553
  %v1555 = vsel %vm1490, %v1460, %v1554
  %v1556 = vsel %vm1492, %v1461, %v1555
  %v1557 = vsel %vm1480, %v1463, %v1462
  %v1558 = vsel %vm1482, %v1464, %v1557
  %v1559 = vsel %vm1484, %v1465, %v1558
  %v1560 = vsel %vm1486, %v1466, %v1559
  %v1561 = vsel %vm1488, %v1467, %v1560
  %v1562 = vsel %vm1490, %v1468, %v1561
  %v1563 = vsel %vm1492, %v1469, %v1562
  %v1564 = vsel %vm1480, %v1471, %v1470
  %v1565 = vsel %vm1482, %v1472, %v1564
  %v1566 = vsel %vm1484, %v1473, %v1565
  %v1567 = vsel %vm1486, %v1474, %v1566
  %v1568 = vsel %vm1488, %v1475, %v1567
  %v1569 = vsel %vm1490, %v1476, %v1568
  %v1570 = vsel %vm1492, %v1477, %v1569
  %v1571 = vsel %vm1480, %v1479, %v1478
  %v1572 = vpack.c.b16 %v1493, %v1493
  %v1573 = vpack.c.b16 %v1500, %v1500
  %v1574 = vpack.c.b16 %v1507, %v1507
  %v1575 = vpack.c.b16 %v1514, %v1514
  %v1576 = vpack.c.b16 %v1521, %v1521
  %v1577 = vpack.c.b16 %v1528, %v1528
  %v1578 = vpack.c.b16 %v1535, %v1535
  %v1579 = vpack.c.b16 %v1542, %v1542
  %v1580 = vpack.c.b16 %v1549, %v1549
  %v1581 = vpack.c.b16 %v1556, %v1556
  %v1582 = vpack.c.b16 %v1563, %v1563
  %v1583 = vpack.c.b16 %v1570, %v1570
  %v1584 = vpack.c.b16 %v1571, %v1571
  %1598 = vst.msk [vmem:[%s1] sm:$0xf] %vm204, %v1572
  %1599 = vst.msk [vmem:[%s1 + $0x4] sm:$0xf] %vm204, %v1573
  %1600 = vst.msk [vmem:[%s1 + $0x8] sm:$0xf] %vm204, %v1574
  %1601 = vst.msk [vmem:[%s1 + $0xc] sm:$0xf] %vm204, %v1575
  %1602 = vst.msk [vmem:[%s1 + $0x10] sm:$0xf] %vm204, %v1576
  %1603 = vst.msk [vmem:[%s1 + $0x14] sm:$0xf] %vm204, %v1577
  %1604 = vst.msk [vmem:[%s1 + $0x18] sm:$0xf] %vm204, %v1578
  %1605 = vst.msk [vmem:[%s1 + $0x1c] sm:$0xf] %vm204, %v1579
  %1606 = vst.msk [vmem:[%s1 + $0x20] sm:$0xf] %vm204, %v1580
  %1607 = vst.msk [vmem:[%s1 + $0x24] sm:$0xf] %vm204, %v1581
  %1608 = vst.msk [vmem:[%s1 + $0x28] sm:$0xf] %vm204, %v1582
  %1609 = vst.msk [vmem:[%s1 + $0x2c] sm:$0xf] %vm204, %v1583
  %vm1610 = vcmask 253952
  %1611 = vst.msk [vmem:[%s1 + $0x30] sm:$0x1] %vm1610, %v1584
  // Predicated region
  $region6: #{_lambda_.41} parent=0 // pred_check
    _
  $region7: #{_lambda_.41} parent=0 // pred_check_branch
    %1613 = sbr.rel (0) target = $region9
  $region8: #{_lambda_.41} parent=0 // pred_region
    _
  $region9: #{_lambda_.41} parent=0 // pred_fallthru
    _
  // Predicated region
  $region10: #{_lambda_.41} parent=0 // pred_check
    _
  $region11: #{_lambda_.41} parent=0 // pred_check_branch
    %1615 = sbr.rel (0) target = $region13
  $region12: #{_lambda_.41} parent=0 // pred_region
    _
  $region13: #{_lambda_.41} parent=0 // pred_fallthru
    _

// kernel: _lambda_.42
$region0: #{_lambda_.42}
  #allocation0 [shape = 'u32[]', space=smem, size = 0x4, offset = 0x4, fixed_abs, tag = 'smem constant byte address 0x4 - core index']
  #allocation1 [shape = 'u32[144,128]{1,0:T(1,128)}', space=vmem, size = 0x12000, scoped, tag = 'internal scratch']
  %s0 = inlined_call_operand.vmem [shape: bf16[32,288], index: 0, kind: input, shape index: {}]
  %s1 = inlined_call_operand.vmem [shape: bf16[288,48], index: 1, kind: input, shape index: {}]
  %s2 = inlined_call_operand.vmem [shape: f32[1,48], index: 2, kind: input, shape index: {}]
  %s3 = inlined_call_operand.vmem [shape: bf16[32,48], index: 3, kind: output, shape index: {}]
  %s4 = sld [smem:[#allocation0]]
  $region22: #{_lambda_.42} parent=0
    _
  %s6 = ssub.s32 1, %s4
  %s7 = scalar_select 0, %s6, %s4
  // Predicated region
  $region2: #{_lambda_.42} parent=0 // pred_check
    _
  $region3: #{_lambda_.42} parent=0 // pred_check_branch
    %9 = sbr.rel (0) target = $region5
  $region4: #{_lambda_.42} parent=0 // pred_region
    _
  $region5: #{_lambda_.42} parent=0 // pred_fallthru
    _
  // Predicated region
  $region6: #{_lambda_.42} parent=0 // pred_check
    _
  $region7: #{_lambda_.42} parent=0 // pred_check_branch
    %11 = sbr.rel (0) target = $region9
  $region8: #{_lambda_.42} parent=0 // pred_region
    _
  $region9: #{_lambda_.42} parent=0 // pred_fallthru
    _
  // Predicated region
  $region10: #{_lambda_.42} parent=0 // pred_check
    _
  $region11: #{_lambda_.42} parent=0 // pred_check_branch
    %13 = sbr.rel (0) target = $region13
  $region12: #{_lambda_.42} parent=0 // pred_region
    _
  $region13: #{_lambda_.42} parent=0 // pred_fallthru
    _
  %v15 = vld [vmem:[%s0] sm:$0xff]
  %v16 = vld [vmem:[%s0 + $0x8] sm:$0xf]
  %v17 = vld [vmem:[%s0 + $0xc] sm:$0xff]
  %v18 = vld [vmem:[%s0 + $0x14] sm:$0xf]
  %v19 = vld [vmem:[%s0 + $0x18] sm:$0xff]
  %v20 = vld [vmem:[%s0 + $0x20] sm:$0xf]
  %v21 = vld [vmem:[%s0 + $0x24] sm:$0xff]
  %v22 = vld [vmem:[%s0 + $0x2c] sm:$0xf]
  %v23 = vld [vmem:[%s1] sm:$0xf]
  %v24 = vld [vmem:[%s1 + $0x4] sm:$0xf]
  %v25 = vld [vmem:[%s1 + $0x8] sm:$0xf]
  %v26 = vld [vmem:[%s1 + $0xc] sm:$0xf]
  %v27 = vld [vmem:[%s1 + $0x10] sm:$0xf]
  %v28 = vld [vmem:[%s1 + $0x14] sm:$0xf]
  %v29 = vld [vmem:[%s1 + $0x18] sm:$0xf]
  %v30 = vld [vmem:[%s1 + $0x1c] sm:$0xf]
  %v31 = vld [vmem:[%s1 + $0x20] sm:$0xf]
  %v32 = vld [vmem:[%s1 + $0x24] sm:$0xf]
  %v33 = vld [vmem:[%s1 + $0x28] sm:$0xf]
  %v34 = vld [vmem:[%s1 + $0x2c] sm:$0xf]
  %v35 = vld [vmem:[%s1 + $0x30] sm:$0xf]
  %v36 = vld [vmem:[%s1 + $0x34] sm:$0xf]
  %v37 = vld [vmem:[%s1 + $0x38] sm:$0xf]
  %v38 = vld [vmem:[%s1 + $0x3c] sm:$0xf]
  %v39 = vld [vmem:[%s1 + $0x40] sm:$0xf]
  %v40 = vld [vmem:[%s1 + $0x44] sm:$0xf]
  %v41 = vld [vmem:[%s1 + $0x48] sm:$0xf]
  %v42 = vld [vmem:[%s1 + $0x4c] sm:$0xf]
  %v43 = vld [vmem:[%s1 + $0x50] sm:$0xf]
  %v44 = vld [vmem:[%s1 + $0x54] sm:$0xf]
  %v45 = vld [vmem:[%s1 + $0x58] sm:$0xf]
  %v46 = vld [vmem:[%s1 + $0x5c] sm:$0xf]
  %v47 = vld [vmem:[%s1 + $0x60] sm:$0xf]
  %v48 = vld [vmem:[%s1 + $0x64] sm:$0xf]
  %v49 = vld [vmem:[%s1 + $0x68] sm:$0xf]
  %v50 = vld [vmem:[%s1 + $0x6c] sm:$0xf]
  %v51 = vld [vmem:[%s1 + $0x70] sm:$0xf]
  %v52 = vld [vmem:[%s1 + $0x74] sm:$0xf]
  %v53 = vld [vmem:[%s1 + $0x78] sm:$0xf]
  %v54 = vld [vmem:[%s1 + $0x7c] sm:$0xf]
  %v55 = vld [vmem:[%s1 + $0x80] sm:$0xf]
  %v56 = vld [vmem:[%s1 + $0x84] sm:$0xf]
  %v57 = vld [vmem:[%s1 + $0x88] sm:$0xf]
  %v58 = vld [vmem:[%s1 + $0x8c] sm:$0xf]
  %v59 = vld [vmem:[%s2] sm:$0x1]
  %v61 = vlaneseq
  %v62 = vshrl.u32 %v61, 7
  %v63 = vsub.s32 0, %v62
  %v64 = vrot.slane %v59, %v63
  %v74 = vunpack.c.l.b16 %v15
  %v75 = vunpack.c.h.b16 %v15
  %v76 = vunpack.c.l.b16 %v16
  %v77 = vunpack.c.l.b16 %v17
  %v78 = vunpack.c.h.b16 %v17
  %v79 = vunpack.c.l.b16 %v18
  %v80 = vunpack.c.l.b16 %v19
  %v81 = vunpack.c.h.b16 %v19
  %v82 = vunpack.c.l.b16 %v20
  %v83 = vunpack.c.l.b16 %v21
  %v84 = vunpack.c.h.b16 %v21
  %v85 = vunpack.c.l.b16 %v22
  %v86 = vpack.c.b16 %v77, %v74
  %v87 = vpack.c.b16 %v78, %v75
  %v88 = vpack.c.b16 %v79, %v76
  %v89 = vpack.c.b16 %v83, %v80
  %v90 = vpack.c.b16 %v84, %v81
  %v91 = vpack.c.b16 %v85, %v82
  %v132 = vunpack.c.l.b16 %v23
  %v133 = vunpack.c.l.b16 %v24
  %v134 = vunpack.c.l.b16 %v25
  %v135 = vunpack.c.l.b16 %v26
  %v136 = vunpack.c.l.b16 %v27
  %v137 = vunpack.c.l.b16 %v28
  %v138 = vunpack.c.l.b16 %v29
  %v139 = vunpack.c.l.b16 %v30
  %v140 = vunpack.c.l.b16 %v31
  %v141 = vunpack.c.l.b16 %v32
  %v142 = vunpack.c.l.b16 %v33
  %v143 = vunpack.c.l.b16 %v34
  %v144 = vunpack.c.l.b16 %v35
  %v145 = vunpack.c.l.b16 %v36
  %v146 = vunpack.c.l.b16 %v37
  %v147 = vunpack.c.l.b16 %v38
  %v148 = vunpack.c.l.b16 %v39
  %v149 = vunpack.c.l.b16 %v40
  %v150 = vunpack.c.l.b16 %v41
  %v151 = vunpack.c.l.b16 %v42
  %v152 = vunpack.c.l.b16 %v43
  %v153 = vunpack.c.l.b16 %v44
  %v154 = vunpack.c.l.b16 %v45
  %v155 = vunpack.c.l.b16 %v46
  %v156 = vunpack.c.l.b16 %v47
  %v157 = vunpack.c.l.b16 %v48
  %v158 = vunpack.c.l.b16 %v49
  %v159 = vunpack.c.l.b16 %v50
  %v160 = vunpack.c.l.b16 %v51
  %v161 = vunpack.c.l.b16 %v52
  %v162 = vunpack.c.l.b16 %v53
  %v163 = vunpack.c.l.b16 %v54
  %v164 = vunpack.c.l.b16 %v55
  %v165 = vunpack.c.l.b16 %v56
  %v166 = vunpack.c.l.b16 %v57
  %v167 = vunpack.c.l.b16 %v58
  %v168 = vpack.c.b16 %v133, %v132
  %v169 = vpack.c.b16 %v135, %v134
  %v170 = vpack.c.b16 %v137, %v136
  %v171 = vpack.c.b16 %v139, %v138
  %v172 = vpack.c.b16 %v141, %v140
  %v173 = vpack.c.b16 %v143, %v142
  %v174 = vpack.c.b16 %v145, %v144
  %v175 = vpack.c.b16 %v147, %v146
  %v176 = vpack.c.b16 %v149, %v148
  %v177 = vpack.c.b16 %v151, %v150
  %v178 = vpack.c.b16 %v153, %v152
  %v179 = vpack.c.b16 %v155, %v154
  %v180 = vpack.c.b16 %v157, %v156
  %v181 = vpack.c.b16 %v159, %v158
  %v182 = vpack.c.b16 %v161, %v160
  %v183 = vpack.c.b16 %v163, %v162
  %v184 = vpack.c.b16 %v165, %v164
  %v185 = vpack.c.b16 %v167, %v166
  %vm204 = vcmask 261120
  %v206 = vsel %vm204, %v88, 0
  %v209 = vsel %vm204, %v91, 0
  %211 = vmatprep.subr.bf16.mxu0 0
  %212 = vmatpush1.bf16.msra.mxu0 %v175
  %213 = vmatprep.subr.bf16.mxu0 0
  %214 = vmatpush1.bf16.msra.mxu0 %v174
  %215 = vmatprep.subr.bf16.mxu0 0
  %216 = vmatpush1.bf16.msra.mxu0 %v173
  %217 = vmatprep.subr.bf16.mxu0 0
  %218 = vmatpush1.bf16.msra.mxu0 %v172
  %219 = vmatprep.subr.bf16.mxu0 0
  %220 = vmatpush1.bf16.msra.mxu0 %v171
  %221 = vmatprep.subr.bf16.mxu0 0
  %222 = vmatpush1.bf16.msra.mxu0 %v170
  %223 = vmatprep.subr.bf16.mxu0 0
  %224 = vmatpush1.bf16.msra.mxu0 %v169
  %225 = vmatprep.subr.bf16.mxu0 0
  %226 = vmatpush1.bf16.msra.mxu0 %v168
  %227 = vmatprep.subr.bf16.mxu0 0
  %228 = vmatpush2.bf16.msra.mxu0 %v183
  %229 = vmatprep.subr.bf16.mxu0 0
  %230 = vmatpush2.bf16.msra.mxu0 %v182
  %231 = vmatprep.subr.bf16.mxu0 0
  %232 = vmatpush2.bf16.msra.mxu0 %v181
  %233 = vmatprep.subr.bf16.mxu0 0
  %234 = vmatpush2.bf16.msra.mxu0 %v180
  %235 = vmatprep.subr.bf16.mxu0 0
  %236 = vmatpush2.bf16.msra.mxu0 %v179
  %237 = vmatprep.subr.bf16.mxu0 0
  %238 = vmatpush2.bf16.msra.mxu0 %v178
  %239 = vmatprep.subr.bf16.mxu0 0
  %240 = vmatpush2.bf16.msra.mxu0 %v177
  %241 = vmatprep.subr.bf16.mxu0 0
  %242 = vmatpush2.bf16.msra.mxu0 %v176
  %243 = vmatprep.mubr.bf16.mxu0 %v87
  %244 = vmatmul.mubr.bf16.gmra.mxu0 %v86
  %v245 = vpop.f32.mrf.mxu0
  %v246 = vadd.f32 %v64, %v245
  %v247 = vpop.f32.mrf.mxu0
  %v248 = vpop.f32.mrf.mxu0
  %v249 = vadd.f32 %v64, %v248
  %v250 = vpop.f32.mrf.mxu0
  %251 = vmatprep.mubr.bf16.mxu0 %v90
  %252 = vmatmul.mubr.bf16.gmra.mxu0 %v89
  %v253 = vpop.f32.mrf.mxu0
  %v254 = vadd.f32 %v64, %v253
  %v255 = vpop.f32.mrf.mxu0
  %v256 = vpop.f32.mrf.mxu0
  %v257 = vadd.f32 %v64, %v256
  %v258 = vpop.f32.mrf.mxu0
  %259 = vdwg.mxu0
  %260 = vmatprep.subr.bf16.mxu0 0
  %261 = vmatpush1.bf16.msra.mxu0 0
  %262 = vmatprep.subr.bf16.mxu0 0
  %263 = vmatpush1.bf16.msra.mxu0 0
  %264 = vmatprep.subr.bf16.mxu0 0
  %265 = vmatpush1.bf16.msra.mxu0 0
  %266 = vmatprep.subr.bf16.mxu0 0
  %267 = vmatpush1.bf16.msra.mxu0 0
  %268 = vmatprep.subr.bf16.mxu0 0
  %269 = vmatpush1.bf16.msra.mxu0 0
  %270 = vmatprep.subr.bf16.mxu0 0
  %271 = vmatpush1.bf16.msra.mxu0 0
  %272 = vmatprep.subr.bf16.mxu0 0
  %273 = vmatpush1.bf16.msra.mxu0 %v185
  %274 = vmatprep.subr.bf16.mxu0 0
  %275 = vmatpush1.bf16.msra.mxu0 %v184
  %276 = vmatprep.subr.bf16.mxu0 0
  %277 = vmatpush2.bf16.msra.mxu0 0
  %278 = vmatprep.subr.bf16.mxu0 0
  %279 = vmatpush2.bf16.msra.mxu0 0
  %280 = vmatprep.subr.bf16.mxu0 0
  %281 = vmatpush2.bf16.msra.mxu0 0
  %282 = vmatprep.subr.bf16.mxu0 0
  %283 = vmatpush2.bf16.msra.mxu0 0
  %284 = vmatprep.subr.bf16.mxu0 0
  %285 = vmatpush2.bf16.msra.mxu0 0
  %286 = vmatprep.subr.bf16.mxu0 0
  %287 = vmatpush2.bf16.msra.mxu0 0
  %288 = vmatprep.subr.bf16.mxu0 0
  %289 = vmatpush2.bf16.msra.mxu0 0
  %290 = vmatprep.subr.bf16.mxu0 0
  %291 = vmatpush2.bf16.msra.mxu0 0
  %292 = vmatprep.mubr.bf16.mxu0 0
  %293 = vmatmul.mubr.bf16.gmra.mxu0 %v206
  %v294 = vpop.f32.mrf.mxu0
  %v295 = vadd.f32 %v246, %v294
  %v296 = vpop.f32.mrf.mxu0
  %v297 = vpop.f32.mrf.mxu0
  %v298 = vadd.f32 %v249, %v297
  %v299 = vpop.f32.mrf.mxu0
  %300 = vmatprep.mubr.bf16.mxu0 0
  %301 = vmatmul.mubr.bf16.gmra.mxu0 %v209
  %v302 = vpop.f32.mrf.mxu0
  %v303 = vadd.f32 %v254, %v302
  %v304 = vpop.f32.mrf.mxu0
  %v305 = vpop.f32.mrf.mxu0
  %v306 = vadd.f32 %v257, %v305
  %v307 = vpop.f32.mrf.mxu0
  %308 = vdwg.mxu0
  %v309 = vxor.u32 %v295, 2147483648
  %v310 = vxor.u32 %v298, 2147483648
  %v311 = vxor.u32 %v303, 2147483648
  %v312 = vxor.u32 %v306, 2147483648
  %v313 = vmul.f32 %v309, 1.442695
  %v314 = vpow.pop %v313
  %v315 = vmul.f32 %v310, 1.442695
  %v316 = vpow.pop %v315
  %v317 = vmul.f32 %v311, 1.442695
  %v318 = vpow.pop %v317
  %v319 = vmul.f32 %v312, 1.442695
  %v320 = vpow.pop %v319
  %v321 = vadd.f32 %v314, 1.0
  %v322 = vadd.f32 %v316, 1.0
  %v323 = vadd.f32 %v318, 1.0
  %v324 = vadd.f32 %v320, 1.0
  %v325 = vrcp.pop %v321
  %v326 = vmul.f32 1.0, %v325
  %v327 = vrcp.pop %v322
  %v328 = vmul.f32 1.0, %v327
  %v329 = vrcp.pop %v323
  %v330 = vmul.f32 1.0, %v329
  %v331 = vrcp.pop %v324
  %v332 = vmul.f32 1.0, %v331
  %v333 = vmul.f32 %v295, %v326
  %v334 = vmul.f32 %v298, %v328
  %v335 = vmul.f32 %v303, %v330
  %v336 = vmul.f32 %v306, %v332
  %v337 = vpack.c.bf16 %v334, %v333
  %v338 = vpack.c.bf16 %v336, %v335
  %v341 = vunpack.c.l.b16 %v337
  %v342 = vunpack.c.h.b16 %v337
  %v343 = vunpack.c.l.b16 %v338
  %v344 = vunpack.c.h.b16 %v338
  %v345 = vpack.c.b16 %v341, %v341
  %v346 = vpack.c.b16 %v342, %v342
  %v347 = vpack.c.b16 %v343, %v343
  %v348 = vpack.c.b16 %v344, %v344
  %vm353 = vcmask 388096
  %354 = vst.msk [vmem:[%s3] sm:$0xf] %vm353, %v345
  %355 = vst.msk [vmem:[%s3 + $0x4] sm:$0xf] %vm353, %v346
  %356 = vst.msk [vmem:[%s3 + $0x8] sm:$0xf] %vm353, %v347
  %357 = vst.msk [vmem:[%s3 + $0xc] sm:$0xf] %vm353, %v348
  // Predicated region
  $region14: #{_lambda_.42} parent=0 // pred_check
    _
  $region15: #{_lambda_.42} parent=0 // pred_check_branch
    %359 = sbr.rel (0) target = $region17
  $region16: #{_lambda_.42} parent=0 // pred_region
    _
  $region17: #{_lambda_.42} parent=0 // pred_fallthru
    _
  // Predicated region
  $region18: #{_lambda_.42} parent=0 // pred_check
    _
  $region19: #{_lambda_.42} parent=0 // pred_check_branch
    %361 = sbr.rel (0) target = $region21
  $region20: #{_lambda_.42} parent=0 // pred_region
    _
  $region21: #{_lambda_.42} parent=0 // pred_fallthru
    _

// kernel: _lambda_.44
$region0: #{_lambda_.44}
  #allocation0 [shape = 'u32[]', space=smem, size = 0x4, offset = 0x4, fixed_abs, tag = 'smem constant byte address 0x4 - core index']
  #allocation1 [shape = 'u32[144,128]{1,0:T(1,128)}', space=vmem, size = 0x12000, scoped, tag = 'internal scratch']
  %s0 = inlined_call_operand.vmem [shape: bf16[32,16], index: 0, kind: input, shape index: {}]
  %s1 = inlined_call_operand.vmem [shape: bf16[16,8], index: 1, kind: input, shape index: {}]
  %s2 = inlined_call_operand.vmem [shape: f32[1,8], index: 2, kind: input, shape index: {}]
  %s3 = inlined_call_operand.vmem [shape: bf16[32,8], index: 3, kind: output, shape index: {}]
  %s4 = sld [smem:[#allocation0]]
  $region22: #{_lambda_.44} parent=0
    _
  %s6 = ssub.s32 1, %s4
  %s7 = scalar_select 0, %s6, %s4
  // Predicated region
  $region2: #{_lambda_.44} parent=0 // pred_check
    _
  $region3: #{_lambda_.44} parent=0 // pred_check_branch
    %9 = sbr.rel (0) target = $region5
  $region4: #{_lambda_.44} parent=0 // pred_region
    _
  $region5: #{_lambda_.44} parent=0 // pred_fallthru
    _
  // Predicated region
  $region6: #{_lambda_.44} parent=0 // pred_check
    _
  $region7: #{_lambda_.44} parent=0 // pred_check_branch
    %11 = sbr.rel (0) target = $region9
  $region8: #{_lambda_.44} parent=0 // pred_region
    _
  $region9: #{_lambda_.44} parent=0 // pred_fallthru
    _
  // Predicated region
  $region10: #{_lambda_.44} parent=0 // pred_check
    _
  $region11: #{_lambda_.44} parent=0 // pred_check_branch
    %13 = sbr.rel (0) target = $region13
  $region12: #{_lambda_.44} parent=0 // pred_region
    _
  $region13: #{_lambda_.44} parent=0 // pred_fallthru
    _
  %v15 = vld [vmem:[%s0] sm:$0xf]
  %v16 = vld [vmem:[%s0 + $0x4] sm:$0xf]
  %v17 = vld [vmem:[%s0 + $0x8] sm:$0xf]
  %v18 = vld [vmem:[%s0 + $0xc] sm:$0xf]
  %v19 = vld [vmem:[%s1] sm:$0xf]
  %v20 = vld [vmem:[%s1 + $0x4] sm:$0xf]
  %v21 = vld [vmem:[%s2] sm:$0x1]
  %v23 = vlaneseq
  %v24 = vshrl.u32 %v23, 7
  %v25 = vsub.s32 0, %v24
  %v26 = vrot.slane %v21, %v25
  %v32 = vunpack.c.l.b16 %v15
  %v33 = vunpack.c.l.b16 %v16
  %v34 = vunpack.c.l.b16 %v17
  %v35 = vunpack.c.l.b16 %v18
  %v36 = vpack.c.b16 %v33, %v32
  %v37 = vpack.c.b16 %v35, %v34
  %v40 = vunpack.c.l.b16 %v19
  %v41 = vunpack.c.l.b16 %v20
  %v42 = vpack.c.b16 %v41, %v40
  %vm44 = vcmask 130048
  %v46 = vsel %vm44, %v36, 0
  %v49 = vsel %vm44, %v37, 0
  %51 = vmatprep.subr.bf16.mxu0 0
  %52 = vmatpush1.bf16.msra.mxu0 0
  %53 = vmatprep.subr.bf16.mxu0 0
  %54 = vmatpush1.bf16.msra.mxu0 0
  %55 = vmatprep.subr.bf16.mxu0 0
  %56 = vmatpush1.bf16.msra.mxu0 0
  %57 = vmatprep.subr.bf16.mxu0 0
  %58 = vmatpush1.bf16.msra.mxu0 0
  %59 = vmatprep.subr.bf16.mxu0 0
  %60 = vmatpush1.bf16.msra.mxu0 0
  %61 = vmatprep.subr.bf16.mxu0 0
  %62 = vmatpush1.bf16.msra.mxu0 0
  %63 = vmatprep.subr.bf16.mxu0 0
  %64 = vmatpush1.bf16.msra.mxu0 0
  %65 = vmatprep.subr.bf16.mxu0 0
  %66 = vmatpush1.bf16.msra.mxu0 %v42
  %67 = vmatprep.subr.bf16.mxu0 0
  %68 = vmatpush2.bf16.msra.mxu0 0
  %69 = vmatprep.subr.bf16.mxu0 0
  %70 = vmatpush2.bf16.msra.mxu0 0
  %71 = vmatprep.subr.bf16.mxu0 0
  %72 = vmatpush2.bf16.msra.mxu0 0
  %73 = vmatprep.subr.bf16.mxu0 0
  %74 = vmatpush2.bf16.msra.mxu0 0
  %75 = vmatprep.subr.bf16.mxu0 0
  %76 = vmatpush2.bf16.msra.mxu0 0
  %77 = vmatprep.subr.bf16.mxu0 0
  %78 = vmatpush2.bf16.msra.mxu0 0
  %79 = vmatprep.subr.bf16.mxu0 0
  %80 = vmatpush2.bf16.msra.mxu0 0
  %81 = vmatprep.subr.bf16.mxu0 0
  %82 = vmatpush2.bf16.msra.mxu0 0
  %83 = vmatprep.mubr.bf16.mxu0 0
  %84 = vmatmul.mubr.bf16.gmra.mxu0 %v46
  %v85 = vpop.f32.mrf.mxu0
  %v86 = vadd.f32 %v26, %v85
  %v87 = vpop.f32.mrf.mxu0
  %v88 = vpop.f32.mrf.mxu0
  %v89 = vadd.f32 %v26, %v88
  %v90 = vpop.f32.mrf.mxu0
  %91 = vmatprep.mubr.bf16.mxu0 0
  %92 = vmatmul.mubr.bf16.gmra.mxu0 %v49
  %v93 = vpop.f32.mrf.mxu0
  %v94 = vadd.f32 %v26, %v93
  %v95 = vpop.f32.mrf.mxu0
  %v96 = vpop.f32.mrf.mxu0
  %v97 = vadd.f32 %v26, %v96
  %v98 = vpop.f32.mrf.mxu0
  %99 = vdwg.mxu0
  %v100 = vxor.u32 %v86, 2147483648
  %v101 = vxor.u32 %v89, 2147483648
  %v102 = vxor.u32 %v94, 2147483648
  %v103 = vxor.u32 %v97, 2147483648
  %v104 = vmul.f32 %v100, 1.442695
  %v105 = vpow.pop %v104
  %v106 = vmul.f32 %v101, 1.442695
  %v107 = vpow.pop %v106
  %v108 = vmul.f32 %v102, 1.442695
  %v109 = vpow.pop %v108
  %v110 = vmul.f32 %v103, 1.442695
  %v111 = vpow.pop %v110
  %v112 = vadd.f32 %v105, 1.0
  %v113 = vadd.f32 %v107, 1.0
  %v114 = vadd.f32 %v109, 1.0
  %v115 = vadd.f32 %v111, 1.0
  %v116 = vrcp.pop %v112
  %v117 = vmul.f32 1.0, %v116
  %v118 = vrcp.pop %v113
  %v119 = vmul.f32 1.0, %v118
  %v120 = vrcp.pop %v114
  %v121 = vmul.f32 1.0, %v120
  %v122 = vrcp.pop %v115
  %v123 = vmul.f32 1.0, %v122
  %v124 = vmul.f32 %v86, %v117
  %v125 = vmul.f32 %v89, %v119
  %v126 = vmul.f32 %v94, %v121
  %v127 = vmul.f32 %v97, %v123
  %v128 = vpack.c.bf16 %v125, %v124
  %v129 = vpack.c.bf16 %v127, %v126
  %v132 = vunpack.c.l.b16 %v128
  %v133 = vunpack.c.h.b16 %v128
  %v134 = vunpack.c.l.b16 %v129
  %v135 = vunpack.c.h.b16 %v129
  %v136 = vpack.c.b16 %v132, %v132
  %v137 = vpack.c.b16 %v133, %v133
  %v138 = vpack.c.b16 %v134, %v134
  %v139 = vpack.c.b16 %v135, %v135
  %vm144 = vcmask 60416
  %145 = vst.msk [vmem:[%s3] sm:$0xf] %vm144, %v136
  %146 = vst.msk [vmem:[%s3 + $0x4] sm:$0xf] %vm144, %v137
  %147 = vst.msk [vmem:[%s3 + $0x8] sm:$0xf] %vm144, %v138
  %148 = vst.msk [vmem:[%s3 + $0xc] sm:$0xf] %vm144, %v139
  // Predicated region
  $region14: #{_lambda_.44} parent=0 // pred_check
    _
  $region15: #{_lambda_.44} parent=0 // pred_check_branch
    %150 = sbr.rel (0) target = $region17
  $region16: #{_lambda_.44} parent=0 // pred_region
    _
  $region17: #{_lambda_.44} parent=0 // pred_fallthru
    _
  // Predicated region
  $region18: #{_lambda_.44} parent=0 // pred_check
    _
  $region19: #{_lambda_.44} parent=0 // pred_check_branch
    %152 = sbr.rel (0) target = $region21
  $region20: #{_lambda_.44} parent=0 // pred_region
    _
  $region21: #{_lambda_.44} parent=0 // pred_fallthru
    _

// kernel: _lambda_.43
$region0: #{_lambda_.43}
  #allocation0 [shape = 'u32[]', space=smem, size = 0x4, offset = 0x4, fixed_abs, tag = 'smem constant byte address 0x4 - core index']
  #allocation1 [shape = 'u32[144,128]{1,0:T(1,128)}', space=vmem, size = 0x12000, scoped, tag = 'internal scratch']
  %s0 = inlined_call_operand.vmem [shape: bf16[32,48], index: 0, kind: input, shape index: {}]
  %s1 = inlined_call_operand.vmem [shape: bf16[48,32], index: 1, kind: input, shape index: {}]
  %s2 = inlined_call_operand.vmem [shape: f32[1,32], index: 2, kind: input, shape index: {}]
  %s3 = inlined_call_operand.vmem [shape: bf16[32,32], index: 3, kind: output, shape index: {}]
  %s4 = sld [smem:[#allocation0]]
  $region22: #{_lambda_.43} parent=0
    _
  %s6 = ssub.s32 1, %s4
  %s7 = scalar_select 0, %s6, %s4
  // Predicated region
  $region2: #{_lambda_.43} parent=0 // pred_check
    _
  $region3: #{_lambda_.43} parent=0 // pred_check_branch
    %9 = sbr.rel (0) target = $region5
  $region4: #{_lambda_.43} parent=0 // pred_region
    _
  $region5: #{_lambda_.43} parent=0 // pred_fallthru
    _
  // Predicated region
  $region6: #{_lambda_.43} parent=0 // pred_check
    _
  $region7: #{_lambda_.43} parent=0 // pred_check_branch
    %11 = sbr.rel (0) target = $region9
  $region8: #{_lambda_.43} parent=0 // pred_region
    _
  $region9: #{_lambda_.43} parent=0 // pred_fallthru
    _
  // Predicated region
  $region10: #{_lambda_.43} parent=0 // pred_check
    _
  $region11: #{_lambda_.43} parent=0 // pred_check_branch
    %13 = sbr.rel (0) target = $region13
  $region12: #{_lambda_.43} parent=0 // pred_region
    _
  $region13: #{_lambda_.43} parent=0 // pred_fallthru
    _
  %v15 = vld [vmem:[%s0] sm:$0xf]
  %v16 = vld [vmem:[%s0 + $0x4] sm:$0xf]
  %v17 = vld [vmem:[%s0 + $0x8] sm:$0xf]
  %v18 = vld [vmem:[%s0 + $0xc] sm:$0xf]
  %v19 = vld [vmem:[%s1] sm:$0xf]
  %v20 = vld [vmem:[%s1 + $0x4] sm:$0xf]
  %v21 = vld [vmem:[%s1 + $0x8] sm:$0xf]
  %v22 = vld [vmem:[%s1 + $0xc] sm:$0xf]
  %v23 = vld [vmem:[%s1 + $0x10] sm:$0xf]
  %v24 = vld [vmem:[%s1 + $0x14] sm:$0xf]
  %v25 = vld [vmem:[%s2] sm:$0x1]
  %v27 = vlaneseq
  %v28 = vshrl.u32 %v27, 7
  %v29 = vsub.s32 0, %v28
  %v30 = vrot.slane %v25, %v29
  %v36 = vunpack.c.l.b16 %v15
  %v37 = vunpack.c.l.b16 %v16
  %v38 = vunpack.c.l.b16 %v17
  %v39 = vunpack.c.l.b16 %v18
  %v40 = vpack.c.b16 %v37, %v36
  %v41 = vpack.c.b16 %v39, %v38
  %v48 = vunpack.c.l.b16 %v19
  %v49 = vunpack.c.l.b16 %v20
  %v50 = vunpack.c.l.b16 %v21
  %v51 = vunpack.c.l.b16 %v22
  %v52 = vunpack.c.l.b16 %v23
  %v53 = vunpack.c.l.b16 %v24
  %v54 = vpack.c.b16 %v49, %v48
  %v55 = vpack.c.b16 %v51, %v50
  %v56 = vpack.c.b16 %v53, %v52
  %vm60 = vcmask 392192
  %v62 = vsel %vm60, %v40, 0
  %v65 = vsel %vm60, %v41, 0
  %67 = vmatprep.subr.bf16.mxu0 0
  %68 = vmatpush1.bf16.msra.mxu0 0
  %69 = vmatprep.subr.bf16.mxu0 0
  %70 = vmatpush1.bf16.msra.mxu0 0
  %71 = vmatprep.subr.bf16.mxu0 0
  %72 = vmatpush1.bf16.msra.mxu0 0
  %73 = vmatprep.subr.bf16.mxu0 0
  %74 = vmatpush1.bf16.msra.mxu0 0
  %75 = vmatprep.subr.bf16.mxu0 0
  %76 = vmatpush1.bf16.msra.mxu0 0
  %77 = vmatprep.subr.bf16.mxu0 0
  %78 = vmatpush1.bf16.msra.mxu0 %v56
  %79 = vmatprep.subr.bf16.mxu0 0
  %80 = vmatpush1.bf16.msra.mxu0 %v55
  %81 = vmatprep.subr.bf16.mxu0 0
  %82 = vmatpush1.bf16.msra.mxu0 %v54
  %83 = vmatprep.subr.bf16.mxu0 0
  %84 = vmatpush2.bf16.msra.mxu0 0
  %85 = vmatprep.subr.bf16.mxu0 0
  %86 = vmatpush2.bf16.msra.mxu0 0
  %87 = vmatprep.subr.bf16.mxu0 0
  %88 = vmatpush2.bf16.msra.mxu0 0
  %89 = vmatprep.subr.bf16.mxu0 0
  %90 = vmatpush2.bf16.msra.mxu0 0
  %91 = vmatprep.subr.bf16.mxu0 0
  %92 = vmatpush2.bf16.msra.mxu0 0
  %93 = vmatprep.subr.bf16.mxu0 0
  %94 = vmatpush2.bf16.msra.mxu0 0
  %95 = vmatprep.subr.bf16.mxu0 0
  %96 = vmatpush2.bf16.msra.mxu0 0
  %97 = vmatprep.subr.bf16.mxu0 0
  %98 = vmatpush2.bf16.msra.mxu0 0
  %99 = vmatprep.mubr.bf16.mxu0 0
  %100 = vmatmul.mubr.bf16.gmra.mxu0 %v62
  %v101 = vpop.f32.mrf.mxu0
  %v102 = vadd.f32 %v30, %v101
  %v103 = vpop.f32.mrf.mxu0
  %v104 = vpop.f32.mrf.mxu0
  %v105 = vadd.f32 %v30, %v104
  %v106 = vpop.f32.mrf.mxu0
  %107 = vmatprep.mubr.bf16.mxu0 0
  %108 = vmatmul.mubr.bf16.gmra.mxu0 %v65
  %v109 = vpop.f32.mrf.mxu0
  %v110 = vadd.f32 %v30, %v109
  %v111 = vpop.f32.mrf.mxu0
  %v112 = vpop.f32.mrf.mxu0
  %v113 = vadd.f32 %v30, %v112
  %v114 = vpop.f32.mrf.mxu0
  %115 = vdwg.mxu0
  %v116 = vxor.u32 %v102, 2147483648
  %v117 = vxor.u32 %v105, 2147483648
  %v118 = vxor.u32 %v110, 2147483648
  %v119 = vxor.u32 %v113, 2147483648
  %v120 = vmul.f32 %v116, 1.442695
  %v121 = vpow.pop %v120
  %v122 = vmul.f32 %v117, 1.442695
  %v123 = vpow.pop %v122
  %v124 = vmul.f32 %v118, 1.442695
  %v125 = vpow.pop %v124
  %v126 = vmul.f32 %v119, 1.442695
  %v127 = vpow.pop %v126
  %v128 = vadd.f32 %v121, 1.0
  %v129 = vadd.f32 %v123, 1.0
  %v130 = vadd.f32 %v125, 1.0
  %v131 = vadd.f32 %v127, 1.0
  %v132 = vrcp.pop %v128
  %v133 = vmul.f32 1.0, %v132
  %v134 = vrcp.pop %v129
  %v135 = vmul.f32 1.0, %v134
  %v136 = vrcp.pop %v130
  %v137 = vmul.f32 1.0, %v136
  %v138 = vrcp.pop %v131
  %v139 = vmul.f32 1.0, %v138
  %v140 = vmul.f32 %v102, %v133
  %v141 = vmul.f32 %v105, %v135
  %v142 = vmul.f32 %v110, %v137
  %v143 = vmul.f32 %v113, %v139
  %v144 = vpack.c.bf16 %v141, %v140
  %v145 = vpack.c.bf16 %v143, %v142
  %v148 = vunpack.c.l.b16 %v144
  %v149 = vunpack.c.h.b16 %v144
  %v150 = vunpack.c.l.b16 %v145
  %v151 = vunpack.c.h.b16 %v145
  %v152 = vpack.c.b16 %v148, %v148
  %v153 = vpack.c.b16 %v149, %v149
  %v154 = vpack.c.b16 %v150, %v150
  %v155 = vpack.c.b16 %v151, %v151
  %vm160 = vcmask 257024
  %161 = vst.msk [vmem:[%s3] sm:$0xf] %vm160, %v152
  %162 = vst.msk [vmem:[%s3 + $0x4] sm:$0xf] %vm160, %v153
  %163 = vst.msk [vmem:[%s3 + $0x8] sm:$0xf] %vm160, %v154
  %164 = vst.msk [vmem:[%s3 + $0xc] sm:$0xf] %vm160, %v155
  // Predicated region
  $region14: #{_lambda_.43} parent=0 // pred_check
    _
  $region15: #{_lambda_.43} parent=0 // pred_check_branch
    %166 = sbr.rel (0) target = $region17
  $region16: #{_lambda_.43} parent=0 // pred_region
    _
  $region17: #{_lambda_.43} parent=0 // pred_fallthru
    _
  // Predicated region
  $region18: #{_lambda_.43} parent=0 // pred_check
    _
  $region19: #{_lambda_.43} parent=0 // pred_check_branch
    %168 = sbr.rel (0) target = $region21
  $region20: #{_lambda_.43} parent=0 // pred_region
    _
  $region21: #{_lambda_.43} parent=0 // pred_fallthru
    _

// kernel: _lambda_.45
$region0: #{_lambda_.45}
  #allocation0 [shape = 'u32[]', space=smem, size = 0x4, offset = 0x4, fixed_abs, tag = 'smem constant byte address 0x4 - core index']
  #allocation1 [shape = 'u32[144,128]{1,0:T(1,128)}', space=vmem, size = 0x12000, scoped, tag = 'internal scratch']
  %s0 = inlined_call_operand.vmem [shape: bf16[2,6,6,8], index: 0, kind: input, shape index: {}]
  %s1 = inlined_call_operand.vmem [shape: bf16[72,8], index: 1, kind: input, shape index: {}]
  %s2 = inlined_call_operand.vmem [shape: f32[1,8], index: 2, kind: input, shape index: {}]
  %s3 = inlined_call_operand.vmem [shape: bf16[2,4,4,8], index: 3, kind: output, shape index: {}]
  %s4 = sld [smem:[#allocation0]]
  $region45: #{_lambda_.45} parent=0
    _
  %s6 = ssub.s32 1, %s4
  %s7 = scalar_select 0, %s6, %s4
  loop: start=0, step=1, limit=10
  $region2: #{_lambda_.45} parent=0 // loop_pre_header
    _
  $region3: #{_lambda_.45} parent=0 // loop_header
    %s9 = sphi 0, %s13
    %p10 = scmp.ge.s32.totalorder %s9, 10
    %s16 = sphi 0, %s28
    %s17 = sphi 0, %s24
    %s18 = sphi 0, %s16
    %s19 = sphi 0, %s17
    %s20 = sphi 0, %s18
    %s21 = sphi 0, %s19
    %s31 = sphi 0, %s33
    %s34 = sphi 0, %s31
    %s35 = sphi 0, %s34
    %s51 = sphi 0, %s35
    %s55 = sphi 0, %s55
    %s57 = sphi 0, %s55
    %s58 = sphi 0, %s57
    %s72 = sphi 0, %s58
    %s76 = sphi 0, %s76
    %s78 = sphi 0, %s76
    %s79 = sphi 0, %s78
    %s93 = sphi 0, %s79
    %s101 = sphi 0, %s103
    %s104 = sphi 0, %s101
    %s105 = sphi 0, %s104
    %s121 = sphi 0, %s105
  $region4: #{_lambda_.45} parent=0 // loop_header_branch
    %12 = sbr.rel (%p10) target = $region8
  $region5: #{_lambda_.45} parent=0 // loop_body
    %s14 = ssub.s32 %s9, 1
    %s15 = ssub.s32 %s9, 2
    %s22 = sadd.s32 1, %s17
    %p23 = scmp.ge.s32.totalorder %s22, 4
    %s24 = scalar_select %p23, 0, %s22
    %s25 = sadd.s32 1, %s16
    %s26 = scalar_select %p23, %s25, %s16
    %p27 = scmp.ge.s32.totalorder %s26, 2
    %s28 = scalar_select %p27, 0, %s26
    %s29 = ssub.s32 %s16, %s28
    %p30 = scmp.eq.s32.totalorder %s29, 0
    %s32 = sadd.s32 %s31, 1
    %s33 = scalar_select %p30, %s31, %s32
    %p36 = pneg %p30
    %p37 = scmp.eq.s32.totalorder %s9, 7
    %p38 = por %p36, %p37
    %p39 = scmp.ne.s32.totalorder %s31, %s34
    %p40 = scmp.eq.s32.totalorder %s9, 0
    %p41 = por %p39, %p40
    %p42 = scmp.ne.s32.totalorder %s31, %s34
    %p43 = scmp.eq.s32.totalorder %s14, 7
    %p44 = por %p42, %p43
    %p45 = scmp.ne.s32.totalorder %s34, %s35
    %p46 = scmp.eq.s32.totalorder %s14, 0
    %p47 = por %p45, %p46
    %p48 = scmp.ne.s32.totalorder %s34, %s35
    %p49 = scmp.eq.s32.totalorder %s15, 7
    %p50 = por %p48, %p49
    %p52 = scmp.ne.s32.totalorder %s35, %s51
    %p53 = scmp.eq.s32.totalorder %s15, 0
    %p54 = por %p52, %p53
    %s56 = sadd.s32 %s55, 1
    %p59 = scmp.eq.s32.totalorder %s9, 7
    %p60 = scmp.ne.s32.totalorder %s55, %s57
    %p61 = scmp.eq.s32.totalorder %s9, 0
    %p62 = por %p60, %p61
    %p63 = scmp.ne.s32.totalorder %s55, %s57
    %p64 = scmp.eq.s32.totalorder %s14, 7
    %p65 = por %p63, %p64
    %p66 = scmp.ne.s32.totalorder %s57, %s58
    %p67 = scmp.eq.s32.totalorder %s14, 0
    %p68 = por %p66, %p67
    %p69 = scmp.ne.s32.totalorder %s57, %s58
    %p70 = scmp.eq.s32.totalorder %s15, 7
    %p71 = por %p69, %p70
    %p73 = scmp.ne.s32.totalorder %s58, %s72
    %p74 = scmp.eq.s32.totalorder %s15, 0
    %p75 = por %p73, %p74
    %s77 = sadd.s32 %s76, 1
    %p80 = scmp.eq.s32.totalorder %s9, 7
    %p81 = scmp.ne.s32.totalorder %s76, %s78
    %p82 = scmp.eq.s32.totalorder %s9, 0
    %p83 = por %p81, %p82
    %p84 = scmp.ne.s32.totalorder %s76, %s78
    %p85 = scmp.eq.s32.totalorder %s14, 7
    %p86 = por %p84, %p85
    %p87 = scmp.ne.s32.totalorder %s78, %s79
    %p88 = scmp.eq.s32.totalorder %s14, 0
    %p89 = por %p87, %p88
    %p90 = scmp.ne.s32.totalorder %s78, %s79
    %p91 = scmp.eq.s32.totalorder %s15, 7
    %p92 = por %p90, %p91
    %p94 = scmp.ne.s32.totalorder %s79, %s93
    %p95 = scmp.eq.s32.totalorder %s15, 0
    %p96 = por %p94, %p95
    %s97 = ssub.s32 %s16, %s28
    %s98 = ssub.s32 %s17, %s24
    %s99 = sor.u32 %s97, %s98
    %p100 = scmp.eq.s32.totalorder %s99, 0
    %s102 = sadd.s32 %s101, 1
    %s103 = scalar_select %p100, %s101, %s102
    %p106 = pneg %p100
    %p107 = scmp.eq.s32.totalorder %s9, 7
    %p108 = por %p106, %p107
    %p109 = scmp.ne.s32.totalorder %s101, %s104
    %p110 = scmp.eq.s32.totalorder %s9, 0
    %p111 = por %p109, %p110
    %p112 = scmp.ne.s32.totalorder %s101, %s104
    %p113 = scmp.eq.s32.totalorder %s14, 7
    %p114 = por %p112, %p113
    %p115 = scmp.ne.s32.totalorder %s104, %s105
    %p116 = scmp.eq.s32.totalorder %s14, 0
    %p117 = por %p115, %p116
    %p118 = scmp.ne.s32.totalorder %s104, %s105
    %p119 = scmp.eq.s32.totalorder %s15, 7
    %p120 = por %p118, %p119
    %p122 = scmp.ne.s32.totalorder %s105, %s121
    %p123 = scmp.eq.s32.totalorder %s15, 0
    %p124 = por %p122, %p123
    %p125 = scmp.le.s32.totalorder 1, %s9
    %p126 = scmp.lt.s32.totalorder %s9, 9
    %p127 = pnand %p125, %p126
    %p128 = pneg %p127
    // Predicated region
    $region9: #{_lambda_.45} parent=5 // pred_check
      _
    $region10: #{_lambda_.45} parent=5 // pred_check_branch
      %130 = sbr.rel (%p127) target = $region12
    $region11: #{_lambda_.45} parent=5 // pred_region
      %s131 = ssub.s32 %s9, 1
      // Predicated region
      $region13: #{_lambda_.45} parent=11 // pred_check
        %p132 = pneg %p68
      $region14: #{_lambda_.45} parent=11 // pred_check_branch
        %134 = sbr.rel (%p132) target = $region16
      $region15: #{_lambda_.45} parent=11 // pred_region
        _
      $region16: #{_lambda_.45} parent=11 // pred_fallthru
        _
      // Predicated region
      $region17: #{_lambda_.45} parent=11 // pred_check
        %p135 = pneg %p89
      $region18: #{_lambda_.45} parent=11 // pred_check_branch
        %137 = sbr.rel (%p135) target = $region20
      $region19: #{_lambda_.45} parent=11 // pred_region
        _
      $region20: #{_lambda_.45} parent=11 // pred_fallthru
        _
    $region12: #{_lambda_.45} parent=5 // pred_fallthru
      _
    %p138 = scmp.lt.s32.totalorder %s9, 8
    // Predicated region
    $region21: #{_lambda_.45} parent=5 // pred_check
      %p139 = pneg %p138
    $region22: #{_lambda_.45} parent=5 // pred_check_branch
      %141 = sbr.rel (%p139) target = $region24
    $region23: #{_lambda_.45} parent=5 // pred_region
      // Predicated region
      $region25: #{_lambda_.45} parent=23 // pred_check
        %p142 = pneg %p41
      $region26: #{_lambda_.45} parent=23 // pred_check_branch
        %144 = sbr.rel (%p142) target = $region28
      $region27: #{_lambda_.45} parent=23 // pred_region
        %p145 = scmp.lt.s32.totalorder %s16, 1
        %s146 = scalar_select %p145, %s16, 1
        %s147 = smul.addr %s146, 6
        %s148 = smul.addr %s147, 4
        %s149 = scalar_lea.vmem %s0, %s148
      $region28: #{_lambda_.45} parent=23 // pred_fallthru
        _
    $region24: #{_lambda_.45} parent=5 // pred_fallthru
      _
    %p150 = scmp.le.s32.totalorder 1, %s9
    %p151 = scmp.lt.s32.totalorder %s9, 9
    %p152 = pnand %p150, %p151
    %p153 = pneg %p152
    // Predicated region
    $region29: #{_lambda_.45} parent=5 // pred_check
      _
    $region30: #{_lambda_.45} parent=5 // pred_check_branch
      %155 = sbr.rel (%p152) target = $region32
    $region31: #{_lambda_.45} parent=5 // pred_region
      %s156 = ssub.s32 %s9, 1
      %p157 = scmp.lt.s32.totalorder %s18, 1
      %s158 = scalar_select %p157, %s18, 1
      %s159 = smul.addr %s158, 6
      %s160 = smul.addr %s159, 4
      %s161 = scalar_lea.vmem %s0, %s160
      %p162 = pneg %p47
      %p163 = pneg %p44
      %p164 = pneg %p68
      %p165 = pneg %p65
      %p166 = pneg %p89
      %p167 = pneg %p86
      %p168 = pneg %p117
      %p169 = pneg %p114
      %p170 = scmp.lt.s32.totalorder %s18, 1
      %s171 = scalar_select %p170, %s18, 1
      %p172 = scmp.lt.s32.totalorder %s19, 3
      %s173 = scalar_select %p172, %s19, 3
      %s174 = smul.addr %s171, 4
      %s175 = sadd.s32 %s173, %s174
      %s176 = smul.addr %s175, 2
      %s177 = scalar_lea.vmem %s3, %s176
      %p178 = scmp.lt.s32.totalorder %s18, 1
      %s179 = scalar_select %p178, %s18, 1
      %s180 = smul.addr %s179, 6
      %s181 = smul.addr %s180, 4
      %s182 = scalar_lea.vmem %s0, %s181
      %p183 = scmp.lt.s32.totalorder %s18, 1
      %s184 = scalar_select %p183, %s18, 1
      %p185 = scmp.lt.s32.totalorder %s19, 3
      %s186 = scalar_select %p185, %s19, 3
      %s187 = smul.addr %s184, 4
      %s188 = sadd.s32 %s186, %s187
      %s189 = smul.addr %s188, 2
      %s190 = scalar_lea.vmem %s3, %s189
      %v192 = vld [vmem:[%s1] sm:$0xf]
      %v193 = vld [vmem:[%s1 + $0x4] sm:$0xf]
      %v194 = vld [vmem:[%s1 + $0x8] sm:$0xf]
      %v195 = vld [vmem:[%s1 + $0xc] sm:$0xf]
      %v196 = vld [vmem:[%s1 + $0x10] sm:$0xf]
      %v197 = vld [vmem:[%s1 + $0x14] sm:$0xf]
      %v198 = vld [vmem:[%s1 + $0x18] sm:$0xf]
      %v199 = vld [vmem:[%s1 + $0x1c] sm:$0xf]
      %v200 = vld [vmem:[%s1 + $0x20] sm:$0xf]
      %s201 = smul.addr %s19, 4
      %s202 = scalar_lea.vmem %s182, %s201
      %v203 = vld [vmem:[%s202] sm:$0x7]
      %v205 = vunpack.c.l.b16 %v203
      %v206 = vpack.c.b16 %v205, %v205
      %v208 = vshrl.u32 %v206, 16
      %v210 = vshll.u32 %v206, 16
      %v212 = vrot.slane %v210, 1
      %v213 = vor.u32 %v208, %v212
      %vm214 = vcmask 64512
      %v216 = vsel %vm214, %v213, 0
      %vm218 = vcmask 1043456
      %v220 = vsel %vm218, %v193, 0
      %222 = vmatprep.subr.bf16.mxu0 0
      %223 = vmatpush1.bf16.msra.mxu0 0
      %224 = vmatprep.subr.bf16.mxu0 0
      %225 = vmatpush1.bf16.msra.mxu0 0
      %226 = vmatprep.subr.bf16.mxu0 0
      %227 = vmatpush1.bf16.msra.mxu0 0
      %228 = vmatprep.subr.bf16.mxu0 0
      %229 = vmatpush1.bf16.msra.mxu0 0
      %230 = vmatprep.subr.bf16.mxu0 0
      %231 = vmatpush1.bf16.msra.mxu0 0
      %232 = vmatprep.subr.bf16.mxu0 0
      %233 = vmatpush1.bf16.msra.mxu0 0
      %234 = vmatprep.subr.bf16.mxu0 0
      %235 = vmatpush1.bf16.msra.mxu0 0
      %236 = vmatprep.subr.bf16.mxu0 0
      %237 = vmatpush1.bf16.msra.mxu0 %v220
      %238 = vmatprep.subr.bf16.mxu0 0
      %239 = vmatpush2.bf16.msra.mxu0 0
      %240 = vmatprep.subr.bf16.mxu0 0
      %241 = vmatpush2.bf16.msra.mxu0 0
      %242 = vmatprep.subr.bf16.mxu0 0
      %243 = vmatpush2.bf16.msra.mxu0 0
      %244 = vmatprep.subr.bf16.mxu0 0
      %245 = vmatpush2.bf16.msra.mxu0 0
      %246 = vmatprep.subr.bf16.mxu0 0
      %247 = vmatpush2.bf16.msra.mxu0 0
      %248 = vmatprep.subr.bf16.mxu0 0
      %249 = vmatpush2.bf16.msra.mxu0 0
      %250 = vmatprep.subr.bf16.mxu0 0
      %251 = vmatpush2.bf16.msra.mxu0 0
      %252 = vmatprep.subr.bf16.mxu0 0
      %253 = vmatpush2.bf16.msra.mxu0 0
      %254 = vmatprep.mubr.bf16.mxu0 0
      %255 = vmatmul.mubr.bf16.gmra.mxu0 %v216
      %v256 = vpop.f32.mrf.mxu0
      %v257 = vadd.f32 0.0, %v256
      %v258 = vpop.f32.mrf.mxu0
      %v259 = vpop.f32.mrf.mxu0
      %v260 = vpop.f32.mrf.mxu0
      %261 = vdwg.mxu0
      %v263 = vsel %vm214, %v203, 0
      %v266 = vsel %vm218, %v192, 0
      %268 = vmatprep.subr.bf16.mxu0 0
      %269 = vmatpush1.bf16.msra.mxu0 0
      %270 = vmatprep.subr.bf16.mxu0 0
      %271 = vmatpush1.bf16.msra.mxu0 0
      %272 = vmatprep.subr.bf16.mxu0 0
      %273 = vmatpush1.bf16.msra.mxu0 0
      %274 = vmatprep.subr.bf16.mxu0 0
      %275 = vmatpush1.bf16.msra.mxu0 0
      %276 = vmatprep.subr.bf16.mxu0 0
      %277 = vmatpush1.bf16.msra.mxu0 0
      %278 = vmatprep.subr.bf16.mxu0 0
      %279 = vmatpush1.bf16.msra.mxu0 0
      %280 = vmatprep.subr.bf16.mxu0 0
      %281 = vmatpush1.bf16.msra.mxu0 0
      %282 = vmatprep.subr.bf16.mxu0 0
      %283 = vmatpush1.bf16.msra.mxu0 %v266
      %284 = vmatprep.subr.bf16.mxu0 0
      %285 = vmatpush2.bf16.msra.mxu0 0
      %286 = vmatprep.subr.bf16.mxu0 0
      %287 = vmatpush2.bf16.msra.mxu0 0
      %288 = vmatprep.subr.bf16.mxu0 0
      %289 = vmatpush2.bf16.msra.mxu0 0
      %290 = vmatprep.subr.bf16.mxu0 0
      %291 = vmatpush2.bf16.msra.mxu0 0
      %292 = vmatprep.subr.bf16.mxu0 0
      %293 = vmatpush2.bf16.msra.mxu0 0
      %294 = vmatprep.subr.bf16.mxu0 0
      %295 = vmatpush2.bf16.msra.mxu0 0
      %296 = vmatprep.subr.bf16.mxu0 0
      %297 = vmatpush2.bf16.msra.mxu0 0
      %298 = vmatprep.subr.bf16.mxu0 0
      %299 = vmatpush2.bf16.msra.mxu0 0
      %300 = vmatprep.mubr.bf16.mxu0 0
      %301 = vmatmul.mubr.bf16.gmra.mxu0 %v263
      %v302 = vpop.f32.mrf.mxu0
      %v303 = vadd.f32 %v257, %v302
      %v304 = vpop.f32.mrf.mxu0
      %v305 = vpop.f32.mrf.mxu0
      %v306 = vpop.f32.mrf.mxu0
      %307 = vdwg.mxu0
      %v308 = vrot.slane %v206, 1
      %v310 = vsel %vm214, %v308, 0
      %v313 = vsel %vm218, %v194, 0
      %315 = vmatprep.subr.bf16.mxu0 0
      %316 = vmatpush1.bf16.msra.mxu0 0
      %317 = vmatprep.subr.bf16.mxu0 0
      %318 = vmatpush1.bf16.msra.mxu0 0
      %319 = vmatprep.subr.bf16.mxu0 0
      %320 = vmatpush1.bf16.msra.mxu0 0
      %321 = vmatprep.subr.bf16.mxu0 0
      %322 = vmatpush1.bf16.msra.mxu0 0
      %323 = vmatprep.subr.bf16.mxu0 0
      %324 = vmatpush1.bf16.msra.mxu0 0
      %325 = vmatprep.subr.bf16.mxu0 0
      %326 = vmatpush1.bf16.msra.mxu0 0
      %327 = vmatprep.subr.bf16.mxu0 0
      %328 = vmatpush1.bf16.msra.mxu0 0
      %329 = vmatprep.subr.bf16.mxu0 0
      %330 = vmatpush1.bf16.msra.mxu0 %v313
      %331 = vmatprep.subr.bf16.mxu0 0
      %332 = vmatpush2.bf16.msra.mxu0 0
      %333 = vmatprep.subr.bf16.mxu0 0
      %334 = vmatpush2.bf16.msra.mxu0 0
      %335 = vmatprep.subr.bf16.mxu0 0
      %336 = vmatpush2.bf16.msra.mxu0 0
      %337 = vmatprep.subr.bf16.mxu0 0
      %338 = vmatpush2.bf16.msra.mxu0 0
      %339 = vmatprep.subr.bf16.mxu0 0
      %340 = vmatpush2.bf16.msra.mxu0 0
      %341 = vmatprep.subr.bf16.mxu0 0
      %342 = vmatpush2.bf16.msra.mxu0 0
      %343 = vmatprep.subr.bf16.mxu0 0
      %344 = vmatpush2.bf16.msra.mxu0 0
      %345 = vmatprep.subr.bf16.mxu0 0
      %346 = vmatpush2.bf16.msra.mxu0 0
      %347 = vmatprep.mubr.bf16.mxu0 0
      %348 = vmatmul.mubr.bf16.gmra.mxu0 %v310
      %v349 = vpop.f32.mrf.mxu0
      %v350 = vadd.f32 0.0, %v349
      %v351 = vpop.f32.mrf.mxu0
      %v352 = vpop.f32.mrf.mxu0
      %v353 = vpop.f32.mrf.mxu0
      %354 = vdwg.mxu0
      %v355 = vadd.f32 %v303, %v350
      %s356 = sadd.s32 %s19, 1
      %s357 = smul.addr %s356, 4
      %s358 = scalar_lea.vmem %s182, %s357
      %v359 = vld [vmem:[%s358] sm:$0x7]
      %v361 = vsel %vm214, %v359, 0
      %v364 = vsel %vm218, %v195, 0
      %366 = vmatprep.subr.bf16.mxu0 0
      %367 = vmatpush1.bf16.msra.mxu0 0
      %368 = vmatprep.subr.bf16.mxu0 0
      %369 = vmatpush1.bf16.msra.mxu0 0
      %370 = vmatprep.subr.bf16.mxu0 0
      %371 = vmatpush1.bf16.msra.mxu0 0
      %372 = vmatprep.subr.bf16.mxu0 0
      %373 = vmatpush1.bf16.msra.mxu0 0
      %374 = vmatprep.subr.bf16.mxu0 0
      %375 = vmatpush1.bf16.msra.mxu0 0
      %376 = vmatprep.subr.bf16.mxu0 0
      %377 = vmatpush1.bf16.msra.mxu0 0
      %378 = vmatprep.subr.bf16.mxu0 0
      %379 = vmatpush1.bf16.msra.mxu0 0
      %380 = vmatprep.subr.bf16.mxu0 0
      %381 = vmatpush1.bf16.msra.mxu0 %v364
      %382 = vmatprep.subr.bf16.mxu0 0
      %383 = vmatpush2.bf16.msra.mxu0 0
      %384 = vmatprep.subr.bf16.mxu0 0
      %385 = vmatpush2.bf16.msra.mxu0 0
      %386 = vmatprep.subr.bf16.mxu0 0
      %387 = vmatpush2.bf16.msra.mxu0 0
      %388 = vmatprep.subr.bf16.mxu0 0
      %389 = vmatpush2.bf16.msra.mxu0 0
      %390 = vmatprep.subr.bf16.mxu0 0
      %391 = vmatpush2.bf16.msra.mxu0 0
      %392 = vmatprep.subr.bf16.mxu0 0
      %393 = vmatpush2.bf16.msra.mxu0 0
      %394 = vmatprep.subr.bf16.mxu0 0
      %395 = vmatpush2.bf16.msra.mxu0 0
      %396 = vmatprep.subr.bf16.mxu0 0
      %397 = vmatpush2.bf16.msra.mxu0 0
      %398 = vmatprep.mubr.bf16.mxu0 0
      %399 = vmatmul.mubr.bf16.gmra.mxu0 %v361
      %v400 = vpop.f32.mrf.mxu0
      %v401 = vadd.f32 0.0, %v400
      %v402 = vpop.f32.mrf.mxu0
      %v403 = vpop.f32.mrf.mxu0
      %v404 = vpop.f32.mrf.mxu0
      %405 = vdwg.mxu0
      %v406 = vadd.f32 %v355, %v401
      %v408 = vunpack.c.l.b16 %v359
      %v409 = vpack.c.b16 %v408, %v408
      %v411 = vshrl.u32 %v409, 16
      %v413 = vshll.u32 %v409, 16
      %v415 = vrot.slane %v413, 1
      %v416 = vor.u32 %v411, %v415
      %v418 = vsel %vm214, %v416, 0
      %v421 = vsel %vm218, %v196, 0
      %423 = vmatprep.subr.bf16.mxu0 0
      %424 = vmatpush1.bf16.msra.mxu0 0
      %425 = vmatprep.subr.bf16.mxu0 0
      %426 = vmatpush1.bf16.msra.mxu0 0
      %427 = vmatprep.subr.bf16.mxu0 0
      %428 = vmatpush1.bf16.msra.mxu0 0
      %429 = vmatprep.subr.bf16.mxu0 0
      %430 = vmatpush1.bf16.msra.mxu0 0
      %431 = vmatprep.subr.bf16.mxu0 0
      %432 = vmatpush1.bf16.msra.mxu0 0
      %433 = vmatprep.subr.bf16.mxu0 0
      %434 = vmatpush1.bf16.msra.mxu0 0
      %435 = vmatprep.subr.bf16.mxu0 0
      %436 = vmatpush1.bf16.msra.mxu0 0
      %437 = vmatprep.subr.bf16.mxu0 0
      %438 = vmatpush1.bf16.msra.mxu0 %v421
      %439 = vmatprep.subr.bf16.mxu0 0
      %440 = vmatpush2.bf16.msra.mxu0 0
      %441 = vmatprep.subr.bf16.mxu0 0
      %442 = vmatpush2.bf16.msra.mxu0 0
      %443 = vmatprep.subr.bf16.mxu0 0
      %444 = vmatpush2.bf16.msra.mxu0 0
      %445 = vmatprep.subr.bf16.mxu0 0
      %446 = vmatpush2.bf16.msra.mxu0 0
      %447 = vmatprep.subr.bf16.mxu0 0
      %448 = vmatpush2.bf16.msra.mxu0 0
      %449 = vmatprep.subr.bf16.mxu0 0
      %450 = vmatpush2.bf16.msra.mxu0 0
      %451 = vmatprep.subr.bf16.mxu0 0
      %452 = vmatpush2.bf16.msra.mxu0 0
      %453 = vmatprep.subr.bf16.mxu0 0
      %454 = vmatpush2.bf16.msra.mxu0 0
      %455 = vmatprep.mubr.bf16.mxu0 0
      %456 = vmatmul.mubr.bf16.gmra.mxu0 %v418
      %v457 = vpop.f32.mrf.mxu0
      %v458 = vadd.f32 0.0, %v457
      %v459 = vpop.f32.mrf.mxu0
      %v460 = vpop.f32.mrf.mxu0
      %v461 = vpop.f32.mrf.mxu0
      %462 = vdwg.mxu0
      %v463 = vadd.f32 %v406, %v458
      %v464 = vrot.slane %v409, 1
      %v466 = vsel %vm214, %v464, 0
      %v469 = vsel %vm218, %v197, 0
      %471 = vmatprep.subr.bf16.mxu0 0
      %472 = vmatpush1.bf16.msra.mxu0 0
      %473 = vmatprep.subr.bf16.mxu0 0
      %474 = vmatpush1.bf16.msra.mxu0 0
      %475 = vmatprep.subr.bf16.mxu0 0
      %476 = vmatpush1.bf16.msra.mxu0 0
      %477 = vmatprep.subr.bf16.mxu0 0
      %478 = vmatpush1.bf16.msra.mxu0 0
      %479 = vmatprep.subr.bf16.mxu0 0
      %480 = vmatpush1.bf16.msra.mxu0 0
      %481 = vmatprep.subr.bf16.mxu0 0
      %482 = vmatpush1.bf16.msra.mxu0 0
      %483 = vmatprep.subr.bf16.mxu0 0
      %484 = vmatpush1.bf16.msra.mxu0 0
      %485 = vmatprep.subr.bf16.mxu0 0
      %486 = vmatpush1.bf16.msra.mxu0 %v469
      %487 = vmatprep.subr.bf16.mxu0 0
      %488 = vmatpush2.bf16.msra.mxu0 0
      %489 = vmatprep.subr.bf16.mxu0 0
      %490 = vmatpush2.bf16.msra.mxu0 0
      %491 = vmatprep.subr.bf16.mxu0 0
      %492 = vmatpush2.bf16.msra.mxu0 0
      %493 = vmatprep.subr.bf16.mxu0 0
      %494 = vmatpush2.bf16.msra.mxu0 0
      %495 = vmatprep.subr.bf16.mxu0 0
      %496 = vmatpush2.bf16.msra.mxu0 0
      %497 = vmatprep.subr.bf16.mxu0 0
      %498 = vmatpush2.bf16.msra.mxu0 0
      %499 = vmatprep.subr.bf16.mxu0 0
      %500 = vmatpush2.bf16.msra.mxu0 0
      %501 = vmatprep.subr.bf16.mxu0 0
      %502 = vmatpush2.bf16.msra.mxu0 0
      %503 = vmatprep.mubr.bf16.mxu0 0
      %504 = vmatmul.mubr.bf16.gmra.mxu0 %v466
      %v505 = vpop.f32.mrf.mxu0
      %v506 = vadd.f32 0.0, %v505
      %v507 = vpop.f32.mrf.mxu0
      %v508 = vpop.f32.mrf.mxu0
      %v509 = vpop.f32.mrf.mxu0
      %510 = vdwg.mxu0
      %v511 = vadd.f32 %v463, %v506
      %s512 = sadd.s32 %s19, 2
      %s513 = smul.addr %s512, 4
      %s514 = scalar_lea.vmem %s182, %s513
      %v515 = vld [vmem:[%s514] sm:$0x7]
      %v517 = vsel %vm214, %v515, 0
      %v520 = vsel %vm218, %v198, 0
      %522 = vmatprep.subr.bf16.mxu0 0
      %523 = vmatpush1.bf16.msra.mxu0 0
      %524 = vmatprep.subr.bf16.mxu0 0
      %525 = vmatpush1.bf16.msra.mxu0 0
      %526 = vmatprep.subr.bf16.mxu0 0
      %527 = vmatpush1.bf16.msra.mxu0 0
      %528 = vmatprep.subr.bf16.mxu0 0
      %529 = vmatpush1.bf16.msra.mxu0 0
      %530 = vmatprep.subr.bf16.mxu0 0
      %531 = vmatpush1.bf16.msra.mxu0 0
      %532 = vmatprep.subr.bf16.mxu0 0
      %533 = vmatpush1.bf16.msra.mxu0 0
      %534 = vmatprep.subr.bf16.mxu0 0
      %535 = vmatpush1.bf16.msra.mxu0 0
      %536 = vmatprep.subr.bf16.mxu0 0
      %537 = vmatpush1.bf16.msra.mxu0 %v520
      %538 = vmatprep.subr.bf16.mxu0 0
      %539 = vmatpush2.bf16.msra.mxu0 0
      %540 = vmatprep.subr.bf16.mxu0 0
      %541 = vmatpush2.bf16.msra.mxu0 0
      %542 = vmatprep.subr.bf16.mxu0 0
      %543 = vmatpush2.bf16.msra.mxu0 0
      %544 = vmatprep.subr.bf16.mxu0 0
      %545 = vmatpush2.bf16.msra.mxu0 0
      %546 = vmatprep.subr.bf16.mxu0 0
      %547 = vmatpush2.bf16.msra.mxu0 0
      %548 = vmatprep.subr.bf16.mxu0 0
      %549 = vmatpush2.bf16.msra.mxu0 0
      %550 = vmatprep.subr.bf16.mxu0 0
      %551 = vmatpush2.bf16.msra.mxu0 0
      %552 = vmatprep.subr.bf16.mxu0 0
      %553 = vmatpush2.bf16.msra.mxu0 0
      %554 = vmatprep.mubr.bf16.mxu0 0
      %555 = vmatmul.mubr.bf16.gmra.mxu0 %v517
      %v556 = vpop.f32.mrf.mxu0
      %v557 = vadd.f32 0.0, %v556
      %v558 = vpop.f32.mrf.mxu0
      %v559 = vpop.f32.mrf.mxu0
      %v560 = vpop.f32.mrf.mxu0
      %561 = vdwg.mxu0
      %v562 = vadd.f32 %v511, %v557
      %v564 = vunpack.c.l.b16 %v515
      %v565 = vpack.c.b16 %v564, %v564
      %v567 = vshrl.u32 %v565, 16
      %v569 = vshll.u32 %v565, 16
      %v571 = vrot.slane %v569, 1
      %v572 = vor.u32 %v567, %v571
      %v574 = vsel %vm214, %v572, 0
      %v577 = vsel %vm218, %v199, 0
      %579 = vmatprep.subr.bf16.mxu0 0
      %580 = vmatpush1.bf16.msra.mxu0 0
      %581 = vmatprep.subr.bf16.mxu0 0
      %582 = vmatpush1.bf16.msra.mxu0 0
      %583 = vmatprep.subr.bf16.mxu0 0
      %584 = vmatpush1.bf16.msra.mxu0 0
      %585 = vmatprep.subr.bf16.mxu0 0
      %586 = vmatpush1.bf16.msra.mxu0 0
      %587 = vmatprep.subr.bf16.mxu0 0
      %588 = vmatpush1.bf16.msra.mxu0 0
      %589 = vmatprep.subr.bf16.mxu0 0
      %590 = vmatpush1.bf16.msra.mxu0 0
      %591 = vmatprep.subr.bf16.mxu0 0
      %592 = vmatpush1.bf16.msra.mxu0 0
      %593 = vmatprep.subr.bf16.mxu0 0
      %594 = vmatpush1.bf16.msra.mxu0 %v577
      %595 = vmatprep.subr.bf16.mxu0 0
      %596 = vmatpush2.bf16.msra.mxu0 0
      %597 = vmatprep.subr.bf16.mxu0 0
      %598 = vmatpush2.bf16.msra.mxu0 0
      %599 = vmatprep.subr.bf16.mxu0 0
      %600 = vmatpush2.bf16.msra.mxu0 0
      %601 = vmatprep.subr.bf16.mxu0 0
      %602 = vmatpush2.bf16.msra.mxu0 0
      %603 = vmatprep.subr.bf16.mxu0 0
      %604 = vmatpush2.bf16.msra.mxu0 0
      %605 = vmatprep.subr.bf16.mxu0 0
      %606 = vmatpush2.bf16.msra.mxu0 0
      %607 = vmatprep.subr.bf16.mxu0 0
      %608 = vmatpush2.bf16.msra.mxu0 0
      %609 = vmatprep.subr.bf16.mxu0 0
      %610 = vmatpush2.bf16.msra.mxu0 0
      %611 = vmatprep.mubr.bf16.mxu0 0
      %612 = vmatmul.mubr.bf16.gmra.mxu0 %v574
      %v613 = vpop.f32.mrf.mxu0
      %v614 = vadd.f32 0.0, %v613
      %v615 = vpop.f32.mrf.mxu0
      %v616 = vpop.f32.mrf.mxu0
      %v617 = vpop.f32.mrf.mxu0
      %618 = vdwg.mxu0
      %v619 = vadd.f32 %v562, %v614
      %v620 = vrot.slane %v565, 1
      %v622 = vsel %vm214, %v620, 0
      %v625 = vsel %vm218, %v200, 0
      %627 = vmatprep.subr.bf16.mxu0 0
      %628 = vmatpush1.bf16.msra.mxu0 0
      %629 = vmatprep.subr.bf16.mxu0 0
      %630 = vmatpush1.bf16.msra.mxu0 0
      %631 = vmatprep.subr.bf16.mxu0 0
      %632 = vmatpush1.bf16.msra.mxu0 0
      %633 = vmatprep.subr.bf16.mxu0 0
      %634 = vmatpush1.bf16.msra.mxu0 0
      %635 = vmatprep.subr.bf16.mxu0 0
      %636 = vmatpush1.bf16.msra.mxu0 0
      %637 = vmatprep.subr.bf16.mxu0 0
      %638 = vmatpush1.bf16.msra.mxu0 0
      %639 = vmatprep.subr.bf16.mxu0 0
      %640 = vmatpush1.bf16.msra.mxu0 0
      %641 = vmatprep.subr.bf16.mxu0 0
      %642 = vmatpush1.bf16.msra.mxu0 %v625
      %643 = vmatprep.subr.bf16.mxu0 0
      %644 = vmatpush2.bf16.msra.mxu0 0
      %645 = vmatprep.subr.bf16.mxu0 0
      %646 = vmatpush2.bf16.msra.mxu0 0
      %647 = vmatprep.subr.bf16.mxu0 0
      %648 = vmatpush2.bf16.msra.mxu0 0
      %649 = vmatprep.subr.bf16.mxu0 0
      %650 = vmatpush2.bf16.msra.mxu0 0
      %651 = vmatprep.subr.bf16.mxu0 0
      %652 = vmatpush2.bf16.msra.mxu0 0
      %653 = vmatprep.subr.bf16.mxu0 0
      %654 = vmatpush2.bf16.msra.mxu0 0
      %655 = vmatprep.subr.bf16.mxu0 0
      %656 = vmatpush2.bf16.msra.mxu0 0
      %657 = vmatprep.subr.bf16.mxu0 0
      %658 = vmatpush2.bf16.msra.mxu0 0
      %659 = vmatprep.mubr.bf16.mxu0 0
      %660 = vmatmul.mubr.bf16.gmra.mxu0 %v622
      %v661 = vpop.f32.mrf.mxu0
      %v662 = vadd.f32 0.0, %v661
      %v663 = vpop.f32.mrf.mxu0
      %v664 = vpop.f32.mrf.mxu0
      %v665 = vpop.f32.mrf.mxu0
      %666 = vdwg.mxu0
      %v667 = vadd.f32 %v619, %v662
      %v668 = vld [vmem:[%s2] sm:$0x1]
      %v670 = vlaneseq
      %v671 = vshrl.u32 %v670, 7
      %v672 = vsub.s32 0, %v671
      %v673 = vrot.slane %v668, %v672
      %v675 = vadd.f32 %v667, %v673
      %v676 = vxor.u32 %v675, 2147483648
      %v677 = vmul.f32 %v676, 1.442695
      %v678 = vpow.pop %v677
      %v679 = vadd.f32 %v678, 1.0
      %v680 = vrcp.pop %v679
      %v681 = vmul.f32 1.0, %v680
      %v682 = vmul.f32 %v675, %v681
      %v683 = vpack.c.bf16 %v682, %v682
      %vm684 = vcmask 58368
      %685 = vst.msk [vmem:[%s190] sm:$0x3] %vm684, %v683
      %p686 = scmp.lt.s32.totalorder %s18, 1
      %s687 = scalar_select %p686, %s18, 1
      %p688 = scmp.lt.s32.totalorder %s19, 3
      %s689 = scalar_select %p688, %s19, 3
      %s690 = smul.addr %s687, 4
      %s691 = sadd.s32 %s689, %s690
      %s692 = smul.addr %s691, 2
      %s693 = scalar_lea.vmem %s3, %s692
      // Predicated region
      $region33: #{_lambda_.45} parent=31 // pred_check
        %p694 = pneg %p114
      $region34: #{_lambda_.45} parent=31 // pred_check_branch
        %696 = sbr.rel (%p694) target = $region36
      $region35: #{_lambda_.45} parent=31 // pred_region
        _
      $region36: #{_lambda_.45} parent=31 // pred_fallthru
        _
    $region32: #{_lambda_.45} parent=5 // pred_fallthru
      _
    %p697 = scmp.le.s32.totalorder 2, %s9
    // Predicated region
    $region37: #{_lambda_.45} parent=5 // pred_check
      %p698 = pneg %p697
    $region38: #{_lambda_.45} parent=5 // pred_check_branch
      %700 = sbr.rel (%p698) target = $region40
    $region39: #{_lambda_.45} parent=5 // pred_region
      %s701 = ssub.s32 %s9, 2
      // Predicated region
      $region41: #{_lambda_.45} parent=39 // pred_check
        %p702 = pneg %p120
      $region42: #{_lambda_.45} parent=39 // pred_check_branch
        %704 = sbr.rel (%p702) target = $region44
      $region43: #{_lambda_.45} parent=39 // pred_region
        %p705 = scmp.lt.s32.totalorder %s20, 1
        %s706 = scalar_select %p705, %s20, 1
        %p707 = scmp.lt.s32.totalorder %s21, 3
        %s708 = scalar_select %p707, %s21, 3
        %s709 = smul.addr %s706, 4
        %s710 = sadd.s32 %s708, %s709
        %s711 = smul.addr %s710, 2
        %s712 = scalar_lea.vmem %s3, %s711
      $region44: #{_lambda_.45} parent=39 // pred_fallthru
        _
    $region40: #{_lambda_.45} parent=5 // pred_fallthru
      _
  $region6: #{_lambda_.45} parent=0 // loop_footer
    %s13 = sadd.s32 1, %s9
  $region7: #{_lambda_.45} parent=0 // loop_footer_branch
    %8 = sbr.rel target = $region3
  $region8: #{_lambda_.45} parent=0 // loop_exit
    _

// kernel: _lambda_.46
$region0: #{_lambda_.46}
  #allocation0 [shape = 'u32[]', space=smem, size = 0x4, offset = 0x4, fixed_abs, tag = 'smem constant byte address 0x4 - core index']
  #allocation1 [shape = 'u32[144,128]{1,0:T(1,128)}', space=vmem, size = 0x12000, scoped, tag = 'internal scratch']
  %s0 = inlined_call_operand.vmem [shape: bf16[2,6,6,8], index: 0, kind: input, shape index: {}]
  %s1 = inlined_call_operand.vmem [shape: bf16[72,8], index: 1, kind: input, shape index: {}]
  %s2 = inlined_call_operand.vmem [shape: f32[1,8], index: 2, kind: input, shape index: {}]
  %s3 = inlined_call_operand.vmem [shape: bf16[2,4,4,8], index: 3, kind: input, shape index: {}]
  %s4 = inlined_call_operand.vmem [shape: bf16[2,4,4,8], index: 4, kind: output, shape index: {}]
  %s5 = sld [smem:[#allocation0]]
  $region49: #{_lambda_.46} parent=0
    _
  %s7 = ssub.s32 1, %s5
  %s8 = scalar_select 0, %s7, %s5
  loop: start=0, step=1, limit=10
  $region2: #{_lambda_.46} parent=0 // loop_pre_header
    _
  $region3: #{_lambda_.46} parent=0 // loop_header
    %s10 = sphi 0, %s14
    %p11 = scmp.ge.s32.totalorder %s10, 10
    %s17 = sphi 0, %s29
    %s18 = sphi 0, %s25
    %s19 = sphi 0, %s17
    %s20 = sphi 0, %s18
    %s21 = sphi 0, %s19
    %s22 = sphi 0, %s20
    %s32 = sphi 0, %s34
    %s35 = sphi 0, %s32
    %s36 = sphi 0, %s35
    %s52 = sphi 0, %s36
    %s56 = sphi 0, %s56
    %s58 = sphi 0, %s56
    %s59 = sphi 0, %s58
    %s73 = sphi 0, %s59
    %s77 = sphi 0, %s77
    %s79 = sphi 0, %s77
    %s80 = sphi 0, %s79
    %s94 = sphi 0, %s80
    %s102 = sphi 0, %s104
    %s105 = sphi 0, %s102
    %s106 = sphi 0, %s105
    %s122 = sphi 0, %s106
    %s130 = sphi 0, %s132
    %s133 = sphi 0, %s130
    %s134 = sphi 0, %s133
    %s150 = sphi 0, %s134
  $region4: #{_lambda_.46} parent=0 // loop_header_branch
    %13 = sbr.rel (%p11) target = $region8
  $region5: #{_lambda_.46} parent=0 // loop_body
    %s15 = ssub.s32 %s10, 1
    %s16 = ssub.s32 %s10, 2
    %s23 = sadd.s32 1, %s18
    %p24 = scmp.ge.s32.totalorder %s23, 4
    %s25 = scalar_select %p24, 0, %s23
    %s26 = sadd.s32 1, %s17
    %s27 = scalar_select %p24, %s26, %s17
    %p28 = scmp.ge.s32.totalorder %s27, 2
    %s29 = scalar_select %p28, 0, %s27
    %s30 = ssub.s32 %s17, %s29
    %p31 = scmp.eq.s32.totalorder %s30, 0
    %s33 = sadd.s32 %s32, 1
    %s34 = scalar_select %p31, %s32, %s33
    %p37 = pneg %p31
    %p38 = scmp.eq.s32.totalorder %s10, 7
    %p39 = por %p37, %p38
    %p40 = scmp.ne.s32.totalorder %s32, %s35
    %p41 = scmp.eq.s32.totalorder %s10, 0
    %p42 = por %p40, %p41
    %p43 = scmp.ne.s32.totalorder %s32, %s35
    %p44 = scmp.eq.s32.totalorder %s15, 7
    %p45 = por %p43, %p44
    %p46 = scmp.ne.s32.totalorder %s35, %s36
    %p47 = scmp.eq.s32.totalorder %s15, 0
    %p48 = por %p46, %p47
    %p49 = scmp.ne.s32.totalorder %s35, %s36
    %p50 = scmp.eq.s32.totalorder %s16, 7
    %p51 = por %p49, %p50
    %p53 = scmp.ne.s32.totalorder %s36, %s52
    %p54 = scmp.eq.s32.totalorder %s16, 0
    %p55 = por %p53, %p54
    %s57 = sadd.s32 %s56, 1
    %p60 = scmp.eq.s32.totalorder %s10, 7
    %p61 = scmp.ne.s32.totalorder %s56, %s58
    %p62 = scmp.eq.s32.totalorder %s10, 0
    %p63 = por %p61, %p62
    %p64 = scmp.ne.s32.totalorder %s56, %s58
    %p65 = scmp.eq.s32.totalorder %s15, 7
    %p66 = por %p64, %p65
    %p67 = scmp.ne.s32.totalorder %s58, %s59
    %p68 = scmp.eq.s32.totalorder %s15, 0
    %p69 = por %p67, %p68
    %p70 = scmp.ne.s32.totalorder %s58, %s59
    %p71 = scmp.eq.s32.totalorder %s16, 7
    %p72 = por %p70, %p71
    %p74 = scmp.ne.s32.totalorder %s59, %s73
    %p75 = scmp.eq.s32.totalorder %s16, 0
    %p76 = por %p74, %p75
    %s78 = sadd.s32 %s77, 1
    %p81 = scmp.eq.s32.totalorder %s10, 7
    %p82 = scmp.ne.s32.totalorder %s77, %s79
    %p83 = scmp.eq.s32.totalorder %s10, 0
    %p84 = por %p82, %p83
    %p85 = scmp.ne.s32.totalorder %s77, %s79
    %p86 = scmp.eq.s32.totalorder %s15, 7
    %p87 = por %p85, %p86
    %p88 = scmp.ne.s32.totalorder %s79, %s80
    %p89 = scmp.eq.s32.totalorder %s15, 0
    %p90 = por %p88, %p89
    %p91 = scmp.ne.s32.totalorder %s79, %s80
    %p92 = scmp.eq.s32.totalorder %s16, 7
    %p93 = por %p91, %p92
    %p95 = scmp.ne.s32.totalorder %s80, %s94
    %p96 = scmp.eq.s32.totalorder %s16, 0
    %p97 = por %p95, %p96
    %s98 = ssub.s32 %s17, %s29
    %s99 = ssub.s32 %s18, %s25
    %s100 = sor.u32 %s98, %s99
    %p101 = scmp.eq.s32.totalorder %s100, 0
    %s103 = sadd.s32 %s102, 1
    %s104 = scalar_select %p101, %s102, %s103
    %p107 = pneg %p101
    %p108 = scmp.eq.s32.totalorder %s10, 7
    %p109 = por %p107, %p108
    %p110 = scmp.ne.s32.totalorder %s102, %s105
    %p111 = scmp.eq.s32.totalorder %s10, 0
    %p112 = por %p110, %p111
    %p113 = scmp.ne.s32.totalorder %s102, %s105
    %p114 = scmp.eq.s32.totalorder %s15, 7
    %p115 = por %p113, %p114
    %p116 = scmp.ne.s32.totalorder %s105, %s106
    %p117 = scmp.eq.s32.totalorder %s15, 0
    %p118 = por %p116, %p117
    %p119 = scmp.ne.s32.totalorder %s105, %s106
    %p120 = scmp.eq.s32.totalorder %s16, 7
    %p121 = por %p119, %p120
    %p123 = scmp.ne.s32.totalorder %s106, %s122
    %p124 = scmp.eq.s32.totalorder %s16, 0
    %p125 = por %p123, %p124
    %s126 = ssub.s32 %s17, %s29
    %s127 = ssub.s32 %s18, %s25
    %s128 = sor.u32 %s126, %s127
    %p129 = scmp.eq.s32.totalorder %s128, 0
    %s131 = sadd.s32 %s130, 1
    %s132 = scalar_select %p129, %s130, %s131
    %p135 = pneg %p129
    %p136 = scmp.eq.s32.totalorder %s10, 7
    %p137 = por %p135, %p136
    %p138 = scmp.ne.s32.totalorder %s130, %s133
    %p139 = scmp.eq.s32.totalorder %s10, 0
    %p140 = por %p138, %p139
    %p141 = scmp.ne.s32.totalorder %s130, %s133
    %p142 = scmp.eq.s32.totalorder %s15, 7
    %p143 = por %p141, %p142
    %p144 = scmp.ne.s32.totalorder %s133, %s134
    %p145 = scmp.eq.s32.totalorder %s15, 0
    %p146 = por %p144, %p145
    %p147 = scmp.ne.s32.totalorder %s133, %s134
    %p148 = scmp.eq.s32.totalorder %s16, 7
    %p149 = por %p147, %p148
    %p151 = scmp.ne.s32.totalorder %s134, %s150
    %p152 = scmp.eq.s32.totalorder %s16, 0
    %p153 = por %p151, %p152
    %p154 = scmp.le.s32.totalorder 1, %s10
    %p155 = scmp.lt.s32.totalorder %s10, 9
    %p156 = pnand %p154, %p155
    %p157 = pneg %p156
    // Predicated region
    $region9: #{_lambda_.46} parent=5 // pred_check
      _
    $region10: #{_lambda_.46} parent=5 // pred_check_branch
      %159 = sbr.rel (%p156) target = $region12
    $region11: #{_lambda_.46} parent=5 // pred_region
      %s160 = ssub.s32 %s10, 1
      // Predicated region
      $region13: #{_lambda_.46} parent=11 // pred_check
        %p161 = pneg %p69
      $region14: #{_lambda_.46} parent=11 // pred_check_branch
        %163 = sbr.rel (%p161) target = $region16
      $region15: #{_lambda_.46} parent=11 // pred_region
        _
      $region16: #{_lambda_.46} parent=11 // pred_fallthru
        _
      // Predicated region
      $region17: #{_lambda_.46} parent=11 // pred_check
        %p164 = pneg %p90
      $region18: #{_lambda_.46} parent=11 // pred_check_branch
        %166 = sbr.rel (%p164) target = $region20
      $region19: #{_lambda_.46} parent=11 // pred_region
        _
      $region20: #{_lambda_.46} parent=11 // pred_fallthru
        _
    $region12: #{_lambda_.46} parent=5 // pred_fallthru
      _
    %p167 = scmp.lt.s32.totalorder %s10, 8
    // Predicated region
    $region21: #{_lambda_.46} parent=5 // pred_check
      %p168 = pneg %p167
    $region22: #{_lambda_.46} parent=5 // pred_check_branch
      %170 = sbr.rel (%p168) target = $region24
    $region23: #{_lambda_.46} parent=5 // pred_region
      // Predicated region
      $region25: #{_lambda_.46} parent=23 // pred_check
        %p171 = pneg %p42
      $region26: #{_lambda_.46} parent=23 // pred_check_branch
        %173 = sbr.rel (%p171) target = $region28
      $region27: #{_lambda_.46} parent=23 // pred_region
        %p174 = scmp.lt.s32.totalorder %s17, 1
        %s175 = scalar_select %p174, %s17, 1
        %s176 = smul.addr %s175, 6
        %s177 = smul.addr %s176, 4
        %s178 = scalar_lea.vmem %s0, %s177
      $region28: #{_lambda_.46} parent=23 // pred_fallthru
        _
      // Predicated region
      $region29: #{_lambda_.46} parent=23 // pred_check
        %p179 = pneg %p112
      $region30: #{_lambda_.46} parent=23 // pred_check_branch
        %181 = sbr.rel (%p179) target = $region32
      $region31: #{_lambda_.46} parent=23 // pred_region
        %p182 = scmp.lt.s32.totalorder %s17, 1
        %s183 = scalar_select %p182, %s17, 1
        %p184 = scmp.lt.s32.totalorder %s18, 3
        %s185 = scalar_select %p184, %s18, 3
        %s186 = smul.addr %s183, 4
        %s187 = sadd.s32 %s185, %s186
        %s188 = smul.addr %s187, 2
        %s189 = scalar_lea.vmem %s3, %s188
      $region32: #{_lambda_.46} parent=23 // pred_fallthru
        _
    $region24: #{_lambda_.46} parent=5 // pred_fallthru
      _
    %p190 = scmp.le.s32.totalorder 1, %s10
    %p191 = scmp.lt.s32.totalorder %s10, 9
    %p192 = pnand %p190, %p191
    %p193 = pneg %p192
    // Predicated region
    $region33: #{_lambda_.46} parent=5 // pred_check
      _
    $region34: #{_lambda_.46} parent=5 // pred_check_branch
      %195 = sbr.rel (%p192) target = $region36
    $region35: #{_lambda_.46} parent=5 // pred_region
      %s196 = ssub.s32 %s10, 1
      %p197 = scmp.lt.s32.totalorder %s19, 1
      %s198 = scalar_select %p197, %s19, 1
      %s199 = smul.addr %s198, 6
      %s200 = smul.addr %s199, 4
      %s201 = scalar_lea.vmem %s0, %s200
      %p202 = pneg %p48
      %p203 = pneg %p45
      %p204 = pneg %p69
      %p205 = pneg %p66
      %p206 = pneg %p90
      %p207 = pneg %p87
      %p208 = scmp.lt.s32.totalorder %s19, 1
      %s209 = scalar_select %p208, %s19, 1
      %p210 = scmp.lt.s32.totalorder %s20, 3
      %s211 = scalar_select %p210, %s20, 3
      %s212 = smul.addr %s209, 4
      %s213 = sadd.s32 %s211, %s212
      %s214 = smul.addr %s213, 2
      %s215 = scalar_lea.vmem %s3, %s214
      %p216 = pneg %p118
      %p217 = pneg %p115
      %p218 = pneg %p146
      %p219 = pneg %p143
      %p220 = scmp.lt.s32.totalorder %s19, 1
      %s221 = scalar_select %p220, %s19, 1
      %p222 = scmp.lt.s32.totalorder %s20, 3
      %s223 = scalar_select %p222, %s20, 3
      %s224 = smul.addr %s221, 4
      %s225 = sadd.s32 %s223, %s224
      %s226 = smul.addr %s225, 2
      %s227 = scalar_lea.vmem %s4, %s226
      %p228 = scmp.lt.s32.totalorder %s19, 1
      %s229 = scalar_select %p228, %s19, 1
      %s230 = smul.addr %s229, 6
      %s231 = smul.addr %s230, 4
      %s232 = scalar_lea.vmem %s0, %s231
      %p233 = scmp.lt.s32.totalorder %s19, 1
      %s234 = scalar_select %p233, %s19, 1
      %p235 = scmp.lt.s32.totalorder %s20, 3
      %s236 = scalar_select %p235, %s20, 3
      %s237 = smul.addr %s234, 4
      %s238 = sadd.s32 %s236, %s237
      %s239 = smul.addr %s238, 2
      %s240 = scalar_lea.vmem %s3, %s239
      %p241 = scmp.lt.s32.totalorder %s19, 1
      %s242 = scalar_select %p241, %s19, 1
      %p243 = scmp.lt.s32.totalorder %s20, 3
      %s244 = scalar_select %p243, %s20, 3
      %s245 = smul.addr %s242, 4
      %s246 = sadd.s32 %s244, %s245
      %s247 = smul.addr %s246, 2
      %s248 = scalar_lea.vmem %s4, %s247
      %v250 = vld [vmem:[%s1] sm:$0xf]
      %v251 = vld [vmem:[%s1 + $0x4] sm:$0xf]
      %v252 = vld [vmem:[%s1 + $0x8] sm:$0xf]
      %v253 = vld [vmem:[%s1 + $0xc] sm:$0xf]
      %v254 = vld [vmem:[%s1 + $0x10] sm:$0xf]
      %v255 = vld [vmem:[%s1 + $0x14] sm:$0xf]
      %v256 = vld [vmem:[%s1 + $0x18] sm:$0xf]
      %v257 = vld [vmem:[%s1 + $0x1c] sm:$0xf]
      %v258 = vld [vmem:[%s1 + $0x20] sm:$0xf]
      %s259 = smul.addr %s20, 4
      %s260 = scalar_lea.vmem %s232, %s259
      %v261 = vld [vmem:[%s260] sm:$0x7]
      %v263 = vunpack.c.l.b16 %v261
      %v264 = vpack.c.b16 %v263, %v263
      %v266 = vshrl.u32 %v264, 16
      %v268 = vshll.u32 %v264, 16
      %v270 = vrot.slane %v268, 1
      %v271 = vor.u32 %v266, %v270
      %vm272 = vcmask 64512
      %v274 = vsel %vm272, %v271, 0
      %vm276 = vcmask 1043456
      %v278 = vsel %vm276, %v251, 0
      %280 = vmatprep.subr.bf16.mxu0 0
      %281 = vmatpush1.bf16.msra.mxu0 0
      %282 = vmatprep.subr.bf16.mxu0 0
      %283 = vmatpush1.bf16.msra.mxu0 0
      %284 = vmatprep.subr.bf16.mxu0 0
      %285 = vmatpush1.bf16.msra.mxu0 0
      %286 = vmatprep.subr.bf16.mxu0 0
      %287 = vmatpush1.bf16.msra.mxu0 0
      %288 = vmatprep.subr.bf16.mxu0 0
      %289 = vmatpush1.bf16.msra.mxu0 0
      %290 = vmatprep.subr.bf16.mxu0 0
      %291 = vmatpush1.bf16.msra.mxu0 0
      %292 = vmatprep.subr.bf16.mxu0 0
      %293 = vmatpush1.bf16.msra.mxu0 0
      %294 = vmatprep.subr.bf16.mxu0 0
      %295 = vmatpush1.bf16.msra.mxu0 %v278
      %296 = vmatprep.subr.bf16.mxu0 0
      %297 = vmatpush2.bf16.msra.mxu0 0
      %298 = vmatprep.subr.bf16.mxu0 0
      %299 = vmatpush2.bf16.msra.mxu0 0
      %300 = vmatprep.subr.bf16.mxu0 0
      %301 = vmatpush2.bf16.msra.mxu0 0
      %302 = vmatprep.subr.bf16.mxu0 0
      %303 = vmatpush2.bf16.msra.mxu0 0
      %304 = vmatprep.subr.bf16.mxu0 0
      %305 = vmatpush2.bf16.msra.mxu0 0
      %306 = vmatprep.subr.bf16.mxu0 0
      %307 = vmatpush2.bf16.msra.mxu0 0
      %308 = vmatprep.subr.bf16.mxu0 0
      %309 = vmatpush2.bf16.msra.mxu0 0
      %310 = vmatprep.subr.bf16.mxu0 0
      %311 = vmatpush2.bf16.msra.mxu0 0
      %312 = vmatprep.mubr.bf16.mxu0 0
      %313 = vmatmul.mubr.bf16.gmra.mxu0 %v274
      %v314 = vpop.f32.mrf.mxu0
      %v315 = vadd.f32 0.0, %v314
      %v316 = vpop.f32.mrf.mxu0
      %v317 = vpop.f32.mrf.mxu0
      %v318 = vpop.f32.mrf.mxu0
      %319 = vdwg.mxu0
      %v321 = vsel %vm272, %v261, 0
      %v324 = vsel %vm276, %v250, 0
      %326 = vmatprep.subr.bf16.mxu0 0
      %327 = vmatpush1.bf16.msra.mxu0 0
      %328 = vmatprep.subr.bf16.mxu0 0
      %329 = vmatpush1.bf16.msra.mxu0 0
      %330 = vmatprep.subr.bf16.mxu0 0
      %331 = vmatpush1.bf16.msra.mxu0 0
      %332 = vmatprep.subr.bf16.mxu0 0
      %333 = vmatpush1.bf16.msra.mxu0 0
      %334 = vmatprep.subr.bf16.mxu0 0
      %335 = vmatpush1.bf16.msra.mxu0 0
      %336 = vmatprep.subr.bf16.mxu0 0
      %337 = vmatpush1.bf16.msra.mxu0 0
      %338 = vmatprep.subr.bf16.mxu0 0
      %339 = vmatpush1.bf16.msra.mxu0 0
      %340 = vmatprep.subr.bf16.mxu0 0
      %341 = vmatpush1.bf16.msra.mxu0 %v324
      %342 = vmatprep.subr.bf16.mxu0 0
      %343 = vmatpush2.bf16.msra.mxu0 0
      %344 = vmatprep.subr.bf16.mxu0 0
      %345 = vmatpush2.bf16.msra.mxu0 0
      %346 = vmatprep.subr.bf16.mxu0 0
      %347 = vmatpush2.bf16.msra.mxu0 0
      %348 = vmatprep.subr.bf16.mxu0 0
      %349 = vmatpush2.bf16.msra.mxu0 0
      %350 = vmatprep.subr.bf16.mxu0 0
      %351 = vmatpush2.bf16.msra.mxu0 0
      %352 = vmatprep.subr.bf16.mxu0 0
      %353 = vmatpush2.bf16.msra.mxu0 0
      %354 = vmatprep.subr.bf16.mxu0 0
      %355 = vmatpush2.bf16.msra.mxu0 0
      %356 = vmatprep.subr.bf16.mxu0 0
      %357 = vmatpush2.bf16.msra.mxu0 0
      %358 = vmatprep.mubr.bf16.mxu0 0
      %359 = vmatmul.mubr.bf16.gmra.mxu0 %v321
      %v360 = vpop.f32.mrf.mxu0
      %v361 = vadd.f32 %v315, %v360
      %v362 = vpop.f32.mrf.mxu0
      %v363 = vpop.f32.mrf.mxu0
      %v364 = vpop.f32.mrf.mxu0
      %365 = vdwg.mxu0
      %v366 = vrot.slane %v264, 1
      %v368 = vsel %vm272, %v366, 0
      %v371 = vsel %vm276, %v252, 0
      %373 = vmatprep.subr.bf16.mxu0 0
      %374 = vmatpush1.bf16.msra.mxu0 0
      %375 = vmatprep.subr.bf16.mxu0 0
      %376 = vmatpush1.bf16.msra.mxu0 0
      %377 = vmatprep.subr.bf16.mxu0 0
      %378 = vmatpush1.bf16.msra.mxu0 0
      %379 = vmatprep.subr.bf16.mxu0 0
      %380 = vmatpush1.bf16.msra.mxu0 0
      %381 = vmatprep.subr.bf16.mxu0 0
      %382 = vmatpush1.bf16.msra.mxu0 0
      %383 = vmatprep.subr.bf16.mxu0 0
      %384 = vmatpush1.bf16.msra.mxu0 0
      %385 = vmatprep.subr.bf16.mxu0 0
      %386 = vmatpush1.bf16.msra.mxu0 0
      %387 = vmatprep.subr.bf16.mxu0 0
      %388 = vmatpush1.bf16.msra.mxu0 %v371
      %389 = vmatprep.subr.bf16.mxu0 0
      %390 = vmatpush2.bf16.msra.mxu0 0
      %391 = vmatprep.subr.bf16.mxu0 0
      %392 = vmatpush2.bf16.msra.mxu0 0
      %393 = vmatprep.subr.bf16.mxu0 0
      %394 = vmatpush2.bf16.msra.mxu0 0
      %395 = vmatprep.subr.bf16.mxu0 0
      %396 = vmatpush2.bf16.msra.mxu0 0
      %397 = vmatprep.subr.bf16.mxu0 0
      %398 = vmatpush2.bf16.msra.mxu0 0
      %399 = vmatprep.subr.bf16.mxu0 0
      %400 = vmatpush2.bf16.msra.mxu0 0
      %401 = vmatprep.subr.bf16.mxu0 0
      %402 = vmatpush2.bf16.msra.mxu0 0
      %403 = vmatprep.subr.bf16.mxu0 0
      %404 = vmatpush2.bf16.msra.mxu0 0
      %405 = vmatprep.mubr.bf16.mxu0 0
      %406 = vmatmul.mubr.bf16.gmra.mxu0 %v368
      %v407 = vpop.f32.mrf.mxu0
      %v408 = vadd.f32 0.0, %v407
      %v409 = vpop.f32.mrf.mxu0
      %v410 = vpop.f32.mrf.mxu0
      %v411 = vpop.f32.mrf.mxu0
      %412 = vdwg.mxu0
      %v413 = vadd.f32 %v361, %v408
      %s414 = sadd.s32 %s20, 1
      %s415 = smul.addr %s414, 4
      %s416 = scalar_lea.vmem %s232, %s415
      %v417 = vld [vmem:[%s416] sm:$0x7]
      %v419 = vsel %vm272, %v417, 0
      %v422 = vsel %vm276, %v253, 0
      %424 = vmatprep.subr.bf16.mxu0 0
      %425 = vmatpush1.bf16.msra.mxu0 0
      %426 = vmatprep.subr.bf16.mxu0 0
      %427 = vmatpush1.bf16.msra.mxu0 0
      %428 = vmatprep.subr.bf16.mxu0 0
      %429 = vmatpush1.bf16.msra.mxu0 0
      %430 = vmatprep.subr.bf16.mxu0 0
      %431 = vmatpush1.bf16.msra.mxu0 0
      %432 = vmatprep.subr.bf16.mxu0 0
      %433 = vmatpush1.bf16.msra.mxu0 0
      %434 = vmatprep.subr.bf16.mxu0 0
      %435 = vmatpush1.bf16.msra.mxu0 0
      %436 = vmatprep.subr.bf16.mxu0 0
      %437 = vmatpush1.bf16.msra.mxu0 0
      %438 = vmatprep.subr.bf16.mxu0 0
      %439 = vmatpush1.bf16.msra.mxu0 %v422
      %440 = vmatprep.subr.bf16.mxu0 0
      %441 = vmatpush2.bf16.msra.mxu0 0
      %442 = vmatprep.subr.bf16.mxu0 0
      %443 = vmatpush2.bf16.msra.mxu0 0
      %444 = vmatprep.subr.bf16.mxu0 0
      %445 = vmatpush2.bf16.msra.mxu0 0
      %446 = vmatprep.subr.bf16.mxu0 0
      %447 = vmatpush2.bf16.msra.mxu0 0
      %448 = vmatprep.subr.bf16.mxu0 0
      %449 = vmatpush2.bf16.msra.mxu0 0
      %450 = vmatprep.subr.bf16.mxu0 0
      %451 = vmatpush2.bf16.msra.mxu0 0
      %452 = vmatprep.subr.bf16.mxu0 0
      %453 = vmatpush2.bf16.msra.mxu0 0
      %454 = vmatprep.subr.bf16.mxu0 0
      %455 = vmatpush2.bf16.msra.mxu0 0
      %456 = vmatprep.mubr.bf16.mxu0 0
      %457 = vmatmul.mubr.bf16.gmra.mxu0 %v419
      %v458 = vpop.f32.mrf.mxu0
      %v459 = vadd.f32 0.0, %v458
      %v460 = vpop.f32.mrf.mxu0
      %v461 = vpop.f32.mrf.mxu0
      %v462 = vpop.f32.mrf.mxu0
      %463 = vdwg.mxu0
      %v464 = vadd.f32 %v413, %v459
      %v466 = vunpack.c.l.b16 %v417
      %v467 = vpack.c.b16 %v466, %v466
      %v469 = vshrl.u32 %v467, 16
      %v471 = vshll.u32 %v467, 16
      %v473 = vrot.slane %v471, 1
      %v474 = vor.u32 %v469, %v473
      %v476 = vsel %vm272, %v474, 0
      %v479 = vsel %vm276, %v254, 0
      %481 = vmatprep.subr.bf16.mxu0 0
      %482 = vmatpush1.bf16.msra.mxu0 0
      %483 = vmatprep.subr.bf16.mxu0 0
      %484 = vmatpush1.bf16.msra.mxu0 0
      %485 = vmatprep.subr.bf16.mxu0 0
      %486 = vmatpush1.bf16.msra.mxu0 0
      %487 = vmatprep.subr.bf16.mxu0 0
      %488 = vmatpush1.bf16.msra.mxu0 0
      %489 = vmatprep.subr.bf16.mxu0 0
      %490 = vmatpush1.bf16.msra.mxu0 0
      %491 = vmatprep.subr.bf16.mxu0 0
      %492 = vmatpush1.bf16.msra.mxu0 0
      %493 = vmatprep.subr.bf16.mxu0 0
      %494 = vmatpush1.bf16.msra.mxu0 0
      %495 = vmatprep.subr.bf16.mxu0 0
      %496 = vmatpush1.bf16.msra.mxu0 %v479
      %497 = vmatprep.subr.bf16.mxu0 0
      %498 = vmatpush2.bf16.msra.mxu0 0
      %499 = vmatprep.subr.bf16.mxu0 0
      %500 = vmatpush2.bf16.msra.mxu0 0
      %501 = vmatprep.subr.bf16.mxu0 0
      %502 = vmatpush2.bf16.msra.mxu0 0
      %503 = vmatprep.subr.bf16.mxu0 0
      %504 = vmatpush2.bf16.msra.mxu0 0
      %505 = vmatprep.subr.bf16.mxu0 0
      %506 = vmatpush2.bf16.msra.mxu0 0
      %507 = vmatprep.subr.bf16.mxu0 0
      %508 = vmatpush2.bf16.msra.mxu0 0
      %509 = vmatprep.subr.bf16.mxu0 0
      %510 = vmatpush2.bf16.msra.mxu0 0
      %511 = vmatprep.subr.bf16.mxu0 0
      %512 = vmatpush2.bf16.msra.mxu0 0
      %513 = vmatprep.mubr.bf16.mxu0 0
      %514 = vmatmul.mubr.bf16.gmra.mxu0 %v476
      %v515 = vpop.f32.mrf.mxu0
      %v516 = vadd.f32 0.0, %v515
      %v517 = vpop.f32.mrf.mxu0
      %v518 = vpop.f32.mrf.mxu0
      %v519 = vpop.f32.mrf.mxu0
      %520 = vdwg.mxu0
      %v521 = vadd.f32 %v464, %v516
      %v522 = vrot.slane %v467, 1
      %v524 = vsel %vm272, %v522, 0
      %v527 = vsel %vm276, %v255, 0
      %529 = vmatprep.subr.bf16.mxu0 0
      %530 = vmatpush1.bf16.msra.mxu0 0
      %531 = vmatprep.subr.bf16.mxu0 0
      %532 = vmatpush1.bf16.msra.mxu0 0
      %533 = vmatprep.subr.bf16.mxu0 0
      %534 = vmatpush1.bf16.msra.mxu0 0
      %535 = vmatprep.subr.bf16.mxu0 0
      %536 = vmatpush1.bf16.msra.mxu0 0
      %537 = vmatprep.subr.bf16.mxu0 0
      %538 = vmatpush1.bf16.msra.mxu0 0
      %539 = vmatprep.subr.bf16.mxu0 0
      %540 = vmatpush1.bf16.msra.mxu0 0
      %541 = vmatprep.subr.bf16.mxu0 0
      %542 = vmatpush1.bf16.msra.mxu0 0
      %543 = vmatprep.subr.bf16.mxu0 0
      %544 = vmatpush1.bf16.msra.mxu0 %v527
      %545 = vmatprep.subr.bf16.mxu0 0
      %546 = vmatpush2.bf16.msra.mxu0 0
      %547 = vmatprep.subr.bf16.mxu0 0
      %548 = vmatpush2.bf16.msra.mxu0 0
      %549 = vmatprep.subr.bf16.mxu0 0
      %550 = vmatpush2.bf16.msra.mxu0 0
      %551 = vmatprep.subr.bf16.mxu0 0
      %552 = vmatpush2.bf16.msra.mxu0 0
      %553 = vmatprep.subr.bf16.mxu0 0
      %554 = vmatpush2.bf16.msra.mxu0 0
      %555 = vmatprep.subr.bf16.mxu0 0
      %556 = vmatpush2.bf16.msra.mxu0 0
      %557 = vmatprep.subr.bf16.mxu0 0
      %558 = vmatpush2.bf16.msra.mxu0 0
      %559 = vmatprep.subr.bf16.mxu0 0
      %560 = vmatpush2.bf16.msra.mxu0 0
      %561 = vmatprep.mubr.bf16.mxu0 0
      %562 = vmatmul.mubr.bf16.gmra.mxu0 %v524
      %v563 = vpop.f32.mrf.mxu0
      %v564 = vadd.f32 0.0, %v563
      %v565 = vpop.f32.mrf.mxu0
      %v566 = vpop.f32.mrf.mxu0
      %v567 = vpop.f32.mrf.mxu0
      %568 = vdwg.mxu0
      %v569 = vadd.f32 %v521, %v564
      %s570 = sadd.s32 %s20, 2
      %s571 = smul.addr %s570, 4
      %s572 = scalar_lea.vmem %s232, %s571
      %v573 = vld [vmem:[%s572] sm:$0x7]
      %v575 = vsel %vm272, %v573, 0
      %v578 = vsel %vm276, %v256, 0
      %580 = vmatprep.subr.bf16.mxu0 0
      %581 = vmatpush1.bf16.msra.mxu0 0
      %582 = vmatprep.subr.bf16.mxu0 0
      %583 = vmatpush1.bf16.msra.mxu0 0
      %584 = vmatprep.subr.bf16.mxu0 0
      %585 = vmatpush1.bf16.msra.mxu0 0
      %586 = vmatprep.subr.bf16.mxu0 0
      %587 = vmatpush1.bf16.msra.mxu0 0
      %588 = vmatprep.subr.bf16.mxu0 0
      %589 = vmatpush1.bf16.msra.mxu0 0
      %590 = vmatprep.subr.bf16.mxu0 0
      %591 = vmatpush1.bf16.msra.mxu0 0
      %592 = vmatprep.subr.bf16.mxu0 0
      %593 = vmatpush1.bf16.msra.mxu0 0
      %594 = vmatprep.subr.bf16.mxu0 0
      %595 = vmatpush1.bf16.msra.mxu0 %v578
      %596 = vmatprep.subr.bf16.mxu0 0
      %597 = vmatpush2.bf16.msra.mxu0 0
      %598 = vmatprep.subr.bf16.mxu0 0
      %599 = vmatpush2.bf16.msra.mxu0 0
      %600 = vmatprep.subr.bf16.mxu0 0
      %601 = vmatpush2.bf16.msra.mxu0 0
      %602 = vmatprep.subr.bf16.mxu0 0
      %603 = vmatpush2.bf16.msra.mxu0 0
      %604 = vmatprep.subr.bf16.mxu0 0
      %605 = vmatpush2.bf16.msra.mxu0 0
      %606 = vmatprep.subr.bf16.mxu0 0
      %607 = vmatpush2.bf16.msra.mxu0 0
      %608 = vmatprep.subr.bf16.mxu0 0
      %609 = vmatpush2.bf16.msra.mxu0 0
      %610 = vmatprep.subr.bf16.mxu0 0
      %611 = vmatpush2.bf16.msra.mxu0 0
      %612 = vmatprep.mubr.bf16.mxu0 0
      %613 = vmatmul.mubr.bf16.gmra.mxu0 %v575
      %v614 = vpop.f32.mrf.mxu0
      %v615 = vadd.f32 0.0, %v614
      %v616 = vpop.f32.mrf.mxu0
      %v617 = vpop.f32.mrf.mxu0
      %v618 = vpop.f32.mrf.mxu0
      %619 = vdwg.mxu0
      %v620 = vadd.f32 %v569, %v615
      %v622 = vunpack.c.l.b16 %v573
      %v623 = vpack.c.b16 %v622, %v622
      %v625 = vshrl.u32 %v623, 16
      %v627 = vshll.u32 %v623, 16
      %v629 = vrot.slane %v627, 1
      %v630 = vor.u32 %v625, %v629
      %v632 = vsel %vm272, %v630, 0
      %v635 = vsel %vm276, %v257, 0
      %637 = vmatprep.subr.bf16.mxu0 0
      %638 = vmatpush1.bf16.msra.mxu0 0
      %639 = vmatprep.subr.bf16.mxu0 0
      %640 = vmatpush1.bf16.msra.mxu0 0
      %641 = vmatprep.subr.bf16.mxu0 0
      %642 = vmatpush1.bf16.msra.mxu0 0
      %643 = vmatprep.subr.bf16.mxu0 0
      %644 = vmatpush1.bf16.msra.mxu0 0
      %645 = vmatprep.subr.bf16.mxu0 0
      %646 = vmatpush1.bf16.msra.mxu0 0
      %647 = vmatprep.subr.bf16.mxu0 0
      %648 = vmatpush1.bf16.msra.mxu0 0
      %649 = vmatprep.subr.bf16.mxu0 0
      %650 = vmatpush1.bf16.msra.mxu0 0
      %651 = vmatprep.subr.bf16.mxu0 0
      %652 = vmatpush1.bf16.msra.mxu0 %v635
      %653 = vmatprep.subr.bf16.mxu0 0
      %654 = vmatpush2.bf16.msra.mxu0 0
      %655 = vmatprep.subr.bf16.mxu0 0
      %656 = vmatpush2.bf16.msra.mxu0 0
      %657 = vmatprep.subr.bf16.mxu0 0
      %658 = vmatpush2.bf16.msra.mxu0 0
      %659 = vmatprep.subr.bf16.mxu0 0
      %660 = vmatpush2.bf16.msra.mxu0 0
      %661 = vmatprep.subr.bf16.mxu0 0
      %662 = vmatpush2.bf16.msra.mxu0 0
      %663 = vmatprep.subr.bf16.mxu0 0
      %664 = vmatpush2.bf16.msra.mxu0 0
      %665 = vmatprep.subr.bf16.mxu0 0
      %666 = vmatpush2.bf16.msra.mxu0 0
      %667 = vmatprep.subr.bf16.mxu0 0
      %668 = vmatpush2.bf16.msra.mxu0 0
      %669 = vmatprep.mubr.bf16.mxu0 0
      %670 = vmatmul.mubr.bf16.gmra.mxu0 %v632
      %v671 = vpop.f32.mrf.mxu0
      %v672 = vadd.f32 0.0, %v671
      %v673 = vpop.f32.mrf.mxu0
      %v674 = vpop.f32.mrf.mxu0
      %v675 = vpop.f32.mrf.mxu0
      %676 = vdwg.mxu0
      %v677 = vadd.f32 %v620, %v672
      %v678 = vrot.slane %v623, 1
      %v680 = vsel %vm272, %v678, 0
      %v683 = vsel %vm276, %v258, 0
      %685 = vmatprep.subr.bf16.mxu0 0
      %686 = vmatpush1.bf16.msra.mxu0 0
      %687 = vmatprep.subr.bf16.mxu0 0
      %688 = vmatpush1.bf16.msra.mxu0 0
      %689 = vmatprep.subr.bf16.mxu0 0
      %690 = vmatpush1.bf16.msra.mxu0 0
      %691 = vmatprep.subr.bf16.mxu0 0
      %692 = vmatpush1.bf16.msra.mxu0 0
      %693 = vmatprep.subr.bf16.mxu0 0
      %694 = vmatpush1.bf16.msra.mxu0 0
      %695 = vmatprep.subr.bf16.mxu0 0
      %696 = vmatpush1.bf16.msra.mxu0 0
      %697 = vmatprep.subr.bf16.mxu0 0
      %698 = vmatpush1.bf16.msra.mxu0 0
      %699 = vmatprep.subr.bf16.mxu0 0
      %700 = vmatpush1.bf16.msra.mxu0 %v683
      %701 = vmatprep.subr.bf16.mxu0 0
      %702 = vmatpush2.bf16.msra.mxu0 0
      %703 = vmatprep.subr.bf16.mxu0 0
      %704 = vmatpush2.bf16.msra.mxu0 0
      %705 = vmatprep.subr.bf16.mxu0 0
      %706 = vmatpush2.bf16.msra.mxu0 0
      %707 = vmatprep.subr.bf16.mxu0 0
      %708 = vmatpush2.bf16.msra.mxu0 0
      %709 = vmatprep.subr.bf16.mxu0 0
      %710 = vmatpush2.bf16.msra.mxu0 0
      %711 = vmatprep.subr.bf16.mxu0 0
      %712 = vmatpush2.bf16.msra.mxu0 0
      %713 = vmatprep.subr.bf16.mxu0 0
      %714 = vmatpush2.bf16.msra.mxu0 0
      %715 = vmatprep.subr.bf16.mxu0 0
      %716 = vmatpush2.bf16.msra.mxu0 0
      %717 = vmatprep.mubr.bf16.mxu0 0
      %718 = vmatmul.mubr.bf16.gmra.mxu0 %v680
      %v719 = vpop.f32.mrf.mxu0
      %v720 = vadd.f32 0.0, %v719
      %v721 = vpop.f32.mrf.mxu0
      %v722 = vpop.f32.mrf.mxu0
      %v723 = vpop.f32.mrf.mxu0
      %724 = vdwg.mxu0
      %v725 = vadd.f32 %v677, %v720
      %v726 = vld [vmem:[%s2] sm:$0x1]
      %v728 = vlaneseq
      %v729 = vshrl.u32 %v728, 7
      %v730 = vsub.s32 0, %v729
      %v731 = vrot.slane %v726, %v730
      %v733 = vadd.f32 %v725, %v731
      %v734 = vxor.u32 %v733, 2147483648
      %v735 = vmul.f32 %v734, 1.442695
      %v736 = vpow.pop %v735
      %v737 = vadd.f32 %v736, 1.0
      %v738 = vrcp.pop %v737
      %v739 = vmul.f32 1.0, %v738
      %v740 = vmul.f32 %v733, %v739
      %v741 = vld [vmem:[%s240] sm:$0x3]
      %v742 = vunpack.c.l.bf16 %v741
      %v743 = vadd.f32 %v740, %v742
      %v744 = vpack.c.bf16 %v743, %v743
      %vm745 = vcmask 58368
      %746 = vst.msk [vmem:[%s248] sm:$0x3] %vm745, %v744
      %p747 = scmp.lt.s32.totalorder %s19, 1
      %s748 = scalar_select %p747, %s19, 1
      %p749 = scmp.lt.s32.totalorder %s20, 3
      %s750 = scalar_select %p749, %s20, 3
      %s751 = smul.addr %s748, 4
      %s752 = sadd.s32 %s750, %s751
      %s753 = smul.addr %s752, 2
      %s754 = scalar_lea.vmem %s4, %s753
      // Predicated region
      $region37: #{_lambda_.46} parent=35 // pred_check
        %p755 = pneg %p143
      $region38: #{_lambda_.46} parent=35 // pred_check_branch
        %757 = sbr.rel (%p755) target = $region40
      $region39: #{_lambda_.46} parent=35 // pred_region
        _
      $region40: #{_lambda_.46} parent=35 // pred_fallthru
        _
    $region36: #{_lambda_.46} parent=5 // pred_fallthru
      _
    %p758 = scmp.le.s32.totalorder 2, %s10
    // Predicated region
    $region41: #{_lambda_.46} parent=5 // pred_check
      %p759 = pneg %p758
    $region42: #{_lambda_.46} parent=5 // pred_check_branch
      %761 = sbr.rel (%p759) target = $region44
    $region43: #{_lambda_.46} parent=5 // pred_region
      %s762 = ssub.s32 %s10, 2
      // Predicated region
      $region45: #{_lambda_.46} parent=43 // pred_check
        %p763 = pneg %p149
      $region46: #{_lambda_.46} parent=43 // pred_check_branch
        %765 = sbr.rel (%p763) target = $region48
      $region47: #{_lambda_.46} parent=43 // pred_region
        %p766 = scmp.lt.s32.totalorder %s21, 1
        %s767 = scalar_select %p766, %s21, 1
        %p768 = scmp.lt.s32.totalorder %s22, 3
        %s769 = scalar_select %p768, %s22, 3
        %s770 = smul.addr %s767, 4
        %s771 = sadd.s32 %s769, %s770
        %s772 = smul.addr %s771, 2
        %s773 = scalar_lea.vmem %s4, %s772
      $region48: #{_lambda_.46} parent=43 // pred_fallthru
        _
    $region44: #{_lambda_.46} parent=5 // pred_fallthru
      _
  $region6: #{_lambda_.46} parent=0 // loop_footer
    %s14 = sadd.s32 1, %s10
  $region7: #{_lambda_.46} parent=0 // loop_footer_branch
    %9 = sbr.rel target = $region3
  $region8: #{_lambda_.46} parent=0 // loop_exit
    _

// kernel: _lambda_.48
$region0: #{_lambda_.48}
  #allocation0 [shape = 'u32[]', space=smem, size = 0x4, offset = 0x4, fixed_abs, tag = 'smem constant byte address 0x4 - core index']
  #allocation1 [shape = 'u32[144,128]{1,0:T(1,128)}', space=vmem, size = 0x12000, scoped, tag = 'internal scratch']
  %s0 = inlined_call_operand.vmem [shape: bf16[32,8], index: 0, kind: input, shape index: {}]
  %s1 = inlined_call_operand.vmem [shape: bf16[32,8], index: 1, kind: input, shape index: {}]
  %s2 = inlined_call_operand.vmem [shape: bf16[8,16], index: 2, kind: input, shape index: {}]
  %s3 = inlined_call_operand.vmem [shape: bf16[8,16], index: 3, kind: input, shape index: {}]
  %s4 = inlined_call_operand.vmem [shape: f32[1,16], index: 4, kind: input, shape index: {}]
  %s5 = inlined_call_operand.vmem [shape: bf16[32,16], index: 5, kind: output, shape index: {}]
  %s6 = sld [smem:[#allocation0]]
  $region30: #{_lambda_.48} parent=0
    _
  %s8 = ssub.s32 1, %s6
  %s9 = scalar_select 0, %s8, %s6
  // Predicated region
  $region2: #{_lambda_.48} parent=0 // pred_check
    _
  $region3: #{_lambda_.48} parent=0 // pred_check_branch
    %11 = sbr.rel (0) target = $region5
  $region4: #{_lambda_.48} parent=0 // pred_region
    _
  $region5: #{_lambda_.48} parent=0 // pred_fallthru
    _
  // Predicated region
  $region6: #{_lambda_.48} parent=0 // pred_check
    _
  $region7: #{_lambda_.48} parent=0 // pred_check_branch
    %13 = sbr.rel (0) target = $region9
  $region8: #{_lambda_.48} parent=0 // pred_region
    _
  $region9: #{_lambda_.48} parent=0 // pred_fallthru
    _
  // Predicated region
  $region10: #{_lambda_.48} parent=0 // pred_check
    _
  $region11: #{_lambda_.48} parent=0 // pred_check_branch
    %15 = sbr.rel (0) target = $region13
  $region12: #{_lambda_.48} parent=0 // pred_region
    _
  $region13: #{_lambda_.48} parent=0 // pred_fallthru
    _
  // Predicated region
  $region14: #{_lambda_.48} parent=0 // pred_check
    _
  $region15: #{_lambda_.48} parent=0 // pred_check_branch
    %17 = sbr.rel (0) target = $region17
  $region16: #{_lambda_.48} parent=0 // pred_region
    _
  $region17: #{_lambda_.48} parent=0 // pred_fallthru
    _
  // Predicated region
  $region18: #{_lambda_.48} parent=0 // pred_check
    _
  $region19: #{_lambda_.48} parent=0 // pred_check_branch
    %19 = sbr.rel (0) target = $region21
  $region20: #{_lambda_.48} parent=0 // pred_region
    _
  $region21: #{_lambda_.48} parent=0 // pred_fallthru
    _
  %v21 = vld [vmem:[%s0] sm:$0xf]
  %v22 = vld [vmem:[%s0 + $0x4] sm:$0xf]
  %v23 = vld [vmem:[%s0 + $0x8] sm:$0xf]
  %v24 = vld [vmem:[%s0 + $0xc] sm:$0xf]
  %v25 = vld [vmem:[%s2] sm:$0xf]
  %v26 = vld [vmem:[%s1] sm:$0xf]
  %v27 = vld [vmem:[%s1 + $0x4] sm:$0xf]
  %v28 = vld [vmem:[%s1 + $0x8] sm:$0xf]
  %v29 = vld [vmem:[%s1 + $0xc] sm:$0xf]
  %v30 = vld [vmem:[%s3] sm:$0xf]
  %v35 = vunpack.c.l.b16 %v26
  %v36 = vunpack.c.l.b16 %v27
  %v37 = vunpack.c.l.b16 %v28
  %v38 = vunpack.c.l.b16 %v29
  %v39 = vpack.c.b16 %v36, %v35
  %v40 = vpack.c.b16 %v38, %v37
  %vm41 = vcmask 64512
  %v43 = vsel %vm41, %v39, 0
  %v46 = vsel %vm41, %v40, 0
  %vm48 = vcmask 1043456
  %v50 = vsel %vm48, %v30, 0
  %52 = vmatprep.subr.bf16.mxu0 0
  %53 = vmatpush1.bf16.msra.mxu0 0
  %54 = vmatprep.subr.bf16.mxu0 0
  %55 = vmatpush1.bf16.msra.mxu0 0
  %56 = vmatprep.subr.bf16.mxu0 0
  %57 = vmatpush1.bf16.msra.mxu0 0
  %58 = vmatprep.subr.bf16.mxu0 0
  %59 = vmatpush1.bf16.msra.mxu0 0
  %60 = vmatprep.subr.bf16.mxu0 0
  %61 = vmatpush1.bf16.msra.mxu0 0
  %62 = vmatprep.subr.bf16.mxu0 0
  %63 = vmatpush1.bf16.msra.mxu0 0
  %64 = vmatprep.subr.bf16.mxu0 0
  %65 = vmatpush1.bf16.msra.mxu0 0
  %66 = vmatprep.subr.bf16.mxu0 0
  %67 = vmatpush1.bf16.msra.mxu0 %v50
  %68 = vmatprep.subr.bf16.mxu0 0
  %69 = vmatpush2.bf16.msra.mxu0 0
  %70 = vmatprep.subr.bf16.mxu0 0
  %71 = vmatpush2.bf16.msra.mxu0 0
  %72 = vmatprep.subr.bf16.mxu0 0
  %73 = vmatpush2.bf16.msra.mxu0 0
  %74 = vmatprep.subr.bf16.mxu0 0
  %75 = vmatpush2.bf16.msra.mxu0 0
  %76 = vmatprep.subr.bf16.mxu0 0
  %77 = vmatpush2.bf16.msra.mxu0 0
  %78 = vmatprep.subr.bf16.mxu0 0
  %79 = vmatpush2.bf16.msra.mxu0 0
  %80 = vmatprep.subr.bf16.mxu0 0
  %81 = vmatpush2.bf16.msra.mxu0 0
  %82 = vmatprep.subr.bf16.mxu0 0
  %83 = vmatpush2.bf16.msra.mxu0 0
  %84 = vmatprep.mubr.bf16.mxu0 0
  %85 = vmatmul.mubr.bf16.gmra.mxu0 %v43
  %v86 = vpop.f32.mrf.mxu0
  %v87 = vadd.f32 0.0, %v86
  %v88 = vpop.f32.mrf.mxu0
  %v89 = vpop.f32.mrf.mxu0
  %v90 = vadd.f32 0.0, %v89
  %v91 = vpop.f32.mrf.mxu0
  %92 = vmatprep.mubr.bf16.mxu0 0
  %93 = vmatmul.mubr.bf16.gmra.mxu0 %v46
  %v94 = vpop.f32.mrf.mxu0
  %v95 = vadd.f32 0.0, %v94
  %v96 = vpop.f32.mrf.mxu0
  %v97 = vpop.f32.mrf.mxu0
  %v98 = vadd.f32 0.0, %v97
  %v99 = vpop.f32.mrf.mxu0
  %100 = vdwg.mxu0
  %v105 = vunpack.c.l.b16 %v21
  %v106 = vunpack.c.l.b16 %v22
  %v107 = vunpack.c.l.b16 %v23
  %v108 = vunpack.c.l.b16 %v24
  %v109 = vpack.c.b16 %v106, %v105
  %v110 = vpack.c.b16 %v108, %v107
  %v112 = vsel %vm41, %v109, 0
  %v115 = vsel %vm41, %v110, 0
  %v118 = vsel %vm48, %v25, 0
  %120 = vmatprep.subr.bf16.mxu0 0
  %121 = vmatpush1.bf16.msra.mxu0 0
  %122 = vmatprep.subr.bf16.mxu0 0
  %123 = vmatpush1.bf16.msra.mxu0 0
  %124 = vmatprep.subr.bf16.mxu0 0
  %125 = vmatpush1.bf16.msra.mxu0 0
  %126 = vmatprep.subr.bf16.mxu0 0
  %127 = vmatpush1.bf16.msra.mxu0 0
  %128 = vmatprep.subr.bf16.mxu0 0
  %129 = vmatpush1.bf16.msra.mxu0 0
  %130 = vmatprep.subr.bf16.mxu0 0
  %131 = vmatpush1.bf16.msra.mxu0 0
  %132 = vmatprep.subr.bf16.mxu0 0
  %133 = vmatpush1.bf16.msra.mxu0 0
  %134 = vmatprep.subr.bf16.mxu0 0
  %135 = vmatpush1.bf16.msra.mxu0 %v118
  %136 = vmatprep.subr.bf16.mxu0 0
  %137 = vmatpush2.bf16.msra.mxu0 0
  %138 = vmatprep.subr.bf16.mxu0 0
  %139 = vmatpush2.bf16.msra.mxu0 0
  %140 = vmatprep.subr.bf16.mxu0 0
  %141 = vmatpush2.bf16.msra.mxu0 0
  %142 = vmatprep.subr.bf16.mxu0 0
  %143 = vmatpush2.bf16.msra.mxu0 0
  %144 = vmatprep.subr.bf16.mxu0 0
  %145 = vmatpush2.bf16.msra.mxu0 0
  %146 = vmatprep.subr.bf16.mxu0 0
  %147 = vmatpush2.bf16.msra.mxu0 0
  %148 = vmatprep.subr.bf16.mxu0 0
  %149 = vmatpush2.bf16.msra.mxu0 0
  %150 = vmatprep.subr.bf16.mxu0 0
  %151 = vmatpush2.bf16.msra.mxu0 0
  %152 = vmatprep.mubr.bf16.mxu0 0
  %153 = vmatmul.mubr.bf16.gmra.mxu0 %v112
  %v154 = vpop.f32.mrf.mxu0
  %v155 = vadd.f32 %v87, %v154
  %v156 = vpop.f32.mrf.mxu0
  %v157 = vpop.f32.mrf.mxu0
  %v158 = vadd.f32 %v90, %v157
  %v159 = vpop.f32.mrf.mxu0
  %160 = vmatprep.mubr.bf16.mxu0 0
  %161 = vmatmul.mubr.bf16.gmra.mxu0 %v115
  %v162 = vpop.f32.mrf.mxu0
  %v163 = vadd.f32 %v95, %v162
  %v164 = vpop.f32.mrf.mxu0
  %v165 = vpop.f32.mrf.mxu0
  %v166 = vadd.f32 %v98, %v165
  %v167 = vpop.f32.mrf.mxu0
  %168 = vdwg.mxu0
  %v169 = vld [vmem:[%s4] sm:$0x1]
  %v171 = vlaneseq
  %v172 = vshrl.u32 %v171, 7
  %v173 = vsub.s32 0, %v172
  %v174 = vrot.slane %v169, %v173
  %v176 = vadd.f32 %v155, %v174
  %v177 = vadd.f32 %v158, %v174
  %v178 = vadd.f32 %v163, %v174
  %v179 = vadd.f32 %v166, %v174
  %v180 = vxor.u32 %v176, 2147483648
  %v181 = vxor.u32 %v177, 2147483648
  %v182 = vxor.u32 %v178, 2147483648
  %v183 = vxor.u32 %v179, 2147483648
  %v184 = vmul.f32 %v180, 1.442695
  %v185 = vpow.pop %v184
  %v186 = vmul.f32 %v181, 1.442695
  %v187 = vpow.pop %v186
  %v188 = vmul.f32 %v182, 1.442695
  %v189 = vpow.pop %v188
  %v190 = vmul.f32 %v183, 1.442695
  %v191 = vpow.pop %v190
  %v192 = vadd.f32 %v185, 1.0
  %v193 = vadd.f32 %v187, 1.0
  %v194 = vadd.f32 %v189, 1.0
  %v195 = vadd.f32 %v191, 1.0
  %v196 = vrcp.pop %v192
  %v197 = vmul.f32 1.0, %v196
  %v198 = vrcp.pop %v193
  %v199 = vmul.f32 1.0, %v198
  %v200 = vrcp.pop %v194
  %v201 = vmul.f32 1.0, %v200
  %v202 = vrcp.pop %v195
  %v203 = vmul.f32 1.0, %v202
  %v204 = vmul.f32 %v176, %v197
  %v205 = vmul.f32 %v177, %v199
  %v206 = vmul.f32 %v178, %v201
  %v207 = vmul.f32 %v179, %v203
  %v208 = vpack.c.bf16 %v205, %v204
  %v209 = vpack.c.bf16 %v207, %v206
  %v212 = vunpack.c.l.b16 %v208
  %v213 = vunpack.c.h.b16 %v208
  %v214 = vunpack.c.l.b16 %v209
  %v215 = vunpack.c.h.b16 %v209
  %v216 = vpack.c.b16 %v212, %v212
  %v217 = vpack.c.b16 %v213, %v213
  %v218 = vpack.c.b16 %v214, %v214
  %v219 = vpack.c.b16 %v215, %v215
  %vm224 = vcmask 125952
  %225 = vst.msk [vmem:[%s5] sm:$0xf] %vm224, %v216
  %226 = vst.msk [vmem:[%s5 + $0x4] sm:$0xf] %vm224, %v217
  %227 = vst.msk [vmem:[%s5 + $0x8] sm:$0xf] %vm224, %v218
  %228 = vst.msk [vmem:[%s5 + $0xc] sm:$0xf] %vm224, %v219
  // Predicated region
  $region22: #{_lambda_.48} parent=0 // pred_check
    _
  $region23: #{_lambda_.48} parent=0 // pred_check_branch
    %230 = sbr.rel (0) target = $region25
  $region24: #{_lambda_.48} parent=0 // pred_region
    _
  $region25: #{_lambda_.48} parent=0 // pred_fallthru
    _
  // Predicated region
  $region26: #{_lambda_.48} parent=0 // pred_check
    _
  $region27: #{_lambda_.48} parent=0 // pred_check_branch
    %232 = sbr.rel (0) target = $region29
  $region28: #{_lambda_.48} parent=0 // pred_region
    _
  $region29: #{_lambda_.48} parent=0 // pred_fallthru
    _

// kernel: _lambda_.49
$region0: #{_lambda_.49}
  #allocation0 [shape = 'u32[]', space=smem, size = 0x4, offset = 0x4, fixed_abs, tag = 'smem constant byte address 0x4 - core index']
  #allocation1 [shape = 'u32[144,128]{1,0:T(1,128)}', space=vmem, size = 0x12000, scoped, tag = 'internal scratch']
  %s0 = inlined_call_operand.vmem [shape: bf16[2,6,6,16], index: 0, kind: input, shape index: {}]
  %s1 = inlined_call_operand.vmem [shape: bf16[144,16], index: 1, kind: input, shape index: {}]
  %s2 = inlined_call_operand.vmem [shape: f32[1,16], index: 2, kind: input, shape index: {}]
  %s3 = inlined_call_operand.vmem [shape: bf16[2,4,4,16], index: 3, kind: output, shape index: {}]
  %s4 = sld [smem:[#allocation0]]
  $region45: #{_lambda_.49} parent=0
    _
  %s6 = ssub.s32 1, %s4
  %s7 = scalar_select 0, %s6, %s4
  loop: start=0, step=1, limit=10
  $region2: #{_lambda_.49} parent=0 // loop_pre_header
    _
  $region3: #{_lambda_.49} parent=0 // loop_header
    %s9 = sphi 0, %s13
    %p10 = scmp.ge.s32.totalorder %s9, 10
    %s16 = sphi 0, %s28
    %s17 = sphi 0, %s24
    %s18 = sphi 0, %s16
    %s19 = sphi 0, %s17
    %s20 = sphi 0, %s18
    %s21 = sphi 0, %s19
    %s31 = sphi 0, %s33
    %s34 = sphi 0, %s31
    %s35 = sphi 0, %s34
    %s51 = sphi 0, %s35
    %s55 = sphi 0, %s55
    %s57 = sphi 0, %s55
    %s58 = sphi 0, %s57
    %s72 = sphi 0, %s58
    %s76 = sphi 0, %s76
    %s78 = sphi 0, %s76
    %s79 = sphi 0, %s78
    %s93 = sphi 0, %s79
    %s101 = sphi 0, %s103
    %s104 = sphi 0, %s101
    %s105 = sphi 0, %s104
    %s121 = sphi 0, %s105
  $region4: #{_lambda_.49} parent=0 // loop_header_branch
    %12 = sbr.rel (%p10) target = $region8
  $region5: #{_lambda_.49} parent=0 // loop_body
    %s14 = ssub.s32 %s9, 1
    %s15 = ssub.s32 %s9, 2
    %s22 = sadd.s32 1, %s17
    %p23 = scmp.ge.s32.totalorder %s22, 4
    %s24 = scalar_select %p23, 0, %s22
    %s25 = sadd.s32 1, %s16
    %s26 = scalar_select %p23, %s25, %s16
    %p27 = scmp.ge.s32.totalorder %s26, 2
    %s28 = scalar_select %p27, 0, %s26
    %s29 = ssub.s32 %s16, %s28
    %p30 = scmp.eq.s32.totalorder %s29, 0
    %s32 = sadd.s32 %s31, 1
    %s33 = scalar_select %p30, %s31, %s32
    %p36 = pneg %p30
    %p37 = scmp.eq.s32.totalorder %s9, 7
    %p38 = por %p36, %p37
    %p39 = scmp.ne.s32.totalorder %s31, %s34
    %p40 = scmp.eq.s32.totalorder %s9, 0
    %p41 = por %p39, %p40
    %p42 = scmp.ne.s32.totalorder %s31, %s34
    %p43 = scmp.eq.s32.totalorder %s14, 7
    %p44 = por %p42, %p43
    %p45 = scmp.ne.s32.totalorder %s34, %s35
    %p46 = scmp.eq.s32.totalorder %s14, 0
    %p47 = por %p45, %p46
    %p48 = scmp.ne.s32.totalorder %s34, %s35
    %p49 = scmp.eq.s32.totalorder %s15, 7
    %p50 = por %p48, %p49
    %p52 = scmp.ne.s32.totalorder %s35, %s51
    %p53 = scmp.eq.s32.totalorder %s15, 0
    %p54 = por %p52, %p53
    %s56 = sadd.s32 %s55, 1
    %p59 = scmp.eq.s32.totalorder %s9, 7
    %p60 = scmp.ne.s32.totalorder %s55, %s57
    %p61 = scmp.eq.s32.totalorder %s9, 0
    %p62 = por %p60, %p61
    %p63 = scmp.ne.s32.totalorder %s55, %s57
    %p64 = scmp.eq.s32.totalorder %s14, 7
    %p65 = por %p63, %p64
    %p66 = scmp.ne.s32.totalorder %s57, %s58
    %p67 = scmp.eq.s32.totalorder %s14, 0
    %p68 = por %p66, %p67
    %p69 = scmp.ne.s32.totalorder %s57, %s58
    %p70 = scmp.eq.s32.totalorder %s15, 7
    %p71 = por %p69, %p70
    %p73 = scmp.ne.s32.totalorder %s58, %s72
    %p74 = scmp.eq.s32.totalorder %s15, 0
    %p75 = por %p73, %p74
    %s77 = sadd.s32 %s76, 1
    %p80 = scmp.eq.s32.totalorder %s9, 7
    %p81 = scmp.ne.s32.totalorder %s76, %s78
    %p82 = scmp.eq.s32.totalorder %s9, 0
    %p83 = por %p81, %p82
    %p84 = scmp.ne.s32.totalorder %s76, %s78
    %p85 = scmp.eq.s32.totalorder %s14, 7
    %p86 = por %p84, %p85
    %p87 = scmp.ne.s32.totalorder %s78, %s79
    %p88 = scmp.eq.s32.totalorder %s14, 0
    %p89 = por %p87, %p88
    %p90 = scmp.ne.s32.totalorder %s78, %s79
    %p91 = scmp.eq.s32.totalorder %s15, 7
    %p92 = por %p90, %p91
    %p94 = scmp.ne.s32.totalorder %s79, %s93
    %p95 = scmp.eq.s32.totalorder %s15, 0
    %p96 = por %p94, %p95
    %s97 = ssub.s32 %s16, %s28
    %s98 = ssub.s32 %s17, %s24
    %s99 = sor.u32 %s97, %s98
    %p100 = scmp.eq.s32.totalorder %s99, 0
    %s102 = sadd.s32 %s101, 1
    %s103 = scalar_select %p100, %s101, %s102
    %p106 = pneg %p100
    %p107 = scmp.eq.s32.totalorder %s9, 7
    %p108 = por %p106, %p107
    %p109 = scmp.ne.s32.totalorder %s101, %s104
    %p110 = scmp.eq.s32.totalorder %s9, 0
    %p111 = por %p109, %p110
    %p112 = scmp.ne.s32.totalorder %s101, %s104
    %p113 = scmp.eq.s32.totalorder %s14, 7
    %p114 = por %p112, %p113
    %p115 = scmp.ne.s32.totalorder %s104, %s105
    %p116 = scmp.eq.s32.totalorder %s14, 0
    %p117 = por %p115, %p116
    %p118 = scmp.ne.s32.totalorder %s104, %s105
    %p119 = scmp.eq.s32.totalorder %s15, 7
    %p120 = por %p118, %p119
    %p122 = scmp.ne.s32.totalorder %s105, %s121
    %p123 = scmp.eq.s32.totalorder %s15, 0
    %p124 = por %p122, %p123
    %p125 = scmp.le.s32.totalorder 1, %s9
    %p126 = scmp.lt.s32.totalorder %s9, 9
    %p127 = pnand %p125, %p126
    %p128 = pneg %p127
    // Predicated region
    $region9: #{_lambda_.49} parent=5 // pred_check
      _
    $region10: #{_lambda_.49} parent=5 // pred_check_branch
      %130 = sbr.rel (%p127) target = $region12
    $region11: #{_lambda_.49} parent=5 // pred_region
      %s131 = ssub.s32 %s9, 1
      // Predicated region
      $region13: #{_lambda_.49} parent=11 // pred_check
        %p132 = pneg %p68
      $region14: #{_lambda_.49} parent=11 // pred_check_branch
        %134 = sbr.rel (%p132) target = $region16
      $region15: #{_lambda_.49} parent=11 // pred_region
        _
      $region16: #{_lambda_.49} parent=11 // pred_fallthru
        _
      // Predicated region
      $region17: #{_lambda_.49} parent=11 // pred_check
        %p135 = pneg %p89
      $region18: #{_lambda_.49} parent=11 // pred_check_branch
        %137 = sbr.rel (%p135) target = $region20
      $region19: #{_lambda_.49} parent=11 // pred_region
        _
      $region20: #{_lambda_.49} parent=11 // pred_fallthru
        _
    $region12: #{_lambda_.49} parent=5 // pred_fallthru
      _
    %p138 = scmp.lt.s32.totalorder %s9, 8
    // Predicated region
    $region21: #{_lambda_.49} parent=5 // pred_check
      %p139 = pneg %p138
    $region22: #{_lambda_.49} parent=5 // pred_check_branch
      %141 = sbr.rel (%p139) target = $region24
    $region23: #{_lambda_.49} parent=5 // pred_region
      // Predicated region
      $region25: #{_lambda_.49} parent=23 // pred_check
        %p142 = pneg %p41
      $region26: #{_lambda_.49} parent=23 // pred_check_branch
        %144 = sbr.rel (%p142) target = $region28
      $region27: #{_lambda_.49} parent=23 // pred_region
        %p145 = scmp.lt.s32.totalorder %s16, 1
        %s146 = scalar_select %p145, %s16, 1
        %s147 = smul.addr %s146, 6
        %s148 = smul.addr %s147, 4
        %s149 = scalar_lea.vmem %s0, %s148
      $region28: #{_lambda_.49} parent=23 // pred_fallthru
        _
    $region24: #{_lambda_.49} parent=5 // pred_fallthru
      _
    %p150 = scmp.le.s32.totalorder 1, %s9
    %p151 = scmp.lt.s32.totalorder %s9, 9
    %p152 = pnand %p150, %p151
    %p153 = pneg %p152
    // Predicated region
    $region29: #{_lambda_.49} parent=5 // pred_check
      _
    $region30: #{_lambda_.49} parent=5 // pred_check_branch
      %155 = sbr.rel (%p152) target = $region32
    $region31: #{_lambda_.49} parent=5 // pred_region
      %s156 = ssub.s32 %s9, 1
      %p157 = scmp.lt.s32.totalorder %s18, 1
      %s158 = scalar_select %p157, %s18, 1
      %s159 = smul.addr %s158, 6
      %s160 = smul.addr %s159, 4
      %s161 = scalar_lea.vmem %s0, %s160
      %p162 = pneg %p47
      %p163 = pneg %p44
      %p164 = pneg %p68
      %p165 = pneg %p65
      %p166 = pneg %p89
      %p167 = pneg %p86
      %p168 = pneg %p117
      %p169 = pneg %p114
      %p170 = scmp.lt.s32.totalorder %s18, 1
      %s171 = scalar_select %p170, %s18, 1
      %p172 = scmp.lt.s32.totalorder %s19, 3
      %s173 = scalar_select %p172, %s19, 3
      %s174 = smul.addr %s171, 4
      %s175 = sadd.s32 %s173, %s174
      %s176 = smul.addr %s175, 2
      %s177 = scalar_lea.vmem %s3, %s176
      %p178 = scmp.lt.s32.totalorder %s18, 1
      %s179 = scalar_select %p178, %s18, 1
      %s180 = smul.addr %s179, 6
      %s181 = smul.addr %s180, 4
      %s182 = scalar_lea.vmem %s0, %s181
      %p183 = scmp.lt.s32.totalorder %s18, 1
      %s184 = scalar_select %p183, %s18, 1
      %p185 = scmp.lt.s32.totalorder %s19, 3
      %s186 = scalar_select %p185, %s19, 3
      %s187 = smul.addr %s184, 4
      %s188 = sadd.s32 %s186, %s187
      %s189 = smul.addr %s188, 2
      %s190 = scalar_lea.vmem %s3, %s189
      %v192 = vld [vmem:[%s1] sm:$0xf]
      %v193 = vld [vmem:[%s1 + $0x4] sm:$0xf]
      %v194 = vld [vmem:[%s1 + $0x8] sm:$0xf]
      %v195 = vld [vmem:[%s1 + $0xc] sm:$0xf]
      %v196 = vld [vmem:[%s1 + $0x10] sm:$0xf]
      %v197 = vld [vmem:[%s1 + $0x14] sm:$0xf]
      %v198 = vld [vmem:[%s1 + $0x18] sm:$0xf]
      %v199 = vld [vmem:[%s1 + $0x1c] sm:$0xf]
      %v200 = vld [vmem:[%s1 + $0x20] sm:$0xf]
      %v201 = vld [vmem:[%s1 + $0x24] sm:$0xf]
      %v202 = vld [vmem:[%s1 + $0x28] sm:$0xf]
      %v203 = vld [vmem:[%s1 + $0x2c] sm:$0xf]
      %v204 = vld [vmem:[%s1 + $0x30] sm:$0xf]
      %v205 = vld [vmem:[%s1 + $0x34] sm:$0xf]
      %v206 = vld [vmem:[%s1 + $0x38] sm:$0xf]
      %v207 = vld [vmem:[%s1 + $0x3c] sm:$0xf]
      %v208 = vld [vmem:[%s1 + $0x40] sm:$0xf]
      %v209 = vld [vmem:[%s1 + $0x44] sm:$0xf]
      %s210 = smul.addr %s19, 4
      %s211 = scalar_lea.vmem %s182, %s210
      %v212 = vld [vmem:[%s211] sm:$0x7]
      %v214 = vunpack.c.l.b16 %v212
      %v215 = vpack.c.b16 %v214, %v214
      %v217 = vshrl.u32 %v215, 16
      %v219 = vshll.u32 %v215, 16
      %v221 = vrot.slane %v219, 1
      %v222 = vor.u32 %v217, %v221
      %v225 = vunpack.c.l.b16 %v194
      %v226 = vunpack.c.l.b16 %v195
      %v227 = vpack.c.b16 %v226, %v225
      %vm229 = vcmask 130048
      %v231 = vsel %vm229, %v222, 0
      %233 = vmatprep.subr.bf16.mxu0 0
      %234 = vmatpush1.bf16.msra.mxu0 0
      %235 = vmatprep.subr.bf16.mxu0 0
      %236 = vmatpush1.bf16.msra.mxu0 0
      %237 = vmatprep.subr.bf16.mxu0 0
      %238 = vmatpush1.bf16.msra.mxu0 0
      %239 = vmatprep.subr.bf16.mxu0 0
      %240 = vmatpush1.bf16.msra.mxu0 0
      %241 = vmatprep.subr.bf16.mxu0 0
      %242 = vmatpush1.bf16.msra.mxu0 0
      %243 = vmatprep.subr.bf16.mxu0 0
      %244 = vmatpush1.bf16.msra.mxu0 0
      %245 = vmatprep.subr.bf16.mxu0 0
      %246 = vmatpush1.bf16.msra.mxu0 0
      %247 = vmatprep.subr.bf16.mxu0 0
      %248 = vmatpush1.bf16.msra.mxu0 %v227
      %249 = vmatprep.subr.bf16.mxu0 0
      %250 = vmatpush2.bf16.msra.mxu0 0
      %251 = vmatprep.subr.bf16.mxu0 0
      %252 = vmatpush2.bf16.msra.mxu0 0
      %253 = vmatprep.subr.bf16.mxu0 0
      %254 = vmatpush2.bf16.msra.mxu0 0
      %255 = vmatprep.subr.bf16.mxu0 0
      %256 = vmatpush2.bf16.msra.mxu0 0
      %257 = vmatprep.subr.bf16.mxu0 0
      %258 = vmatpush2.bf16.msra.mxu0 0
      %259 = vmatprep.subr.bf16.mxu0 0
      %260 = vmatpush2.bf16.msra.mxu0 0
      %261 = vmatprep.subr.bf16.mxu0 0
      %262 = vmatpush2.bf16.msra.mxu0 0
      %263 = vmatprep.subr.bf16.mxu0 0
      %264 = vmatpush2.bf16.msra.mxu0 0
      %265 = vmatprep.mubr.bf16.mxu0 0
      %266 = vmatmul.mubr.bf16.gmra.mxu0 %v231
      %v267 = vpop.f32.mrf.mxu0
      %v268 = vadd.f32 0.0, %v267
      %v269 = vpop.f32.mrf.mxu0
      %v270 = vpop.f32.mrf.mxu0
      %v271 = vpop.f32.mrf.mxu0
      %272 = vdwg.mxu0
      %v275 = vunpack.c.l.b16 %v192
      %v276 = vunpack.c.l.b16 %v193
      %v277 = vpack.c.b16 %v276, %v275
      %v280 = vsel %vm229, %v212, 0
      %282 = vmatprep.subr.bf16.mxu0 0
      %283 = vmatpush1.bf16.msra.mxu0 0
      %284 = vmatprep.subr.bf16.mxu0 0
      %285 = vmatpush1.bf16.msra.mxu0 0
      %286 = vmatprep.subr.bf16.mxu0 0
      %287 = vmatpush1.bf16.msra.mxu0 0
      %288 = vmatprep.subr.bf16.mxu0 0
      %289 = vmatpush1.bf16.msra.mxu0 0
      %290 = vmatprep.subr.bf16.mxu0 0
      %291 = vmatpush1.bf16.msra.mxu0 0
      %292 = vmatprep.subr.bf16.mxu0 0
      %293 = vmatpush1.bf16.msra.mxu0 0
      %294 = vmatprep.subr.bf16.mxu0 0
      %295 = vmatpush1.bf16.msra.mxu0 0
      %296 = vmatprep.subr.bf16.mxu0 0
      %297 = vmatpush1.bf16.msra.mxu0 %v277
      %298 = vmatprep.subr.bf16.mxu0 0
      %299 = vmatpush2.bf16.msra.mxu0 0
      %300 = vmatprep.subr.bf16.mxu0 0
      %301 = vmatpush2.bf16.msra.mxu0 0
      %302 = vmatprep.subr.bf16.mxu0 0
      %303 = vmatpush2.bf16.msra.mxu0 0
      %304 = vmatprep.subr.bf16.mxu0 0
      %305 = vmatpush2.bf16.msra.mxu0 0
      %306 = vmatprep.subr.bf16.mxu0 0
      %307 = vmatpush2.bf16.msra.mxu0 0
      %308 = vmatprep.subr.bf16.mxu0 0
      %309 = vmatpush2.bf16.msra.mxu0 0
      %310 = vmatprep.subr.bf16.mxu0 0
      %311 = vmatpush2.bf16.msra.mxu0 0
      %312 = vmatprep.subr.bf16.mxu0 0
      %313 = vmatpush2.bf16.msra.mxu0 0
      %314 = vmatprep.mubr.bf16.mxu0 0
      %315 = vmatmul.mubr.bf16.gmra.mxu0 %v280
      %v316 = vpop.f32.mrf.mxu0
      %v317 = vadd.f32 %v268, %v316
      %v318 = vpop.f32.mrf.mxu0
      %v319 = vpop.f32.mrf.mxu0
      %v320 = vpop.f32.mrf.mxu0
      %321 = vdwg.mxu0
      %v322 = vrot.slane %v215, 1
      %v325 = vunpack.c.l.b16 %v196
      %v326 = vunpack.c.l.b16 %v197
      %v327 = vpack.c.b16 %v326, %v325
      %v330 = vsel %vm229, %v322, 0
      %332 = vmatprep.subr.bf16.mxu0 0
      %333 = vmatpush1.bf16.msra.mxu0 0
      %334 = vmatprep.subr.bf16.mxu0 0
      %335 = vmatpush1.bf16.msra.mxu0 0
      %336 = vmatprep.subr.bf16.mxu0 0
      %337 = vmatpush1.bf16.msra.mxu0 0
      %338 = vmatprep.subr.bf16.mxu0 0
      %339 = vmatpush1.bf16.msra.mxu0 0
      %340 = vmatprep.subr.bf16.mxu0 0
      %341 = vmatpush1.bf16.msra.mxu0 0
      %342 = vmatprep.subr.bf16.mxu0 0
      %343 = vmatpush1.bf16.msra.mxu0 0
      %344 = vmatprep.subr.bf16.mxu0 0
      %345 = vmatpush1.bf16.msra.mxu0 0
      %346 = vmatprep.subr.bf16.mxu0 0
      %347 = vmatpush1.bf16.msra.mxu0 %v327
      %348 = vmatprep.subr.bf16.mxu0 0
      %349 = vmatpush2.bf16.msra.mxu0 0
      %350 = vmatprep.subr.bf16.mxu0 0
      %351 = vmatpush2.bf16.msra.mxu0 0
      %352 = vmatprep.subr.bf16.mxu0 0
      %353 = vmatpush2.bf16.msra.mxu0 0
      %354 = vmatprep.subr.bf16.mxu0 0
      %355 = vmatpush2.bf16.msra.mxu0 0
      %356 = vmatprep.subr.bf16.mxu0 0
      %357 = vmatpush2.bf16.msra.mxu0 0
      %358 = vmatprep.subr.bf16.mxu0 0
      %359 = vmatpush2.bf16.msra.mxu0 0
      %360 = vmatprep.subr.bf16.mxu0 0
      %361 = vmatpush2.bf16.msra.mxu0 0
      %362 = vmatprep.subr.bf16.mxu0 0
      %363 = vmatpush2.bf16.msra.mxu0 0
      %364 = vmatprep.mubr.bf16.mxu0 0
      %365 = vmatmul.mubr.bf16.gmra.mxu0 %v330
      %v366 = vpop.f32.mrf.mxu0
      %v367 = vadd.f32 0.0, %v366
      %v368 = vpop.f32.mrf.mxu0
      %v369 = vpop.f32.mrf.mxu0
      %v370 = vpop.f32.mrf.mxu0
      %371 = vdwg.mxu0
      %v372 = vadd.f32 %v317, %v367
      %s373 = sadd.s32 %s19, 1
      %s374 = smul.addr %s373, 4
      %s375 = scalar_lea.vmem %s182, %s374
      %v376 = vld [vmem:[%s375] sm:$0x7]
      %v379 = vunpack.c.l.b16 %v198
      %v380 = vunpack.c.l.b16 %v199
      %v381 = vpack.c.b16 %v380, %v379
      %v384 = vsel %vm229, %v376, 0
      %386 = vmatprep.subr.bf16.mxu0 0
      %387 = vmatpush1.bf16.msra.mxu0 0
      %388 = vmatprep.subr.bf16.mxu0 0
      %389 = vmatpush1.bf16.msra.mxu0 0
      %390 = vmatprep.subr.bf16.mxu0 0
      %391 = vmatpush1.bf16.msra.mxu0 0
      %392 = vmatprep.subr.bf16.mxu0 0
      %393 = vmatpush1.bf16.msra.mxu0 0
      %394 = vmatprep.subr.bf16.mxu0 0
      %395 = vmatpush1.bf16.msra.mxu0 0
      %396 = vmatprep.subr.bf16.mxu0 0
      %397 = vmatpush1.bf16.msra.mxu0 0
      %398 = vmatprep.subr.bf16.mxu0 0
      %399 = vmatpush1.bf16.msra.mxu0 0
      %400 = vmatprep.subr.bf16.mxu0 0
      %401 = vmatpush1.bf16.msra.mxu0 %v381
      %402 = vmatprep.subr.bf16.mxu0 0
      %403 = vmatpush2.bf16.msra.mxu0 0
      %404 = vmatprep.subr.bf16.mxu0 0
      %405 = vmatpush2.bf16.msra.mxu0 0
      %406 = vmatprep.subr.bf16.mxu0 0
      %407 = vmatpush2.bf16.msra.mxu0 0
      %408 = vmatprep.subr.bf16.mxu0 0
      %409 = vmatpush2.bf16.msra.mxu0 0
      %410 = vmatprep.subr.bf16.mxu0 0
      %411 = vmatpush2.bf16.msra.mxu0 0
      %412 = vmatprep.subr.bf16.mxu0 0
      %413 = vmatpush2.bf16.msra.mxu0 0
      %414 = vmatprep.subr.bf16.mxu0 0
      %415 = vmatpush2.bf16.msra.mxu0 0
      %416 = vmatprep.subr.bf16.mxu0 0
      %417 = vmatpush2.bf16.msra.mxu0 0
      %418 = vmatprep.mubr.bf16.mxu0 0
      %419 = vmatmul.mubr.bf16.gmra.mxu0 %v384
      %v420 = vpop.f32.mrf.mxu0
      %v421 = vadd.f32 0.0, %v420
      %v422 = vpop.f32.mrf.mxu0
      %v423 = vpop.f32.mrf.mxu0
      %v424 = vpop.f32.mrf.mxu0
      %425 = vdwg.mxu0
      %v426 = vadd.f32 %v372, %v421
      %v428 = vunpack.c.l.b16 %v376
      %v429 = vpack.c.b16 %v428, %v428
      %v431 = vshrl.u32 %v429, 16
      %v433 = vshll.u32 %v429, 16
      %v435 = vrot.slane %v433, 1
      %v436 = vor.u32 %v431, %v435
      %v439 = vunpack.c.l.b16 %v200
      %v440 = vunpack.c.l.b16 %v201
      %v441 = vpack.c.b16 %v440, %v439
      %v444 = vsel %vm229, %v436, 0
      %446 = vmatprep.subr.bf16.mxu0 0
      %447 = vmatpush1.bf16.msra.mxu0 0
      %448 = vmatprep.subr.bf16.mxu0 0
      %449 = vmatpush1.bf16.msra.mxu0 0
      %450 = vmatprep.subr.bf16.mxu0 0
      %451 = vmatpush1.bf16.msra.mxu0 0
      %452 = vmatprep.subr.bf16.mxu0 0
      %453 = vmatpush1.bf16.msra.mxu0 0
      %454 = vmatprep.subr.bf16.mxu0 0
      %455 = vmatpush1.bf16.msra.mxu0 0
      %456 = vmatprep.subr.bf16.mxu0 0
      %457 = vmatpush1.bf16.msra.mxu0 0
      %458 = vmatprep.subr.bf16.mxu0 0
      %459 = vmatpush1.bf16.msra.mxu0 0
      %460 = vmatprep.subr.bf16.mxu0 0
      %461 = vmatpush1.bf16.msra.mxu0 %v441
      %462 = vmatprep.subr.bf16.mxu0 0
      %463 = vmatpush2.bf16.msra.mxu0 0
      %464 = vmatprep.subr.bf16.mxu0 0
      %465 = vmatpush2.bf16.msra.mxu0 0
      %466 = vmatprep.subr.bf16.mxu0 0
      %467 = vmatpush2.bf16.msra.mxu0 0
      %468 = vmatprep.subr.bf16.mxu0 0
      %469 = vmatpush2.bf16.msra.mxu0 0
      %470 = vmatprep.subr.bf16.mxu0 0
      %471 = vmatpush2.bf16.msra.mxu0 0
      %472 = vmatprep.subr.bf16.mxu0 0
      %473 = vmatpush2.bf16.msra.mxu0 0
      %474 = vmatprep.subr.bf16.mxu0 0
      %475 = vmatpush2.bf16.msra.mxu0 0
      %476 = vmatprep.subr.bf16.mxu0 0
      %477 = vmatpush2.bf16.msra.mxu0 0
      %478 = vmatprep.mubr.bf16.mxu0 0
      %479 = vmatmul.mubr.bf16.gmra.mxu0 %v444
      %v480 = vpop.f32.mrf.mxu0
      %v481 = vadd.f32 0.0, %v480
      %v482 = vpop.f32.mrf.mxu0
      %v483 = vpop.f32.mrf.mxu0
      %v484 = vpop.f32.mrf.mxu0
      %485 = vdwg.mxu0
      %v486 = vadd.f32 %v426, %v481
      %v487 = vrot.slane %v429, 1
      %v490 = vunpack.c.l.b16 %v202
      %v491 = vunpack.c.l.b16 %v203
      %v492 = vpack.c.b16 %v491, %v490
      %v495 = vsel %vm229, %v487, 0
      %497 = vmatprep.subr.bf16.mxu0 0
      %498 = vmatpush1.bf16.msra.mxu0 0
      %499 = vmatprep.subr.bf16.mxu0 0
      %500 = vmatpush1.bf16.msra.mxu0 0
      %501 = vmatprep.subr.bf16.mxu0 0
      %502 = vmatpush1.bf16.msra.mxu0 0
      %503 = vmatprep.subr.bf16.mxu0 0
      %504 = vmatpush1.bf16.msra.mxu0 0
      %505 = vmatprep.subr.bf16.mxu0 0
      %506 = vmatpush1.bf16.msra.mxu0 0
      %507 = vmatprep.subr.bf16.mxu0 0
      %508 = vmatpush1.bf16.msra.mxu0 0
      %509 = vmatprep.subr.bf16.mxu0 0
      %510 = vmatpush1.bf16.msra.mxu0 0
      %511 = vmatprep.subr.bf16.mxu0 0
      %512 = vmatpush1.bf16.msra.mxu0 %v492
      %513 = vmatprep.subr.bf16.mxu0 0
      %514 = vmatpush2.bf16.msra.mxu0 0
      %515 = vmatprep.subr.bf16.mxu0 0
      %516 = vmatpush2.bf16.msra.mxu0 0
      %517 = vmatprep.subr.bf16.mxu0 0
      %518 = vmatpush2.bf16.msra.mxu0 0
      %519 = vmatprep.subr.bf16.mxu0 0
      %520 = vmatpush2.bf16.msra.mxu0 0
      %521 = vmatprep.subr.bf16.mxu0 0
      %522 = vmatpush2.bf16.msra.mxu0 0
      %523 = vmatprep.subr.bf16.mxu0 0
      %524 = vmatpush2.bf16.msra.mxu0 0
      %525 = vmatprep.subr.bf16.mxu0 0
      %526 = vmatpush2.bf16.msra.mxu0 0
      %527 = vmatprep.subr.bf16.mxu0 0
      %528 = vmatpush2.bf16.msra.mxu0 0
      %529 = vmatprep.mubr.bf16.mxu0 0
      %530 = vmatmul.mubr.bf16.gmra.mxu0 %v495
      %v531 = vpop.f32.mrf.mxu0
      %v532 = vadd.f32 0.0, %v531
      %v533 = vpop.f32.mrf.mxu0
      %v534 = vpop.f32.mrf.mxu0
      %v535 = vpop.f32.mrf.mxu0
      %536 = vdwg.mxu0
      %v537 = vadd.f32 %v486, %v532
      %s538 = sadd.s32 %s19, 2
      %s539 = smul.addr %s538, 4
      %s540 = scalar_lea.vmem %s182, %s539
      %v541 = vld [vmem:[%s540] sm:$0x7]
      %v544 = vunpack.c.l.b16 %v204
      %v545 = vunpack.c.l.b16 %v205
      %v546 = vpack.c.b16 %v545, %v544
      %v549 = vsel %vm229, %v541, 0
      %551 = vmatprep.subr.bf16.mxu0 0
      %552 = vmatpush1.bf16.msra.mxu0 0
      %553 = vmatprep.subr.bf16.mxu0 0
      %554 = vmatpush1.bf16.msra.mxu0 0
      %555 = vmatprep.subr.bf16.mxu0 0
      %556 = vmatpush1.bf16.msra.mxu0 0
      %557 = vmatprep.subr.bf16.mxu0 0
      %558 = vmatpush1.bf16.msra.mxu0 0
      %559 = vmatprep.subr.bf16.mxu0 0
      %560 = vmatpush1.bf16.msra.mxu0 0
      %561 = vmatprep.subr.bf16.mxu0 0
      %562 = vmatpush1.bf16.msra.mxu0 0
      %563 = vmatprep.subr.bf16.mxu0 0
      %564 = vmatpush1.bf16.msra.mxu0 0
      %565 = vmatprep.subr.bf16.mxu0 0
      %566 = vmatpush1.bf16.msra.mxu0 %v546
      %567 = vmatprep.subr.bf16.mxu0 0
      %568 = vmatpush2.bf16.msra.mxu0 0
      %569 = vmatprep.subr.bf16.mxu0 0
      %570 = vmatpush2.bf16.msra.mxu0 0
      %571 = vmatprep.subr.bf16.mxu0 0
      %572 = vmatpush2.bf16.msra.mxu0 0
      %573 = vmatprep.subr.bf16.mxu0 0
      %574 = vmatpush2.bf16.msra.mxu0 0
      %575 = vmatprep.subr.bf16.mxu0 0
      %576 = vmatpush2.bf16.msra.mxu0 0
      %577 = vmatprep.subr.bf16.mxu0 0
      %578 = vmatpush2.bf16.msra.mxu0 0
      %579 = vmatprep.subr.bf16.mxu0 0
      %580 = vmatpush2.bf16.msra.mxu0 0
      %581 = vmatprep.subr.bf16.mxu0 0
      %582 = vmatpush2.bf16.msra.mxu0 0
      %583 = vmatprep.mubr.bf16.mxu0 0
      %584 = vmatmul.mubr.bf16.gmra.mxu0 %v549
      %v585 = vpop.f32.mrf.mxu0
      %v586 = vadd.f32 0.0, %v585
      %v587 = vpop.f32.mrf.mxu0
      %v588 = vpop.f32.mrf.mxu0
      %v589 = vpop.f32.mrf.mxu0
      %590 = vdwg.mxu0
      %v591 = vadd.f32 %v537, %v586
      %v593 = vunpack.c.l.b16 %v541
      %v594 = vpack.c.b16 %v593, %v593
      %v596 = vshrl.u32 %v594, 16
      %v598 = vshll.u32 %v594, 16
      %v600 = vrot.slane %v598, 1
      %v601 = vor.u32 %v596, %v600
      %v604 = vunpack.c.l.b16 %v206
      %v605 = vunpack.c.l.b16 %v207
      %v606 = vpack.c.b16 %v605, %v604
      %v609 = vsel %vm229, %v601, 0
      %611 = vmatprep.subr.bf16.mxu0 0
      %612 = vmatpush1.bf16.msra.mxu0 0
      %613 = vmatprep.subr.bf16.mxu0 0
      %614 = vmatpush1.bf16.msra.mxu0 0
      %615 = vmatprep.subr.bf16.mxu0 0
      %616 = vmatpush1.bf16.msra.mxu0 0
      %617 = vmatprep.subr.bf16.mxu0 0
      %618 = vmatpush1.bf16.msra.mxu0 0
      %619 = vmatprep.subr.bf16.mxu0 0
      %620 = vmatpush1.bf16.msra.mxu0 0
      %621 = vmatprep.subr.bf16.mxu0 0
      %622 = vmatpush1.bf16.msra.mxu0 0
      %623 = vmatprep.subr.bf16.mxu0 0
      %624 = vmatpush1.bf16.msra.mxu0 0
      %625 = vmatprep.subr.bf16.mxu0 0
      %626 = vmatpush1.bf16.msra.mxu0 %v606
      %627 = vmatprep.subr.bf16.mxu0 0
      %628 = vmatpush2.bf16.msra.mxu0 0
      %629 = vmatprep.subr.bf16.mxu0 0
      %630 = vmatpush2.bf16.msra.mxu0 0
      %631 = vmatprep.subr.bf16.mxu0 0
      %632 = vmatpush2.bf16.msra.mxu0 0
      %633 = vmatprep.subr.bf16.mxu0 0
      %634 = vmatpush2.bf16.msra.mxu0 0
      %635 = vmatprep.subr.bf16.mxu0 0
      %636 = vmatpush2.bf16.msra.mxu0 0
      %637 = vmatprep.subr.bf16.mxu0 0
      %638 = vmatpush2.bf16.msra.mxu0 0
      %639 = vmatprep.subr.bf16.mxu0 0
      %640 = vmatpush2.bf16.msra.mxu0 0
      %641 = vmatprep.subr.bf16.mxu0 0
      %642 = vmatpush2.bf16.msra.mxu0 0
      %643 = vmatprep.mubr.bf16.mxu0 0
      %644 = vmatmul.mubr.bf16.gmra.mxu0 %v609
      %v645 = vpop.f32.mrf.mxu0
      %v646 = vadd.f32 0.0, %v645
      %v647 = vpop.f32.mrf.mxu0
      %v648 = vpop.f32.mrf.mxu0
      %v649 = vpop.f32.mrf.mxu0
      %650 = vdwg.mxu0
      %v651 = vadd.f32 %v591, %v646
      %v652 = vrot.slane %v594, 1
      %v655 = vunpack.c.l.b16 %v208
      %v656 = vunpack.c.l.b16 %v209
      %v657 = vpack.c.b16 %v656, %v655
      %v660 = vsel %vm229, %v652, 0
      %662 = vmatprep.subr.bf16.mxu0 0
      %663 = vmatpush1.bf16.msra.mxu0 0
      %664 = vmatprep.subr.bf16.mxu0 0
      %665 = vmatpush1.bf16.msra.mxu0 0
      %666 = vmatprep.subr.bf16.mxu0 0
      %667 = vmatpush1.bf16.msra.mxu0 0
      %668 = vmatprep.subr.bf16.mxu0 0
      %669 = vmatpush1.bf16.msra.mxu0 0
      %670 = vmatprep.subr.bf16.mxu0 0
      %671 = vmatpush1.bf16.msra.mxu0 0
      %672 = vmatprep.subr.bf16.mxu0 0
      %673 = vmatpush1.bf16.msra.mxu0 0
      %674 = vmatprep.subr.bf16.mxu0 0
      %675 = vmatpush1.bf16.msra.mxu0 0
      %676 = vmatprep.subr.bf16.mxu0 0
      %677 = vmatpush1.bf16.msra.mxu0 %v657
      %678 = vmatprep.subr.bf16.mxu0 0
      %679 = vmatpush2.bf16.msra.mxu0 0
      %680 = vmatprep.subr.bf16.mxu0 0
      %681 = vmatpush2.bf16.msra.mxu0 0
      %682 = vmatprep.subr.bf16.mxu0 0
      %683 = vmatpush2.bf16.msra.mxu0 0
      %684 = vmatprep.subr.bf16.mxu0 0
      %685 = vmatpush2.bf16.msra.mxu0 0
      %686 = vmatprep.subr.bf16.mxu0 0
      %687 = vmatpush2.bf16.msra.mxu0 0
      %688 = vmatprep.subr.bf16.mxu0 0
      %689 = vmatpush2.bf16.msra.mxu0 0
      %690 = vmatprep.subr.bf16.mxu0 0
      %691 = vmatpush2.bf16.msra.mxu0 0
      %692 = vmatprep.subr.bf16.mxu0 0
      %693 = vmatpush2.bf16.msra.mxu0 0
      %694 = vmatprep.mubr.bf16.mxu0 0
      %695 = vmatmul.mubr.bf16.gmra.mxu0 %v660
      %v696 = vpop.f32.mrf.mxu0
      %v697 = vadd.f32 0.0, %v696
      %v698 = vpop.f32.mrf.mxu0
      %v699 = vpop.f32.mrf.mxu0
      %v700 = vpop.f32.mrf.mxu0
      %701 = vdwg.mxu0
      %v702 = vadd.f32 %v651, %v697
      %v703 = vld [vmem:[%s2] sm:$0x1]
      %v705 = vlaneseq
      %v706 = vshrl.u32 %v705, 7
      %v707 = vsub.s32 0, %v706
      %v708 = vrot.slane %v703, %v707
      %v710 = vadd.f32 %v702, %v708
      %v711 = vxor.u32 %v710, 2147483648
      %v712 = vmul.f32 %v711, 1.442695
      %v713 = vpow.pop %v712
      %v714 = vadd.f32 %v713, 1.0
      %v715 = vrcp.pop %v714
      %v716 = vmul.f32 1.0, %v715
      %v717 = vmul.f32 %v710, %v716
      %v718 = vpack.c.bf16 %v717, %v717
      %vm719 = vcmask 123904
      %720 = vst.msk [vmem:[%s190] sm:$0x3] %vm719, %v718
      %p721 = scmp.lt.s32.totalorder %s18, 1
      %s722 = scalar_select %p721, %s18, 1
      %p723 = scmp.lt.s32.totalorder %s19, 3
      %s724 = scalar_select %p723, %s19, 3
      %s725 = smul.addr %s722, 4
      %s726 = sadd.s32 %s724, %s725
      %s727 = smul.addr %s726, 2
      %s728 = scalar_lea.vmem %s3, %s727
      // Predicated region
      $region33: #{_lambda_.49} parent=31 // pred_check
        %p729 = pneg %p114
      $region34: #{_lambda_.49} parent=31 // pred_check_branch
        %731 = sbr.rel (%p729) target = $region36
      $region35: #{_lambda_.49} parent=31 // pred_region
        _
      $region36: #{_lambda_.49} parent=31 // pred_fallthru
        _
    $region32: #{_lambda_.49} parent=5 // pred_fallthru
      _
    %p732 = scmp.le.s32.totalorder 2, %s9
    // Predicated region
    $region37: #{_lambda_.49} parent=5 // pred_check
      %p733 = pneg %p732
    $region38: #{_lambda_.49} parent=5 // pred_check_branch
      %735 = sbr.rel (%p733) target = $region40
    $region39: #{_lambda_.49} parent=5 // pred_region
      %s736 = ssub.s32 %s9, 2
      // Predicated region
      $region41: #{_lambda_.49} parent=39 // pred_check
        %p737 = pneg %p120
      $region42: #{_lambda_.49} parent=39 // pred_check_branch
        %739 = sbr.rel (%p737) target = $region44
      $region43: #{_lambda_.49} parent=39 // pred_region
        %p740 = scmp.lt.s32.totalorder %s20, 1
        %s741 = scalar_select %p740, %s20, 1
        %p742 = scmp.lt.s32.totalorder %s21, 3
        %s743 = scalar_select %p742, %s21, 3
        %s744 = smul.addr %s741, 4
        %s745 = sadd.s32 %s743, %s744
        %s746 = smul.addr %s745, 2
        %s747 = scalar_lea.vmem %s3, %s746
      $region44: #{_lambda_.49} parent=39 // pred_fallthru
        _
    $region40: #{_lambda_.49} parent=5 // pred_fallthru
      _
  $region6: #{_lambda_.49} parent=0 // loop_footer
    %s13 = sadd.s32 1, %s9
  $region7: #{_lambda_.49} parent=0 // loop_footer_branch
    %8 = sbr.rel target = $region3
  $region8: #{_lambda_.49} parent=0 // loop_exit
    _

// kernel: _lambda_.56
$region0: #{_lambda_.56}
  #allocation0 [shape = 'u32[]', space=smem, size = 0x4, offset = 0x4, fixed_abs, tag = 'smem constant byte address 0x4 - core index']
  #allocation1 [shape = 'u32[144,128]{1,0:T(1,128)}', space=vmem, size = 0x12000, scoped, tag = 'internal scratch']
  %s0 = inlined_call_operand.vmem [shape: bf16[32,32], index: 0, kind: input, shape index: {}]
  %s1 = inlined_call_operand.vmem [shape: bf16[32,16], index: 1, kind: input, shape index: {}]
  %s2 = inlined_call_operand.vmem [shape: bf16[32,16], index: 2, kind: input, shape index: {}]
  %s3 = inlined_call_operand.vmem [shape: bf16[32,48], index: 3, kind: input, shape index: {}]
  %s4 = inlined_call_operand.vmem [shape: bf16[16,48], index: 4, kind: input, shape index: {}]
  %s5 = inlined_call_operand.vmem [shape: bf16[16,48], index: 5, kind: input, shape index: {}]
  %s6 = inlined_call_operand.vmem [shape: f32[1,48], index: 6, kind: input, shape index: {}]
  %s7 = inlined_call_operand.vmem [shape: bf16[32,48], index: 7, kind: output, shape index: {}]
  %s8 = sld [smem:[#allocation0]]
  $region38: #{_lambda_.56} parent=0
    _
  %s10 = ssub.s32 1, %s8
  %s11 = scalar_select 0, %s10, %s8
  // Predicated region
  $region2: #{_lambda_.56} parent=0 // pred_check
    _
  $region3: #{_lambda_.56} parent=0 // pred_check_branch
    %13 = sbr.rel (0) target = $region5
  $region4: #{_lambda_.56} parent=0 // pred_region
    _
  $region5: #{_lambda_.56} parent=0 // pred_fallthru
    _
  // Predicated region
  $region6: #{_lambda_.56} parent=0 // pred_check
    _
  $region7: #{_lambda_.56} parent=0 // pred_check_branch
    %15 = sbr.rel (0) target = $region9
  $region8: #{_lambda_.56} parent=0 // pred_region
    _
  $region9: #{_lambda_.56} parent=0 // pred_fallthru
    _
  // Predicated region
  $region10: #{_lambda_.56} parent=0 // pred_check
    _
  $region11: #{_lambda_.56} parent=0 // pred_check_branch
    %17 = sbr.rel (0) target = $region13
  $region12: #{_lambda_.56} parent=0 // pred_region
    _
  $region13: #{_lambda_.56} parent=0 // pred_fallthru
    _
  // Predicated region
  $region14: #{_lambda_.56} parent=0 // pred_check
    _
  $region15: #{_lambda_.56} parent=0 // pred_check_branch
    %19 = sbr.rel (0) target = $region17
  $region16: #{_lambda_.56} parent=0 // pred_region
    _
  $region17: #{_lambda_.56} parent=0 // pred_fallthru
    _
  // Predicated region
  $region18: #{_lambda_.56} parent=0 // pred_check
    _
  $region19: #{_lambda_.56} parent=0 // pred_check_branch
    %21 = sbr.rel (0) target = $region21
  $region20: #{_lambda_.56} parent=0 // pred_region
    _
  $region21: #{_lambda_.56} parent=0 // pred_fallthru
    _
  // Predicated region
  $region22: #{_lambda_.56} parent=0 // pred_check
    _
  $region23: #{_lambda_.56} parent=0 // pred_check_branch
    %23 = sbr.rel (0) target = $region25
  $region24: #{_lambda_.56} parent=0 // pred_region
    _
  $region25: #{_lambda_.56} parent=0 // pred_fallthru
    _
  // Predicated region
  $region26: #{_lambda_.56} parent=0 // pred_check
    _
  $region27: #{_lambda_.56} parent=0 // pred_check_branch
    %25 = sbr.rel (0) target = $region29
  $region28: #{_lambda_.56} parent=0 // pred_region
    _
  $region29: #{_lambda_.56} parent=0 // pred_fallthru
    _
  %v27 = vld [vmem:[%s0] sm:$0xf]
  %v28 = vld [vmem:[%s0 + $0x4] sm:$0xf]
  %v29 = vld [vmem:[%s0 + $0x8] sm:$0xf]
  %v30 = vld [vmem:[%s0 + $0xc] sm:$0xf]
  %v31 = vld [vmem:[%s3] sm:$0xf]
  %v32 = vld [vmem:[%s3 + $0x4] sm:$0xf]
  %v33 = vld [vmem:[%s3 + $0x8] sm:$0xf]
  %v34 = vld [vmem:[%s3 + $0xc] sm:$0xf]
  %v35 = vld [vmem:[%s1] sm:$0xf]
  %v36 = vld [vmem:[%s1 + $0x4] sm:$0xf]
  %v37 = vld [vmem:[%s1 + $0x8] sm:$0xf]
  %v38 = vld [vmem:[%s1 + $0xc] sm:$0xf]
  %v39 = vld [vmem:[%s4] sm:$0xf]
  %v40 = vld [vmem:[%s4 + $0x4] sm:$0xf]
  %v45 = vunpack.c.l.b16 %v35
  %v46 = vunpack.c.l.b16 %v36
  %v47 = vunpack.c.l.b16 %v37
  %v48 = vunpack.c.l.b16 %v38
  %v49 = vpack.c.b16 %v46, %v45
  %v50 = vpack.c.b16 %v48, %v47
  %v53 = vunpack.c.l.b16 %v39
  %v54 = vunpack.c.l.b16 %v40
  %v55 = vpack.c.b16 %v54, %v53
  %vm57 = vcmask 130048
  %v59 = vsel %vm57, %v49, 0
  %v62 = vsel %vm57, %v50, 0
  %64 = vmatprep.subr.bf16.mxu0 0
  %65 = vmatpush1.bf16.msra.mxu0 0
  %66 = vmatprep.subr.bf16.mxu0 0
  %67 = vmatpush1.bf16.msra.mxu0 0
  %68 = vmatprep.subr.bf16.mxu0 0
  %69 = vmatpush1.bf16.msra.mxu0 0
  %70 = vmatprep.subr.bf16.mxu0 0
  %71 = vmatpush1.bf16.msra.mxu0 0
  %72 = vmatprep.subr.bf16.mxu0 0
  %73 = vmatpush1.bf16.msra.mxu0 0
  %74 = vmatprep.subr.bf16.mxu0 0
  %75 = vmatpush1.bf16.msra.mxu0 0
  %76 = vmatprep.subr.bf16.mxu0 0
  %77 = vmatpush1.bf16.msra.mxu0 0
  %78 = vmatprep.subr.bf16.mxu0 0
  %79 = vmatpush1.bf16.msra.mxu0 %v55
  %80 = vmatprep.subr.bf16.mxu0 0
  %81 = vmatpush2.bf16.msra.mxu0 0
  %82 = vmatprep.subr.bf16.mxu0 0
  %83 = vmatpush2.bf16.msra.mxu0 0
  %84 = vmatprep.subr.bf16.mxu0 0
  %85 = vmatpush2.bf16.msra.mxu0 0
  %86 = vmatprep.subr.bf16.mxu0 0
  %87 = vmatpush2.bf16.msra.mxu0 0
  %88 = vmatprep.subr.bf16.mxu0 0
  %89 = vmatpush2.bf16.msra.mxu0 0
  %90 = vmatprep.subr.bf16.mxu0 0
  %91 = vmatpush2.bf16.msra.mxu0 0
  %92 = vmatprep.subr.bf16.mxu0 0
  %93 = vmatpush2.bf16.msra.mxu0 0
  %94 = vmatprep.subr.bf16.mxu0 0
  %95 = vmatpush2.bf16.msra.mxu0 0
  %96 = vmatprep.mubr.bf16.mxu0 0
  %97 = vmatmul.mubr.bf16.gmra.mxu0 %v59
  %v98 = vpop.f32.mrf.mxu0
  %v99 = vadd.f32 0.0, %v98
  %v100 = vpop.f32.mrf.mxu0
  %v101 = vpop.f32.mrf.mxu0
  %v102 = vadd.f32 0.0, %v101
  %v103 = vpop.f32.mrf.mxu0
  %104 = vmatprep.mubr.bf16.mxu0 0
  %105 = vmatmul.mubr.bf16.gmra.mxu0 %v62
  %v106 = vpop.f32.mrf.mxu0
  %v107 = vadd.f32 0.0, %v106
  %v108 = vpop.f32.mrf.mxu0
  %v109 = vpop.f32.mrf.mxu0
  %v110 = vadd.f32 0.0, %v109
  %v111 = vpop.f32.mrf.mxu0
  %112 = vdwg.mxu0
  %v117 = vunpack.c.l.b16 %v27
  %v118 = vunpack.c.l.b16 %v28
  %v119 = vunpack.c.l.b16 %v29
  %v120 = vunpack.c.l.b16 %v30
  %v121 = vpack.c.b16 %v118, %v117
  %v122 = vpack.c.b16 %v120, %v119
  %v127 = vunpack.c.l.b16 %v31
  %v128 = vunpack.c.l.b16 %v32
  %v129 = vunpack.c.l.b16 %v33
  %v130 = vunpack.c.l.b16 %v34
  %v131 = vpack.c.b16 %v128, %v127
  %v132 = vpack.c.b16 %v130, %v129
  %vm135 = vcmask 261120
  %v137 = vsel %vm135, %v121, 0
  %v140 = vsel %vm135, %v122, 0
  %142 = vmatprep.subr.bf16.mxu0 0
  %143 = vmatpush1.bf16.msra.mxu0 0
  %144 = vmatprep.subr.bf16.mxu0 0
  %145 = vmatpush1.bf16.msra.mxu0 0
  %146 = vmatprep.subr.bf16.mxu0 0
  %147 = vmatpush1.bf16.msra.mxu0 0
  %148 = vmatprep.subr.bf16.mxu0 0
  %149 = vmatpush1.bf16.msra.mxu0 0
  %150 = vmatprep.subr.bf16.mxu0 0
  %151 = vmatpush1.bf16.msra.mxu0 0
  %152 = vmatprep.subr.bf16.mxu0 0
  %153 = vmatpush1.bf16.msra.mxu0 0
  %154 = vmatprep.subr.bf16.mxu0 0
  %155 = vmatpush1.bf16.msra.mxu0 %v132
  %156 = vmatprep.subr.bf16.mxu0 0
  %157 = vmatpush1.bf16.msra.mxu0 %v131
  %158 = vmatprep.subr.bf16.mxu0 0
  %159 = vmatpush2.bf16.msra.mxu0 0
  %160 = vmatprep.subr.bf16.mxu0 0
  %161 = vmatpush2.bf16.msra.mxu0 0
  %162 = vmatprep.subr.bf16.mxu0 0
  %163 = vmatpush2.bf16.msra.mxu0 0
  %164 = vmatprep.subr.bf16.mxu0 0
  %165 = vmatpush2.bf16.msra.mxu0 0
  %166 = vmatprep.subr.bf16.mxu0 0
  %167 = vmatpush2.bf16.msra.mxu0 0
  %168 = vmatprep.subr.bf16.mxu0 0
  %169 = vmatpush2.bf16.msra.mxu0 0
  %170 = vmatprep.subr.bf16.mxu0 0
  %171 = vmatpush2.bf16.msra.mxu0 0
  %172 = vmatprep.subr.bf16.mxu0 0
  %173 = vmatpush2.bf16.msra.mxu0 0
  %174 = vmatprep.mubr.bf16.mxu0 0
  %175 = vmatmul.mubr.bf16.gmra.mxu0 %v137
  %v176 = vpop.f32.mrf.mxu0
  %v177 = vadd.f32 %v99, %v176
  %v178 = vpop.f32.mrf.mxu0
  %v179 = vpop.f32.mrf.mxu0
  %v180 = vadd.f32 %v102, %v179
  %v181 = vpop.f32.mrf.mxu0
  %182 = vmatprep.mubr.bf16.mxu0 0
  %183 = vmatmul.mubr.bf16.gmra.mxu0 %v140
  %v184 = vpop.f32.mrf.mxu0
  %v185 = vadd.f32 %v107, %v184
  %v186 = vpop.f32.mrf.mxu0
  %v187 = vpop.f32.mrf.mxu0
  %v188 = vadd.f32 %v110, %v187
  %v189 = vpop.f32.mrf.mxu0
  %190 = vdwg.mxu0
  %v191 = vld [vmem:[%s2] sm:$0xf]
  %v192 = vld [vmem:[%s2 + $0x4] sm:$0xf]
  %v193 = vld [vmem:[%s2 + $0x8] sm:$0xf]
  %v194 = vld [vmem:[%s2 + $0xc] sm:$0xf]
  %v195 = vld [vmem:[%s5] sm:$0xf]
  %v196 = vld [vmem:[%s5 + $0x4] sm:$0xf]
  %v201 = vunpack.c.l.b16 %v191
  %v202 = vunpack.c.l.b16 %v192
  %v203 = vunpack.c.l.b16 %v193
  %v204 = vunpack.c.l.b16 %v194
  %v205 = vpack.c.b16 %v202, %v201
  %v206 = vpack.c.b16 %v204, %v203
  %v209 = vunpack.c.l.b16 %v195
  %v210 = vunpack.c.l.b16 %v196
  %v211 = vpack.c.b16 %v210, %v209
  %v214 = vsel %vm57, %v205, 0
  %v217 = vsel %vm57, %v206, 0
  %219 = vmatprep.subr.bf16.mxu0 0
  %220 = vmatpush1.bf16.msra.mxu0 0
  %221 = vmatprep.subr.bf16.mxu0 0
  %222 = vmatpush1.bf16.msra.mxu0 0
  %223 = vmatprep.subr.bf16.mxu0 0
  %224 = vmatpush1.bf16.msra.mxu0 0
  %225 = vmatprep.subr.bf16.mxu0 0
  %226 = vmatpush1.bf16.msra.mxu0 0
  %227 = vmatprep.subr.bf16.mxu0 0
  %228 = vmatpush1.bf16.msra.mxu0 0
  %229 = vmatprep.subr.bf16.mxu0 0
  %230 = vmatpush1.bf16.msra.mxu0 0
  %231 = vmatprep.subr.bf16.mxu0 0
  %232 = vmatpush1.bf16.msra.mxu0 0
  %233 = vmatprep.subr.bf16.mxu0 0
  %234 = vmatpush1.bf16.msra.mxu0 %v211
  %235 = vmatprep.subr.bf16.mxu0 0
  %236 = vmatpush2.bf16.msra.mxu0 0
  %237 = vmatprep.subr.bf16.mxu0 0
  %238 = vmatpush2.bf16.msra.mxu0 0
  %239 = vmatprep.subr.bf16.mxu0 0
  %240 = vmatpush2.bf16.msra.mxu0 0
  %241 = vmatprep.subr.bf16.mxu0 0
  %242 = vmatpush2.bf16.msra.mxu0 0
  %243 = vmatprep.subr.bf16.mxu0 0
  %244 = vmatpush2.bf16.msra.mxu0 0
  %245 = vmatprep.subr.bf16.mxu0 0
  %246 = vmatpush2.bf16.msra.mxu0 0
  %247 = vmatprep.subr.bf16.mxu0 0
  %248 = vmatpush2.bf16.msra.mxu0 0
  %249 = vmatprep.subr.bf16.mxu0 0
  %250 = vmatpush2.bf16.msra.mxu0 0
  %251 = vmatprep.mubr.bf16.mxu0 0
  %252 = vmatmul.mubr.bf16.gmra.mxu0 %v214
  %v253 = vpop.f32.mrf.mxu0
  %v254 = vadd.f32 0.0, %v253
  %v255 = vpop.f32.mrf.mxu0
  %v256 = vpop.f32.mrf.mxu0
  %v257 = vadd.f32 0.0, %v256
  %v258 = vpop.f32.mrf.mxu0
  %259 = vmatprep.mubr.bf16.mxu0 0
  %260 = vmatmul.mubr.bf16.gmra.mxu0 %v217
  %v261 = vpop.f32.mrf.mxu0
  %v262 = vadd.f32 0.0, %v261
  %v263 = vpop.f32.mrf.mxu0
  %v264 = vpop.f32.mrf.mxu0
  %v265 = vadd.f32 0.0, %v264
  %v266 = vpop.f32.mrf.mxu0
  %267 = vdwg.mxu0
  %v268 = vadd.f32 %v177, %v254
  %v269 = vadd.f32 %v180, %v257
  %v270 = vadd.f32 %v185, %v262
  %v271 = vadd.f32 %v188, %v265
  %v272 = vld [vmem:[%s6] sm:$0x1]
  %v274 = vlaneseq
  %v275 = vshrl.u32 %v274, 7
  %v276 = vsub.s32 0, %v275
  %v277 = vrot.slane %v272, %v276
  %v279 = vadd.f32 %v268, %v277
  %v280 = vadd.f32 %v269, %v277
  %v281 = vadd.f32 %v270, %v277
  %v282 = vadd.f32 %v271, %v277
  %v283 = vxor.u32 %v279, 2147483648
  %v284 = vxor.u32 %v280, 2147483648
  %v285 = vxor.u32 %v281, 2147483648
  %v286 = vxor.u32 %v282, 2147483648
  %v287 = vmul.f32 %v283, 1.442695
  %v288 = vpow.pop %v287
  %v289 = vmul.f32 %v284, 1.442695
  %v290 = vpow.pop %v289
  %v291 = vmul.f32 %v285, 1.442695
  %v292 = vpow.pop %v291
  %v293 = vmul.f32 %v286, 1.442695
  %v294 = vpow.pop %v293
  %v295 = vadd.f32 %v288, 1.0
  %v296 = vadd.f32 %v290, 1.0
  %v297 = vadd.f32 %v292, 1.0
  %v298 = vadd.f32 %v294, 1.0
  %v299 = vrcp.pop %v295
  %v300 = vmul.f32 1.0, %v299
  %v301 = vrcp.pop %v296
  %v302 = vmul.f32 1.0, %v301
  %v303 = vrcp.pop %v297
  %v304 = vmul.f32 1.0, %v303
  %v305 = vrcp.pop %v298
  %v306 = vmul.f32 1.0, %v305
  %v307 = vmul.f32 %v279, %v300
  %v308 = vmul.f32 %v280, %v302
  %v309 = vmul.f32 %v281, %v304
  %v310 = vmul.f32 %v282, %v306
  %v311 = vpack.c.bf16 %v308, %v307
  %v312 = vpack.c.bf16 %v310, %v309
  %v315 = vunpack.c.l.b16 %v311
  %v316 = vunpack.c.h.b16 %v311
  %v317 = vunpack.c.l.b16 %v312
  %v318 = vunpack.c.h.b16 %v312
  %v319 = vpack.c.b16 %v315, %v315
  %v320 = vpack.c.b16 %v316, %v316
  %v321 = vpack.c.b16 %v317, %v317
  %v322 = vpack.c.b16 %v318, %v318
  %vm327 = vcmask 388096
  %328 = vst.msk [vmem:[%s7] sm:$0xf] %vm327, %v319
  %329 = vst.msk [vmem:[%s7 + $0x4] sm:$0xf] %vm327, %v320
  %330 = vst.msk [vmem:[%s7 + $0x8] sm:$0xf] %vm327, %v321
  %331 = vst.msk [vmem:[%s7 + $0xc] sm:$0xf] %vm327, %v322
  // Predicated region
  $region30: #{_lambda_.56} parent=0 // pred_check
    _
  $region31: #{_lambda_.56} parent=0 // pred_check_branch
    %333 = sbr.rel (0) target = $region33
  $region32: #{_lambda_.56} parent=0 // pred_region
    _
  $region33: #{_lambda_.56} parent=0 // pred_fallthru
    _
  // Predicated region
  $region34: #{_lambda_.56} parent=0 // pred_check
    _
  $region35: #{_lambda_.56} parent=0 // pred_check_branch
    %335 = sbr.rel (0) target = $region37
  $region36: #{_lambda_.56} parent=0 // pred_region
    _
  $region37: #{_lambda_.56} parent=0 // pred_fallthru
    _

// kernel: _lambda_.57
$region0: #{_lambda_.57}
  #allocation0 [shape = 'u32[]', space=smem, size = 0x4, offset = 0x4, fixed_abs, tag = 'smem constant byte address 0x4 - core index']
  #allocation1 [shape = 'u32[144,128]{1,0:T(1,128)}', space=vmem, size = 0x12000, scoped, tag = 'internal scratch']
  %s0 = inlined_call_operand.vmem [shape: bf16[18,4,48], index: 0, kind: input, shape index: {}]
  %s1 = inlined_call_operand.vmem [shape: bf16[18,48], index: 1, kind: output, shape index: {}]
  %s2 = sld [smem:[#allocation0]]
  $region14: #{_lambda_.57} parent=0
    _
  %s4 = ssub.s32 1, %s2
  %s5 = scalar_select 0, %s4, %s2
  // Predicated region
  $region2: #{_lambda_.57} parent=0 // pred_check
    _
  $region3: #{_lambda_.57} parent=0 // pred_check_branch
    %7 = sbr.rel (0) target = $region5
  $region4: #{_lambda_.57} parent=0 // pred_region
    _
  $region5: #{_lambda_.57} parent=0 // pred_fallthru
    _
  %v8 = vld [vmem:[%s0] sm:$0x3]
  %v9 = vld [vmem:[%s0 + $0x2] sm:$0x3]
  %v10 = vld [vmem:[%s0 + $0x4] sm:$0x3]
  %v11 = vld [vmem:[%s0 + $0x6] sm:$0x3]
  %v12 = vld [vmem:[%s0 + $0x8] sm:$0x3]
  %v13 = vld [vmem:[%s0 + $0xa] sm:$0x3]
  %v14 = vld [vmem:[%s0 + $0xc] sm:$0x3]
  %v15 = vld [vmem:[%s0 + $0xe] sm:$0x3]
  %v16 = vld [vmem:[%s0 + $0x10] sm:$0x3]
  %v17 = vld [vmem:[%s0 + $0x12] sm:$0x3]
  %v18 = vld [vmem:[%s0 + $0x14] sm:$0x3]
  %v19 = vld [vmem:[%s0 + $0x16] sm:$0x3]
  %v20 = vld [vmem:[%s0 + $0x18] sm:$0x3]
  %v21 = vld [vmem:[%s0 + $0x1a] sm:$0x3]
  %v22 = vld [vmem:[%s0 + $0x1c] sm:$0x3]
  %v23 = vld [vmem:[%s0 + $0x1e] sm:$0x3]
  %v24 = vld [vmem:[%s0 + $0x20] sm:$0x3]
  %v25 = vld [vmem:[%s0 + $0x22] sm:$0x3]
  %v26 = vunpack.c.l.bf16 %v8
  %v27 = vunpack.c.l.bf16 %v9
  %v28 = vunpack.c.l.bf16 %v10
  %v29 = vunpack.c.l.bf16 %v11
  %v30 = vunpack.c.l.bf16 %v12
  %v31 = vunpack.c.l.bf16 %v13
  %v32 = vunpack.c.l.bf16 %v14
  %v33 = vunpack.c.l.bf16 %v15
  %v34 = vunpack.c.l.bf16 %v16
  %v35 = vunpack.c.l.bf16 %v17
  %v36 = vunpack.c.l.bf16 %v18
  %v37 = vunpack.c.l.bf16 %v19
  %v38 = vunpack.c.l.bf16 %v20
  %v39 = vunpack.c.l.bf16 %v21
  %v40 = vunpack.c.l.bf16 %v22
  %v41 = vunpack.c.l.bf16 %v23
  %v42 = vunpack.c.l.bf16 %v24
  %v43 = vunpack.c.l.bf16 %v25
  %vm44 = vcmask 388096
  %v45 = vsel %vm44, %v26, 0.0
  %v46 = vrot.slane %v45, 4
  %v47 = vadd.f32 %v45, %v46
  %v48 = vrot.slane %v47, 2
  %v49 = vadd.f32 %v47, %v48
  %v50 = vrot.slane %v49, 1
  %v51 = vadd.f32 %v49, %v50
  %v52 = vsel %vm44, %v27, 0.0
  %v53 = vrot.slane %v52, 4
  %v54 = vadd.f32 %v52, %v53
  %v55 = vrot.slane %v54, 2
  %v56 = vadd.f32 %v54, %v55
  %v57 = vrot.slane %v56, 1
  %v58 = vadd.f32 %v56, %v57
  %v59 = vsel %vm44, %v28, 0.0
  %v60 = vrot.slane %v59, 4
  %v61 = vadd.f32 %v59, %v60
  %v62 = vrot.slane %v61, 2
  %v63 = vadd.f32 %v61, %v62
  %v64 = vrot.slane %v63, 1
  %v65 = vadd.f32 %v63, %v64
  %v66 = vsel %vm44, %v29, 0.0
  %v67 = vrot.slane %v66, 4
  %v68 = vadd.f32 %v66, %v67
  %v69 = vrot.slane %v68, 2
  %v70 = vadd.f32 %v68, %v69
  %v71 = vrot.slane %v70, 1
  %v72 = vadd.f32 %v70, %v71
  %v73 = vsel %vm44, %v30, 0.0
  %v74 = vrot.slane %v73, 4
  %v75 = vadd.f32 %v73, %v74
  %v76 = vrot.slane %v75, 2
  %v77 = vadd.f32 %v75, %v76
  %v78 = vrot.slane %v77, 1
  %v79 = vadd.f32 %v77, %v78
  %v80 = vsel %vm44, %v31, 0.0
  %v81 = vrot.slane %v80, 4
  %v82 = vadd.f32 %v80, %v81
  %v83 = vrot.slane %v82, 2
  %v84 = vadd.f32 %v82, %v83
  %v85 = vrot.slane %v84, 1
  %v86 = vadd.f32 %v84, %v85
  %v87 = vsel %vm44, %v32, 0.0
  %v88 = vrot.slane %v87, 4
  %v89 = vadd.f32 %v87, %v88
  %v90 = vrot.slane %v89, 2
  %v91 = vadd.f32 %v89, %v90
  %v92 = vrot.slane %v91, 1
  %v93 = vadd.f32 %v91, %v92
  %v94 = vsel %vm44, %v33, 0.0
  %v95 = vrot.slane %v94, 4
  %v96 = vadd.f32 %v94, %v95
  %v97 = vrot.slane %v96, 2
  %v98 = vadd.f32 %v96, %v97
  %v99 = vrot.slane %v98, 1
  %v100 = vadd.f32 %v98, %v99
  %v101 = vsel %vm44, %v34, 0.0
  %v102 = vrot.slane %v101, 4
  %v103 = vadd.f32 %v101, %v102
  %v104 = vrot.slane %v103, 2
  %v105 = vadd.f32 %v103, %v104
  %v106 = vrot.slane %v105, 1
  %v107 = vadd.f32 %v105, %v106
  %v108 = vsel %vm44, %v35, 0.0
  %v109 = vrot.slane %v108, 4
  %v110 = vadd.f32 %v108, %v109
  %v111 = vrot.slane %v110, 2
  %v112 = vadd.f32 %v110, %v111
  %v113 = vrot.slane %v112, 1
  %v114 = vadd.f32 %v112, %v113
  %v115 = vsel %vm44, %v36, 0.0
  %v116 = vrot.slane %v115, 4
  %v117 = vadd.f32 %v115, %v116
  %v118 = vrot.slane %v117, 2
  %v119 = vadd.f32 %v117, %v118
  %v120 = vrot.slane %v119, 1
  %v121 = vadd.f32 %v119, %v120
  %v122 = vsel %vm44, %v37, 0.0
  %v123 = vrot.slane %v122, 4
  %v124 = vadd.f32 %v122, %v123
  %v125 = vrot.slane %v124, 2
  %v126 = vadd.f32 %v124, %v125
  %v127 = vrot.slane %v126, 1
  %v128 = vadd.f32 %v126, %v127
  %v129 = vsel %vm44, %v38, 0.0
  %v130 = vrot.slane %v129, 4
  %v131 = vadd.f32 %v129, %v130
  %v132 = vrot.slane %v131, 2
  %v133 = vadd.f32 %v131, %v132
  %v134 = vrot.slane %v133, 1
  %v135 = vadd.f32 %v133, %v134
  %v136 = vsel %vm44, %v39, 0.0
  %v137 = vrot.slane %v136, 4
  %v138 = vadd.f32 %v136, %v137
  %v139 = vrot.slane %v138, 2
  %v140 = vadd.f32 %v138, %v139
  %v141 = vrot.slane %v140, 1
  %v142 = vadd.f32 %v140, %v141
  %v143 = vsel %vm44, %v40, 0.0
  %v144 = vrot.slane %v143, 4
  %v145 = vadd.f32 %v143, %v144
  %v146 = vrot.slane %v145, 2
  %v147 = vadd.f32 %v145, %v146
  %v148 = vrot.slane %v147, 1
  %v149 = vadd.f32 %v147, %v148
  %v150 = vsel %vm44, %v41, 0.0
  %v151 = vrot.slane %v150, 4
  %v152 = vadd.f32 %v150, %v151
  %v153 = vrot.slane %v152, 2
  %v154 = vadd.f32 %v152, %v153
  %v155 = vrot.slane %v154, 1
  %v156 = vadd.f32 %v154, %v155
  %v157 = vsel %vm44, %v42, 0.0
  %v158 = vrot.slane %v157, 4
  %v159 = vadd.f32 %v157, %v158
  %v160 = vrot.slane %v159, 2
  %v161 = vadd.f32 %v159, %v160
  %v162 = vrot.slane %v161, 1
  %v163 = vadd.f32 %v161, %v162
  %v164 = vsel %vm44, %v43, 0.0
  %v165 = vrot.slane %v164, 4
  %v166 = vadd.f32 %v164, %v165
  %v167 = vrot.slane %v166, 2
  %v168 = vadd.f32 %v166, %v167
  %v169 = vrot.slane %v168, 1
  %v170 = vadd.f32 %v168, %v169
  %v171 = vrcp.pop 4.0
  %v172 = vmul.f32 %v51, %v171
  %v173 = vmul.f32 %v58, %v171
  %v174 = vmul.f32 %v65, %v171
  %v175 = vmul.f32 %v72, %v171
  %v176 = vmul.f32 %v79, %v171
  %v177 = vmul.f32 %v86, %v171
  %v178 = vmul.f32 %v93, %v171
  %v179 = vmul.f32 %v100, %v171
  %v180 = vmul.f32 %v107, %v171
  %v181 = vmul.f32 %v114, %v171
  %v182 = vmul.f32 %v121, %v171
  %v183 = vmul.f32 %v128, %v171
  %v184 = vmul.f32 %v135, %v171
  %v185 = vmul.f32 %v142, %v171
  %v186 = vmul.f32 %v149, %v171
  %v187 = vmul.f32 %v156, %v171
  %v188 = vmul.f32 %v163, %v171
  %v189 = vmul.f32 %v170, %v171
  %v190 = vpack.c.bf16 %v172, %v172
  %v191 = vpack.c.bf16 %v173, %v173
  %v192 = vpack.c.bf16 %v174, %v174
  %v193 = vpack.c.bf16 %v175, %v175
  %v194 = vpack.c.bf16 %v176, %v176
  %v195 = vpack.c.bf16 %v177, %v177
  %v196 = vpack.c.bf16 %v178, %v178
  %v197 = vpack.c.bf16 %v179, %v179
  %v198 = vpack.c.bf16 %v180, %v180
  %v199 = vpack.c.bf16 %v181, %v181
  %v200 = vpack.c.bf16 %v182, %v182
  %v201 = vpack.c.bf16 %v183, %v183
  %v202 = vpack.c.bf16 %v184, %v184
  %v203 = vpack.c.bf16 %v185, %v185
  %v204 = vpack.c.bf16 %v186, %v186
  %v205 = vpack.c.bf16 %v187, %v187
  %v206 = vpack.c.bf16 %v188, %v188
  %v207 = vpack.c.bf16 %v189, %v189
  %v226 = vunpack.c.l.b16 %v190
  %v227 = vunpack.c.l.b16 %v191
  %v228 = vunpack.c.l.b16 %v192
  %v229 = vunpack.c.l.b16 %v193
  %v230 = vunpack.c.l.b16 %v194
  %v231 = vunpack.c.l.b16 %v195
  %v232 = vunpack.c.l.b16 %v196
  %v233 = vunpack.c.l.b16 %v197
  %v234 = vunpack.c.l.b16 %v198
  %v235 = vunpack.c.l.b16 %v199
  %v236 = vunpack.c.l.b16 %v200
  %v237 = vunpack.c.l.b16 %v201
  %v238 = vunpack.c.l.b16 %v202
  %v239 = vunpack.c.l.b16 %v203
  %v240 = vunpack.c.l.b16 %v204
  %v241 = vunpack.c.l.b16 %v205
  %v242 = vunpack.c.l.b16 %v206
  %v243 = vunpack.c.l.b16 %v207
  %v244 = vpack.c.b16 %v226, %v226
  %v245 = vpack.c.b16 %v227, %v227
  %v246 = vpack.c.b16 %v228, %v228
  %v247 = vpack.c.b16 %v229, %v229
  %v248 = vpack.c.b16 %v230, %v230
  %v249 = vpack.c.b16 %v231, %v231
  %v250 = vpack.c.b16 %v232, %v232
  %v251 = vpack.c.b16 %v233, %v233
  %v252 = vpack.c.b16 %v234, %v234
  %v253 = vpack.c.b16 %v235, %v235
  %v254 = vpack.c.b16 %v236, %v236
  %v255 = vpack.c.b16 %v237, %v237
  %v256 = vpack.c.b16 %v238, %v238
  %v257 = vpack.c.b16 %v239, %v239
  %v258 = vpack.c.b16 %v240, %v240
  %v259 = vpack.c.b16 %v241, %v241
  %v260 = vpack.c.b16 %v242, %v242
  %v261 = vpack.c.b16 %v243, %v243
  %v262 = vunpack.c.l.b16 %v244
  %v263 = vunpack.c.l.b16 %v245
  %v264 = vunpack.c.l.b16 %v246
  %v265 = vunpack.c.l.b16 %v247
  %v266 = vunpack.c.l.b16 %v248
  %v267 = vunpack.c.l.b16 %v249
  %v268 = vunpack.c.l.b16 %v250
  %v269 = vunpack.c.l.b16 %v251
  %v270 = vunpack.c.l.b16 %v252
  %v271 = vunpack.c.l.b16 %v253
  %v272 = vunpack.c.l.b16 %v254
  %v273 = vunpack.c.l.b16 %v255
  %v274 = vunpack.c.l.b16 %v256
  %v275 = vunpack.c.l.b16 %v257
  %v276 = vunpack.c.l.b16 %v258
  %v277 = vunpack.c.l.b16 %v259
  %v278 = vunpack.c.l.b16 %v260
  %v279 = vunpack.c.l.b16 %v261
  %vm280 = vcmask 1041409
  %v281 = vsel %vm280, %v263, %v262
  %vm282 = vcmask 1042434
  %v283 = vsel %vm282, %v264, %v281
  %vm284 = vcmask 1043459
  %v285 = vsel %vm284, %v265, %v283
  %vm286 = vcmask 1044484
  %v287 = vsel %vm286, %v266, %v285
  %vm288 = vcmask 1045509
  %v289 = vsel %vm288, %v267, %v287
  %vm290 = vcmask 1046534
  %v291 = vsel %vm290, %v268, %v289
  %vm292 = vcmask 1047559
  %v293 = vsel %vm292, %v269, %v291
  %v294 = vsel %vm280, %v271, %v270
  %v295 = vsel %vm282, %v272, %v294
  %v296 = vsel %vm284, %v273, %v295
  %v297 = vsel %vm286, %v274, %v296
  %v298 = vsel %vm288, %v275, %v297
  %v299 = vsel %vm290, %v276, %v298
  %v300 = vsel %vm292, %v277, %v299
  %v301 = vsel %vm280, %v279, %v278
  %v302 = vpack.c.b16 %v293, %v293
  %v303 = vpack.c.b16 %v300, %v300
  %v304 = vpack.c.b16 %v301, %v301
  %308 = vst.msk [vmem:[%s1] sm:$0xf] %vm44, %v302
  %309 = vst.msk [vmem:[%s1 + $0x4] sm:$0xf] %vm44, %v303
  %vm310 = vcmask 385024
  %311 = vst.msk [vmem:[%s1 + $0x8] sm:$0x1] %vm310, %v304
  // Predicated region
  $region6: #{_lambda_.57} parent=0 // pred_check
    _
  $region7: #{_lambda_.57} parent=0 // pred_check_branch
    %313 = sbr.rel (0) target = $region9
  $region8: #{_lambda_.57} parent=0 // pred_region
    _
  $region9: #{_lambda_.57} parent=0 // pred_fallthru
    _
  // Predicated region
  $region10: #{_lambda_.57} parent=0 // pred_check
    _
  $region11: #{_lambda_.57} parent=0 // pred_check_branch
    %315 = sbr.rel (0) target = $region13
  $region12: #{_lambda_.57} parent=0 // pred_region
    _
  $region13: #{_lambda_.57} parent=0 // pred_fallthru
    _

// kernel: _lambda_.58
$region0: #{_lambda_.58}
  #allocation0 [shape = 'u32[]', space=smem, size = 0x4, offset = 0x4, fixed_abs, tag = 'smem constant byte address 0x4 - core index']
  #allocation1 [shape = 'u32[144,128]{1,0:T(1,128)}', space=vmem, size = 0x12000, scoped, tag = 'internal scratch']
  %s0 = inlined_call_operand.vmem [shape: bf16[8,216], index: 0, kind: input, shape index: {}]
  %s1 = inlined_call_operand.vmem [shape: bf16[216,32], index: 1, kind: input, shape index: {}]
  %s2 = inlined_call_operand.vmem [shape: f32[1,32], index: 2, kind: input, shape index: {}]
  %s3 = inlined_call_operand.vmem [shape: bf16[8,32], index: 3, kind: output, shape index: {}]
  %s4 = sld [smem:[#allocation0]]
  $region22: #{_lambda_.58} parent=0
    _
  %s6 = ssub.s32 1, %s4
  %s7 = scalar_select 0, %s6, %s4
  // Predicated region
  $region2: #{_lambda_.58} parent=0 // pred_check
    _
  $region3: #{_lambda_.58} parent=0 // pred_check_branch
    %9 = sbr.rel (0) target = $region5
  $region4: #{_lambda_.58} parent=0 // pred_region
    _
  $region5: #{_lambda_.58} parent=0 // pred_fallthru
    _
  // Predicated region
  $region6: #{_lambda_.58} parent=0 // pred_check
    _
  $region7: #{_lambda_.58} parent=0 // pred_check_branch
    %11 = sbr.rel (0) target = $region9
  $region8: #{_lambda_.58} parent=0 // pred_region
    _
  $region9: #{_lambda_.58} parent=0 // pred_fallthru
    _
  // Predicated region
  $region10: #{_lambda_.58} parent=0 // pred_check
    _
  $region11: #{_lambda_.58} parent=0 // pred_check_branch
    %13 = sbr.rel (0) target = $region13
  $region12: #{_lambda_.58} parent=0 // pred_region
    _
  $region13: #{_lambda_.58} parent=0 // pred_fallthru
    _
  %v15 = vld [vmem:[%s0] sm:$0xff]
  %v16 = vld [vmem:[%s1] sm:$0xf]
  %v17 = vld [vmem:[%s1 + $0x4] sm:$0xf]
  %v18 = vld [vmem:[%s1 + $0x8] sm:$0xf]
  %v19 = vld [vmem:[%s1 + $0xc] sm:$0xf]
  %v20 = vld [vmem:[%s1 + $0x10] sm:$0xf]
  %v21 = vld [vmem:[%s1 + $0x14] sm:$0xf]
  %v22 = vld [vmem:[%s1 + $0x18] sm:$0xf]
  %v23 = vld [vmem:[%s1 + $0x1c] sm:$0xf]
  %v24 = vld [vmem:[%s1 + $0x20] sm:$0xf]
  %v25 = vld [vmem:[%s1 + $0x24] sm:$0xf]
  %v26 = vld [vmem:[%s1 + $0x28] sm:$0xf]
  %v27 = vld [vmem:[%s1 + $0x2c] sm:$0xf]
  %v28 = vld [vmem:[%s1 + $0x30] sm:$0xf]
  %v29 = vld [vmem:[%s1 + $0x34] sm:$0xf]
  %v30 = vld [vmem:[%s1 + $0x38] sm:$0xf]
  %v31 = vld [vmem:[%s1 + $0x3c] sm:$0xf]
  %v32 = vld [vmem:[%s1 + $0x40] sm:$0xf]
  %v33 = vld [vmem:[%s1 + $0x44] sm:$0xf]
  %v34 = vld [vmem:[%s1 + $0x48] sm:$0xf]
  %v35 = vld [vmem:[%s1 + $0x4c] sm:$0xf]
  %v36 = vld [vmem:[%s1 + $0x50] sm:$0xf]
  %v37 = vld [vmem:[%s1 + $0x54] sm:$0xf]
  %v38 = vld [vmem:[%s1 + $0x58] sm:$0xf]
  %v39 = vld [vmem:[%s1 + $0x5c] sm:$0xf]
  %v40 = vld [vmem:[%s1 + $0x60] sm:$0xf]
  %v41 = vld [vmem:[%s1 + $0x64] sm:$0xf]
  %v42 = vld [vmem:[%s1 + $0x68] sm:$0xf]
  %v43 = vld [vmem:[%s2] sm:$0x1]
  %v45 = vlaneseq
  %v46 = vshrl.u32 %v45, 7
  %v47 = vsub.s32 0, %v46
  %v48 = vrot.slane %v43, %v47
  %v51 = vunpack.c.l.b16 %v15
  %v52 = vunpack.c.h.b16 %v15
  %v53 = vpack.c.b16 %v51, %v51
  %v54 = vpack.c.b16 %v52, %v52
  %v83 = vunpack.c.l.b16 %v16
  %v84 = vunpack.c.l.b16 %v17
  %v85 = vunpack.c.l.b16 %v18
  %v86 = vunpack.c.l.b16 %v19
  %v87 = vunpack.c.l.b16 %v20
  %v88 = vunpack.c.l.b16 %v21
  %v89 = vunpack.c.l.b16 %v22
  %v90 = vunpack.c.l.b16 %v23
  %v91 = vunpack.c.l.b16 %v24
  %v92 = vunpack.c.l.b16 %v25
  %v93 = vunpack.c.l.b16 %v26
  %v94 = vunpack.c.l.b16 %v27
  %v95 = vunpack.c.l.b16 %v28
  %v96 = vunpack.c.l.b16 %v29
  %v97 = vunpack.c.l.b16 %v30
  %v98 = vunpack.c.l.b16 %v31
  %v99 = vunpack.c.l.b16 %v32
  %v100 = vunpack.c.l.b16 %v33
  %v101 = vunpack.c.l.b16 %v34
  %v102 = vunpack.c.l.b16 %v35
  %v103 = vunpack.c.l.b16 %v36
  %v104 = vunpack.c.l.b16 %v37
  %v105 = vunpack.c.l.b16 %v38
  %v106 = vunpack.c.l.b16 %v39
  %v107 = vunpack.c.l.b16 %v40
  %v108 = vunpack.c.l.b16 %v41
  %v109 = vunpack.c.l.b16 %v42
  %v110 = vpack.c.b16 %v84, %v83
  %v111 = vpack.c.b16 %v86, %v85
  %v112 = vpack.c.b16 %v88, %v87
  %v113 = vpack.c.b16 %v90, %v89
  %v114 = vpack.c.b16 %v92, %v91
  %v115 = vpack.c.b16 %v94, %v93
  %v116 = vpack.c.b16 %v96, %v95
  %v117 = vpack.c.b16 %v98, %v97
  %v118 = vpack.c.b16 %v100, %v99
  %v119 = vpack.c.b16 %v102, %v101
  %v120 = vpack.c.b16 %v104, %v103
  %v121 = vpack.c.b16 %v106, %v105
  %v122 = vpack.c.b16 %v108, %v107
  %v123 = vpack.c.b16 %v109, %v109
  %vm137 = vcmask 719872
  %v139 = vsel %vm137, %v54, 0
  %vm141 = vcmask 1043456
  %v143 = vsel %vm141, %v123, 0
  %145 = vmatprep.subr.bf16.mxu0 0
  %146 = vmatpush1.bf16.msra.mxu0 %v117
  %147 = vmatprep.subr.bf16.mxu0 0
  %148 = vmatpush1.bf16.msra.mxu0 %v116
  %149 = vmatprep.subr.bf16.mxu0 0
  %150 = vmatpush1.bf16.msra.mxu0 %v115
  %151 = vmatprep.subr.bf16.mxu0 0
  %152 = vmatpush1.bf16.msra.mxu0 %v114
  %153 = vmatprep.subr.bf16.mxu0 0
  %154 = vmatpush1.bf16.msra.mxu0 %v113
  %155 = vmatprep.subr.bf16.mxu0 0
  %156 = vmatpush1.bf16.msra.mxu0 %v112
  %157 = vmatprep.subr.bf16.mxu0 0
  %158 = vmatpush1.bf16.msra.mxu0 %v111
  %159 = vmatprep.subr.bf16.mxu0 0
  %160 = vmatpush1.bf16.msra.mxu0 %v110
  %161 = vmatprep.subr.bf16.mxu0 0
  %162 = vmatpush2.bf16.msra.mxu0 0
  %163 = vmatprep.subr.bf16.mxu0 0
  %164 = vmatpush2.bf16.msra.mxu0 0
  %165 = vmatprep.subr.bf16.mxu0 0
  %166 = vmatpush2.bf16.msra.mxu0 %v143
  %167 = vmatprep.subr.bf16.mxu0 0
  %168 = vmatpush2.bf16.msra.mxu0 %v122
  %169 = vmatprep.subr.bf16.mxu0 0
  %170 = vmatpush2.bf16.msra.mxu0 %v121
  %171 = vmatprep.subr.bf16.mxu0 0
  %172 = vmatpush2.bf16.msra.mxu0 %v120
  %173 = vmatprep.subr.bf16.mxu0 0
  %174 = vmatpush2.bf16.msra.mxu0 %v119
  %175 = vmatprep.subr.bf16.mxu0 0
  %176 = vmatpush2.bf16.msra.mxu0 %v118
  %177 = vmatprep.mubr.bf16.mxu0 %v139
  %178 = vmatmul.mubr.bf16.gmra.mxu0 %v53
  %v179 = vpop.f32.mrf.mxu0
  %v180 = vadd.f32 %v48, %v179
  %v181 = vpop.f32.mrf.mxu0
  %v182 = vpop.f32.mrf.mxu0
  %v183 = vpop.f32.mrf.mxu0
  %184 = vdwg.mxu0
  %v185 = vxor.u32 %v180, 2147483648
  %v186 = vmul.f32 %v185, 1.442695
  %v187 = vpow.pop %v186
  %v188 = vadd.f32 %v187, 1.0
  %v189 = vrcp.pop %v188
  %v190 = vmul.f32 1.0, %v189
  %v191 = vmul.f32 %v180, %v190
  %v192 = vpack.c.bf16 %v191, %v191
  %vm193 = vcmask 257024
  %194 = vst.msk [vmem:[%s3] sm:$0xf] %vm193, %v192
  // Predicated region
  $region14: #{_lambda_.58} parent=0 // pred_check
    _
  $region15: #{_lambda_.58} parent=0 // pred_check_branch
    %196 = sbr.rel (0) target = $region17
  $region16: #{_lambda_.58} parent=0 // pred_region
    _
  $region17: #{_lambda_.58} parent=0 // pred_fallthru
    _
  // Predicated region
  $region18: #{_lambda_.58} parent=0 // pred_check
    _
  $region19: #{_lambda_.58} parent=0 // pred_check_branch
    %198 = sbr.rel (0) target = $region21
  $region20: #{_lambda_.58} parent=0 // pred_region
    _
  $region21: #{_lambda_.58} parent=0 // pred_fallthru
    _

// kernel: _lambda_.59
$region0: #{_lambda_.59}
  #allocation0 [shape = 'u32[]', space=smem, size = 0x4, offset = 0x4, fixed_abs, tag = 'smem constant byte address 0x4 - core index']
  #allocation1 [shape = 'u32[144,128]{1,0:T(1,128)}', space=vmem, size = 0x12000, scoped, tag = 'internal scratch']
  %s0 = inlined_call_operand.vmem [shape: bf16[8,9,24], index: 0, kind: input, shape index: {}]
  %s1 = inlined_call_operand.vmem [shape: bf16[8,24], index: 1, kind: output, shape index: {}]
  %s2 = sld [smem:[#allocation0]]
  $region14: #{_lambda_.59} parent=0
    _
  %s4 = ssub.s32 1, %s2
  %s5 = scalar_select 0, %s4, %s2
  // Predicated region
  $region2: #{_lambda_.59} parent=0 // pred_check
    _
  $region3: #{_lambda_.59} parent=0 // pred_check_branch
    %7 = sbr.rel (0) target = $region5
  $region4: #{_lambda_.59} parent=0 // pred_region
    _
  $region5: #{_lambda_.59} parent=0 // pred_fallthru
    _
  %v9 = vld [vmem:[%s0] sm:$0xf]
  %v10 = vld [vmem:[%s0 + $0x4] sm:$0x1]
  %v11 = vld [vmem:[%s0 + $0x8] sm:$0xf]
  %v12 = vld [vmem:[%s0 + $0xc] sm:$0x1]
  %v13 = vld [vmem:[%s0 + $0x10] sm:$0xf]
  %v14 = vld [vmem:[%s0 + $0x14] sm:$0x1]
  %v15 = vld [vmem:[%s0 + $0x18] sm:$0xf]
  %v16 = vld [vmem:[%s0 + $0x1c] sm:$0x1]
  %v17 = vld [vmem:[%s0 + $0x20] sm:$0xf]
  %v18 = vld [vmem:[%s0 + $0x24] sm:$0x1]
  %v19 = vld [vmem:[%s0 + $0x28] sm:$0xf]
  %v20 = vld [vmem:[%s0 + $0x2c] sm:$0x1]
  %v21 = vld [vmem:[%s0 + $0x30] sm:$0xf]
  %v22 = vld [vmem:[%s0 + $0x34] sm:$0x1]
  %v23 = vld [vmem:[%s0 + $0x38] sm:$0xf]
  %v24 = vld [vmem:[%s0 + $0x3c] sm:$0x1]
  %v41 = vunpack.c.l.b16 %v9
  %v42 = vunpack.c.l.b16 %v10
  %v43 = vunpack.c.l.b16 %v11
  %v44 = vunpack.c.l.b16 %v12
  %v45 = vunpack.c.l.b16 %v13
  %v46 = vunpack.c.l.b16 %v14
  %v47 = vunpack.c.l.b16 %v15
  %v48 = vunpack.c.l.b16 %v16
  %v49 = vunpack.c.l.b16 %v17
  %v50 = vunpack.c.l.b16 %v18
  %v51 = vunpack.c.l.b16 %v19
  %v52 = vunpack.c.l.b16 %v20
  %v53 = vunpack.c.l.b16 %v21
  %v54 = vunpack.c.l.b16 %v22
  %v55 = vunpack.c.l.b16 %v23
  %v56 = vunpack.c.l.b16 %v24
  %v57 = vpack.c.b16 %v42, %v41
  %v58 = vpack.c.b16 %v44, %v43
  %v59 = vpack.c.b16 %v46, %v45
  %v60 = vpack.c.b16 %v48, %v47
  %v61 = vpack.c.b16 %v50, %v49
  %v62 = vpack.c.b16 %v52, %v51
  %v63 = vpack.c.b16 %v54, %v53
  %v64 = vpack.c.b16 %v56, %v55
  %vm73 = vcmask 192512
  %vm74 = vsmask.f32 4352
  %vm75 = vmand %vm73, %vm74
  %v76 = vsel %vm75, %v57, 4286644096
  %v77 = vunpack.i.l.bf16 %v76
  %v78 = vunpack.i.h.bf16 %v76
  %v79 = vmax.f32 %v77, %v78
  %v80 = vrot.slane %v79, 4
  %v81 = vmax.f32 %v79, %v80
  %v82 = vrot.slane %v81, 2
  %v83 = vmax.f32 %v81, %v82
  %v84 = vrot.slane %v83, 1
  %v85 = vmax.f32 %v83, %v84
  %v86 = vpack.i.bf16 %v85, %v85
  %v87 = vsel %vm75, %v58, 4286644096
  %v88 = vunpack.i.l.bf16 %v87
  %v89 = vunpack.i.h.bf16 %v87
  %v90 = vmax.f32 %v88, %v89
  %v91 = vrot.slane %v90, 4
  %v92 = vmax.f32 %v90, %v91
  %v93 = vrot.slane %v92, 2
  %v94 = vmax.f32 %v92, %v93
  %v95 = vrot.slane %v94, 1
  %v96 = vmax.f32 %v94, %v95
  %v97 = vpack.i.bf16 %v96, %v96
  %v98 = vsel %vm75, %v59, 4286644096
  %v99 = vunpack.i.l.bf16 %v98
  %v100 = vunpack.i.h.bf16 %v98
  %v101 = vmax.f32 %v99, %v100
  %v102 = vrot.slane %v101, 4
  %v103 = vmax.f32 %v101, %v102
  %v104 = vrot.slane %v103, 2
  %v105 = vmax.f32 %v103, %v104
  %v106 = vrot.slane %v105, 1
  %v107 = vmax.f32 %v105, %v106
  %v108 = vpack.i.bf16 %v107, %v107
  %v109 = vsel %vm75, %v60, 4286644096
  %v110 = vunpack.i.l.bf16 %v109
  %v111 = vunpack.i.h.bf16 %v109
  %v112 = vmax.f32 %v110, %v111
  %v113 = vrot.slane %v112, 4
  %v114 = vmax.f32 %v112, %v113
  %v115 = vrot.slane %v114, 2
  %v116 = vmax.f32 %v114, %v115
  %v117 = vrot.slane %v116, 1
  %v118 = vmax.f32 %v116, %v117
  %v119 = vpack.i.bf16 %v118, %v118
  %v120 = vsel %vm75, %v61, 4286644096
  %v121 = vunpack.i.l.bf16 %v120
  %v122 = vunpack.i.h.bf16 %v120
  %v123 = vmax.f32 %v121, %v122
  %v124 = vrot.slane %v123, 4
  %v125 = vmax.f32 %v123, %v124
  %v126 = vrot.slane %v125, 2
  %v127 = vmax.f32 %v125, %v126
  %v128 = vrot.slane %v127, 1
  %v129 = vmax.f32 %v127, %v128
  %v130 = vpack.i.bf16 %v129, %v129
  %v131 = vsel %vm75, %v62, 4286644096
  %v132 = vunpack.i.l.bf16 %v131
  %v133 = vunpack.i.h.bf16 %v131
  %v134 = vmax.f32 %v132, %v133
  %v135 = vrot.slane %v134, 4
  %v136 = vmax.f32 %v134, %v135
  %v137 = vrot.slane %v136, 2
  %v138 = vmax.f32 %v136, %v137
  %v139 = vrot.slane %v138, 1
  %v140 = vmax.f32 %v138, %v139
  %v141 = vpack.i.bf16 %v140, %v140
  %v142 = vsel %vm75, %v63, 4286644096
  %v143 = vunpack.i.l.bf16 %v142
  %v144 = vunpack.i.h.bf16 %v142
  %v145 = vmax.f32 %v143, %v144
  %v146 = vrot.slane %v145, 4
  %v147 = vmax.f32 %v145, %v146
  %v148 = vrot.slane %v147, 2
  %v149 = vmax.f32 %v147, %v148
  %v150 = vrot.slane %v149, 1
  %v151 = vmax.f32 %v149, %v150
  %v152 = vpack.i.bf16 %v151, %v151
  %v153 = vsel %vm75, %v64, 4286644096
  %v154 = vunpack.i.l.bf16 %v153
  %v155 = vunpack.i.h.bf16 %v153
  %v156 = vmax.f32 %v154, %v155
  %v157 = vrot.slane %v156, 4
  %v158 = vmax.f32 %v156, %v157
  %v159 = vrot.slane %v158, 2
  %v160 = vmax.f32 %v158, %v159
  %v161 = vrot.slane %v160, 1
  %v162 = vmax.f32 %v160, %v161
  %v163 = vpack.i.bf16 %v162, %v162
  %v172 = vunpack.c.l.b16 %v86
  %v173 = vunpack.c.l.b16 %v97
  %v174 = vunpack.c.l.b16 %v108
  %v175 = vunpack.c.l.b16 %v119
  %v176 = vunpack.c.l.b16 %v130
  %v177 = vunpack.c.l.b16 %v141
  %v178 = vunpack.c.l.b16 %v152
  %v179 = vunpack.c.l.b16 %v163
  %v180 = vpack.c.b16 %v172, %v172
  %v181 = vpack.c.b16 %v173, %v173
  %v182 = vpack.c.b16 %v174, %v174
  %v183 = vpack.c.b16 %v175, %v175
  %v184 = vpack.c.b16 %v176, %v176
  %v185 = vpack.c.b16 %v177, %v177
  %v186 = vpack.c.b16 %v178, %v178
  %v187 = vpack.c.b16 %v179, %v179
  %v188 = vunpack.c.l.b16 %v180
  %v189 = vunpack.c.l.b16 %v181
  %v190 = vunpack.c.l.b16 %v182
  %v191 = vunpack.c.l.b16 %v183
  %v192 = vunpack.c.l.b16 %v184
  %v193 = vunpack.c.l.b16 %v185
  %v194 = vunpack.c.l.b16 %v186
  %v195 = vunpack.c.l.b16 %v187
  %vm196 = vcmask 1041409
  %v197 = vsel %vm196, %v189, %v188
  %vm198 = vcmask 1042434
  %v199 = vsel %vm198, %v190, %v197
  %vm200 = vcmask 1043459
  %v201 = vsel %vm200, %v191, %v199
  %vm202 = vcmask 1044484
  %v203 = vsel %vm202, %v192, %v201
  %vm204 = vcmask 1045509
  %v205 = vsel %vm204, %v193, %v203
  %vm206 = vcmask 1046534
  %v207 = vsel %vm206, %v194, %v205
  %vm208 = vcmask 1047559
  %v209 = vsel %vm208, %v195, %v207
  %v210 = vpack.c.b16 %v209, %v209
  %vm212 = vcmask 191488
  %213 = vst.msk [vmem:[%s1] sm:$0xf] %vm212, %v210
  // Predicated region
  $region6: #{_lambda_.59} parent=0 // pred_check
    _
  $region7: #{_lambda_.59} parent=0 // pred_check_branch
    %215 = sbr.rel (0) target = $region9
  $region8: #{_lambda_.59} parent=0 // pred_region
    _
  $region9: #{_lambda_.59} parent=0 // pred_fallthru
    _
  // Predicated region
  $region10: #{_lambda_.59} parent=0 // pred_check
    _
  $region11: #{_lambda_.59} parent=0 // pred_check_branch
    %217 = sbr.rel (0) target = $region13
  $region12: #{_lambda_.59} parent=0 // pred_region
    _
  $region13: #{_lambda_.59} parent=0 // pred_fallthru
    _

// kernel: _lambda_.60
$region0: #{_lambda_.60}
  #allocation0 [shape = 'u32[]', space=smem, size = 0x4, offset = 0x4, fixed_abs, tag = 'smem constant byte address 0x4 - core index']
  #allocation1 [shape = 'u32[144,128]{1,0:T(1,128)}', space=vmem, size = 0x12000, scoped, tag = 'internal scratch']
  %s0 = inlined_call_operand.vmem [shape: bf16[8,24], index: 0, kind: input, shape index: {}]
  %s1 = inlined_call_operand.vmem [shape: bf16[24,32], index: 1, kind: input, shape index: {}]
  %s2 = inlined_call_operand.vmem [shape: f32[1,32], index: 2, kind: input, shape index: {}]
  %s3 = inlined_call_operand.vmem [shape: bf16[8,32], index: 3, kind: output, shape index: {}]
  %s4 = sld [smem:[#allocation0]]
  $region22: #{_lambda_.60} parent=0
    _
  %s6 = ssub.s32 1, %s4
  %s7 = scalar_select 0, %s6, %s4
  // Predicated region
  $region2: #{_lambda_.60} parent=0 // pred_check
    _
  $region3: #{_lambda_.60} parent=0 // pred_check_branch
    %9 = sbr.rel (0) target = $region5
  $region4: #{_lambda_.60} parent=0 // pred_region
    _
  $region5: #{_lambda_.60} parent=0 // pred_fallthru
    _
  // Predicated region
  $region6: #{_lambda_.60} parent=0 // pred_check
    _
  $region7: #{_lambda_.60} parent=0 // pred_check_branch
    %11 = sbr.rel (0) target = $region9
  $region8: #{_lambda_.60} parent=0 // pred_region
    _
  $region9: #{_lambda_.60} parent=0 // pred_fallthru
    _
  // Predicated region
  $region10: #{_lambda_.60} parent=0 // pred_check
    _
  $region11: #{_lambda_.60} parent=0 // pred_check_branch
    %13 = sbr.rel (0) target = $region13
  $region12: #{_lambda_.60} parent=0 // pred_region
    _
  $region13: #{_lambda_.60} parent=0 // pred_fallthru
    _
  %v15 = vld [vmem:[%s0] sm:$0xf]
  %v16 = vld [vmem:[%s1] sm:$0xf]
  %v17 = vld [vmem:[%s1 + $0x4] sm:$0xf]
  %v18 = vld [vmem:[%s1 + $0x8] sm:$0xf]
  %v19 = vld [vmem:[%s2] sm:$0x1]
  %v21 = vlaneseq
  %v22 = vshrl.u32 %v21, 7
  %v23 = vsub.s32 0, %v22
  %v24 = vrot.slane %v19, %v23
  %v29 = vunpack.c.l.b16 %v16
  %v30 = vunpack.c.l.b16 %v17
  %v31 = vunpack.c.l.b16 %v18
  %v32 = vpack.c.b16 %v30, %v29
  %v33 = vpack.c.b16 %v31, %v31
  %vm35 = vcmask 195584
  %v37 = vsel %vm35, %v15, 0
  %vm39 = vcmask 1043456
  %v41 = vsel %vm39, %v33, 0
  %43 = vmatprep.subr.bf16.mxu0 0
  %44 = vmatpush1.bf16.msra.mxu0 0
  %45 = vmatprep.subr.bf16.mxu0 0
  %46 = vmatpush1.bf16.msra.mxu0 0
  %47 = vmatprep.subr.bf16.mxu0 0
  %48 = vmatpush1.bf16.msra.mxu0 0
  %49 = vmatprep.subr.bf16.mxu0 0
  %50 = vmatpush1.bf16.msra.mxu0 0
  %51 = vmatprep.subr.bf16.mxu0 0
  %52 = vmatpush1.bf16.msra.mxu0 0
  %53 = vmatprep.subr.bf16.mxu0 0
  %54 = vmatpush1.bf16.msra.mxu0 0
  %55 = vmatprep.subr.bf16.mxu0 0
  %56 = vmatpush1.bf16.msra.mxu0 %v41
  %57 = vmatprep.subr.bf16.mxu0 0
  %58 = vmatpush1.bf16.msra.mxu0 %v32
  %59 = vmatprep.subr.bf16.mxu0 0
  %60 = vmatpush2.bf16.msra.mxu0 0
  %61 = vmatprep.subr.bf16.mxu0 0
  %62 = vmatpush2.bf16.msra.mxu0 0
  %63 = vmatprep.subr.bf16.mxu0 0
  %64 = vmatpush2.bf16.msra.mxu0 0
  %65 = vmatprep.subr.bf16.mxu0 0
  %66 = vmatpush2.bf16.msra.mxu0 0
  %67 = vmatprep.subr.bf16.mxu0 0
  %68 = vmatpush2.bf16.msra.mxu0 0
  %69 = vmatprep.subr.bf16.mxu0 0
  %70 = vmatpush2.bf16.msra.mxu0 0
  %71 = vmatprep.subr.bf16.mxu0 0
  %72 = vmatpush2.bf16.msra.mxu0 0
  %73 = vmatprep.subr.bf16.mxu0 0
  %74 = vmatpush2.bf16.msra.mxu0 0
  %75 = vmatprep.mubr.bf16.mxu0 0
  %76 = vmatmul.mubr.bf16.gmra.mxu0 %v37
  %v77 = vpop.f32.mrf.mxu0
  %v78 = vadd.f32 %v24, %v77
  %v79 = vpop.f32.mrf.mxu0
  %v80 = vpop.f32.mrf.mxu0
  %v81 = vpop.f32.mrf.mxu0
  %82 = vdwg.mxu0
  %v83 = vxor.u32 %v78, 2147483648
  %v84 = vmul.f32 %v83, 1.442695
  %v85 = vpow.pop %v84
  %v86 = vadd.f32 %v85, 1.0
  %v87 = vrcp.pop %v86
  %v88 = vmul.f32 1.0, %v87
  %v89 = vmul.f32 %v78, %v88
  %v90 = vpack.c.bf16 %v89, %v89
  %vm91 = vcmask 257024
  %92 = vst.msk [vmem:[%s3] sm:$0xf] %vm91, %v90
  // Predicated region
  $region14: #{_lambda_.60} parent=0 // pred_check
    _
  $region15: #{_lambda_.60} parent=0 // pred_check_branch
    %94 = sbr.rel (0) target = $region17
  $region16: #{_lambda_.60} parent=0 // pred_region
    _
  $region17: #{_lambda_.60} parent=0 // pred_fallthru
    _
  // Predicated region
  $region18: #{_lambda_.60} parent=0 // pred_check
    _
  $region19: #{_lambda_.60} parent=0 // pred_check_branch
    %96 = sbr.rel (0) target = $region21
  $region20: #{_lambda_.60} parent=0 // pred_region
    _
  $region21: #{_lambda_.60} parent=0 // pred_fallthru
    _

// kernel: _lambda_.61
$region0: #{_lambda_.61}
  #allocation0 [shape = 'u32[]', space=smem, size = 0x4, offset = 0x4, fixed_abs, tag = 'smem constant byte address 0x4 - core index']
  #allocation1 [shape = 'u32[144,128]{1,0:T(1,128)}', space=vmem, size = 0x12000, scoped, tag = 'internal scratch']
  %s0 = inlined_call_operand.vmem [shape: bf16[8,64], index: 0, kind: input, shape index: {}]
  %s1 = inlined_call_operand.vmem [shape: bf16[64,16], index: 1, kind: input, shape index: {}]
  %s2 = inlined_call_operand.vmem [shape: f32[1,16], index: 2, kind: input, shape index: {}]
  %s3 = inlined_call_operand.vmem [shape: bf16[8,16], index: 3, kind: output, shape index: {}]
  %s4 = sld [smem:[#allocation0]]
  $region22: #{_lambda_.61} parent=0
    _
  %s6 = ssub.s32 1, %s4
  %s7 = scalar_select 0, %s6, %s4
  // Predicated region
  $region2: #{_lambda_.61} parent=0 // pred_check
    _
  $region3: #{_lambda_.61} parent=0 // pred_check_branch
    %9 = sbr.rel (0) target = $region5
  $region4: #{_lambda_.61} parent=0 // pred_region
    _
  $region5: #{_lambda_.61} parent=0 // pred_fallthru
    _
  // Predicated region
  $region6: #{_lambda_.61} parent=0 // pred_check
    _
  $region7: #{_lambda_.61} parent=0 // pred_check_branch
    %11 = sbr.rel (0) target = $region9
  $region8: #{_lambda_.61} parent=0 // pred_region
    _
  $region9: #{_lambda_.61} parent=0 // pred_fallthru
    _
  // Predicated region
  $region10: #{_lambda_.61} parent=0 // pred_check
    _
  $region11: #{_lambda_.61} parent=0 // pred_check_branch
    %13 = sbr.rel (0) target = $region13
  $region12: #{_lambda_.61} parent=0 // pred_region
    _
  $region13: #{_lambda_.61} parent=0 // pred_fallthru
    _
  %v15 = vld [vmem:[%s0] sm:$0xf]
  %v16 = vld [vmem:[%s1] sm:$0xf]
  %v17 = vld [vmem:[%s1 + $0x4] sm:$0xf]
  %v18 = vld [vmem:[%s1 + $0x8] sm:$0xf]
  %v19 = vld [vmem:[%s1 + $0xc] sm:$0xf]
  %v20 = vld [vmem:[%s1 + $0x10] sm:$0xf]
  %v21 = vld [vmem:[%s1 + $0x14] sm:$0xf]
  %v22 = vld [vmem:[%s1 + $0x18] sm:$0xf]
  %v23 = vld [vmem:[%s1 + $0x1c] sm:$0xf]
  %v24 = vld [vmem:[%s2] sm:$0x1]
  %v26 = vlaneseq
  %v27 = vshrl.u32 %v26, 7
  %v28 = vsub.s32 0, %v27
  %v29 = vrot.slane %v24, %v28
  %v39 = vunpack.c.l.b16 %v16
  %v40 = vunpack.c.l.b16 %v17
  %v41 = vunpack.c.l.b16 %v18
  %v42 = vunpack.c.l.b16 %v19
  %v43 = vunpack.c.l.b16 %v20
  %v44 = vunpack.c.l.b16 %v21
  %v45 = vunpack.c.l.b16 %v22
  %v46 = vunpack.c.l.b16 %v23
  %v47 = vpack.c.b16 %v40, %v39
  %v48 = vpack.c.b16 %v42, %v41
  %v49 = vpack.c.b16 %v44, %v43
  %v50 = vpack.c.b16 %v46, %v45
  %vm55 = vcmask 523264
  %v57 = vsel %vm55, %v15, 0
  %59 = vmatprep.subr.bf16.mxu0 0
  %60 = vmatpush1.bf16.msra.mxu0 0
  %61 = vmatprep.subr.bf16.mxu0 0
  %62 = vmatpush1.bf16.msra.mxu0 0
  %63 = vmatprep.subr.bf16.mxu0 0
  %64 = vmatpush1.bf16.msra.mxu0 0
  %65 = vmatprep.subr.bf16.mxu0 0
  %66 = vmatpush1.bf16.msra.mxu0 0
  %67 = vmatprep.subr.bf16.mxu0 0
  %68 = vmatpush1.bf16.msra.mxu0 %v50
  %69 = vmatprep.subr.bf16.mxu0 0
  %70 = vmatpush1.bf16.msra.mxu0 %v49
  %71 = vmatprep.subr.bf16.mxu0 0
  %72 = vmatpush1.bf16.msra.mxu0 %v48
  %73 = vmatprep.subr.bf16.mxu0 0
  %74 = vmatpush1.bf16.msra.mxu0 %v47
  %75 = vmatprep.subr.bf16.mxu0 0
  %76 = vmatpush2.bf16.msra.mxu0 0
  %77 = vmatprep.subr.bf16.mxu0 0
  %78 = vmatpush2.bf16.msra.mxu0 0
  %79 = vmatprep.subr.bf16.mxu0 0
  %80 = vmatpush2.bf16.msra.mxu0 0
  %81 = vmatprep.subr.bf16.mxu0 0
  %82 = vmatpush2.bf16.msra.mxu0 0
  %83 = vmatprep.subr.bf16.mxu0 0
  %84 = vmatpush2.bf16.msra.mxu0 0
  %85 = vmatprep.subr.bf16.mxu0 0
  %86 = vmatpush2.bf16.msra.mxu0 0
  %87 = vmatprep.subr.bf16.mxu0 0
  %88 = vmatpush2.bf16.msra.mxu0 0
  %89 = vmatprep.subr.bf16.mxu0 0
  %90 = vmatpush2.bf16.msra.mxu0 0
  %91 = vmatprep.mubr.bf16.mxu0 0
  %92 = vmatmul.mubr.bf16.gmra.mxu0 %v57
  %v93 = vpop.f32.mrf.mxu0
  %v94 = vadd.f32 %v29, %v93
  %v95 = vpop.f32.mrf.mxu0
  %v96 = vpop.f32.mrf.mxu0
  %v97 = vpop.f32.mrf.mxu0
  %98 = vdwg.mxu0
  %v99 = vxor.u32 %v94, 2147483648
  %v100 = vmul.f32 %v99, 1.442695
  %v101 = vpow.pop %v100
  %v102 = vadd.f32 %v101, 1.0
  %v103 = vrcp.pop %v102
  %v104 = vmul.f32 1.0, %v103
  %v105 = vmul.f32 %v94, %v104
  %v106 = vpack.c.bf16 %v105, %v105
  %vm107 = vcmask 125952
  %108 = vst.msk [vmem:[%s3] sm:$0xf] %vm107, %v106
  // Predicated region
  $region14: #{_lambda_.61} parent=0 // pred_check
    _
  $region15: #{_lambda_.61} parent=0 // pred_check_branch
    %110 = sbr.rel (0) target = $region17
  $region16: #{_lambda_.61} parent=0 // pred_region
    _
  $region17: #{_lambda_.61} parent=0 // pred_fallthru
    _
  // Predicated region
  $region18: #{_lambda_.61} parent=0 // pred_check
    _
  $region19: #{_lambda_.61} parent=0 // pred_check_branch
    %112 = sbr.rel (0) target = $region21
  $region20: #{_lambda_.61} parent=0 // pred_region
    _
  $region21: #{_lambda_.61} parent=0 // pred_fallthru
    _

// kernel: _lambda_.69
$region0: #{_lambda_.69}
  #allocation0 [shape = 'u32[]', space=smem, size = 0x4, offset = 0x4, fixed_abs, tag = 'smem constant byte address 0x4 - core index']
  #allocation1 [shape = 'u32[144,128]{1,0:T(1,128)}', space=vmem, size = 0x12000, scoped, tag = 'internal scratch']
  %s0 = inlined_call_operand.vmem [shape: bf16[2,4,64], index: 0, kind: input, shape index: {}]
  %s1 = inlined_call_operand.vmem [shape: bf16[2,64], index: 1, kind: output, shape index: {}]
  %s2 = sld [smem:[#allocation0]]
  $region14: #{_lambda_.69} parent=0
    _
  %s4 = ssub.s32 1, %s2
  %s5 = scalar_select 0, %s4, %s2
  // Predicated region
  $region2: #{_lambda_.69} parent=0 // pred_check
    _
  $region3: #{_lambda_.69} parent=0 // pred_check_branch
    %7 = sbr.rel (0) target = $region5
  $region4: #{_lambda_.69} parent=0 // pred_region
    _
  $region5: #{_lambda_.69} parent=0 // pred_fallthru
    _
  %v8 = vld [vmem:[%s0] sm:$0x3]
  %v9 = vld [vmem:[%s0 + $0x2] sm:$0x3]
  %v10 = vunpack.c.l.bf16 %v8
  %v11 = vunpack.c.l.bf16 %v9
  %vm12 = vcmask 519168
  %v13 = vsel %vm12, %v10, 0.0
  %v14 = vrot.slane %v13, 4
  %v15 = vadd.f32 %v13, %v14
  %v16 = vrot.slane %v15, 2
  %v17 = vadd.f32 %v15, %v16
  %v18 = vrot.slane %v17, 1
  %v19 = vadd.f32 %v17, %v18
  %v20 = vsel %vm12, %v11, 0.0
  %v21 = vrot.slane %v20, 4
  %v22 = vadd.f32 %v20, %v21
  %v23 = vrot.slane %v22, 2
  %v24 = vadd.f32 %v22, %v23
  %v25 = vrot.slane %v24, 1
  %v26 = vadd.f32 %v24, %v25
  %v27 = vrcp.pop 4.0
  %v28 = vmul.f32 %v19, %v27
  %v29 = vmul.f32 %v26, %v27
  %v30 = vpack.c.bf16 %v28, %v28
  %v31 = vpack.c.bf16 %v29, %v29
  %v35 = vunpack.c.l.s4 1966171168
  %v36 = vunpack.c.0.s8 %v35
  %v37 = vlaneseq
  %v38 = vshrl.u32 %v37, 7
  %v39 = vsub.s32 %v36, %v38
  %v40 = vrot.slane %v30, %v39
  %v42 = vunpack.c.l.s4 1966171168
  %v43 = vunpack.c.0.s8 %v42
  %v44 = vlaneseq
  %v45 = vshrl.u32 %v44, 7
  %v46 = vsub.s32 %v43, %v45
  %v47 = vrot.slane %v40, %v46
  %v49 = vunpack.c.l.s4 1966171168
  %v50 = vunpack.c.0.s8 %v49
  %v51 = vlaneseq
  %v52 = vshrl.u32 %v51, 7
  %v53 = vsub.s32 %v50, %v52
  %v54 = vrot.slane %v31, %v53
  %v56 = vunpack.c.l.s4 1966171168
  %v57 = vunpack.c.0.s8 %v56
  %v58 = vlaneseq
  %v59 = vshrl.u32 %v58, 7
  %v60 = vsub.s32 %v57, %v59
  %v61 = vrot.slane %v54, %v60
  %v63 = vunpack.c.l.s4 1935823168
  %v64 = vunpack.c.0.s8 %v63
  %v65 = vlaneseq
  %v66 = vshrl.u32 %v65, 7
  %v67 = vsub.s32 %v64, %v66
  %v68 = vrot.slane %v47, %v67
  %v70 = vunpack.c.l.s4 1935823168
  %v71 = vunpack.c.0.s8 %v70
  %v72 = vlaneseq
  %v73 = vshrl.u32 %v72, 7
  %v74 = vsub.s32 %v71, %v73
  %v75 = vrot.slane %v68, %v74
  %v77 = vunpack.c.l.s4 1935823168
  %v78 = vunpack.c.0.s8 %v77
  %v79 = vlaneseq
  %v80 = vshrl.u32 %v79, 7
  %v81 = vsub.s32 %v78, %v80
  %v82 = vrot.slane %v61, %v81
  %v84 = vunpack.c.l.s4 1935823168
  %v85 = vunpack.c.0.s8 %v84
  %v86 = vlaneseq
  %v87 = vshrl.u32 %v86, 7
  %v88 = vsub.s32 %v85, %v87
  %v89 = vrot.slane %v82, %v88
  %v90 = vunpack.c.l.b16 %v75
  %v91 = vunpack.c.l.b16 %v89
  %v92 = vrot.slane %v91, 7
  %vm93 = vcmask 1041409
  %v94 = vsel %vm93, %v92, %v90
  %v95 = vpack.c.b16 %v94, %v94
  %v97 = vunpack.c.l.s4 1966171168
  %v98 = vunpack.c.0.s8 %v97
  %v99 = vlaneseq
  %v100 = vshrl.u32 %v99, 7
  %v101 = vsub.s32 %v98, %v100
  %v102 = vrot.slane %v95, %v101
  %v104 = vunpack.c.l.s4 1966171168
  %v105 = vunpack.c.0.s8 %v104
  %v106 = vlaneseq
  %v107 = vshrl.u32 %v106, 7
  %v108 = vsub.s32 %v105, %v107
  %v109 = vrot.slane %v102, %v108
  %vm111 = vcmask 516096
  %112 = vst.msk [vmem:[%s1] sm:$0x1] %vm111, %v109
  // Predicated region
  $region6: #{_lambda_.69} parent=0 // pred_check
    _
  $region7: #{_lambda_.69} parent=0 // pred_check_branch
    %114 = sbr.rel (0) target = $region9
  $region8: #{_lambda_.69} parent=0 // pred_region
    _
  $region9: #{_lambda_.69} parent=0 // pred_fallthru
    _
  // Predicated region
  $region10: #{_lambda_.69} parent=0 // pred_check
    _
  $region11: #{_lambda_.69} parent=0 // pred_check_branch
    %116 = sbr.rel (0) target = $region13
  $region12: #{_lambda_.69} parent=0 // pred_region
    _
  $region13: #{_lambda_.69} parent=0 // pred_fallthru
    _

// kernel: _lambda_.62
$region0: #{_lambda_.62}
  #allocation0 [shape = 'u32[]', space=smem, size = 0x4, offset = 0x4, fixed_abs, tag = 'smem constant byte address 0x4 - core index']
  #allocation1 [shape = 'u32[144,128]{1,0:T(1,128)}', space=vmem, size = 0x12000, scoped, tag = 'internal scratch']
  %s0 = inlined_call_operand.vmem [shape: bf16[8,5,16], index: 0, kind: input, shape index: {}]
  %s1 = inlined_call_operand.vmem [shape: bf16[8,16], index: 1, kind: output, shape index: {}]
  %s2 = sld [smem:[#allocation0]]
  $region14: #{_lambda_.62} parent=0
    _
  %s4 = ssub.s32 1, %s2
  %s5 = scalar_select 0, %s4, %s2
  // Predicated region
  $region2: #{_lambda_.62} parent=0 // pred_check
    _
  $region3: #{_lambda_.62} parent=0 // pred_check_branch
    %7 = sbr.rel (0) target = $region5
  $region4: #{_lambda_.62} parent=0 // pred_region
    _
  $region5: #{_lambda_.62} parent=0 // pred_fallthru
    _
  %v9 = vld [vmem:[%s0] sm:$0x7]
  %v10 = vld [vmem:[%s0 + $0x4] sm:$0x7]
  %v11 = vld [vmem:[%s0 + $0x8] sm:$0x7]
  %v12 = vld [vmem:[%s0 + $0xc] sm:$0x7]
  %v13 = vld [vmem:[%s0 + $0x10] sm:$0x7]
  %v14 = vld [vmem:[%s0 + $0x14] sm:$0x7]
  %v15 = vld [vmem:[%s0 + $0x18] sm:$0x7]
  %v16 = vld [vmem:[%s0 + $0x1c] sm:$0x7]
  %vm17 = vcmask 124928
  %vm18 = vsmask.f32 2304
  %vm19 = vmand %vm17, %vm18
  %v20 = vsel %vm19, %v9, 4286644096
  %v21 = vunpack.i.l.bf16 %v20
  %v22 = vunpack.i.h.bf16 %v20
  %v23 = vmax.f32 %v21, %v22
  %v24 = vrot.slane %v23, 4
  %v25 = vmax.f32 %v23, %v24
  %v26 = vrot.slane %v25, 2
  %v27 = vmax.f32 %v25, %v26
  %v28 = vrot.slane %v27, 1
  %v29 = vmax.f32 %v27, %v28
  %v30 = vpack.i.bf16 %v29, %v29
  %v31 = vsel %vm19, %v10, 4286644096
  %v32 = vunpack.i.l.bf16 %v31
  %v33 = vunpack.i.h.bf16 %v31
  %v34 = vmax.f32 %v32, %v33
  %v35 = vrot.slane %v34, 4
  %v36 = vmax.f32 %v34, %v35
  %v37 = vrot.slane %v36, 2
  %v38 = vmax.f32 %v36, %v37
  %v39 = vrot.slane %v38, 1
  %v40 = vmax.f32 %v38, %v39
  %v41 = vpack.i.bf16 %v40, %v40
  %v42 = vsel %vm19, %v11, 4286644096
  %v43 = vunpack.i.l.bf16 %v42
  %v44 = vunpack.i.h.bf16 %v42
  %v45 = vmax.f32 %v43, %v44
  %v46 = vrot.slane %v45, 4
  %v47 = vmax.f32 %v45, %v46
  %v48 = vrot.slane %v47, 2
  %v49 = vmax.f32 %v47, %v48
  %v50 = vrot.slane %v49, 1
  %v51 = vmax.f32 %v49, %v50
  %v52 = vpack.i.bf16 %v51, %v51
  %v53 = vsel %vm19, %v12, 4286644096
  %v54 = vunpack.i.l.bf16 %v53
  %v55 = vunpack.i.h.bf16 %v53
  %v56 = vmax.f32 %v54, %v55
  %v57 = vrot.slane %v56, 4
  %v58 = vmax.f32 %v56, %v57
  %v59 = vrot.slane %v58, 2
  %v60 = vmax.f32 %v58, %v59
  %v61 = vrot.slane %v60, 1
  %v62 = vmax.f32 %v60, %v61
  %v63 = vpack.i.bf16 %v62, %v62
  %v64 = vsel %vm19, %v13, 4286644096
  %v65 = vunpack.i.l.bf16 %v64
  %v66 = vunpack.i.h.bf16 %v64
  %v67 = vmax.f32 %v65, %v66
  %v68 = vrot.slane %v67, 4
  %v69 = vmax.f32 %v67, %v68
  %v70 = vrot.slane %v69, 2
  %v71 = vmax.f32 %v69, %v70
  %v72 = vrot.slane %v71, 1
  %v73 = vmax.f32 %v71, %v72
  %v74 = vpack.i.bf16 %v73, %v73
  %v75 = vsel %vm19, %v14, 4286644096
  %v76 = vunpack.i.l.bf16 %v75
  %v77 = vunpack.i.h.bf16 %v75
  %v78 = vmax.f32 %v76, %v77
  %v79 = vrot.slane %v78, 4
  %v80 = vmax.f32 %v78, %v79
  %v81 = vrot.slane %v80, 2
  %v82 = vmax.f32 %v80, %v81
  %v83 = vrot.slane %v82, 1
  %v84 = vmax.f32 %v82, %v83
  %v85 = vpack.i.bf16 %v84, %v84
  %v86 = vsel %vm19, %v15, 4286644096
  %v87 = vunpack.i.l.bf16 %v86
  %v88 = vunpack.i.h.bf16 %v86
  %v89 = vmax.f32 %v87, %v88
  %v90 = vrot.slane %v89, 4
  %v91 = vmax.f32 %v89, %v90
  %v92 = vrot.slane %v91, 2
  %v93 = vmax.f32 %v91, %v92
  %v94 = vrot.slane %v93, 1
  %v95 = vmax.f32 %v93, %v94
  %v96 = vpack.i.bf16 %v95, %v95
  %v97 = vsel %vm19, %v16, 4286644096
  %v98 = vunpack.i.l.bf16 %v97
  %v99 = vunpack.i.h.bf16 %v97
  %v100 = vmax.f32 %v98, %v99
  %v101 = vrot.slane %v100, 4
  %v102 = vmax.f32 %v100, %v101
  %v103 = vrot.slane %v102, 2
  %v104 = vmax.f32 %v102, %v103
  %v105 = vrot.slane %v104, 1
  %v106 = vmax.f32 %v104, %v105
  %v107 = vpack.i.bf16 %v106, %v106
  %v116 = vunpack.c.l.b16 %v30
  %v117 = vunpack.c.l.b16 %v41
  %v118 = vunpack.c.l.b16 %v52
  %v119 = vunpack.c.l.b16 %v63
  %v120 = vunpack.c.l.b16 %v74
  %v121 = vunpack.c.l.b16 %v85
  %v122 = vunpack.c.l.b16 %v96
  %v123 = vunpack.c.l.b16 %v107
  %v124 = vpack.c.b16 %v116, %v116
  %v125 = vpack.c.b16 %v117, %v117
  %v126 = vpack.c.b16 %v118, %v118
  %v127 = vpack.c.b16 %v119, %v119
  %v128 = vpack.c.b16 %v120, %v120
  %v129 = vpack.c.b16 %v121, %v121
  %v130 = vpack.c.b16 %v122, %v122
  %v131 = vpack.c.b16 %v123, %v123
  %v132 = vunpack.c.l.b16 %v124
  %v133 = vunpack.c.l.b16 %v125
  %v134 = vunpack.c.l.b16 %v126
  %v135 = vunpack.c.l.b16 %v127
  %v136 = vunpack.c.l.b16 %v128
  %v137 = vunpack.c.l.b16 %v129
  %v138 = vunpack.c.l.b16 %v130
  %v139 = vunpack.c.l.b16 %v131
  %vm140 = vcmask 1041409
  %v141 = vsel %vm140, %v133, %v132
  %vm142 = vcmask 1042434
  %v143 = vsel %vm142, %v134, %v141
  %vm144 = vcmask 1043459
  %v145 = vsel %vm144, %v135, %v143
  %vm146 = vcmask 1044484
  %v147 = vsel %vm146, %v136, %v145
  %vm148 = vcmask 1045509
  %v149 = vsel %vm148, %v137, %v147
  %vm150 = vcmask 1046534
  %v151 = vsel %vm150, %v138, %v149
  %vm152 = vcmask 1047559
  %v153 = vsel %vm152, %v139, %v151
  %v154 = vpack.c.b16 %v153, %v153
  %vm156 = vcmask 125952
  %157 = vst.msk [vmem:[%s1] sm:$0xf] %vm156, %v154
  // Predicated region
  $region6: #{_lambda_.62} parent=0 // pred_check
    _
  $region7: #{_lambda_.62} parent=0 // pred_check_branch
    %159 = sbr.rel (0) target = $region9
  $region8: #{_lambda_.62} parent=0 // pred_region
    _
  $region9: #{_lambda_.62} parent=0 // pred_fallthru
    _
  // Predicated region
  $region10: #{_lambda_.62} parent=0 // pred_check
    _
  $region11: #{_lambda_.62} parent=0 // pred_check_branch
    %161 = sbr.rel (0) target = $region13
  $region12: #{_lambda_.62} parent=0 // pred_region
    _
  $region13: #{_lambda_.62} parent=0 // pred_fallthru
    _

// kernel: _lambda_.68
$region0: #{_lambda_.68}
  #allocation0 [shape = 'u32[]', space=smem, size = 0x4, offset = 0x4, fixed_abs, tag = 'smem constant byte address 0x4 - core index']
  #allocation1 [shape = 'u32[144,128]{1,0:T(1,128)}', space=vmem, size = 0x12000, scoped, tag = 'internal scratch']
  %s0 = inlined_call_operand.vmem [shape: bf16[8,16], index: 0, kind: input, shape index: {}]
  %s1 = inlined_call_operand.vmem [shape: bf16[8,16], index: 1, kind: input, shape index: {}]
  %s2 = inlined_call_operand.vmem [shape: bf16[8,16], index: 2, kind: input, shape index: {}]
  %s3 = inlined_call_operand.vmem [shape: bf16[8,16], index: 3, kind: input, shape index: {}]
  %s4 = inlined_call_operand.vmem [shape: bf16[16,64], index: 4, kind: input, shape index: {}]
  %s5 = inlined_call_operand.vmem [shape: bf16[16,64], index: 5, kind: input, shape index: {}]
  %s6 = inlined_call_operand.vmem [shape: bf16[16,64], index: 6, kind: input, shape index: {}]
  %s7 = inlined_call_operand.vmem [shape: bf16[16,64], index: 7, kind: input, shape index: {}]
  %s8 = inlined_call_operand.vmem [shape: f32[1,64], index: 8, kind: input, shape index: {}]
  %s9 = inlined_call_operand.vmem [shape: bf16[8,64], index: 9, kind: output, shape index: {}]
  %s10 = sld [smem:[#allocation0]]
  $region46: #{_lambda_.68} parent=0
    _
  %s12 = ssub.s32 1, %s10
  %s13 = scalar_select 0, %s12, %s10
  // Predicated region
  $region2: #{_lambda_.68} parent=0 // pred_check
    _
  $region3: #{_lambda_.68} parent=0 // pred_check_branch
    %15 = sbr.rel (0) target = $region5
  $region4: #{_lambda_.68} parent=0 // pred_region
    _
  $region5: #{_lambda_.68} parent=0 // pred_fallthru
    _
  // Predicated region
  $region6: #{_lambda_.68} parent=0 // pred_check
    _
  $region7: #{_lambda_.68} parent=0 // pred_check_branch
    %17 = sbr.rel (0) target = $region9
  $region8: #{_lambda_.68} parent=0 // pred_region
    _
  $region9: #{_lambda_.68} parent=0 // pred_fallthru
    _
  // Predicated region
  $region10: #{_lambda_.68} parent=0 // pred_check
    _
  $region11: #{_lambda_.68} parent=0 // pred_check_branch
    %19 = sbr.rel (0) target = $region13
  $region12: #{_lambda_.68} parent=0 // pred_region
    _
  $region13: #{_lambda_.68} parent=0 // pred_fallthru
    _
  // Predicated region
  $region14: #{_lambda_.68} parent=0 // pred_check
    _
  $region15: #{_lambda_.68} parent=0 // pred_check_branch
    %21 = sbr.rel (0) target = $region17
  $region16: #{_lambda_.68} parent=0 // pred_region
    _
  $region17: #{_lambda_.68} parent=0 // pred_fallthru
    _
  // Predicated region
  $region18: #{_lambda_.68} parent=0 // pred_check
    _
  $region19: #{_lambda_.68} parent=0 // pred_check_branch
    %23 = sbr.rel (0) target = $region21
  $region20: #{_lambda_.68} parent=0 // pred_region
    _
  $region21: #{_lambda_.68} parent=0 // pred_fallthru
    _
  // Predicated region
  $region22: #{_lambda_.68} parent=0 // pred_check
    _
  $region23: #{_lambda_.68} parent=0 // pred_check_branch
    %25 = sbr.rel (0) target = $region25
  $region24: #{_lambda_.68} parent=0 // pred_region
    _
  $region25: #{_lambda_.68} parent=0 // pred_fallthru
    _
  // Predicated region
  $region26: #{_lambda_.68} parent=0 // pred_check
    _
  $region27: #{_lambda_.68} parent=0 // pred_check_branch
    %27 = sbr.rel (0) target = $region29
  $region28: #{_lambda_.68} parent=0 // pred_region
    _
  $region29: #{_lambda_.68} parent=0 // pred_fallthru
    _
  // Predicated region
  $region30: #{_lambda_.68} parent=0 // pred_check
    _
  $region31: #{_lambda_.68} parent=0 // pred_check_branch
    %29 = sbr.rel (0) target = $region33
  $region32: #{_lambda_.68} parent=0 // pred_region
    _
  $region33: #{_lambda_.68} parent=0 // pred_fallthru
    _
  // Predicated region
  $region34: #{_lambda_.68} parent=0 // pred_check
    _
  $region35: #{_lambda_.68} parent=0 // pred_check_branch
    %31 = sbr.rel (0) target = $region37
  $region36: #{_lambda_.68} parent=0 // pred_region
    _
  $region37: #{_lambda_.68} parent=0 // pred_fallthru
    _
  %v33 = vld [vmem:[%s0] sm:$0xf]
  %v34 = vld [vmem:[%s4] sm:$0xf]
  %v35 = vld [vmem:[%s4 + $0x4] sm:$0xf]
  %v36 = vld [vmem:[%s1] sm:$0xf]
  %v37 = vld [vmem:[%s5] sm:$0xf]
  %v38 = vld [vmem:[%s5 + $0x4] sm:$0xf]
  %v41 = vunpack.c.l.b16 %v37
  %v42 = vunpack.c.l.b16 %v38
  %v43 = vpack.c.b16 %v42, %v41
  %vm45 = vcmask 130048
  %v47 = vsel %vm45, %v36, 0
  %49 = vmatprep.subr.bf16.mxu0 0
  %50 = vmatpush1.bf16.msra.mxu0 0
  %51 = vmatprep.subr.bf16.mxu0 0
  %52 = vmatpush1.bf16.msra.mxu0 0
  %53 = vmatprep.subr.bf16.mxu0 0
  %54 = vmatpush1.bf16.msra.mxu0 0
  %55 = vmatprep.subr.bf16.mxu0 0
  %56 = vmatpush1.bf16.msra.mxu0 0
  %57 = vmatprep.subr.bf16.mxu0 0
  %58 = vmatpush1.bf16.msra.mxu0 0
  %59 = vmatprep.subr.bf16.mxu0 0
  %60 = vmatpush1.bf16.msra.mxu0 0
  %61 = vmatprep.subr.bf16.mxu0 0
  %62 = vmatpush1.bf16.msra.mxu0 0
  %63 = vmatprep.subr.bf16.mxu0 0
  %64 = vmatpush1.bf16.msra.mxu0 %v43
  %65 = vmatprep.subr.bf16.mxu0 0
  %66 = vmatpush2.bf16.msra.mxu0 0
  %67 = vmatprep.subr.bf16.mxu0 0
  %68 = vmatpush2.bf16.msra.mxu0 0
  %69 = vmatprep.subr.bf16.mxu0 0
  %70 = vmatpush2.bf16.msra.mxu0 0
  %71 = vmatprep.subr.bf16.mxu0 0
  %72 = vmatpush2.bf16.msra.mxu0 0
  %73 = vmatprep.subr.bf16.mxu0 0
  %74 = vmatpush2.bf16.msra.mxu0 0
  %75 = vmatprep.subr.bf16.mxu0 0
  %76 = vmatpush2.bf16.msra.mxu0 0
  %77 = vmatprep.subr.bf16.mxu0 0
  %78 = vmatpush2.bf16.msra.mxu0 0
  %79 = vmatprep.subr.bf16.mxu0 0
  %80 = vmatpush2.bf16.msra.mxu0 0
  %81 = vmatprep.mubr.bf16.mxu0 0
  %82 = vmatmul.mubr.bf16.gmra.mxu0 %v47
  %v83 = vpop.f32.mrf.mxu0
  %v84 = vadd.f32 0.0, %v83
  %v85 = vpop.f32.mrf.mxu0
  %v86 = vpop.f32.mrf.mxu0
  %v87 = vpop.f32.mrf.mxu0
  %88 = vdwg.mxu0
  %v91 = vunpack.c.l.b16 %v34
  %v92 = vunpack.c.l.b16 %v35
  %v93 = vpack.c.b16 %v92, %v91
  %v96 = vsel %vm45, %v33, 0
  %98 = vmatprep.subr.bf16.mxu0 0
  %99 = vmatpush1.bf16.msra.mxu0 0
  %100 = vmatprep.subr.bf16.mxu0 0
  %101 = vmatpush1.bf16.msra.mxu0 0
  %102 = vmatprep.subr.bf16.mxu0 0
  %103 = vmatpush1.bf16.msra.mxu0 0
  %104 = vmatprep.subr.bf16.mxu0 0
  %105 = vmatpush1.bf16.msra.mxu0 0
  %106 = vmatprep.subr.bf16.mxu0 0
  %107 = vmatpush1.bf16.msra.mxu0 0
  %108 = vmatprep.subr.bf16.mxu0 0
  %109 = vmatpush1.bf16.msra.mxu0 0
  %110 = vmatprep.subr.bf16.mxu0 0
  %111 = vmatpush1.bf16.msra.mxu0 0
  %112 = vmatprep.subr.bf16.mxu0 0
  %113 = vmatpush1.bf16.msra.mxu0 %v93
  %114 = vmatprep.subr.bf16.mxu0 0
  %115 = vmatpush2.bf16.msra.mxu0 0
  %116 = vmatprep.subr.bf16.mxu0 0
  %117 = vmatpush2.bf16.msra.mxu0 0
  %118 = vmatprep.subr.bf16.mxu0 0
  %119 = vmatpush2.bf16.msra.mxu0 0
  %120 = vmatprep.subr.bf16.mxu0 0
  %121 = vmatpush2.bf16.msra.mxu0 0
  %122 = vmatprep.subr.bf16.mxu0 0
  %123 = vmatpush2.bf16.msra.mxu0 0
  %124 = vmatprep.subr.bf16.mxu0 0
  %125 = vmatpush2.bf16.msra.mxu0 0
  %126 = vmatprep.subr.bf16.mxu0 0
  %127 = vmatpush2.bf16.msra.mxu0 0
  %128 = vmatprep.subr.bf16.mxu0 0
  %129 = vmatpush2.bf16.msra.mxu0 0
  %130 = vmatprep.mubr.bf16.mxu0 0
  %131 = vmatmul.mubr.bf16.gmra.mxu0 %v96
  %v132 = vpop.f32.mrf.mxu0
  %v133 = vadd.f32 %v84, %v132
  %v134 = vpop.f32.mrf.mxu0
  %v135 = vpop.f32.mrf.mxu0
  %v136 = vpop.f32.mrf.mxu0
  %137 = vdwg.mxu0
  %v138 = vld [vmem:[%s2] sm:$0xf]
  %v139 = vld [vmem:[%s6] sm:$0xf]
  %v140 = vld [vmem:[%s6 + $0x4] sm:$0xf]
  %v143 = vunpack.c.l.b16 %v139
  %v144 = vunpack.c.l.b16 %v140
  %v145 = vpack.c.b16 %v144, %v143
  %v148 = vsel %vm45, %v138, 0
  %150 = vmatprep.subr.bf16.mxu0 0
  %151 = vmatpush1.bf16.msra.mxu0 0
  %152 = vmatprep.subr.bf16.mxu0 0
  %153 = vmatpush1.bf16.msra.mxu0 0
  %154 = vmatprep.subr.bf16.mxu0 0
  %155 = vmatpush1.bf16.msra.mxu0 0
  %156 = vmatprep.subr.bf16.mxu0 0
  %157 = vmatpush1.bf16.msra.mxu0 0
  %158 = vmatprep.subr.bf16.mxu0 0
  %159 = vmatpush1.bf16.msra.mxu0 0
  %160 = vmatprep.subr.bf16.mxu0 0
  %161 = vmatpush1.bf16.msra.mxu0 0
  %162 = vmatprep.subr.bf16.mxu0 0
  %163 = vmatpush1.bf16.msra.mxu0 0
  %164 = vmatprep.subr.bf16.mxu0 0
  %165 = vmatpush1.bf16.msra.mxu0 %v145
  %166 = vmatprep.subr.bf16.mxu0 0
  %167 = vmatpush2.bf16.msra.mxu0 0
  %168 = vmatprep.subr.bf16.mxu0 0
  %169 = vmatpush2.bf16.msra.mxu0 0
  %170 = vmatprep.subr.bf16.mxu0 0
  %171 = vmatpush2.bf16.msra.mxu0 0
  %172 = vmatprep.subr.bf16.mxu0 0
  %173 = vmatpush2.bf16.msra.mxu0 0
  %174 = vmatprep.subr.bf16.mxu0 0
  %175 = vmatpush2.bf16.msra.mxu0 0
  %176 = vmatprep.subr.bf16.mxu0 0
  %177 = vmatpush2.bf16.msra.mxu0 0
  %178 = vmatprep.subr.bf16.mxu0 0
  %179 = vmatpush2.bf16.msra.mxu0 0
  %180 = vmatprep.subr.bf16.mxu0 0
  %181 = vmatpush2.bf16.msra.mxu0 0
  %182 = vmatprep.mubr.bf16.mxu0 0
  %183 = vmatmul.mubr.bf16.gmra.mxu0 %v148
  %v184 = vpop.f32.mrf.mxu0
  %v185 = vadd.f32 0.0, %v184
  %v186 = vpop.f32.mrf.mxu0
  %v187 = vpop.f32.mrf.mxu0
  %v188 = vpop.f32.mrf.mxu0
  %189 = vdwg.mxu0
  %v190 = vadd.f32 %v133, %v185
  %v191 = vld [vmem:[%s3] sm:$0xf]
  %v192 = vld [vmem:[%s7] sm:$0xf]
  %v193 = vld [vmem:[%s7 + $0x4] sm:$0xf]
  %v196 = vunpack.c.l.b16 %v192
  %v197 = vunpack.c.l.b16 %v193
  %v198 = vpack.c.b16 %v197, %v196
  %v201 = vsel %vm45, %v191, 0
  %203 = vmatprep.subr.bf16.mxu0 0
  %204 = vmatpush1.bf16.msra.mxu0 0
  %205 = vmatprep.subr.bf16.mxu0 0
  %206 = vmatpush1.bf16.msra.mxu0 0
  %207 = vmatprep.subr.bf16.mxu0 0
  %208 = vmatpush1.bf16.msra.mxu0 0
  %209 = vmatprep.subr.bf16.mxu0 0
  %210 = vmatpush1.bf16.msra.mxu0 0
  %211 = vmatprep.subr.bf16.mxu0 0
  %212 = vmatpush1.bf16.msra.mxu0 0
  %213 = vmatprep.subr.bf16.mxu0 0
  %214 = vmatpush1.bf16.msra.mxu0 0
  %215 = vmatprep.subr.bf16.mxu0 0
  %216 = vmatpush1.bf16.msra.mxu0 0
  %217 = vmatprep.subr.bf16.mxu0 0
  %218 = vmatpush1.bf16.msra.mxu0 %v198
  %219 = vmatprep.subr.bf16.mxu0 0
  %220 = vmatpush2.bf16.msra.mxu0 0
  %221 = vmatprep.subr.bf16.mxu0 0
  %222 = vmatpush2.bf16.msra.mxu0 0
  %223 = vmatprep.subr.bf16.mxu0 0
  %224 = vmatpush2.bf16.msra.mxu0 0
  %225 = vmatprep.subr.bf16.mxu0 0
  %226 = vmatpush2.bf16.msra.mxu0 0
  %227 = vmatprep.subr.bf16.mxu0 0
  %228 = vmatpush2.bf16.msra.mxu0 0
  %229 = vmatprep.subr.bf16.mxu0 0
  %230 = vmatpush2.bf16.msra.mxu0 0
  %231 = vmatprep.subr.bf16.mxu0 0
  %232 = vmatpush2.bf16.msra.mxu0 0
  %233 = vmatprep.subr.bf16.mxu0 0
  %234 = vmatpush2.bf16.msra.mxu0 0
  %235 = vmatprep.mubr.bf16.mxu0 0
  %236 = vmatmul.mubr.bf16.gmra.mxu0 %v201
  %v237 = vpop.f32.mrf.mxu0
  %v238 = vadd.f32 0.0, %v237
  %v239 = vpop.f32.mrf.mxu0
  %v240 = vpop.f32.mrf.mxu0
  %v241 = vpop.f32.mrf.mxu0
  %242 = vdwg.mxu0
  %v243 = vadd.f32 %v190, %v238
  %v244 = vld [vmem:[%s8] sm:$0x1]
  %v246 = vlaneseq
  %v247 = vshrl.u32 %v246, 7
  %v248 = vsub.s32 0, %v247
  %v249 = vrot.slane %v244, %v248
  %v251 = vadd.f32 %v243, %v249
  %v252 = vxor.u32 %v251, 2147483648
  %v253 = vmul.f32 %v252, 1.442695
  %v254 = vpow.pop %v253
  %v255 = vadd.f32 %v254, 1.0
  %v256 = vrcp.pop %v255
  %v257 = vmul.f32 1.0, %v256
  %v258 = vmul.f32 %v251, %v257
  %v259 = vpack.c.bf16 %v258, %v258
  %vm260 = vcmask 519168
  %261 = vst.msk [vmem:[%s9] sm:$0xf] %vm260, %v259
  // Predicated region
  $region38: #{_lambda_.68} parent=0 // pred_check
    _
  $region39: #{_lambda_.68} parent=0 // pred_check_branch
    %263 = sbr.rel (0) target = $region41
  $region40: #{_lambda_.68} parent=0 // pred_region
    _
  $region41: #{_lambda_.68} parent=0 // pred_fallthru
    _
  // Predicated region
  $region42: #{_lambda_.68} parent=0 // pred_check
    _
  $region43: #{_lambda_.68} parent=0 // pred_check_branch
    %265 = sbr.rel (0) target = $region45
  $region44: #{_lambda_.68} parent=0 // pred_region
    _
  $region45: #{_lambda_.68} parent=0 // pred_fallthru
    _

</llo_original>
